<compile_context>
chip_gen: v5e
topology: v5e:2x2
jax: 0.10.0
libtpu: 0.0.40
codegen_flags: <defaults>
</compile_context>

<pallas_src>
import math

import jax
import jax.numpy as jnp
from jax import lax
from jax.experimental import pallas as pl
from jax.experimental.pallas import tpu as pltpu

# ----------------------------- "cfg" constants ------------------------------
D_MODEL = 32
N_HEADS = 4
D_HEAD = D_MODEL // N_HEADS
N_LAYERS = 2
D_FF = 64
DROPOUT = 0.0            # dropout disabled -> deterministic forward
MAX_LEN = 64
SMOOTHING = 0.1
SRC_VOCAB = 16
TGT_VOCAB = 16
PAD_IDX = 1
BOS_IDX = 2
LN_EPS = 1e-5
NEG_INF = -1e30          # stands in for float('-inf') in the additive masks


# --------------------------- in-kernel math helpers --------------------------
def _erf(x):
    # Abramowitz & Stegun 7.1.26 rational approximation (max abs err ~1.5e-7),
    # i.e. numerically "exact" gelu in f32 without relying on lax.erf lowering.
    a1, a2, a3, a4, a5 = 0.254829592, -0.284496736, 1.421413741, -1.453152027, 1.061405429
    p = 0.3275911
    sgn = jnp.where(x < 0.0, -1.0, 1.0)
    ax = jnp.abs(x)
    t = 1.0 / (1.0 + p * ax)
    poly = ((((a5 * t + a4) * t + a3) * t + a2) * t + a1) * t
    return sgn * (1.0 - poly * jnp.exp(-ax * ax))


def _gelu(x):
    # torch F.gelu (erf-based, the nn.Transformer 'gelu' activation)
    return 0.5 * x * (1.0 + _erf(x * (1.0 / math.sqrt(2.0))))


def _layernorm(y, g, b):
    # torch nn.LayerNorm over the last dim; g/b are (1, D)
    mu = jnp.mean(y, axis=-1, keepdims=True)
    var = jnp.mean((y - mu) ** 2, axis=-1, keepdims=True)
    return (y - mu) * lax.rsqrt(var + LN_EPS) * g + b


def _attn_core(q, k, v, B, Lq, Lk, mask):
    """Multi-head scaled-dot attention on flattened rows.

    q: (B*Lq, D), k/v: (B*Lk, D), mask: additive f32 broadcastable to
    (B, Lq, Lk).  Returns the head-concatenated context, shape (B*Lq, D).
    Scores/softmax are batched over B (einsum), heads are a 4-way unroll.
    """
    scale = 1.0 / math.sqrt(D_HEAD)
    q3 = q.reshape(B, Lq, D_MODEL)
    k3 = k.reshape(B, Lk, D_MODEL)
    v3 = v.reshape(B, Lk, D_MODEL)
    outs = []
    for h in range(N_HEADS):
        lo, hi = h * D_HEAD, (h + 1) * D_HEAD
        s = jnp.einsum('bqd,bkd->bqk', q3[:, :, lo:hi], k3[:, :, lo:hi],
                       preferred_element_type=jnp.float32) * scale + mask
        s = s - jnp.max(s, axis=-1, keepdims=True)
        p = jnp.exp(s)
        p = p * pl.reciprocal(jnp.sum(p, axis=-1, keepdims=True), approx=True)
        outs.append(jnp.einsum('bqk,bkd->bqd', p, v3[:, :, lo:hi],
                               preferred_element_type=jnp.float32))
    return jnp.concatenate(outs, axis=-1).reshape(B * Lq, D_MODEL)


# ------------------------------ fused Pallas kernel ---------------------------
def _transformer_kernel(
        src_ref, tgt_ref, spad_ref, tpad_ref, tgt_ids_ref,
        # encoder
        e_qkv_w, e_qkv_b, e_out_w, e_out_b,
        e_ln1_g, e_ln1_b, e_ln2_g, e_ln2_b,
        e_ff1_w, e_ff1_b, e_ff2_w, e_ff2_b,
        e_nrm_g, e_nrm_b,
        # decoder
        d_sqkv_w, d_sqkv_b, d_sout_w, d_sout_b,
        d_cq_w, d_cq_b, d_ckv_w, d_ckv_b, d_cout_w, d_cout_b,
        d_ln1_g, d_ln1_b, d_ln2_g, d_ln2_b, d_ln3_g, d_ln3_b,
        d_ff1_w, d_ff1_b, d_ff2_w, d_ff2_b,
        d_nrm_g, d_nrm_b,
        # generator
        gen_w, gen_b,
        # outputs
        nw_ref, kl_ref):
    B, Ls, _ = src_ref.shape
    _, Lt, _ = tgt_ref.shape
    D = D_MODEL

    # ------------------------------- encoder --------------------------------
    x = src_ref[...].reshape(B * Ls, D)                   # batch folded into rows
    enc_mask = spad_ref[...]                              # (B, 1, Ls) additive
    for l in range(N_LAYERS):
        qkv = jnp.dot(x, e_qkv_w[l], preferred_element_type=jnp.float32) + e_qkv_b[l]
        a = _attn_core(qkv[:, :D], qkv[:, D:2 * D], qkv[:, 2 * D:], B, Ls, Ls, enc_mask)
        a = jnp.dot(a, e_out_w[l], preferred_element_type=jnp.float32) + e_out_b[l]
        x = _layernorm(x + a, e_ln1_g[l], e_ln1_b[l])
        h = _gelu(jnp.dot(x, e_ff1_w[l], preferred_element_type=jnp.float32) + e_ff1_b[l])
        h = jnp.dot(h, e_ff2_w[l], preferred_element_type=jnp.float32) + e_ff2_b[l]
        x = _layernorm(x + h, e_ln2_g[l], e_ln2_b[l])
    mem = _layernorm(x, e_nrm_g[...], e_nrm_b[...])       # (B*Ls, D)

    # ------------------------------- decoder --------------------------------
    y = tgt_ref[...].reshape(B * Lt, D)
    # causal ("generate_square_subsequent_mask") built in-kernel from 3-D iota
    row = lax.broadcasted_iota(jnp.int32, (1, Lt, Lt), 1)
    col = lax.broadcasted_iota(jnp.int32, (1, Lt, Lt), 2)
    causal = jnp.where(col > row, NEG_INF, 0.0).astype(jnp.float32)
    self_mask = causal + tpad_ref[...]                    # (B, Lt, Lt)
    cross_mask = spad_ref[...]                            # (B, 1, Ls)
    for l in range(N_LAYERS):
        qkv = jnp.dot(y, d_sqkv_w[l], preferred_element_type=jnp.float32) + d_sqkv_b[l]
        a = _attn_core(qkv[:, :D], qkv[:, D:2 * D], qkv[:, 2 * D:], B, Lt, Lt, self_mask)
        a = jnp.dot(a, d_sout_w[l], preferred_element_type=jnp.float32) + d_sout_b[l]
        y = _layernorm(y + a, d_ln1_g[l], d_ln1_b[l])

        q = jnp.dot(y, d_cq_w[l], preferred_element_type=jnp.float32) + d_cq_b[l]
        kv = jnp.dot(mem, d_ckv_w[l], preferred_element_type=jnp.float32) + d_ckv_b[l]
        a = _attn_core(q, kv[:, :D], kv[:, D:], B, Lt, Ls, cross_mask)
        a = jnp.dot(a, d_cout_w[l], preferred_element_type=jnp.float32) + d_cout_b[l]
        y = _layernorm(y + a, d_ln2_g[l], d_ln2_b[l])

        h = _gelu(jnp.dot(y, d_ff1_w[l], preferred_element_type=jnp.float32) + d_ff1_b[l])
        h = jnp.dot(h, d_ff2_w[l], preferred_element_type=jnp.float32) + d_ff2_b[l]
        y = _layernorm(y + h, d_ln3_g[l], d_ln3_b[l])
    dec = _layernorm(y, d_nrm_g[...], d_nrm_b[...])       # (B*Lt, D)

    # -------- generator (linear + log_softmax) + KL loss + greedy argmax -----
    V = gen_w.shape[-1]
    logits = jnp.dot(dec, gen_w[...], preferred_element_type=jnp.float32) + gen_b[...]
    m = jnp.max(logits, axis=-1, keepdims=True)
    z = logits - m
    lp = z - jnp.log(jnp.sum(jnp.exp(z), axis=-1, keepdims=True))    # (B*Lt, V)

    R = B * Lt
    cols_i = lax.broadcasted_iota(jnp.int32, (R, V), 1)
    cols_f = cols_i.astype(jnp.float32)
    # greedy next-word = first maximal index (matches torch.max / argmax)
    mx = jnp.max(lp, axis=-1, keepdims=True)
    nw = jnp.min(jnp.where(lp >= mx, cols_f, float(V)), axis=-1, keepdims=True)
    nw_ref[...] = nw.astype(jnp.int32)                               # (B*Lt, 1)

    # label-smoothed true distribution via one-hot compare (no scatter)
    tgt = tgt_ids_ref[...]                                           # (B*Lt, 1)
    conf = 1.0 - SMOOTHING
    smooth = SMOOTHING / (V - 2)
    td = jnp.where(cols_i == tgt, conf, smooth)
    td = jnp.where(cols_i == PAD_IDX, 0.0, td)
    td = jnp.where(tgt == PAD_IDX, 0.0, td)
    kl = jnp.where(td > 0.0,
                   td * (jnp.log(jnp.maximum(td, 1e-38)) - lp), 0.0)
    kl_ref[...] = jnp.sum(kl, axis=-1, keepdims=True)                # (B*Lt, 1)


# ------------------------------ kernel wrapper -------------------------------
def _run_transformer(src_x, tgt_x, src_pad, tgt_pad, tgt_ids, p):
    B, Ls, _ = src_x.shape
    _, Lt, _ = tgt_x.shape
    e, d = p["enc"], p["dec"]
    args = (src_x, tgt_x, src_pad, tgt_pad, tgt_ids,
            e["qkv_w"], e["qkv_b"], e["out_w"], e["out_b"],
            e["ln1_g"], e["ln1_b"], e["ln2_g"], e["ln2_b"],
            e["ff1_w"], e["ff1_b"], e["ff2_w"], e["ff2_b"],
            e["norm_g"], e["norm_b"],
            d["sqkv_w"], d["sqkv_b"], d["sout_w"], d["sout_b"],
            d["cq_w"], d["cq_b"], d["ckv_w"], d["ckv_b"], d["cout_w"], d["cout_b"],
            d["ln1_g"], d["ln1_b"], d["ln2_g"], d["ln2_b"], d["ln3_g"], d["ln3_b"],
            d["ff1_w"], d["ff1_b"], d["ff2_w"], d["ff2_b"],
            d["norm_g"], d["norm_b"],
            p["gen_w"], p["gen_b"])
    return pl.pallas_call(
        _transformer_kernel,
        in_specs=[pl.BlockSpec(memory_space=pltpu.MemorySpace.VMEM) for _ in args],
        out_specs=(pl.BlockSpec(memory_space=pltpu.MemorySpace.VMEM),
                   pl.BlockSpec(memory_space=pltpu.MemorySpace.VMEM)),
        out_shape=(jax.ShapeDtypeStruct((B * Lt, 1), jnp.int32),
                   jax.ShapeDtypeStruct((B * Lt, 1), jnp.float32)),
    )(*args)


# ------------------------------ forward (decode) -----------------------------
@jax.jit
def _decode_core(params, input_tensor, output_tensor):
    Ls, B = input_tensor.shape
    out_i = output_tensor[:-1, :]                     # (Lt, B) decoder input
    out_o = output_tensor[1:, :]                      # (Lt, B) loss target
    Lt = out_i.shape[0]

    # additive key-padding masks (0 / -inf), shape (B, 1, Lk)
    src_pad = jnp.where((input_tensor == PAD_IDX).T[:, None, :],
                        NEG_INF, 0.0).astype(jnp.float32)
    tgt_pad = jnp.where((out_i == PAD_IDX).T[:, None, :],
                        NEG_INF, 0.0).astype(jnp.float32)

    # Embeddings(): lut(x) * sqrt(d_model), + positional encoding (dropout=0)
    pe = params["pe"]
    src_x = (jnp.take(params["src_emb"], input_tensor.T, axis=0)
             * math.sqrt(D_MODEL) + pe[:Ls][None, :, :])      # (B, Ls, D)
    tgt_x = (jnp.take(params["tgt_emb"], out_i.T, axis=0)
             * math.sqrt(D_MODEL) + pe[:Lt][None, :, :])      # (B, Lt, D)

    tgt_ids = out_o.T.reshape(B * Lt, 1).astype(jnp.int32)    # rows b-major

    nw, kl_rows = _run_transformer(src_x, tgt_x, src_pad, tgt_pad, tgt_ids, params)
    loss = jnp.sum(kl_rows)                                   # KLDiv(reduction='sum')

    # greedy argmax accumulation, vectorized; reproduces the reference's
    # torch.cat(..., dim=1) growth exactly (ys ends up shape (1, Lt*B)).
    nw_t = nw.reshape(B, Lt).T                                # (Lt, B)
    ys = jnp.concatenate(
        [jnp.full((1, B), BOS_IDX, dtype=input_tensor.dtype),
         nw_t[:Lt - 1].astype(input_tensor.dtype).reshape(1, (Lt - 1) * B)],
        axis=1)
    norm = jnp.sum(out_o != PAD_IDX).astype(jnp.float32)
    return ys, loss, norm


def transformer_decode(params, input_tensor, output_tensor):
    """Training-time forward: Transformer.decode(...)."""
    ys, loss, norm = _decode_core(params, input_tensor, output_tensor)
    out_len = output_tensor.shape[0] - 1
    max_attention_indices = None
    return ys, max_attention_indices, loss, out_len, norm


# --------------------------- parameter construction --------------------------
def positional_encoding(max_len, d_model):
    position = jnp.arange(max_len, dtype=jnp.float32)[:, None]
    div_term = jnp.exp(
        jnp.arange(0, d_model, 2, dtype=jnp.float32) * (-math.log(10000.0) / d_model))
    pe = jnp.zeros((max_len, d_model), jnp.float32)
    pe = pe.at[:, 0::2].set(jnp.sin(position * div_term))
    pe = pe.at[:, 1::2].set(jnp.cos(position * div_term))
    return pe[:, None, :]                                     # (max_len, 1, d_model)


def init_params(key):
    """Random parameters laid out exactly like the torch module's tensors."""
    keys = iter(jax.random.split(key, 256))

    def w(shape, scale=0.05):
        return jax.random.normal(next(keys), shape, jnp.float32) * scale

    def mha_p():
        return {"in_w": w((3 * D_MODEL, D_MODEL)),
                "in_b": jnp.zeros((3 * D_MODEL,), jnp.float32),
                "out_w": w((D_MODEL, D_MODEL)),
                "out_b": jnp.zeros((D_MODEL,), jnp.float32)}

    def ln_p():
        return {"g": jnp.ones((D_MODEL,), jnp.float32),
                "b": jnp.zeros((D_MODEL,), jnp.float32)}

    enc_layers, dec_layers = [], []
    for _ in range(N_LAYERS):
        enc_layers.append({
            "self": mha_p(),
            "lin1_w": w((D_FF, D_MODEL)), "lin1_b": jnp.zeros((D_FF,), jnp.float32),
            "lin2_w": w((D_MODEL, D_FF)), "lin2_b": jnp.zeros((D_MODEL,), jnp.float32),
            "ln1": ln_p(), "ln2": ln_p()})
    for _ in range(N_LAYERS):
        dec_layers.append({
            "self": mha_p(), "cross": mha_p(),
            "lin1_w": w((D_FF, D_MODEL)), "lin1_b": jnp.zeros((D_FF,), jnp.float32),
            "lin2_w": w((D_MODEL, D_FF)), "lin2_b": jnp.zeros((D_MODEL,), jnp.float32),
            "ln1": ln_p(), "ln2": ln_p(), "ln3": ln_p()})
    return {
        "src_emb": w((SRC_VOCAB, D_MODEL), 1.0),
        "tgt_emb": w((TGT_VOCAB, D_MODEL), 1.0),
        "enc": enc_layers, "dec": dec_layers,
        "enc_norm": ln_p(), "dec_norm": ln_p(),
        "gen_w": w((TGT_VOCAB, D_MODEL)),
        "gen_b": jnp.zeros((TGT_VOCAB,), jnp.float32),
        "pe": positional_encoding(MAX_LEN, D_MODEL),
    }


def pack_params(raw):
    """One-time repack: pre-transposed, per-layer stacked, lane-dense weights.

    torch in_proj_weight rows are [0:D]=Q, [D:2D]=K, [2D:3D]=V, so x @ in_w.T
    gives the fused [Q|K|V] (rows, 3D) block the kernel slices per head.
    """
    D = D_MODEL

    def stk(layers, fn):
        return jnp.stack([fn(p) for p in layers])

    def ffn_ln(layers, ln_names):
        out = {
            "ff1_w": stk(layers, lambda p: p["lin1_w"].T),
            "ff1_b": stk(layers, lambda p: p["lin1_b"].reshape(1, D_FF)),
            "ff2_w": stk(layers, lambda p: p["lin2_w"].T),
            "ff2_b": stk(layers, lambda p: p["lin2_b"].reshape(1, D)),
        }
        for name in ln_names:
            out[name + "_g"] = stk(layers, lambda p, n=name: p[n]["g"].reshape(1, D))
            out[name + "_b"] = stk(layers, lambda p, n=name: p[n]["b"].reshape(1, D))
        return out

    enc = {
        "qkv_w": stk(raw["enc"], lambda p: p["self"]["in_w"].T),            # (NL, D, 3D)
        "qkv_b": stk(raw["enc"], lambda p: p["self"]["in_b"].reshape(1, 3 * D)),
        "out_w": stk(raw["enc"], lambda p: p["self"]["out_w"].T),           # (NL, D, D)
        "out_b": stk(raw["enc"], lambda p: p["self"]["out_b"].reshape(1, D)),
        "norm_g": raw["enc_norm"]["g"].reshape(1, D),
        "norm_b": raw["enc_norm"]["b"].reshape(1, D),
        **ffn_ln(raw["enc"], ("ln1", "ln2")),
    }
    dec = {
        "sqkv_w": stk(raw["dec"], lambda p: p["self"]["in_w"].T),           # (NL, D, 3D)
        "sqkv_b": stk(raw["dec"], lambda p: p["self"]["in_b"].reshape(1, 3 * D)),
        "sout_w": stk(raw["dec"], lambda p: p["self"]["out_w"].T),
        "sout_b": stk(raw["dec"], lambda p: p["self"]["out_b"].reshape(1, D)),
        "cq_w": stk(raw["dec"], lambda p: p["cross"]["in_w"][:D].T),        # (NL, D, D)
        "cq_b": stk(raw["dec"], lambda p: p["cross"]["in_b"][:D].reshape(1, D)),
        "ckv_w": stk(raw["dec"], lambda p: p["cross"]["in_w"][D:].T),       # (NL, D, 2D)
        "ckv_b": stk(raw["dec"], lambda p: p["cross"]["in_b"][D:].reshape(1, 2 * D)),
        "cout_w": stk(raw["dec"], lambda p: p["cross"]["out_w"].T),
        "cout_b": stk(raw["dec"], lambda p: p["cross"]["out_b"].reshape(1, D)),
        "norm_g": raw["dec_norm"]["g"].reshape(1, D),
        "norm_b": raw["dec_norm"]["b"].reshape(1, D),
        **ffn_ln(raw["dec"], ("ln1", "ln2", "ln3")),
    }
    return {
        "src_emb": raw["src_emb"], "tgt_emb": raw["tgt_emb"],
        "pe": raw["pe"][:, 0, :],                         # (max_len, d_model)
        "enc": enc, "dec": dec,
        "gen_w": raw["gen_w"].T,                          # (D, V)
        "gen_b": raw["gen_b"].reshape(1, TGT_VOCAB),
    }


# ------------------------------------ main -----------------------------------
if __name__ == "__main__":
    key = jax.random.PRNGKey(0)
    pkey, skey, tkey = jax.random.split(key, 3)
    params = pack_params(init_params(pkey))

    # seq lengths chosen so Ls and Lt(=Lt_tok-1) are multiples of 8 (aligned
    # sublane collapse of (B, L, D) -> (B*L, D) inside the fused kernel).
    Ls, Lt_tok, B = 8, 9, 2
    # tokens in [2, vocab): avoid pad(1) except where explicitly inserted
    src_tok = jax.random.randint(skey, (Ls, B), 2, SRC_VOCAB).astype(jnp.int32)
    tgt_tok = jax.random.randint(tkey, (Lt_tok, B), 2, TGT_VOCAB).astype(jnp.int32)
    src_tok = src_tok.at[-1, 0].set(PAD_IDX)     # exercise src key-padding mask
    tgt_tok = tgt_tok.at[0, :].set(BOS_IDX)      # BOS at start of target
    tgt_tok = tgt_tok.at[-2, 1].set(PAD_IDX)     # pad inside decoder input + loss
    tgt_tok = tgt_tok.at[-1, 1].set(PAD_IDX)     # pad in the loss target

    ys, max_attn, loss, out_len, norm = transformer_decode(params, src_tok, tgt_tok)
    jax.block_until_ready((ys, loss, norm))
    assert bool(jnp.isfinite(loss))
    print("KERNEL_OK")
</pallas_src>

<mosaic_0001>
module attributes {stable_mosaic.version = 11 : i64} {
  func.func @_transformer_kernel(%arg0: memref<2x8x32xf32, #tpu.memory_space<vmem>>, %arg1: memref<2x8x32xf32, #tpu.memory_space<vmem>>, %arg2: memref<2x1x8xf32, #tpu.memory_space<vmem>>, %arg3: memref<2x1x8xf32, #tpu.memory_space<vmem>>, %arg4: memref<16x1xi32, #tpu.memory_space<vmem>>, %arg5: memref<2x32x96xf32, #tpu.memory_space<vmem>>, %arg6: memref<2x1x96xf32, #tpu.memory_space<vmem>>, %arg7: memref<2x32x32xf32, #tpu.memory_space<vmem>>, %arg8: memref<2x1x32xf32, #tpu.memory_space<vmem>>, %arg9: memref<2x1x32xf32, #tpu.memory_space<vmem>>, %arg10: memref<2x1x32xf32, #tpu.memory_space<vmem>>, %arg11: memref<2x1x32xf32, #tpu.memory_space<vmem>>, %arg12: memref<2x1x32xf32, #tpu.memory_space<vmem>>, %arg13: memref<2x32x64xf32, #tpu.memory_space<vmem>>, %arg14: memref<2x1x64xf32, #tpu.memory_space<vmem>>, %arg15: memref<2x64x32xf32, #tpu.memory_space<vmem>>, %arg16: memref<2x1x32xf32, #tpu.memory_space<vmem>>, %arg17: memref<1x32xf32, #tpu.memory_space<vmem>>, %arg18: memref<1x32xf32, #tpu.memory_space<vmem>>, %arg19: memref<2x32x96xf32, #tpu.memory_space<vmem>>, %arg20: memref<2x1x96xf32, #tpu.memory_space<vmem>>, %arg21: memref<2x32x32xf32, #tpu.memory_space<vmem>>, %arg22: memref<2x1x32xf32, #tpu.memory_space<vmem>>, %arg23: memref<2x32x32xf32, #tpu.memory_space<vmem>>, %arg24: memref<2x1x32xf32, #tpu.memory_space<vmem>>, %arg25: memref<2x32x64xf32, #tpu.memory_space<vmem>>, %arg26: memref<2x1x64xf32, #tpu.memory_space<vmem>>, %arg27: memref<2x32x32xf32, #tpu.memory_space<vmem>>, %arg28: memref<2x1x32xf32, #tpu.memory_space<vmem>>, %arg29: memref<2x1x32xf32, #tpu.memory_space<vmem>>, %arg30: memref<2x1x32xf32, #tpu.memory_space<vmem>>, %arg31: memref<2x1x32xf32, #tpu.memory_space<vmem>>, %arg32: memref<2x1x32xf32, #tpu.memory_space<vmem>>, %arg33: memref<2x1x32xf32, #tpu.memory_space<vmem>>, %arg34: memref<2x1x32xf32, #tpu.memory_space<vmem>>, %arg35: memref<2x32x64xf32, #tpu.memory_space<vmem>>, %arg36: memref<2x1x64xf32, #tpu.memory_space<vmem>>, %arg37: memref<2x64x32xf32, #tpu.memory_space<vmem>>, %arg38: memref<2x1x32xf32, #tpu.memory_space<vmem>>, %arg39: memref<1x32xf32, #tpu.memory_space<vmem>>, %arg40: memref<1x32xf32, #tpu.memory_space<vmem>>, %arg41: memref<32x16xf32, #tpu.memory_space<vmem>>, %arg42: memref<1x16xf32, #tpu.memory_space<vmem>>, %arg43: memref<16x1xi32, #tpu.memory_space<vmem>>, %arg44: memref<16x1xf32, #tpu.memory_space<vmem>>) attributes {dimension_semantics = [], scalar_prefetch = 0 : i64, scratch_operands = 0 : i64, tpu.core_type = #tpu.core_type<tc>} {
    %c0 = arith.constant 0 : index
    %c0_0 = arith.constant 0 : index
    %c0_1 = arith.constant 0 : index
    %0 = vector.load %arg0[%c0, %c0_0, %c0_1] : memref<2x8x32xf32, #tpu.memory_space<vmem>>, vector<2x8x32xf32>
    %1 = vector.shape_cast %0 : vector<2x8x32xf32> to vector<16x32xf32>
    %c0_2 = arith.constant 0 : index
    %c0_3 = arith.constant 0 : index
    %c0_4 = arith.constant 0 : index
    %2 = vector.load %arg2[%c0_2, %c0_3, %c0_4] : memref<2x1x8xf32, #tpu.memory_space<vmem>>, vector<2x1x8xf32>
    %c0_5 = arith.constant 0 : index
    %c0_6 = arith.constant 0 : index
    %c0_7 = arith.constant 0 : index
    %3 = vector.load %arg5[%c0_5, %c0_6, %c0_7] : memref<2x32x96xf32, #tpu.memory_space<vmem>>, vector<1x32x96xf32>
    %4 = vector.shape_cast %3 : vector<1x32x96xf32> to vector<32x96xf32>
    %cst = arith.constant dense<0.000000e+00> : vector<16x96xf32>
    %5 = tpu.matmul %1, %4, %cst {dimension_numbers = #tpu.dot_dimension_numbers<[1], [0], [0], [1], [0, 0, 1, 1], [], []>} : vector<16x32xf32>, vector<32x96xf32>, vector<16x96xf32> -> vector<16x96xf32>
    %c0_8 = arith.constant 0 : index
    %c0_9 = arith.constant 0 : index
    %c0_10 = arith.constant 0 : index
    %6 = vector.load %arg6[%c0_8, %c0_9, %c0_10] : memref<2x1x96xf32, #tpu.memory_space<vmem>>, vector<1x1x96xf32>
    %7 = vector.shape_cast %6 : vector<1x1x96xf32> to vector<1x96xf32>
    %8 = vector.broadcast %7 : vector<1x96xf32> to vector<16x96xf32>
    %9 = arith.addf %5, %8 : vector<16x96xf32>
    %10 = vector.extract_strided_slice %9 {offsets = [0, 0], sizes = [16, 32], strides = [1, 1]} : vector<16x96xf32> to vector<16x32xf32>
    %11 = vector.extract_strided_slice %9 {offsets = [0, 32], sizes = [16, 32], strides = [1, 1]} : vector<16x96xf32> to vector<16x32xf32>
    %12 = vector.extract_strided_slice %9 {offsets = [0, 64], sizes = [16, 32], strides = [1, 1]} : vector<16x96xf32> to vector<16x32xf32>
    %13 = vector.shape_cast %10 : vector<16x32xf32> to vector<2x8x32xf32>
    %14 = vector.shape_cast %11 : vector<16x32xf32> to vector<2x8x32xf32>
    %15 = vector.shape_cast %12 : vector<16x32xf32> to vector<2x8x32xf32>
    %16 = vector.extract_strided_slice %13 {offsets = [0, 0, 0], sizes = [2, 8, 8], strides = [1, 1, 1]} : vector<2x8x32xf32> to vector<2x8x8xf32>
    %17 = vector.extract_strided_slice %14 {offsets = [0, 0, 0], sizes = [2, 8, 8], strides = [1, 1, 1]} : vector<2x8x32xf32> to vector<2x8x8xf32>
    "tpu.trace_start"() <{level = 10 : i32, message = "bqd,bkd->bqk"}> : () -> ()
    %cst_11 = arith.constant dense<0.000000e+00> : vector<2x8x8xf32>
    %18 = tpu.matmul %16, %17, %cst_11 {dimension_numbers = #tpu.dot_dimension_numbers<[2], [2], [1], [1], [0, 0, 0, 1, 1, 1], [0], [0]>} : vector<2x8x8xf32>, vector<2x8x8xf32>, vector<2x8x8xf32> -> vector<2x8x8xf32>
    "tpu.trace_stop"() : () -> ()
    %cst_12 = arith.constant 0.353553385 : f32
    %19 = vector.broadcast %cst_12 : f32 to vector<2x8x8xf32>
    %20 = arith.mulf %18, %19 : vector<2x8x8xf32>
    %21 = vector.broadcast %2 : vector<2x1x8xf32> to vector<2x8x8xf32>
    %22 = arith.addf %20, %21 : vector<2x8x8xf32>
    %cst_13 = arith.constant dense<0xFF800000> : vector<2x8xf32>
    %23 = vector.multi_reduction <maximumf>, %22, %cst_13 [2] : vector<2x8x8xf32> to vector<2x8xf32>
    %24 = vector.shape_cast %23 : vector<2x8xf32> to vector<2x8x1xf32>
    %25 = vector.broadcast %24 : vector<2x8x1xf32> to vector<2x8x8xf32>
    %26 = arith.subf %22, %25 : vector<2x8x8xf32>
    %27 = math.exp %26 : vector<2x8x8xf32>
    %cst_14 = arith.constant dense<0.000000e+00> : vector<2x8xf32>
    %28 = vector.multi_reduction <add>, %27, %cst_14 [2] : vector<2x8x8xf32> to vector<2x8xf32>
    %29 = vector.shape_cast %28 : vector<2x8xf32> to vector<2x8x1xf32>
    %30 = tpu.reciprocal %29 {approx = true} : vector<2x8x1xf32> -> vector<2x8x1xf32>
    %31 = vector.broadcast %30 : vector<2x8x1xf32> to vector<2x8x8xf32>
    %32 = arith.mulf %27, %31 : vector<2x8x8xf32>
    %33 = vector.extract_strided_slice %15 {offsets = [0, 0, 0], sizes = [2, 8, 8], strides = [1, 1, 1]} : vector<2x8x32xf32> to vector<2x8x8xf32>
    "tpu.trace_start"() <{level = 10 : i32, message = "bqk,bkd->bqd"}> : () -> ()
    %cst_15 = arith.constant dense<0.000000e+00> : vector<2x8x8xf32>
    %34 = tpu.matmul %32, %33, %cst_15 {dimension_numbers = #tpu.dot_dimension_numbers<[2], [1], [1], [2], [0, 0, 0, 1, 1, 2], [0], [0]>} : vector<2x8x8xf32>, vector<2x8x8xf32>, vector<2x8x8xf32> -> vector<2x8x8xf32>
    "tpu.trace_stop"() : () -> ()
    %35 = vector.extract_strided_slice %13 {offsets = [0, 0, 8], sizes = [2, 8, 8], strides = [1, 1, 1]} : vector<2x8x32xf32> to vector<2x8x8xf32>
    %36 = vector.extract_strided_slice %14 {offsets = [0, 0, 8], sizes = [2, 8, 8], strides = [1, 1, 1]} : vector<2x8x32xf32> to vector<2x8x8xf32>
    "tpu.trace_start"() <{level = 10 : i32, message = "bqd,bkd->bqk"}> : () -> ()
    %cst_16 = arith.constant dense<0.000000e+00> : vector<2x8x8xf32>
    %37 = tpu.matmul %35, %36, %cst_16 {dimension_numbers = #tpu.dot_dimension_numbers<[2], [2], [1], [1], [0, 0, 0, 1, 1, 1], [0], [0]>} : vector<2x8x8xf32>, vector<2x8x8xf32>, vector<2x8x8xf32> -> vector<2x8x8xf32>
    "tpu.trace_stop"() : () -> ()
    %cst_17 = arith.constant 0.353553385 : f32
    %38 = vector.broadcast %cst_17 : f32 to vector<2x8x8xf32>
    %39 = arith.mulf %37, %38 : vector<2x8x8xf32>
    %40 = vector.broadcast %2 : vector<2x1x8xf32> to vector<2x8x8xf32>
    %41 = arith.addf %39, %40 : vector<2x8x8xf32>
    %cst_18 = arith.constant dense<0xFF800000> : vector<2x8xf32>
    %42 = vector.multi_reduction <maximumf>, %41, %cst_18 [2] : vector<2x8x8xf32> to vector<2x8xf32>
    %43 = vector.shape_cast %42 : vector<2x8xf32> to vector<2x8x1xf32>
    %44 = vector.broadcast %43 : vector<2x8x1xf32> to vector<2x8x8xf32>
    %45 = arith.subf %41, %44 : vector<2x8x8xf32>
    %46 = math.exp %45 : vector<2x8x8xf32>
    %cst_19 = arith.constant dense<0.000000e+00> : vector<2x8xf32>
    %47 = vector.multi_reduction <add>, %46, %cst_19 [2] : vector<2x8x8xf32> to vector<2x8xf32>
    %48 = vector.shape_cast %47 : vector<2x8xf32> to vector<2x8x1xf32>
    %49 = tpu.reciprocal %48 {approx = true} : vector<2x8x1xf32> -> vector<2x8x1xf32>
    %50 = vector.broadcast %49 : vector<2x8x1xf32> to vector<2x8x8xf32>
    %51 = arith.mulf %46, %50 : vector<2x8x8xf32>
    %52 = vector.extract_strided_slice %15 {offsets = [0, 0, 8], sizes = [2, 8, 8], strides = [1, 1, 1]} : vector<2x8x32xf32> to vector<2x8x8xf32>
    "tpu.trace_start"() <{level = 10 : i32, message = "bqk,bkd->bqd"}> : () -> ()
    %cst_20 = arith.constant dense<0.000000e+00> : vector<2x8x8xf32>
    %53 = tpu.matmul %51, %52, %cst_20 {dimension_numbers = #tpu.dot_dimension_numbers<[2], [1], [1], [2], [0, 0, 0, 1, 1, 2], [0], [0]>} : vector<2x8x8xf32>, vector<2x8x8xf32>, vector<2x8x8xf32> -> vector<2x8x8xf32>
    "tpu.trace_stop"() : () -> ()
    %54 = vector.extract_strided_slice %13 {offsets = [0, 0, 16], sizes = [2, 8, 8], strides = [1, 1, 1]} : vector<2x8x32xf32> to vector<2x8x8xf32>
    %55 = vector.extract_strided_slice %14 {offsets = [0, 0, 16], sizes = [2, 8, 8], strides = [1, 1, 1]} : vector<2x8x32xf32> to vector<2x8x8xf32>
    "tpu.trace_start"() <{level = 10 : i32, message = "bqd,bkd->bqk"}> : () -> ()
    %cst_21 = arith.constant dense<0.000000e+00> : vector<2x8x8xf32>
    %56 = tpu.matmul %54, %55, %cst_21 {dimension_numbers = #tpu.dot_dimension_numbers<[2], [2], [1], [1], [0, 0, 0, 1, 1, 1], [0], [0]>} : vector<2x8x8xf32>, vector<2x8x8xf32>, vector<2x8x8xf32> -> vector<2x8x8xf32>
    "tpu.trace_stop"() : () -> ()
    %cst_22 = arith.constant 0.353553385 : f32
    %57 = vector.broadcast %cst_22 : f32 to vector<2x8x8xf32>
    %58 = arith.mulf %56, %57 : vector<2x8x8xf32>
    %59 = vector.broadcast %2 : vector<2x1x8xf32> to vector<2x8x8xf32>
    %60 = arith.addf %58, %59 : vector<2x8x8xf32>
    %cst_23 = arith.constant dense<0xFF800000> : vector<2x8xf32>
    %61 = vector.multi_reduction <maximumf>, %60, %cst_23 [2] : vector<2x8x8xf32> to vector<2x8xf32>
    %62 = vector.shape_cast %61 : vector<2x8xf32> to vector<2x8x1xf32>
    %63 = vector.broadcast %62 : vector<2x8x1xf32> to vector<2x8x8xf32>
    %64 = arith.subf %60, %63 : vector<2x8x8xf32>
    %65 = math.exp %64 : vector<2x8x8xf32>
    %cst_24 = arith.constant dense<0.000000e+00> : vector<2x8xf32>
    %66 = vector.multi_reduction <add>, %65, %cst_24 [2] : vector<2x8x8xf32> to vector<2x8xf32>
    %67 = vector.shape_cast %66 : vector<2x8xf32> to vector<2x8x1xf32>
    %68 = tpu.reciprocal %67 {approx = true} : vector<2x8x1xf32> -> vector<2x8x1xf32>
    %69 = vector.broadcast %68 : vector<2x8x1xf32> to vector<2x8x8xf32>
    %70 = arith.mulf %65, %69 : vector<2x8x8xf32>
    %71 = vector.extract_strided_slice %15 {offsets = [0, 0, 16], sizes = [2, 8, 8], strides = [1, 1, 1]} : vector<2x8x32xf32> to vector<2x8x8xf32>
    "tpu.trace_start"() <{level = 10 : i32, message = "bqk,bkd->bqd"}> : () -> ()
    %cst_25 = arith.constant dense<0.000000e+00> : vector<2x8x8xf32>
    %72 = tpu.matmul %70, %71, %cst_25 {dimension_numbers = #tpu.dot_dimension_numbers<[2], [1], [1], [2], [0, 0, 0, 1, 1, 2], [0], [0]>} : vector<2x8x8xf32>, vector<2x8x8xf32>, vector<2x8x8xf32> -> vector<2x8x8xf32>
    "tpu.trace_stop"() : () -> ()
    %73 = vector.extract_strided_slice %13 {offsets = [0, 0, 24], sizes = [2, 8, 8], strides = [1, 1, 1]} : vector<2x8x32xf32> to vector<2x8x8xf32>
    %74 = vector.extract_strided_slice %14 {offsets = [0, 0, 24], sizes = [2, 8, 8], strides = [1, 1, 1]} : vector<2x8x32xf32> to vector<2x8x8xf32>
    "tpu.trace_start"() <{level = 10 : i32, message = "bqd,bkd->bqk"}> : () -> ()
    %cst_26 = arith.constant dense<0.000000e+00> : vector<2x8x8xf32>
    %75 = tpu.matmul %73, %74, %cst_26 {dimension_numbers = #tpu.dot_dimension_numbers<[2], [2], [1], [1], [0, 0, 0, 1, 1, 1], [0], [0]>} : vector<2x8x8xf32>, vector<2x8x8xf32>, vector<2x8x8xf32> -> vector<2x8x8xf32>
    "tpu.trace_stop"() : () -> ()
    %cst_27 = arith.constant 0.353553385 : f32
    %76 = vector.broadcast %cst_27 : f32 to vector<2x8x8xf32>
    %77 = arith.mulf %75, %76 : vector<2x8x8xf32>
    %78 = vector.broadcast %2 : vector<2x1x8xf32> to vector<2x8x8xf32>
    %79 = arith.addf %77, %78 : vector<2x8x8xf32>
    %cst_28 = arith.constant dense<0xFF800000> : vector<2x8xf32>
    %80 = vector.multi_reduction <maximumf>, %79, %cst_28 [2] : vector<2x8x8xf32> to vector<2x8xf32>
    %81 = vector.shape_cast %80 : vector<2x8xf32> to vector<2x8x1xf32>
    %82 = vector.broadcast %81 : vector<2x8x1xf32> to vector<2x8x8xf32>
    %83 = arith.subf %79, %82 : vector<2x8x8xf32>
    %84 = math.exp %83 : vector<2x8x8xf32>
    %cst_29 = arith.constant dense<0.000000e+00> : vector<2x8xf32>
    %85 = vector.multi_reduction <add>, %84, %cst_29 [2] : vector<2x8x8xf32> to vector<2x8xf32>
    %86 = vector.shape_cast %85 : vector<2x8xf32> to vector<2x8x1xf32>
    %87 = tpu.reciprocal %86 {approx = true} : vector<2x8x1xf32> -> vector<2x8x1xf32>
    %88 = vector.broadcast %87 : vector<2x8x1xf32> to vector<2x8x8xf32>
    %89 = arith.mulf %84, %88 : vector<2x8x8xf32>
    %90 = vector.extract_strided_slice %15 {offsets = [0, 0, 24], sizes = [2, 8, 8], strides = [1, 1, 1]} : vector<2x8x32xf32> to vector<2x8x8xf32>
    "tpu.trace_start"() <{level = 10 : i32, message = "bqk,bkd->bqd"}> : () -> ()
    %cst_30 = arith.constant dense<0.000000e+00> : vector<2x8x8xf32>
    %91 = tpu.matmul %89, %90, %cst_30 {dimension_numbers = #tpu.dot_dimension_numbers<[2], [1], [1], [2], [0, 0, 0, 1, 1, 2], [0], [0]>} : vector<2x8x8xf32>, vector<2x8x8xf32>, vector<2x8x8xf32> -> vector<2x8x8xf32>
    "tpu.trace_stop"() : () -> ()
    %92 = tpu.concatenate %34, %53, %72, %91 in 2 : vector<2x8x8xf32>, vector<2x8x8xf32>, vector<2x8x8xf32>, vector<2x8x8xf32> -> vector<2x8x32xf32>
    %93 = vector.shape_cast %92 : vector<2x8x32xf32> to vector<16x32xf32>
    %c0_31 = arith.constant 0 : index
    %c0_32 = arith.constant 0 : index
    %c0_33 = arith.constant 0 : index
    %94 = vector.load %arg7[%c0_31, %c0_32, %c0_33] : memref<2x32x32xf32, #tpu.memory_space<vmem>>, vector<1x32x32xf32>
    %95 = vector.shape_cast %94 : vector<1x32x32xf32> to vector<32x32xf32>
    %cst_34 = arith.constant dense<0.000000e+00> : vector<16x32xf32>
    %96 = tpu.matmul %93, %95, %cst_34 {dimension_numbers = #tpu.dot_dimension_numbers<[1], [0], [0], [1], [0, 0, 1, 1], [], []>} : vector<16x32xf32>, vector<32x32xf32>, vector<16x32xf32> -> vector<16x32xf32>
    %c0_35 = arith.constant 0 : index
    %c0_36 = arith.constant 0 : index
    %c0_37 = arith.constant 0 : index
    %97 = vector.load %arg8[%c0_35, %c0_36, %c0_37] : memref<2x1x32xf32, #tpu.memory_space<vmem>>, vector<1x1x32xf32>
    %98 = vector.shape_cast %97 : vector<1x1x32xf32> to vector<1x32xf32>
    %99 = vector.broadcast %98 : vector<1x32xf32> to vector<16x32xf32>
    %100 = arith.addf %96, %99 : vector<16x32xf32>
    %101 = arith.addf %1, %100 : vector<16x32xf32>
    %c0_38 = arith.constant 0 : index
    %c0_39 = arith.constant 0 : index
    %c0_40 = arith.constant 0 : index
    %102 = vector.load %arg9[%c0_38, %c0_39, %c0_40] : memref<2x1x32xf32, #tpu.memory_space<vmem>>, vector<1x1x32xf32>
    %103 = vector.shape_cast %102 : vector<1x1x32xf32> to vector<1x32xf32>
    %c0_41 = arith.constant 0 : index
    %c0_42 = arith.constant 0 : index
    %c0_43 = arith.constant 0 : index
    %104 = vector.load %arg10[%c0_41, %c0_42, %c0_43] : memref<2x1x32xf32, #tpu.memory_space<vmem>>, vector<1x1x32xf32>
    %105 = vector.shape_cast %104 : vector<1x1x32xf32> to vector<1x32xf32>
    %cst_44 = arith.constant dense<0.000000e+00> : vector<16xf32>
    %106 = vector.multi_reduction <add>, %101, %cst_44 [1] : vector<16x32xf32> to vector<16xf32>
    %107 = vector.shape_cast %106 : vector<16xf32> to vector<16x1xf32>
    %cst_45 = arith.constant 3.200000e+01 : f32
    %108 = vector.broadcast %cst_45 : f32 to vector<16x1xf32>
    %109 = arith.divf %107, %108 : vector<16x1xf32>
    %110 = vector.broadcast %109 : vector<16x1xf32> to vector<16x32xf32>
    %111 = arith.subf %101, %110 : vector<16x32xf32>
    %112 = arith.mulf %111, %111 : vector<16x32xf32>
    %cst_46 = arith.constant dense<0.000000e+00> : vector<16xf32>
    %113 = vector.multi_reduction <add>, %112, %cst_46 [1] : vector<16x32xf32> to vector<16xf32>
    %114 = vector.shape_cast %113 : vector<16xf32> to vector<16x1xf32>
    %cst_47 = arith.constant 3.200000e+01 : f32
    %115 = vector.broadcast %cst_47 : f32 to vector<16x1xf32>
    %116 = arith.divf %114, %115 : vector<16x1xf32>
    %117 = vector.broadcast %109 : vector<16x1xf32> to vector<16x32xf32>
    %118 = arith.subf %101, %117 : vector<16x32xf32>
    %cst_48 = arith.constant 9.99999974E-6 : f32
    %119 = vector.broadcast %cst_48 : f32 to vector<16x1xf32>
    %120 = arith.addf %116, %119 : vector<16x1xf32>
    %121 = math.rsqrt %120 : vector<16x1xf32>
    %122 = vector.broadcast %121 : vector<16x1xf32> to vector<16x32xf32>
    %123 = arith.mulf %118, %122 : vector<16x32xf32>
    %124 = vector.broadcast %103 : vector<1x32xf32> to vector<16x32xf32>
    %125 = arith.mulf %123, %124 : vector<16x32xf32>
    %126 = vector.broadcast %105 : vector<1x32xf32> to vector<16x32xf32>
    %127 = arith.addf %125, %126 : vector<16x32xf32>
    %c0_49 = arith.constant 0 : index
    %c0_50 = arith.constant 0 : index
    %c0_51 = arith.constant 0 : index
    %128 = vector.load %arg13[%c0_49, %c0_50, %c0_51] : memref<2x32x64xf32, #tpu.memory_space<vmem>>, vector<1x32x64xf32>
    %129 = vector.shape_cast %128 : vector<1x32x64xf32> to vector<32x64xf32>
    %cst_52 = arith.constant dense<0.000000e+00> : vector<16x64xf32>
    %130 = tpu.matmul %127, %129, %cst_52 {dimension_numbers = #tpu.dot_dimension_numbers<[1], [0], [0], [1], [0, 0, 1, 1], [], []>} : vector<16x32xf32>, vector<32x64xf32>, vector<16x64xf32> -> vector<16x64xf32>
    %c0_53 = arith.constant 0 : index
    %c0_54 = arith.constant 0 : index
    %c0_55 = arith.constant 0 : index
    %131 = vector.load %arg14[%c0_53, %c0_54, %c0_55] : memref<2x1x64xf32, #tpu.memory_space<vmem>>, vector<1x1x64xf32>
    %132 = vector.shape_cast %131 : vector<1x1x64xf32> to vector<1x64xf32>
    %133 = vector.broadcast %132 : vector<1x64xf32> to vector<16x64xf32>
    %134 = arith.addf %130, %133 : vector<16x64xf32>
    %cst_56 = arith.constant 5.000000e-01 : f32
    %135 = vector.broadcast %cst_56 : f32 to vector<16x64xf32>
    %136 = arith.mulf %135, %134 : vector<16x64xf32>
    %cst_57 = arith.constant 0.707106769 : f32
    %137 = vector.broadcast %cst_57 : f32 to vector<16x64xf32>
    %138 = arith.mulf %134, %137 : vector<16x64xf32>
    %cst_58 = arith.constant 0.000000e+00 : f32
    %139 = vector.broadcast %cst_58 : f32 to vector<16x64xf32>
    %140 = arith.cmpf olt, %138, %139 : vector<16x64xf32>
    %cst_59 = arith.constant -1.000000e+00 : f32
    %cst_60 = arith.constant 1.000000e+00 : f32
    %141 = vector.broadcast %cst_59 : f32 to vector<16x64xf32>
    %142 = vector.broadcast %cst_60 : f32 to vector<16x64xf32>
    %143 = arith.select %140, %141, %142 : vector<16x64xi1>, vector<16x64xf32>
    %144 = math.absf %138 : vector<16x64xf32>
    %cst_61 = arith.constant 0.327591091 : f32
    %145 = vector.broadcast %cst_61 : f32 to vector<16x64xf32>
    %146 = arith.mulf %145, %144 : vector<16x64xf32>
    %cst_62 = arith.constant 1.000000e+00 : f32
    %147 = vector.broadcast %cst_62 : f32 to vector<16x64xf32>
    %148 = arith.addf %147, %146 : vector<16x64xf32>
    %cst_63 = arith.constant 1.000000e+00 : f32
    %149 = vector.broadcast %cst_63 : f32 to vector<16x64xf32>
    %150 = arith.divf %149, %148 : vector<16x64xf32>
    %cst_64 = arith.constant 1.06140542 : f32
    %151 = vector.broadcast %cst_64 : f32 to vector<16x64xf32>
    %152 = arith.mulf %151, %150 : vector<16x64xf32>
    %cst_65 = arith.constant -1.45315206 : f32
    %153 = vector.broadcast %cst_65 : f32 to vector<16x64xf32>
    %154 = arith.addf %152, %153 : vector<16x64xf32>
    %155 = arith.mulf %154, %150 : vector<16x64xf32>
    %cst_66 = arith.constant 1.42141378 : f32
    %156 = vector.broadcast %cst_66 : f32 to vector<16x64xf32>
    %157 = arith.addf %155, %156 : vector<16x64xf32>
    %158 = arith.mulf %157, %150 : vector<16x64xf32>
    %cst_67 = arith.constant -0.284496725 : f32
    %159 = vector.broadcast %cst_67 : f32 to vector<16x64xf32>
    %160 = arith.addf %158, %159 : vector<16x64xf32>
    %161 = arith.mulf %160, %150 : vector<16x64xf32>
    %cst_68 = arith.constant 0.254829586 : f32
    %162 = vector.broadcast %cst_68 : f32 to vector<16x64xf32>
    %163 = arith.addf %161, %162 : vector<16x64xf32>
    %164 = arith.mulf %163, %150 : vector<16x64xf32>
    %cst_69 = arith.constant 0.000000e+00 : f32
    %165 = vector.broadcast %cst_69 : f32 to vector<16x64xf32>
    %166 = arith.subf %165, %144 : vector<16x64xf32>
    %167 = arith.mulf %166, %144 : vector<16x64xf32>
    %168 = math.exp %167 : vector<16x64xf32>
    %169 = arith.mulf %164, %168 : vector<16x64xf32>
    %cst_70 = arith.constant 1.000000e+00 : f32
    %170 = vector.broadcast %cst_70 : f32 to vector<16x64xf32>
    %171 = arith.subf %170, %169 : vector<16x64xf32>
    %172 = arith.mulf %143, %171 : vector<16x64xf32>
    %cst_71 = arith.constant 1.000000e+00 : f32
    %173 = vector.broadcast %cst_71 : f32 to vector<16x64xf32>
    %174 = arith.addf %173, %172 : vector<16x64xf32>
    %175 = arith.mulf %136, %174 : vector<16x64xf32>
    %c0_72 = arith.constant 0 : index
    %c0_73 = arith.constant 0 : index
    %c0_74 = arith.constant 0 : index
    %176 = vector.load %arg15[%c0_72, %c0_73, %c0_74] : memref<2x64x32xf32, #tpu.memory_space<vmem>>, vector<1x64x32xf32>
    %177 = vector.shape_cast %176 : vector<1x64x32xf32> to vector<64x32xf32>
    %cst_75 = arith.constant dense<0.000000e+00> : vector<16x32xf32>
    %178 = tpu.matmul %175, %177, %cst_75 {dimension_numbers = #tpu.dot_dimension_numbers<[1], [0], [0], [1], [0, 0, 1, 1], [], []>} : vector<16x64xf32>, vector<64x32xf32>, vector<16x32xf32> -> vector<16x32xf32>
    %c0_76 = arith.constant 0 : index
    %c0_77 = arith.constant 0 : index
    %c0_78 = arith.constant 0 : index
    %179 = vector.load %arg16[%c0_76, %c0_77, %c0_78] : memref<2x1x32xf32, #tpu.memory_space<vmem>>, vector<1x1x32xf32>
    %180 = vector.shape_cast %179 : vector<1x1x32xf32> to vector<1x32xf32>
    %181 = vector.broadcast %180 : vector<1x32xf32> to vector<16x32xf32>
    %182 = arith.addf %178, %181 : vector<16x32xf32>
    %183 = arith.addf %127, %182 : vector<16x32xf32>
    %c0_79 = arith.constant 0 : index
    %c0_80 = arith.constant 0 : index
    %c0_81 = arith.constant 0 : index
    %184 = vector.load %arg11[%c0_79, %c0_80, %c0_81] : memref<2x1x32xf32, #tpu.memory_space<vmem>>, vector<1x1x32xf32>
    %185 = vector.shape_cast %184 : vector<1x1x32xf32> to vector<1x32xf32>
    %c0_82 = arith.constant 0 : index
    %c0_83 = arith.constant 0 : index
    %c0_84 = arith.constant 0 : index
    %186 = vector.load %arg12[%c0_82, %c0_83, %c0_84] : memref<2x1x32xf32, #tpu.memory_space<vmem>>, vector<1x1x32xf32>
    %187 = vector.shape_cast %186 : vector<1x1x32xf32> to vector<1x32xf32>
    %cst_85 = arith.constant dense<0.000000e+00> : vector<16xf32>
    %188 = vector.multi_reduction <add>, %183, %cst_85 [1] : vector<16x32xf32> to vector<16xf32>
    %189 = vector.shape_cast %188 : vector<16xf32> to vector<16x1xf32>
    %cst_86 = arith.constant 3.200000e+01 : f32
    %190 = vector.broadcast %cst_86 : f32 to vector<16x1xf32>
    %191 = arith.divf %189, %190 : vector<16x1xf32>
    %192 = vector.broadcast %191 : vector<16x1xf32> to vector<16x32xf32>
    %193 = arith.subf %183, %192 : vector<16x32xf32>
    %194 = arith.mulf %193, %193 : vector<16x32xf32>
    %cst_87 = arith.constant dense<0.000000e+00> : vector<16xf32>
    %195 = vector.multi_reduction <add>, %194, %cst_87 [1] : vector<16x32xf32> to vector<16xf32>
    %196 = vector.shape_cast %195 : vector<16xf32> to vector<16x1xf32>
    %cst_88 = arith.constant 3.200000e+01 : f32
    %197 = vector.broadcast %cst_88 : f32 to vector<16x1xf32>
    %198 = arith.divf %196, %197 : vector<16x1xf32>
    %199 = vector.broadcast %191 : vector<16x1xf32> to vector<16x32xf32>
    %200 = arith.subf %183, %199 : vector<16x32xf32>
    %cst_89 = arith.constant 9.99999974E-6 : f32
    %201 = vector.broadcast %cst_89 : f32 to vector<16x1xf32>
    %202 = arith.addf %198, %201 : vector<16x1xf32>
    %203 = math.rsqrt %202 : vector<16x1xf32>
    %204 = vector.broadcast %203 : vector<16x1xf32> to vector<16x32xf32>
    %205 = arith.mulf %200, %204 : vector<16x32xf32>
    %206 = vector.broadcast %185 : vector<1x32xf32> to vector<16x32xf32>
    %207 = arith.mulf %205, %206 : vector<16x32xf32>
    %208 = vector.broadcast %187 : vector<1x32xf32> to vector<16x32xf32>
    %209 = arith.addf %207, %208 : vector<16x32xf32>
    %c1 = arith.constant 1 : index
    %c0_90 = arith.constant 0 : index
    %c0_91 = arith.constant 0 : index
    %210 = vector.load %arg5[%c1, %c0_90, %c0_91] : memref<2x32x96xf32, #tpu.memory_space<vmem>>, vector<1x32x96xf32>
    %211 = vector.shape_cast %210 : vector<1x32x96xf32> to vector<32x96xf32>
    %cst_92 = arith.constant dense<0.000000e+00> : vector<16x96xf32>
    %212 = tpu.matmul %209, %211, %cst_92 {dimension_numbers = #tpu.dot_dimension_numbers<[1], [0], [0], [1], [0, 0, 1, 1], [], []>} : vector<16x32xf32>, vector<32x96xf32>, vector<16x96xf32> -> vector<16x96xf32>
    %c1_93 = arith.constant 1 : index
    %c0_94 = arith.constant 0 : index
    %c0_95 = arith.constant 0 : index
    %213 = vector.load %arg6[%c1_93, %c0_94, %c0_95] : memref<2x1x96xf32, #tpu.memory_space<vmem>>, vector<1x1x96xf32>
    %214 = vector.shape_cast %213 : vector<1x1x96xf32> to vector<1x96xf32>
    %215 = vector.broadcast %214 : vector<1x96xf32> to vector<16x96xf32>
    %216 = arith.addf %212, %215 : vector<16x96xf32>
    %217 = vector.extract_strided_slice %216 {offsets = [0, 0], sizes = [16, 32], strides = [1, 1]} : vector<16x96xf32> to vector<16x32xf32>
    %218 = vector.extract_strided_slice %216 {offsets = [0, 32], sizes = [16, 32], strides = [1, 1]} : vector<16x96xf32> to vector<16x32xf32>
    %219 = vector.extract_strided_slice %216 {offsets = [0, 64], sizes = [16, 32], strides = [1, 1]} : vector<16x96xf32> to vector<16x32xf32>
    %220 = vector.shape_cast %217 : vector<16x32xf32> to vector<2x8x32xf32>
    %221 = vector.shape_cast %218 : vector<16x32xf32> to vector<2x8x32xf32>
    %222 = vector.shape_cast %219 : vector<16x32xf32> to vector<2x8x32xf32>
    %223 = vector.extract_strided_slice %220 {offsets = [0, 0, 0], sizes = [2, 8, 8], strides = [1, 1, 1]} : vector<2x8x32xf32> to vector<2x8x8xf32>
    %224 = vector.extract_strided_slice %221 {offsets = [0, 0, 0], sizes = [2, 8, 8], strides = [1, 1, 1]} : vector<2x8x32xf32> to vector<2x8x8xf32>
    "tpu.trace_start"() <{level = 10 : i32, message = "bqd,bkd->bqk"}> : () -> ()
    %cst_96 = arith.constant dense<0.000000e+00> : vector<2x8x8xf32>
    %225 = tpu.matmul %223, %224, %cst_96 {dimension_numbers = #tpu.dot_dimension_numbers<[2], [2], [1], [1], [0, 0, 0, 1, 1, 1], [0], [0]>} : vector<2x8x8xf32>, vector<2x8x8xf32>, vector<2x8x8xf32> -> vector<2x8x8xf32>
    "tpu.trace_stop"() : () -> ()
    %cst_97 = arith.constant 0.353553385 : f32
    %226 = vector.broadcast %cst_97 : f32 to vector<2x8x8xf32>
    %227 = arith.mulf %225, %226 : vector<2x8x8xf32>
    %228 = vector.broadcast %2 : vector<2x1x8xf32> to vector<2x8x8xf32>
    %229 = arith.addf %227, %228 : vector<2x8x8xf32>
    %cst_98 = arith.constant dense<0xFF800000> : vector<2x8xf32>
    %230 = vector.multi_reduction <maximumf>, %229, %cst_98 [2] : vector<2x8x8xf32> to vector<2x8xf32>
    %231 = vector.shape_cast %230 : vector<2x8xf32> to vector<2x8x1xf32>
    %232 = vector.broadcast %231 : vector<2x8x1xf32> to vector<2x8x8xf32>
    %233 = arith.subf %229, %232 : vector<2x8x8xf32>
    %234 = math.exp %233 : vector<2x8x8xf32>
    %cst_99 = arith.constant dense<0.000000e+00> : vector<2x8xf32>
    %235 = vector.multi_reduction <add>, %234, %cst_99 [2] : vector<2x8x8xf32> to vector<2x8xf32>
    %236 = vector.shape_cast %235 : vector<2x8xf32> to vector<2x8x1xf32>
    %237 = tpu.reciprocal %236 {approx = true} : vector<2x8x1xf32> -> vector<2x8x1xf32>
    %238 = vector.broadcast %237 : vector<2x8x1xf32> to vector<2x8x8xf32>
    %239 = arith.mulf %234, %238 : vector<2x8x8xf32>
    %240 = vector.extract_strided_slice %222 {offsets = [0, 0, 0], sizes = [2, 8, 8], strides = [1, 1, 1]} : vector<2x8x32xf32> to vector<2x8x8xf32>
    "tpu.trace_start"() <{level = 10 : i32, message = "bqk,bkd->bqd"}> : () -> ()
    %cst_100 = arith.constant dense<0.000000e+00> : vector<2x8x8xf32>
    %241 = tpu.matmul %239, %240, %cst_100 {dimension_numbers = #tpu.dot_dimension_numbers<[2], [1], [1], [2], [0, 0, 0, 1, 1, 2], [0], [0]>} : vector<2x8x8xf32>, vector<2x8x8xf32>, vector<2x8x8xf32> -> vector<2x8x8xf32>
    "tpu.trace_stop"() : () -> ()
    %242 = vector.extract_strided_slice %220 {offsets = [0, 0, 8], sizes = [2, 8, 8], strides = [1, 1, 1]} : vector<2x8x32xf32> to vector<2x8x8xf32>
    %243 = vector.extract_strided_slice %221 {offsets = [0, 0, 8], sizes = [2, 8, 8], strides = [1, 1, 1]} : vector<2x8x32xf32> to vector<2x8x8xf32>
    "tpu.trace_start"() <{level = 10 : i32, message = "bqd,bkd->bqk"}> : () -> ()
    %cst_101 = arith.constant dense<0.000000e+00> : vector<2x8x8xf32>
    %244 = tpu.matmul %242, %243, %cst_101 {dimension_numbers = #tpu.dot_dimension_numbers<[2], [2], [1], [1], [0, 0, 0, 1, 1, 1], [0], [0]>} : vector<2x8x8xf32>, vector<2x8x8xf32>, vector<2x8x8xf32> -> vector<2x8x8xf32>
    "tpu.trace_stop"() : () -> ()
    %cst_102 = arith.constant 0.353553385 : f32
    %245 = vector.broadcast %cst_102 : f32 to vector<2x8x8xf32>
    %246 = arith.mulf %244, %245 : vector<2x8x8xf32>
    %247 = vector.broadcast %2 : vector<2x1x8xf32> to vector<2x8x8xf32>
    %248 = arith.addf %246, %247 : vector<2x8x8xf32>
    %cst_103 = arith.constant dense<0xFF800000> : vector<2x8xf32>
    %249 = vector.multi_reduction <maximumf>, %248, %cst_103 [2] : vector<2x8x8xf32> to vector<2x8xf32>
    %250 = vector.shape_cast %249 : vector<2x8xf32> to vector<2x8x1xf32>
    %251 = vector.broadcast %250 : vector<2x8x1xf32> to vector<2x8x8xf32>
    %252 = arith.subf %248, %251 : vector<2x8x8xf32>
    %253 = math.exp %252 : vector<2x8x8xf32>
    %cst_104 = arith.constant dense<0.000000e+00> : vector<2x8xf32>
    %254 = vector.multi_reduction <add>, %253, %cst_104 [2] : vector<2x8x8xf32> to vector<2x8xf32>
    %255 = vector.shape_cast %254 : vector<2x8xf32> to vector<2x8x1xf32>
    %256 = tpu.reciprocal %255 {approx = true} : vector<2x8x1xf32> -> vector<2x8x1xf32>
    %257 = vector.broadcast %256 : vector<2x8x1xf32> to vector<2x8x8xf32>
    %258 = arith.mulf %253, %257 : vector<2x8x8xf32>
    %259 = vector.extract_strided_slice %222 {offsets = [0, 0, 8], sizes = [2, 8, 8], strides = [1, 1, 1]} : vector<2x8x32xf32> to vector<2x8x8xf32>
    "tpu.trace_start"() <{level = 10 : i32, message = "bqk,bkd->bqd"}> : () -> ()
    %cst_105 = arith.constant dense<0.000000e+00> : vector<2x8x8xf32>
    %260 = tpu.matmul %258, %259, %cst_105 {dimension_numbers = #tpu.dot_dimension_numbers<[2], [1], [1], [2], [0, 0, 0, 1, 1, 2], [0], [0]>} : vector<2x8x8xf32>, vector<2x8x8xf32>, vector<2x8x8xf32> -> vector<2x8x8xf32>
    "tpu.trace_stop"() : () -> ()
    %261 = vector.extract_strided_slice %220 {offsets = [0, 0, 16], sizes = [2, 8, 8], strides = [1, 1, 1]} : vector<2x8x32xf32> to vector<2x8x8xf32>
    %262 = vector.extract_strided_slice %221 {offsets = [0, 0, 16], sizes = [2, 8, 8], strides = [1, 1, 1]} : vector<2x8x32xf32> to vector<2x8x8xf32>
    "tpu.trace_start"() <{level = 10 : i32, message = "bqd,bkd->bqk"}> : () -> ()
    %cst_106 = arith.constant dense<0.000000e+00> : vector<2x8x8xf32>
    %263 = tpu.matmul %261, %262, %cst_106 {dimension_numbers = #tpu.dot_dimension_numbers<[2], [2], [1], [1], [0, 0, 0, 1, 1, 1], [0], [0]>} : vector<2x8x8xf32>, vector<2x8x8xf32>, vector<2x8x8xf32> -> vector<2x8x8xf32>
    "tpu.trace_stop"() : () -> ()
    %cst_107 = arith.constant 0.353553385 : f32
    %264 = vector.broadcast %cst_107 : f32 to vector<2x8x8xf32>
    %265 = arith.mulf %263, %264 : vector<2x8x8xf32>
    %266 = vector.broadcast %2 : vector<2x1x8xf32> to vector<2x8x8xf32>
    %267 = arith.addf %265, %266 : vector<2x8x8xf32>
    %cst_108 = arith.constant dense<0xFF800000> : vector<2x8xf32>
    %268 = vector.multi_reduction <maximumf>, %267, %cst_108 [2] : vector<2x8x8xf32> to vector<2x8xf32>
    %269 = vector.shape_cast %268 : vector<2x8xf32> to vector<2x8x1xf32>
    %270 = vector.broadcast %269 : vector<2x8x1xf32> to vector<2x8x8xf32>
    %271 = arith.subf %267, %270 : vector<2x8x8xf32>
    %272 = math.exp %271 : vector<2x8x8xf32>
    %cst_109 = arith.constant dense<0.000000e+00> : vector<2x8xf32>
    %273 = vector.multi_reduction <add>, %272, %cst_109 [2] : vector<2x8x8xf32> to vector<2x8xf32>
    %274 = vector.shape_cast %273 : vector<2x8xf32> to vector<2x8x1xf32>
    %275 = tpu.reciprocal %274 {approx = true} : vector<2x8x1xf32> -> vector<2x8x1xf32>
    %276 = vector.broadcast %275 : vector<2x8x1xf32> to vector<2x8x8xf32>
    %277 = arith.mulf %272, %276 : vector<2x8x8xf32>
    %278 = vector.extract_strided_slice %222 {offsets = [0, 0, 16], sizes = [2, 8, 8], strides = [1, 1, 1]} : vector<2x8x32xf32> to vector<2x8x8xf32>
    "tpu.trace_start"() <{level = 10 : i32, message = "bqk,bkd->bqd"}> : () -> ()
    %cst_110 = arith.constant dense<0.000000e+00> : vector<2x8x8xf32>
    %279 = tpu.matmul %277, %278, %cst_110 {dimension_numbers = #tpu.dot_dimension_numbers<[2], [1], [1], [2], [0, 0, 0, 1, 1, 2], [0], [0]>} : vector<2x8x8xf32>, vector<2x8x8xf32>, vector<2x8x8xf32> -> vector<2x8x8xf32>
    "tpu.trace_stop"() : () -> ()
    %280 = vector.extract_strided_slice %220 {offsets = [0, 0, 24], sizes = [2, 8, 8], strides = [1, 1, 1]} : vector<2x8x32xf32> to vector<2x8x8xf32>
    %281 = vector.extract_strided_slice %221 {offsets = [0, 0, 24], sizes = [2, 8, 8], strides = [1, 1, 1]} : vector<2x8x32xf32> to vector<2x8x8xf32>
    "tpu.trace_start"() <{level = 10 : i32, message = "bqd,bkd->bqk"}> : () -> ()
    %cst_111 = arith.constant dense<0.000000e+00> : vector<2x8x8xf32>
    %282 = tpu.matmul %280, %281, %cst_111 {dimension_numbers = #tpu.dot_dimension_numbers<[2], [2], [1], [1], [0, 0, 0, 1, 1, 1], [0], [0]>} : vector<2x8x8xf32>, vector<2x8x8xf32>, vector<2x8x8xf32> -> vector<2x8x8xf32>
    "tpu.trace_stop"() : () -> ()
    %cst_112 = arith.constant 0.353553385 : f32
    %283 = vector.broadcast %cst_112 : f32 to vector<2x8x8xf32>
    %284 = arith.mulf %282, %283 : vector<2x8x8xf32>
    %285 = vector.broadcast %2 : vector<2x1x8xf32> to vector<2x8x8xf32>
    %286 = arith.addf %284, %285 : vector<2x8x8xf32>
    %cst_113 = arith.constant dense<0xFF800000> : vector<2x8xf32>
    %287 = vector.multi_reduction <maximumf>, %286, %cst_113 [2] : vector<2x8x8xf32> to vector<2x8xf32>
    %288 = vector.shape_cast %287 : vector<2x8xf32> to vector<2x8x1xf32>
    %289 = vector.broadcast %288 : vector<2x8x1xf32> to vector<2x8x8xf32>
    %290 = arith.subf %286, %289 : vector<2x8x8xf32>
    %291 = math.exp %290 : vector<2x8x8xf32>
    %cst_114 = arith.constant dense<0.000000e+00> : vector<2x8xf32>
    %292 = vector.multi_reduction <add>, %291, %cst_114 [2] : vector<2x8x8xf32> to vector<2x8xf32>
    %293 = vector.shape_cast %292 : vector<2x8xf32> to vector<2x8x1xf32>
    %294 = tpu.reciprocal %293 {approx = true} : vector<2x8x1xf32> -> vector<2x8x1xf32>
    %295 = vector.broadcast %294 : vector<2x8x1xf32> to vector<2x8x8xf32>
    %296 = arith.mulf %291, %295 : vector<2x8x8xf32>
    %297 = vector.extract_strided_slice %222 {offsets = [0, 0, 24], sizes = [2, 8, 8], strides = [1, 1, 1]} : vector<2x8x32xf32> to vector<2x8x8xf32>
    "tpu.trace_start"() <{level = 10 : i32, message = "bqk,bkd->bqd"}> : () -> ()
    %cst_115 = arith.constant dense<0.000000e+00> : vector<2x8x8xf32>
    %298 = tpu.matmul %296, %297, %cst_115 {dimension_numbers = #tpu.dot_dimension_numbers<[2], [1], [1], [2], [0, 0, 0, 1, 1, 2], [0], [0]>} : vector<2x8x8xf32>, vector<2x8x8xf32>, vector<2x8x8xf32> -> vector<2x8x8xf32>
    "tpu.trace_stop"() : () -> ()
    %299 = tpu.concatenate %241, %260, %279, %298 in 2 : vector<2x8x8xf32>, vector<2x8x8xf32>, vector<2x8x8xf32>, vector<2x8x8xf32> -> vector<2x8x32xf32>
    %300 = vector.shape_cast %299 : vector<2x8x32xf32> to vector<16x32xf32>
    %c1_116 = arith.constant 1 : index
    %c0_117 = arith.constant 0 : index
    %c0_118 = arith.constant 0 : index
    %301 = vector.load %arg7[%c1_116, %c0_117, %c0_118] : memref<2x32x32xf32, #tpu.memory_space<vmem>>, vector<1x32x32xf32>
    %302 = vector.shape_cast %301 : vector<1x32x32xf32> to vector<32x32xf32>
    %cst_119 = arith.constant dense<0.000000e+00> : vector<16x32xf32>
    %303 = tpu.matmul %300, %302, %cst_119 {dimension_numbers = #tpu.dot_dimension_numbers<[1], [0], [0], [1], [0, 0, 1, 1], [], []>} : vector<16x32xf32>, vector<32x32xf32>, vector<16x32xf32> -> vector<16x32xf32>
    %c1_120 = arith.constant 1 : index
    %c0_121 = arith.constant 0 : index
    %c0_122 = arith.constant 0 : index
    %304 = vector.load %arg8[%c1_120, %c0_121, %c0_122] : memref<2x1x32xf32, #tpu.memory_space<vmem>>, vector<1x1x32xf32>
    %305 = vector.shape_cast %304 : vector<1x1x32xf32> to vector<1x32xf32>
    %306 = vector.broadcast %305 : vector<1x32xf32> to vector<16x32xf32>
    %307 = arith.addf %303, %306 : vector<16x32xf32>
    %308 = arith.addf %209, %307 : vector<16x32xf32>
    %c1_123 = arith.constant 1 : index
    %c0_124 = arith.constant 0 : index
    %c0_125 = arith.constant 0 : index
    %309 = vector.load %arg9[%c1_123, %c0_124, %c0_125] : memref<2x1x32xf32, #tpu.memory_space<vmem>>, vector<1x1x32xf32>
    %310 = vector.shape_cast %309 : vector<1x1x32xf32> to vector<1x32xf32>
    %c1_126 = arith.constant 1 : index
    %c0_127 = arith.constant 0 : index
    %c0_128 = arith.constant 0 : index
    %311 = vector.load %arg10[%c1_126, %c0_127, %c0_128] : memref<2x1x32xf32, #tpu.memory_space<vmem>>, vector<1x1x32xf32>
    %312 = vector.shape_cast %311 : vector<1x1x32xf32> to vector<1x32xf32>
    %cst_129 = arith.constant dense<0.000000e+00> : vector<16xf32>
    %313 = vector.multi_reduction <add>, %308, %cst_129 [1] : vector<16x32xf32> to vector<16xf32>
    %314 = vector.shape_cast %313 : vector<16xf32> to vector<16x1xf32>
    %cst_130 = arith.constant 3.200000e+01 : f32
    %315 = vector.broadcast %cst_130 : f32 to vector<16x1xf32>
    %316 = arith.divf %314, %315 : vector<16x1xf32>
    %317 = vector.broadcast %316 : vector<16x1xf32> to vector<16x32xf32>
    %318 = arith.subf %308, %317 : vector<16x32xf32>
    %319 = arith.mulf %318, %318 : vector<16x32xf32>
    %cst_131 = arith.constant dense<0.000000e+00> : vector<16xf32>
    %320 = vector.multi_reduction <add>, %319, %cst_131 [1] : vector<16x32xf32> to vector<16xf32>
    %321 = vector.shape_cast %320 : vector<16xf32> to vector<16x1xf32>
    %cst_132 = arith.constant 3.200000e+01 : f32
    %322 = vector.broadcast %cst_132 : f32 to vector<16x1xf32>
    %323 = arith.divf %321, %322 : vector<16x1xf32>
    %324 = vector.broadcast %316 : vector<16x1xf32> to vector<16x32xf32>
    %325 = arith.subf %308, %324 : vector<16x32xf32>
    %cst_133 = arith.constant 9.99999974E-6 : f32
    %326 = vector.broadcast %cst_133 : f32 to vector<16x1xf32>
    %327 = arith.addf %323, %326 : vector<16x1xf32>
    %328 = math.rsqrt %327 : vector<16x1xf32>
    %329 = vector.broadcast %328 : vector<16x1xf32> to vector<16x32xf32>
    %330 = arith.mulf %325, %329 : vector<16x32xf32>
    %331 = vector.broadcast %310 : vector<1x32xf32> to vector<16x32xf32>
    %332 = arith.mulf %330, %331 : vector<16x32xf32>
    %333 = vector.broadcast %312 : vector<1x32xf32> to vector<16x32xf32>
    %334 = arith.addf %332, %333 : vector<16x32xf32>
    %c1_134 = arith.constant 1 : index
    %c0_135 = arith.constant 0 : index
    %c0_136 = arith.constant 0 : index
    %335 = vector.load %arg13[%c1_134, %c0_135, %c0_136] : memref<2x32x64xf32, #tpu.memory_space<vmem>>, vector<1x32x64xf32>
    %336 = vector.shape_cast %335 : vector<1x32x64xf32> to vector<32x64xf32>
    %cst_137 = arith.constant dense<0.000000e+00> : vector<16x64xf32>
    %337 = tpu.matmul %334, %336, %cst_137 {dimension_numbers = #tpu.dot_dimension_numbers<[1], [0], [0], [1], [0, 0, 1, 1], [], []>} : vector<16x32xf32>, vector<32x64xf32>, vector<16x64xf32> -> vector<16x64xf32>
    %c1_138 = arith.constant 1 : index
    %c0_139 = arith.constant 0 : index
    %c0_140 = arith.constant 0 : index
    %338 = vector.load %arg14[%c1_138, %c0_139, %c0_140] : memref<2x1x64xf32, #tpu.memory_space<vmem>>, vector<1x1x64xf32>
    %339 = vector.shape_cast %338 : vector<1x1x64xf32> to vector<1x64xf32>
    %340 = vector.broadcast %339 : vector<1x64xf32> to vector<16x64xf32>
    %341 = arith.addf %337, %340 : vector<16x64xf32>
    %cst_141 = arith.constant 5.000000e-01 : f32
    %342 = vector.broadcast %cst_141 : f32 to vector<16x64xf32>
    %343 = arith.mulf %342, %341 : vector<16x64xf32>
    %cst_142 = arith.constant 0.707106769 : f32
    %344 = vector.broadcast %cst_142 : f32 to vector<16x64xf32>
    %345 = arith.mulf %341, %344 : vector<16x64xf32>
    %cst_143 = arith.constant 0.000000e+00 : f32
    %346 = vector.broadcast %cst_143 : f32 to vector<16x64xf32>
    %347 = arith.cmpf olt, %345, %346 : vector<16x64xf32>
    %cst_144 = arith.constant -1.000000e+00 : f32
    %cst_145 = arith.constant 1.000000e+00 : f32
    %348 = vector.broadcast %cst_144 : f32 to vector<16x64xf32>
    %349 = vector.broadcast %cst_145 : f32 to vector<16x64xf32>
    %350 = arith.select %347, %348, %349 : vector<16x64xi1>, vector<16x64xf32>
    %351 = math.absf %345 : vector<16x64xf32>
    %cst_146 = arith.constant 0.327591091 : f32
    %352 = vector.broadcast %cst_146 : f32 to vector<16x64xf32>
    %353 = arith.mulf %352, %351 : vector<16x64xf32>
    %cst_147 = arith.constant 1.000000e+00 : f32
    %354 = vector.broadcast %cst_147 : f32 to vector<16x64xf32>
    %355 = arith.addf %354, %353 : vector<16x64xf32>
    %cst_148 = arith.constant 1.000000e+00 : f32
    %356 = vector.broadcast %cst_148 : f32 to vector<16x64xf32>
    %357 = arith.divf %356, %355 : vector<16x64xf32>
    %cst_149 = arith.constant 1.06140542 : f32
    %358 = vector.broadcast %cst_149 : f32 to vector<16x64xf32>
    %359 = arith.mulf %358, %357 : vector<16x64xf32>
    %cst_150 = arith.constant -1.45315206 : f32
    %360 = vector.broadcast %cst_150 : f32 to vector<16x64xf32>
    %361 = arith.addf %359, %360 : vector<16x64xf32>
    %362 = arith.mulf %361, %357 : vector<16x64xf32>
    %cst_151 = arith.constant 1.42141378 : f32
    %363 = vector.broadcast %cst_151 : f32 to vector<16x64xf32>
    %364 = arith.addf %362, %363 : vector<16x64xf32>
    %365 = arith.mulf %364, %357 : vector<16x64xf32>
    %cst_152 = arith.constant -0.284496725 : f32
    %366 = vector.broadcast %cst_152 : f32 to vector<16x64xf32>
    %367 = arith.addf %365, %366 : vector<16x64xf32>
    %368 = arith.mulf %367, %357 : vector<16x64xf32>
    %cst_153 = arith.constant 0.254829586 : f32
    %369 = vector.broadcast %cst_153 : f32 to vector<16x64xf32>
    %370 = arith.addf %368, %369 : vector<16x64xf32>
    %371 = arith.mulf %370, %357 : vector<16x64xf32>
    %cst_154 = arith.constant 0.000000e+00 : f32
    %372 = vector.broadcast %cst_154 : f32 to vector<16x64xf32>
    %373 = arith.subf %372, %351 : vector<16x64xf32>
    %374 = arith.mulf %373, %351 : vector<16x64xf32>
    %375 = math.exp %374 : vector<16x64xf32>
    %376 = arith.mulf %371, %375 : vector<16x64xf32>
    %cst_155 = arith.constant 1.000000e+00 : f32
    %377 = vector.broadcast %cst_155 : f32 to vector<16x64xf32>
    %378 = arith.subf %377, %376 : vector<16x64xf32>
    %379 = arith.mulf %350, %378 : vector<16x64xf32>
    %cst_156 = arith.constant 1.000000e+00 : f32
    %380 = vector.broadcast %cst_156 : f32 to vector<16x64xf32>
    %381 = arith.addf %380, %379 : vector<16x64xf32>
    %382 = arith.mulf %343, %381 : vector<16x64xf32>
    %c1_157 = arith.constant 1 : index
    %c0_158 = arith.constant 0 : index
    %c0_159 = arith.constant 0 : index
    %383 = vector.load %arg15[%c1_157, %c0_158, %c0_159] : memref<2x64x32xf32, #tpu.memory_space<vmem>>, vector<1x64x32xf32>
    %384 = vector.shape_cast %383 : vector<1x64x32xf32> to vector<64x32xf32>
    %cst_160 = arith.constant dense<0.000000e+00> : vector<16x32xf32>
    %385 = tpu.matmul %382, %384, %cst_160 {dimension_numbers = #tpu.dot_dimension_numbers<[1], [0], [0], [1], [0, 0, 1, 1], [], []>} : vector<16x64xf32>, vector<64x32xf32>, vector<16x32xf32> -> vector<16x32xf32>
    %c1_161 = arith.constant 1 : index
    %c0_162 = arith.constant 0 : index
    %c0_163 = arith.constant 0 : index
    %386 = vector.load %arg16[%c1_161, %c0_162, %c0_163] : memref<2x1x32xf32, #tpu.memory_space<vmem>>, vector<1x1x32xf32>
    %387 = vector.shape_cast %386 : vector<1x1x32xf32> to vector<1x32xf32>
    %388 = vector.broadcast %387 : vector<1x32xf32> to vector<16x32xf32>
    %389 = arith.addf %385, %388 : vector<16x32xf32>
    %390 = arith.addf %334, %389 : vector<16x32xf32>
    %c1_164 = arith.constant 1 : index
    %c0_165 = arith.constant 0 : index
    %c0_166 = arith.constant 0 : index
    %391 = vector.load %arg11[%c1_164, %c0_165, %c0_166] : memref<2x1x32xf32, #tpu.memory_space<vmem>>, vector<1x1x32xf32>
    %392 = vector.shape_cast %391 : vector<1x1x32xf32> to vector<1x32xf32>
    %c1_167 = arith.constant 1 : index
    %c0_168 = arith.constant 0 : index
    %c0_169 = arith.constant 0 : index
    %393 = vector.load %arg12[%c1_167, %c0_168, %c0_169] : memref<2x1x32xf32, #tpu.memory_space<vmem>>, vector<1x1x32xf32>
    %394 = vector.shape_cast %393 : vector<1x1x32xf32> to vector<1x32xf32>
    %cst_170 = arith.constant dense<0.000000e+00> : vector<16xf32>
    %395 = vector.multi_reduction <add>, %390, %cst_170 [1] : vector<16x32xf32> to vector<16xf32>
    %396 = vector.shape_cast %395 : vector<16xf32> to vector<16x1xf32>
    %cst_171 = arith.constant 3.200000e+01 : f32
    %397 = vector.broadcast %cst_171 : f32 to vector<16x1xf32>
    %398 = arith.divf %396, %397 : vector<16x1xf32>
    %399 = vector.broadcast %398 : vector<16x1xf32> to vector<16x32xf32>
    %400 = arith.subf %390, %399 : vector<16x32xf32>
    %401 = arith.mulf %400, %400 : vector<16x32xf32>
    %cst_172 = arith.constant dense<0.000000e+00> : vector<16xf32>
    %402 = vector.multi_reduction <add>, %401, %cst_172 [1] : vector<16x32xf32> to vector<16xf32>
    %403 = vector.shape_cast %402 : vector<16xf32> to vector<16x1xf32>
    %cst_173 = arith.constant 3.200000e+01 : f32
    %404 = vector.broadcast %cst_173 : f32 to vector<16x1xf32>
    %405 = arith.divf %403, %404 : vector<16x1xf32>
    %406 = vector.broadcast %398 : vector<16x1xf32> to vector<16x32xf32>
    %407 = arith.subf %390, %406 : vector<16x32xf32>
    %cst_174 = arith.constant 9.99999974E-6 : f32
    %408 = vector.broadcast %cst_174 : f32 to vector<16x1xf32>
    %409 = arith.addf %405, %408 : vector<16x1xf32>
    %410 = math.rsqrt %409 : vector<16x1xf32>
    %411 = vector.broadcast %410 : vector<16x1xf32> to vector<16x32xf32>
    %412 = arith.mulf %407, %411 : vector<16x32xf32>
    %413 = vector.broadcast %392 : vector<1x32xf32> to vector<16x32xf32>
    %414 = arith.mulf %412, %413 : vector<16x32xf32>
    %415 = vector.broadcast %394 : vector<1x32xf32> to vector<16x32xf32>
    %416 = arith.addf %414, %415 : vector<16x32xf32>
    %c0_175 = arith.constant 0 : index
    %c0_176 = arith.constant 0 : index
    %417 = vector.load %arg17[%c0_175, %c0_176] : memref<1x32xf32, #tpu.memory_space<vmem>>, vector<1x32xf32>
    %c0_177 = arith.constant 0 : index
    %c0_178 = arith.constant 0 : index
    %418 = vector.load %arg18[%c0_177, %c0_178] : memref<1x32xf32, #tpu.memory_space<vmem>>, vector<1x32xf32>
    %cst_179 = arith.constant dense<0.000000e+00> : vector<16xf32>
    %419 = vector.multi_reduction <add>, %416, %cst_179 [1] : vector<16x32xf32> to vector<16xf32>
    %420 = vector.shape_cast %419 : vector<16xf32> to vector<16x1xf32>
    %cst_180 = arith.constant 3.200000e+01 : f32
    %421 = vector.broadcast %cst_180 : f32 to vector<16x1xf32>
    %422 = arith.divf %420, %421 : vector<16x1xf32>
    %423 = vector.broadcast %422 : vector<16x1xf32> to vector<16x32xf32>
    %424 = arith.subf %416, %423 : vector<16x32xf32>
    %425 = arith.mulf %424, %424 : vector<16x32xf32>
    %cst_181 = arith.constant dense<0.000000e+00> : vector<16xf32>
    %426 = vector.multi_reduction <add>, %425, %cst_181 [1] : vector<16x32xf32> to vector<16xf32>
    %427 = vector.shape_cast %426 : vector<16xf32> to vector<16x1xf32>
    %cst_182 = arith.constant 3.200000e+01 : f32
    %428 = vector.broadcast %cst_182 : f32 to vector<16x1xf32>
    %429 = arith.divf %427, %428 : vector<16x1xf32>
    %430 = vector.broadcast %422 : vector<16x1xf32> to vector<16x32xf32>
    %431 = arith.subf %416, %430 : vector<16x32xf32>
    %cst_183 = arith.constant 9.99999974E-6 : f32
    %432 = vector.broadcast %cst_183 : f32 to vector<16x1xf32>
    %433 = arith.addf %429, %432 : vector<16x1xf32>
    %434 = math.rsqrt %433 : vector<16x1xf32>
    %435 = vector.broadcast %434 : vector<16x1xf32> to vector<16x32xf32>
    %436 = arith.mulf %431, %435 : vector<16x32xf32>
    %437 = vector.broadcast %417 : vector<1x32xf32> to vector<16x32xf32>
    %438 = arith.mulf %436, %437 : vector<16x32xf32>
    %439 = vector.broadcast %418 : vector<1x32xf32> to vector<16x32xf32>
    %440 = arith.addf %438, %439 : vector<16x32xf32>
    %c0_184 = arith.constant 0 : index
    %c0_185 = arith.constant 0 : index
    %c0_186 = arith.constant 0 : index
    %441 = vector.load %arg1[%c0_184, %c0_185, %c0_186] : memref<2x8x32xf32, #tpu.memory_space<vmem>>, vector<2x8x32xf32>
    %442 = vector.shape_cast %441 : vector<2x8x32xf32> to vector<16x32xf32>
    %443 = tpu.iota {dimensions = array<i32: 1>} : vector<1x8x8xi32>
    %444 = tpu.iota {dimensions = array<i32: 2>} : vector<1x8x8xi32>
    %445 = arith.cmpi sgt, %444, %443 : vector<1x8x8xi32>
    %cst_187 = arith.constant -1.000000e+30 : f32
    %cst_188 = arith.constant 0.000000e+00 : f32
    %446 = vector.broadcast %cst_187 : f32 to vector<1x8x8xf32>
    %447 = vector.broadcast %cst_188 : f32 to vector<1x8x8xf32>
    %448 = arith.select %445, %446, %447 : vector<1x8x8xi1>, vector<1x8x8xf32>
    %c0_189 = arith.constant 0 : index
    %c0_190 = arith.constant 0 : index
    %c0_191 = arith.constant 0 : index
    %449 = vector.load %arg3[%c0_189, %c0_190, %c0_191] : memref<2x1x8xf32, #tpu.memory_space<vmem>>, vector<2x1x8xf32>
    %450 = vector.broadcast %448 : vector<1x8x8xf32> to vector<2x8x8xf32>
    %451 = vector.broadcast %449 : vector<2x1x8xf32> to vector<2x8x8xf32>
    %452 = arith.addf %450, %451 : vector<2x8x8xf32>
    %c0_192 = arith.constant 0 : index
    %c0_193 = arith.constant 0 : index
    %c0_194 = arith.constant 0 : index
    %453 = vector.load %arg2[%c0_192, %c0_193, %c0_194] : memref<2x1x8xf32, #tpu.memory_space<vmem>>, vector<2x1x8xf32>
    %c0_195 = arith.constant 0 : index
    %c0_196 = arith.constant 0 : index
    %c0_197 = arith.constant 0 : index
    %454 = vector.load %arg19[%c0_195, %c0_196, %c0_197] : memref<2x32x96xf32, #tpu.memory_space<vmem>>, vector<1x32x96xf32>
    %455 = vector.shape_cast %454 : vector<1x32x96xf32> to vector<32x96xf32>
    %cst_198 = arith.constant dense<0.000000e+00> : vector<16x96xf32>
    %456 = tpu.matmul %442, %455, %cst_198 {dimension_numbers = #tpu.dot_dimension_numbers<[1], [0], [0], [1], [0, 0, 1, 1], [], []>} : vector<16x32xf32>, vector<32x96xf32>, vector<16x96xf32> -> vector<16x96xf32>
    %c0_199 = arith.constant 0 : index
    %c0_200 = arith.constant 0 : index
    %c0_201 = arith.constant 0 : index
    %457 = vector.load %arg20[%c0_199, %c0_200, %c0_201] : memref<2x1x96xf32, #tpu.memory_space<vmem>>, vector<1x1x96xf32>
    %458 = vector.shape_cast %457 : vector<1x1x96xf32> to vector<1x96xf32>
    %459 = vector.broadcast %458 : vector<1x96xf32> to vector<16x96xf32>
    %460 = arith.addf %456, %459 : vector<16x96xf32>
    %461 = vector.extract_strided_slice %460 {offsets = [0, 0], sizes = [16, 32], strides = [1, 1]} : vector<16x96xf32> to vector<16x32xf32>
    %462 = vector.extract_strided_slice %460 {offsets = [0, 32], sizes = [16, 32], strides = [1, 1]} : vector<16x96xf32> to vector<16x32xf32>
    %463 = vector.extract_strided_slice %460 {offsets = [0, 64], sizes = [16, 32], strides = [1, 1]} : vector<16x96xf32> to vector<16x32xf32>
    %464 = vector.shape_cast %461 : vector<16x32xf32> to vector<2x8x32xf32>
    %465 = vector.shape_cast %462 : vector<16x32xf32> to vector<2x8x32xf32>
    %466 = vector.shape_cast %463 : vector<16x32xf32> to vector<2x8x32xf32>
    %467 = vector.extract_strided_slice %464 {offsets = [0, 0, 0], sizes = [2, 8, 8], strides = [1, 1, 1]} : vector<2x8x32xf32> to vector<2x8x8xf32>
    %468 = vector.extract_strided_slice %465 {offsets = [0, 0, 0], sizes = [2, 8, 8], strides = [1, 1, 1]} : vector<2x8x32xf32> to vector<2x8x8xf32>
    "tpu.trace_start"() <{level = 10 : i32, message = "bqd,bkd->bqk"}> : () -> ()
    %cst_202 = arith.constant dense<0.000000e+00> : vector<2x8x8xf32>
    %469 = tpu.matmul %467, %468, %cst_202 {dimension_numbers = #tpu.dot_dimension_numbers<[2], [2], [1], [1], [0, 0, 0, 1, 1, 1], [0], [0]>} : vector<2x8x8xf32>, vector<2x8x8xf32>, vector<2x8x8xf32> -> vector<2x8x8xf32>
    "tpu.trace_stop"() : () -> ()
    %cst_203 = arith.constant 0.353553385 : f32
    %470 = vector.broadcast %cst_203 : f32 to vector<2x8x8xf32>
    %471 = arith.mulf %469, %470 : vector<2x8x8xf32>
    %472 = arith.addf %471, %452 : vector<2x8x8xf32>
    %cst_204 = arith.constant dense<0xFF800000> : vector<2x8xf32>
    %473 = vector.multi_reduction <maximumf>, %472, %cst_204 [2] : vector<2x8x8xf32> to vector<2x8xf32>
    %474 = vector.shape_cast %473 : vector<2x8xf32> to vector<2x8x1xf32>
    %475 = vector.broadcast %474 : vector<2x8x1xf32> to vector<2x8x8xf32>
    %476 = arith.subf %472, %475 : vector<2x8x8xf32>
    %477 = math.exp %476 : vector<2x8x8xf32>
    %cst_205 = arith.constant dense<0.000000e+00> : vector<2x8xf32>
    %478 = vector.multi_reduction <add>, %477, %cst_205 [2] : vector<2x8x8xf32> to vector<2x8xf32>
    %479 = vector.shape_cast %478 : vector<2x8xf32> to vector<2x8x1xf32>
    %480 = tpu.reciprocal %479 {approx = true} : vector<2x8x1xf32> -> vector<2x8x1xf32>
    %481 = vector.broadcast %480 : vector<2x8x1xf32> to vector<2x8x8xf32>
    %482 = arith.mulf %477, %481 : vector<2x8x8xf32>
    %483 = vector.extract_strided_slice %466 {offsets = [0, 0, 0], sizes = [2, 8, 8], strides = [1, 1, 1]} : vector<2x8x32xf32> to vector<2x8x8xf32>
    "tpu.trace_start"() <{level = 10 : i32, message = "bqk,bkd->bqd"}> : () -> ()
    %cst_206 = arith.constant dense<0.000000e+00> : vector<2x8x8xf32>
    %484 = tpu.matmul %482, %483, %cst_206 {dimension_numbers = #tpu.dot_dimension_numbers<[2], [1], [1], [2], [0, 0, 0, 1, 1, 2], [0], [0]>} : vector<2x8x8xf32>, vector<2x8x8xf32>, vector<2x8x8xf32> -> vector<2x8x8xf32>
    "tpu.trace_stop"() : () -> ()
    %485 = vector.extract_strided_slice %464 {offsets = [0, 0, 8], sizes = [2, 8, 8], strides = [1, 1, 1]} : vector<2x8x32xf32> to vector<2x8x8xf32>
    %486 = vector.extract_strided_slice %465 {offsets = [0, 0, 8], sizes = [2, 8, 8], strides = [1, 1, 1]} : vector<2x8x32xf32> to vector<2x8x8xf32>
    "tpu.trace_start"() <{level = 10 : i32, message = "bqd,bkd->bqk"}> : () -> ()
    %cst_207 = arith.constant dense<0.000000e+00> : vector<2x8x8xf32>
    %487 = tpu.matmul %485, %486, %cst_207 {dimension_numbers = #tpu.dot_dimension_numbers<[2], [2], [1], [1], [0, 0, 0, 1, 1, 1], [0], [0]>} : vector<2x8x8xf32>, vector<2x8x8xf32>, vector<2x8x8xf32> -> vector<2x8x8xf32>
    "tpu.trace_stop"() : () -> ()
    %cst_208 = arith.constant 0.353553385 : f32
    %488 = vector.broadcast %cst_208 : f32 to vector<2x8x8xf32>
    %489 = arith.mulf %487, %488 : vector<2x8x8xf32>
    %490 = arith.addf %489, %452 : vector<2x8x8xf32>
    %cst_209 = arith.constant dense<0xFF800000> : vector<2x8xf32>
    %491 = vector.multi_reduction <maximumf>, %490, %cst_209 [2] : vector<2x8x8xf32> to vector<2x8xf32>
    %492 = vector.shape_cast %491 : vector<2x8xf32> to vector<2x8x1xf32>
    %493 = vector.broadcast %492 : vector<2x8x1xf32> to vector<2x8x8xf32>
    %494 = arith.subf %490, %493 : vector<2x8x8xf32>
    %495 = math.exp %494 : vector<2x8x8xf32>
    %cst_210 = arith.constant dense<0.000000e+00> : vector<2x8xf32>
    %496 = vector.multi_reduction <add>, %495, %cst_210 [2] : vector<2x8x8xf32> to vector<2x8xf32>
    %497 = vector.shape_cast %496 : vector<2x8xf32> to vector<2x8x1xf32>
    %498 = tpu.reciprocal %497 {approx = true} : vector<2x8x1xf32> -> vector<2x8x1xf32>
    %499 = vector.broadcast %498 : vector<2x8x1xf32> to vector<2x8x8xf32>
    %500 = arith.mulf %495, %499 : vector<2x8x8xf32>
    %501 = vector.extract_strided_slice %466 {offsets = [0, 0, 8], sizes = [2, 8, 8], strides = [1, 1, 1]} : vector<2x8x32xf32> to vector<2x8x8xf32>
    "tpu.trace_start"() <{level = 10 : i32, message = "bqk,bkd->bqd"}> : () -> ()
    %cst_211 = arith.constant dense<0.000000e+00> : vector<2x8x8xf32>
    %502 = tpu.matmul %500, %501, %cst_211 {dimension_numbers = #tpu.dot_dimension_numbers<[2], [1], [1], [2], [0, 0, 0, 1, 1, 2], [0], [0]>} : vector<2x8x8xf32>, vector<2x8x8xf32>, vector<2x8x8xf32> -> vector<2x8x8xf32>
    "tpu.trace_stop"() : () -> ()
    %503 = vector.extract_strided_slice %464 {offsets = [0, 0, 16], sizes = [2, 8, 8], strides = [1, 1, 1]} : vector<2x8x32xf32> to vector<2x8x8xf32>
    %504 = vector.extract_strided_slice %465 {offsets = [0, 0, 16], sizes = [2, 8, 8], strides = [1, 1, 1]} : vector<2x8x32xf32> to vector<2x8x8xf32>
    "tpu.trace_start"() <{level = 10 : i32, message = "bqd,bkd->bqk"}> : () -> ()
    %cst_212 = arith.constant dense<0.000000e+00> : vector<2x8x8xf32>
    %505 = tpu.matmul %503, %504, %cst_212 {dimension_numbers = #tpu.dot_dimension_numbers<[2], [2], [1], [1], [0, 0, 0, 1, 1, 1], [0], [0]>} : vector<2x8x8xf32>, vector<2x8x8xf32>, vector<2x8x8xf32> -> vector<2x8x8xf32>
    "tpu.trace_stop"() : () -> ()
    %cst_213 = arith.constant 0.353553385 : f32
    %506 = vector.broadcast %cst_213 : f32 to vector<2x8x8xf32>
    %507 = arith.mulf %505, %506 : vector<2x8x8xf32>
    %508 = arith.addf %507, %452 : vector<2x8x8xf32>
    %cst_214 = arith.constant dense<0xFF800000> : vector<2x8xf32>
    %509 = vector.multi_reduction <maximumf>, %508, %cst_214 [2] : vector<2x8x8xf32> to vector<2x8xf32>
    %510 = vector.shape_cast %509 : vector<2x8xf32> to vector<2x8x1xf32>
    %511 = vector.broadcast %510 : vector<2x8x1xf32> to vector<2x8x8xf32>
    %512 = arith.subf %508, %511 : vector<2x8x8xf32>
    %513 = math.exp %512 : vector<2x8x8xf32>
    %cst_215 = arith.constant dense<0.000000e+00> : vector<2x8xf32>
    %514 = vector.multi_reduction <add>, %513, %cst_215 [2] : vector<2x8x8xf32> to vector<2x8xf32>
    %515 = vector.shape_cast %514 : vector<2x8xf32> to vector<2x8x1xf32>
    %516 = tpu.reciprocal %515 {approx = true} : vector<2x8x1xf32> -> vector<2x8x1xf32>
    %517 = vector.broadcast %516 : vector<2x8x1xf32> to vector<2x8x8xf32>
    %518 = arith.mulf %513, %517 : vector<2x8x8xf32>
    %519 = vector.extract_strided_slice %466 {offsets = [0, 0, 16], sizes = [2, 8, 8], strides = [1, 1, 1]} : vector<2x8x32xf32> to vector<2x8x8xf32>
    "tpu.trace_start"() <{level = 10 : i32, message = "bqk,bkd->bqd"}> : () -> ()
    %cst_216 = arith.constant dense<0.000000e+00> : vector<2x8x8xf32>
    %520 = tpu.matmul %518, %519, %cst_216 {dimension_numbers = #tpu.dot_dimension_numbers<[2], [1], [1], [2], [0, 0, 0, 1, 1, 2], [0], [0]>} : vector<2x8x8xf32>, vector<2x8x8xf32>, vector<2x8x8xf32> -> vector<2x8x8xf32>
    "tpu.trace_stop"() : () -> ()
    %521 = vector.extract_strided_slice %464 {offsets = [0, 0, 24], sizes = [2, 8, 8], strides = [1, 1, 1]} : vector<2x8x32xf32> to vector<2x8x8xf32>
    %522 = vector.extract_strided_slice %465 {offsets = [0, 0, 24], sizes = [2, 8, 8], strides = [1, 1, 1]} : vector<2x8x32xf32> to vector<2x8x8xf32>
    "tpu.trace_start"() <{level = 10 : i32, message = "bqd,bkd->bqk"}> : () -> ()
    %cst_217 = arith.constant dense<0.000000e+00> : vector<2x8x8xf32>
    %523 = tpu.matmul %521, %522, %cst_217 {dimension_numbers = #tpu.dot_dimension_numbers<[2], [2], [1], [1], [0, 0, 0, 1, 1, 1], [0], [0]>} : vector<2x8x8xf32>, vector<2x8x8xf32>, vector<2x8x8xf32> -> vector<2x8x8xf32>
    "tpu.trace_stop"() : () -> ()
    %cst_218 = arith.constant 0.353553385 : f32
    %524 = vector.broadcast %cst_218 : f32 to vector<2x8x8xf32>
    %525 = arith.mulf %523, %524 : vector<2x8x8xf32>
    %526 = arith.addf %525, %452 : vector<2x8x8xf32>
    %cst_219 = arith.constant dense<0xFF800000> : vector<2x8xf32>
    %527 = vector.multi_reduction <maximumf>, %526, %cst_219 [2] : vector<2x8x8xf32> to vector<2x8xf32>
    %528 = vector.shape_cast %527 : vector<2x8xf32> to vector<2x8x1xf32>
    %529 = vector.broadcast %528 : vector<2x8x1xf32> to vector<2x8x8xf32>
    %530 = arith.subf %526, %529 : vector<2x8x8xf32>
    %531 = math.exp %530 : vector<2x8x8xf32>
    %cst_220 = arith.constant dense<0.000000e+00> : vector<2x8xf32>
    %532 = vector.multi_reduction <add>, %531, %cst_220 [2] : vector<2x8x8xf32> to vector<2x8xf32>
    %533 = vector.shape_cast %532 : vector<2x8xf32> to vector<2x8x1xf32>
    %534 = tpu.reciprocal %533 {approx = true} : vector<2x8x1xf32> -> vector<2x8x1xf32>
    %535 = vector.broadcast %534 : vector<2x8x1xf32> to vector<2x8x8xf32>
    %536 = arith.mulf %531, %535 : vector<2x8x8xf32>
    %537 = vector.extract_strided_slice %466 {offsets = [0, 0, 24], sizes = [2, 8, 8], strides = [1, 1, 1]} : vector<2x8x32xf32> to vector<2x8x8xf32>
    "tpu.trace_start"() <{level = 10 : i32, message = "bqk,bkd->bqd"}> : () -> ()
    %cst_221 = arith.constant dense<0.000000e+00> : vector<2x8x8xf32>
    %538 = tpu.matmul %536, %537, %cst_221 {dimension_numbers = #tpu.dot_dimension_numbers<[2], [1], [1], [2], [0, 0, 0, 1, 1, 2], [0], [0]>} : vector<2x8x8xf32>, vector<2x8x8xf32>, vector<2x8x8xf32> -> vector<2x8x8xf32>
    "tpu.trace_stop"() : () -> ()
    %539 = tpu.concatenate %484, %502, %520, %538 in 2 : vector<2x8x8xf32>, vector<2x8x8xf32>, vector<2x8x8xf32>, vector<2x8x8xf32> -> vector<2x8x32xf32>
    %540 = vector.shape_cast %539 : vector<2x8x32xf32> to vector<16x32xf32>
    %c0_222 = arith.constant 0 : index
    %c0_223 = arith.constant 0 : index
    %c0_224 = arith.constant 0 : index
    %541 = vector.load %arg21[%c0_222, %c0_223, %c0_224] : memref<2x32x32xf32, #tpu.memory_space<vmem>>, vector<1x32x32xf32>
    %542 = vector.shape_cast %541 : vector<1x32x32xf32> to vector<32x32xf32>
    %cst_225 = arith.constant dense<0.000000e+00> : vector<16x32xf32>
    %543 = tpu.matmul %540, %542, %cst_225 {dimension_numbers = #tpu.dot_dimension_numbers<[1], [0], [0], [1], [0, 0, 1, 1], [], []>} : vector<16x32xf32>, vector<32x32xf32>, vector<16x32xf32> -> vector<16x32xf32>
    %c0_226 = arith.constant 0 : index
    %c0_227 = arith.constant 0 : index
    %c0_228 = arith.constant 0 : index
    %544 = vector.load %arg22[%c0_226, %c0_227, %c0_228] : memref<2x1x32xf32, #tpu.memory_space<vmem>>, vector<1x1x32xf32>
    %545 = vector.shape_cast %544 : vector<1x1x32xf32> to vector<1x32xf32>
    %546 = vector.broadcast %545 : vector<1x32xf32> to vector<16x32xf32>
    %547 = arith.addf %543, %546 : vector<16x32xf32>
    %548 = arith.addf %442, %547 : vector<16x32xf32>
    %c0_229 = arith.constant 0 : index
    %c0_230 = arith.constant 0 : index
    %c0_231 = arith.constant 0 : index
    %549 = vector.load %arg29[%c0_229, %c0_230, %c0_231] : memref<2x1x32xf32, #tpu.memory_space<vmem>>, vector<1x1x32xf32>
    %550 = vector.shape_cast %549 : vector<1x1x32xf32> to vector<1x32xf32>
    %c0_232 = arith.constant 0 : index
    %c0_233 = arith.constant 0 : index
    %c0_234 = arith.constant 0 : index
    %551 = vector.load %arg30[%c0_232, %c0_233, %c0_234] : memref<2x1x32xf32, #tpu.memory_space<vmem>>, vector<1x1x32xf32>
    %552 = vector.shape_cast %551 : vector<1x1x32xf32> to vector<1x32xf32>
    %cst_235 = arith.constant dense<0.000000e+00> : vector<16xf32>
    %553 = vector.multi_reduction <add>, %548, %cst_235 [1] : vector<16x32xf32> to vector<16xf32>
    %554 = vector.shape_cast %553 : vector<16xf32> to vector<16x1xf32>
    %cst_236 = arith.constant 3.200000e+01 : f32
    %555 = vector.broadcast %cst_236 : f32 to vector<16x1xf32>
    %556 = arith.divf %554, %555 : vector<16x1xf32>
    %557 = vector.broadcast %556 : vector<16x1xf32> to vector<16x32xf32>
    %558 = arith.subf %548, %557 : vector<16x32xf32>
    %559 = arith.mulf %558, %558 : vector<16x32xf32>
    %cst_237 = arith.constant dense<0.000000e+00> : vector<16xf32>
    %560 = vector.multi_reduction <add>, %559, %cst_237 [1] : vector<16x32xf32> to vector<16xf32>
    %561 = vector.shape_cast %560 : vector<16xf32> to vector<16x1xf32>
    %cst_238 = arith.constant 3.200000e+01 : f32
    %562 = vector.broadcast %cst_238 : f32 to vector<16x1xf32>
    %563 = arith.divf %561, %562 : vector<16x1xf32>
    %564 = vector.broadcast %556 : vector<16x1xf32> to vector<16x32xf32>
    %565 = arith.subf %548, %564 : vector<16x32xf32>
    %cst_239 = arith.constant 9.99999974E-6 : f32
    %566 = vector.broadcast %cst_239 : f32 to vector<16x1xf32>
    %567 = arith.addf %563, %566 : vector<16x1xf32>
    %568 = math.rsqrt %567 : vector<16x1xf32>
    %569 = vector.broadcast %568 : vector<16x1xf32> to vector<16x32xf32>
    %570 = arith.mulf %565, %569 : vector<16x32xf32>
    %571 = vector.broadcast %550 : vector<1x32xf32> to vector<16x32xf32>
    %572 = arith.mulf %570, %571 : vector<16x32xf32>
    %573 = vector.broadcast %552 : vector<1x32xf32> to vector<16x32xf32>
    %574 = arith.addf %572, %573 : vector<16x32xf32>
    %c0_240 = arith.constant 0 : index
    %c0_241 = arith.constant 0 : index
    %c0_242 = arith.constant 0 : index
    %575 = vector.load %arg23[%c0_240, %c0_241, %c0_242] : memref<2x32x32xf32, #tpu.memory_space<vmem>>, vector<1x32x32xf32>
    %576 = vector.shape_cast %575 : vector<1x32x32xf32> to vector<32x32xf32>
    %cst_243 = arith.constant dense<0.000000e+00> : vector<16x32xf32>
    %577 = tpu.matmul %574, %576, %cst_243 {dimension_numbers = #tpu.dot_dimension_numbers<[1], [0], [0], [1], [0, 0, 1, 1], [], []>} : vector<16x32xf32>, vector<32x32xf32>, vector<16x32xf32> -> vector<16x32xf32>
    %c0_244 = arith.constant 0 : index
    %c0_245 = arith.constant 0 : index
    %c0_246 = arith.constant 0 : index
    %578 = vector.load %arg24[%c0_244, %c0_245, %c0_246] : memref<2x1x32xf32, #tpu.memory_space<vmem>>, vector<1x1x32xf32>
    %579 = vector.shape_cast %578 : vector<1x1x32xf32> to vector<1x32xf32>
    %580 = vector.broadcast %579 : vector<1x32xf32> to vector<16x32xf32>
    %581 = arith.addf %577, %580 : vector<16x32xf32>
    %c0_247 = arith.constant 0 : index
    %c0_248 = arith.constant 0 : index
    %c0_249 = arith.constant 0 : index
    %582 = vector.load %arg25[%c0_247, %c0_248, %c0_249] : memref<2x32x64xf32, #tpu.memory_space<vmem>>, vector<1x32x64xf32>
    %583 = vector.shape_cast %582 : vector<1x32x64xf32> to vector<32x64xf32>
    %cst_250 = arith.constant dense<0.000000e+00> : vector<16x64xf32>
    %584 = tpu.matmul %440, %583, %cst_250 {dimension_numbers = #tpu.dot_dimension_numbers<[1], [0], [0], [1], [0, 0, 1, 1], [], []>} : vector<16x32xf32>, vector<32x64xf32>, vector<16x64xf32> -> vector<16x64xf32>
    %c0_251 = arith.constant 0 : index
    %c0_252 = arith.constant 0 : index
    %c0_253 = arith.constant 0 : index
    %585 = vector.load %arg26[%c0_251, %c0_252, %c0_253] : memref<2x1x64xf32, #tpu.memory_space<vmem>>, vector<1x1x64xf32>
    %586 = vector.shape_cast %585 : vector<1x1x64xf32> to vector<1x64xf32>
    %587 = vector.broadcast %586 : vector<1x64xf32> to vector<16x64xf32>
    %588 = arith.addf %584, %587 : vector<16x64xf32>
    %589 = vector.extract_strided_slice %588 {offsets = [0, 0], sizes = [16, 32], strides = [1, 1]} : vector<16x64xf32> to vector<16x32xf32>
    %590 = vector.extract_strided_slice %588 {offsets = [0, 32], sizes = [16, 32], strides = [1, 1]} : vector<16x64xf32> to vector<16x32xf32>
    %591 = vector.shape_cast %581 : vector<16x32xf32> to vector<2x8x32xf32>
    %592 = vector.shape_cast %589 : vector<16x32xf32> to vector<2x8x32xf32>
    %593 = vector.shape_cast %590 : vector<16x32xf32> to vector<2x8x32xf32>
    %594 = vector.extract_strided_slice %591 {offsets = [0, 0, 0], sizes = [2, 8, 8], strides = [1, 1, 1]} : vector<2x8x32xf32> to vector<2x8x8xf32>
    %595 = vector.extract_strided_slice %592 {offsets = [0, 0, 0], sizes = [2, 8, 8], strides = [1, 1, 1]} : vector<2x8x32xf32> to vector<2x8x8xf32>
    "tpu.trace_start"() <{level = 10 : i32, message = "bqd,bkd->bqk"}> : () -> ()
    %cst_254 = arith.constant dense<0.000000e+00> : vector<2x8x8xf32>
    %596 = tpu.matmul %594, %595, %cst_254 {dimension_numbers = #tpu.dot_dimension_numbers<[2], [2], [1], [1], [0, 0, 0, 1, 1, 1], [0], [0]>} : vector<2x8x8xf32>, vector<2x8x8xf32>, vector<2x8x8xf32> -> vector<2x8x8xf32>
    "tpu.trace_stop"() : () -> ()
    %cst_255 = arith.constant 0.353553385 : f32
    %597 = vector.broadcast %cst_255 : f32 to vector<2x8x8xf32>
    %598 = arith.mulf %596, %597 : vector<2x8x8xf32>
    %599 = vector.broadcast %453 : vector<2x1x8xf32> to vector<2x8x8xf32>
    %600 = arith.addf %598, %599 : vector<2x8x8xf32>
    %cst_256 = arith.constant dense<0xFF800000> : vector<2x8xf32>
    %601 = vector.multi_reduction <maximumf>, %600, %cst_256 [2] : vector<2x8x8xf32> to vector<2x8xf32>
    %602 = vector.shape_cast %601 : vector<2x8xf32> to vector<2x8x1xf32>
    %603 = vector.broadcast %602 : vector<2x8x1xf32> to vector<2x8x8xf32>
    %604 = arith.subf %600, %603 : vector<2x8x8xf32>
    %605 = math.exp %604 : vector<2x8x8xf32>
    %cst_257 = arith.constant dense<0.000000e+00> : vector<2x8xf32>
    %606 = vector.multi_reduction <add>, %605, %cst_257 [2] : vector<2x8x8xf32> to vector<2x8xf32>
    %607 = vector.shape_cast %606 : vector<2x8xf32> to vector<2x8x1xf32>
    %608 = tpu.reciprocal %607 {approx = true} : vector<2x8x1xf32> -> vector<2x8x1xf32>
    %609 = vector.broadcast %608 : vector<2x8x1xf32> to vector<2x8x8xf32>
    %610 = arith.mulf %605, %609 : vector<2x8x8xf32>
    %611 = vector.extract_strided_slice %593 {offsets = [0, 0, 0], sizes = [2, 8, 8], strides = [1, 1, 1]} : vector<2x8x32xf32> to vector<2x8x8xf32>
    "tpu.trace_start"() <{level = 10 : i32, message = "bqk,bkd->bqd"}> : () -> ()
    %cst_258 = arith.constant dense<0.000000e+00> : vector<2x8x8xf32>
    %612 = tpu.matmul %610, %611, %cst_258 {dimension_numbers = #tpu.dot_dimension_numbers<[2], [1], [1], [2], [0, 0, 0, 1, 1, 2], [0], [0]>} : vector<2x8x8xf32>, vector<2x8x8xf32>, vector<2x8x8xf32> -> vector<2x8x8xf32>
    "tpu.trace_stop"() : () -> ()
    %613 = vector.extract_strided_slice %591 {offsets = [0, 0, 8], sizes = [2, 8, 8], strides = [1, 1, 1]} : vector<2x8x32xf32> to vector<2x8x8xf32>
    %614 = vector.extract_strided_slice %592 {offsets = [0, 0, 8], sizes = [2, 8, 8], strides = [1, 1, 1]} : vector<2x8x32xf32> to vector<2x8x8xf32>
    "tpu.trace_start"() <{level = 10 : i32, message = "bqd,bkd->bqk"}> : () -> ()
    %cst_259 = arith.constant dense<0.000000e+00> : vector<2x8x8xf32>
    %615 = tpu.matmul %613, %614, %cst_259 {dimension_numbers = #tpu.dot_dimension_numbers<[2], [2], [1], [1], [0, 0, 0, 1, 1, 1], [0], [0]>} : vector<2x8x8xf32>, vector<2x8x8xf32>, vector<2x8x8xf32> -> vector<2x8x8xf32>
    "tpu.trace_stop"() : () -> ()
    %cst_260 = arith.constant 0.353553385 : f32
    %616 = vector.broadcast %cst_260 : f32 to vector<2x8x8xf32>
    %617 = arith.mulf %615, %616 : vector<2x8x8xf32>
    %618 = vector.broadcast %453 : vector<2x1x8xf32> to vector<2x8x8xf32>
    %619 = arith.addf %617, %618 : vector<2x8x8xf32>
    %cst_261 = arith.constant dense<0xFF800000> : vector<2x8xf32>
    %620 = vector.multi_reduction <maximumf>, %619, %cst_261 [2] : vector<2x8x8xf32> to vector<2x8xf32>
    %621 = vector.shape_cast %620 : vector<2x8xf32> to vector<2x8x1xf32>
    %622 = vector.broadcast %621 : vector<2x8x1xf32> to vector<2x8x8xf32>
    %623 = arith.subf %619, %622 : vector<2x8x8xf32>
    %624 = math.exp %623 : vector<2x8x8xf32>
    %cst_262 = arith.constant dense<0.000000e+00> : vector<2x8xf32>
    %625 = vector.multi_reduction <add>, %624, %cst_262 [2] : vector<2x8x8xf32> to vector<2x8xf32>
    %626 = vector.shape_cast %625 : vector<2x8xf32> to vector<2x8x1xf32>
    %627 = tpu.reciprocal %626 {approx = true} : vector<2x8x1xf32> -> vector<2x8x1xf32>
    %628 = vector.broadcast %627 : vector<2x8x1xf32> to vector<2x8x8xf32>
    %629 = arith.mulf %624, %628 : vector<2x8x8xf32>
    %630 = vector.extract_strided_slice %593 {offsets = [0, 0, 8], sizes = [2, 8, 8], strides = [1, 1, 1]} : vector<2x8x32xf32> to vector<2x8x8xf32>
    "tpu.trace_start"() <{level = 10 : i32, message = "bqk,bkd->bqd"}> : () -> ()
    %cst_263 = arith.constant dense<0.000000e+00> : vector<2x8x8xf32>
    %631 = tpu.matmul %629, %630, %cst_263 {dimension_numbers = #tpu.dot_dimension_numbers<[2], [1], [1], [2], [0, 0, 0, 1, 1, 2], [0], [0]>} : vector<2x8x8xf32>, vector<2x8x8xf32>, vector<2x8x8xf32> -> vector<2x8x8xf32>
    "tpu.trace_stop"() : () -> ()
    %632 = vector.extract_strided_slice %591 {offsets = [0, 0, 16], sizes = [2, 8, 8], strides = [1, 1, 1]} : vector<2x8x32xf32> to vector<2x8x8xf32>
    %633 = vector.extract_strided_slice %592 {offsets = [0, 0, 16], sizes = [2, 8, 8], strides = [1, 1, 1]} : vector<2x8x32xf32> to vector<2x8x8xf32>
    "tpu.trace_start"() <{level = 10 : i32, message = "bqd,bkd->bqk"}> : () -> ()
    %cst_264 = arith.constant dense<0.000000e+00> : vector<2x8x8xf32>
    %634 = tpu.matmul %632, %633, %cst_264 {dimension_numbers = #tpu.dot_dimension_numbers<[2], [2], [1], [1], [0, 0, 0, 1, 1, 1], [0], [0]>} : vector<2x8x8xf32>, vector<2x8x8xf32>, vector<2x8x8xf32> -> vector<2x8x8xf32>
    "tpu.trace_stop"() : () -> ()
    %cst_265 = arith.constant 0.353553385 : f32
    %635 = vector.broadcast %cst_265 : f32 to vector<2x8x8xf32>
    %636 = arith.mulf %634, %635 : vector<2x8x8xf32>
    %637 = vector.broadcast %453 : vector<2x1x8xf32> to vector<2x8x8xf32>
    %638 = arith.addf %636, %637 : vector<2x8x8xf32>
    %cst_266 = arith.constant dense<0xFF800000> : vector<2x8xf32>
    %639 = vector.multi_reduction <maximumf>, %638, %cst_266 [2] : vector<2x8x8xf32> to vector<2x8xf32>
    %640 = vector.shape_cast %639 : vector<2x8xf32> to vector<2x8x1xf32>
    %641 = vector.broadcast %640 : vector<2x8x1xf32> to vector<2x8x8xf32>
    %642 = arith.subf %638, %641 : vector<2x8x8xf32>
    %643 = math.exp %642 : vector<2x8x8xf32>
    %cst_267 = arith.constant dense<0.000000e+00> : vector<2x8xf32>
    %644 = vector.multi_reduction <add>, %643, %cst_267 [2] : vector<2x8x8xf32> to vector<2x8xf32>
    %645 = vector.shape_cast %644 : vector<2x8xf32> to vector<2x8x1xf32>
    %646 = tpu.reciprocal %645 {approx = true} : vector<2x8x1xf32> -> vector<2x8x1xf32>
    %647 = vector.broadcast %646 : vector<2x8x1xf32> to vector<2x8x8xf32>
    %648 = arith.mulf %643, %647 : vector<2x8x8xf32>
    %649 = vector.extract_strided_slice %593 {offsets = [0, 0, 16], sizes = [2, 8, 8], strides = [1, 1, 1]} : vector<2x8x32xf32> to vector<2x8x8xf32>
    "tpu.trace_start"() <{level = 10 : i32, message = "bqk,bkd->bqd"}> : () -> ()
    %cst_268 = arith.constant dense<0.000000e+00> : vector<2x8x8xf32>
    %650 = tpu.matmul %648, %649, %cst_268 {dimension_numbers = #tpu.dot_dimension_numbers<[2], [1], [1], [2], [0, 0, 0, 1, 1, 2], [0], [0]>} : vector<2x8x8xf32>, vector<2x8x8xf32>, vector<2x8x8xf32> -> vector<2x8x8xf32>
    "tpu.trace_stop"() : () -> ()
    %651 = vector.extract_strided_slice %591 {offsets = [0, 0, 24], sizes = [2, 8, 8], strides = [1, 1, 1]} : vector<2x8x32xf32> to vector<2x8x8xf32>
    %652 = vector.extract_strided_slice %592 {offsets = [0, 0, 24], sizes = [2, 8, 8], strides = [1, 1, 1]} : vector<2x8x32xf32> to vector<2x8x8xf32>
    "tpu.trace_start"() <{level = 10 : i32, message = "bqd,bkd->bqk"}> : () -> ()
    %cst_269 = arith.constant dense<0.000000e+00> : vector<2x8x8xf32>
    %653 = tpu.matmul %651, %652, %cst_269 {dimension_numbers = #tpu.dot_dimension_numbers<[2], [2], [1], [1], [0, 0, 0, 1, 1, 1], [0], [0]>} : vector<2x8x8xf32>, vector<2x8x8xf32>, vector<2x8x8xf32> -> vector<2x8x8xf32>
    "tpu.trace_stop"() : () -> ()
    %cst_270 = arith.constant 0.353553385 : f32
    %654 = vector.broadcast %cst_270 : f32 to vector<2x8x8xf32>
    %655 = arith.mulf %653, %654 : vector<2x8x8xf32>
    %656 = vector.broadcast %453 : vector<2x1x8xf32> to vector<2x8x8xf32>
    %657 = arith.addf %655, %656 : vector<2x8x8xf32>
    %cst_271 = arith.constant dense<0xFF800000> : vector<2x8xf32>
    %658 = vector.multi_reduction <maximumf>, %657, %cst_271 [2] : vector<2x8x8xf32> to vector<2x8xf32>
    %659 = vector.shape_cast %658 : vector<2x8xf32> to vector<2x8x1xf32>
    %660 = vector.broadcast %659 : vector<2x8x1xf32> to vector<2x8x8xf32>
    %661 = arith.subf %657, %660 : vector<2x8x8xf32>
    %662 = math.exp %661 : vector<2x8x8xf32>
    %cst_272 = arith.constant dense<0.000000e+00> : vector<2x8xf32>
    %663 = vector.multi_reduction <add>, %662, %cst_272 [2] : vector<2x8x8xf32> to vector<2x8xf32>
    %664 = vector.shape_cast %663 : vector<2x8xf32> to vector<2x8x1xf32>
    %665 = tpu.reciprocal %664 {approx = true} : vector<2x8x1xf32> -> vector<2x8x1xf32>
    %666 = vector.broadcast %665 : vector<2x8x1xf32> to vector<2x8x8xf32>
    %667 = arith.mulf %662, %666 : vector<2x8x8xf32>
    %668 = vector.extract_strided_slice %593 {offsets = [0, 0, 24], sizes = [2, 8, 8], strides = [1, 1, 1]} : vector<2x8x32xf32> to vector<2x8x8xf32>
    "tpu.trace_start"() <{level = 10 : i32, message = "bqk,bkd->bqd"}> : () -> ()
    %cst_273 = arith.constant dense<0.000000e+00> : vector<2x8x8xf32>
    %669 = tpu.matmul %667, %668, %cst_273 {dimension_numbers = #tpu.dot_dimension_numbers<[2], [1], [1], [2], [0, 0, 0, 1, 1, 2], [0], [0]>} : vector<2x8x8xf32>, vector<2x8x8xf32>, vector<2x8x8xf32> -> vector<2x8x8xf32>
    "tpu.trace_stop"() : () -> ()
    %670 = tpu.concatenate %612, %631, %650, %669 in 2 : vector<2x8x8xf32>, vector<2x8x8xf32>, vector<2x8x8xf32>, vector<2x8x8xf32> -> vector<2x8x32xf32>
    %671 = vector.shape_cast %670 : vector<2x8x32xf32> to vector<16x32xf32>
    %c0_274 = arith.constant 0 : index
    %c0_275 = arith.constant 0 : index
    %c0_276 = arith.constant 0 : index
    %672 = vector.load %arg27[%c0_274, %c0_275, %c0_276] : memref<2x32x32xf32, #tpu.memory_space<vmem>>, vector<1x32x32xf32>
    %673 = vector.shape_cast %672 : vector<1x32x32xf32> to vector<32x32xf32>
    %cst_277 = arith.constant dense<0.000000e+00> : vector<16x32xf32>
    %674 = tpu.matmul %671, %673, %cst_277 {dimension_numbers = #tpu.dot_dimension_numbers<[1], [0], [0], [1], [0, 0, 1, 1], [], []>} : vector<16x32xf32>, vector<32x32xf32>, vector<16x32xf32> -> vector<16x32xf32>
    %c0_278 = arith.constant 0 : index
    %c0_279 = arith.constant 0 : index
    %c0_280 = arith.constant 0 : index
    %675 = vector.load %arg28[%c0_278, %c0_279, %c0_280] : memref<2x1x32xf32, #tpu.memory_space<vmem>>, vector<1x1x32xf32>
    %676 = vector.shape_cast %675 : vector<1x1x32xf32> to vector<1x32xf32>
    %677 = vector.broadcast %676 : vector<1x32xf32> to vector<16x32xf32>
    %678 = arith.addf %674, %677 : vector<16x32xf32>
    %679 = arith.addf %574, %678 : vector<16x32xf32>
    %c0_281 = arith.constant 0 : index
    %c0_282 = arith.constant 0 : index
    %c0_283 = arith.constant 0 : index
    %680 = vector.load %arg31[%c0_281, %c0_282, %c0_283] : memref<2x1x32xf32, #tpu.memory_space<vmem>>, vector<1x1x32xf32>
    %681 = vector.shape_cast %680 : vector<1x1x32xf32> to vector<1x32xf32>
    %c0_284 = arith.constant 0 : index
    %c0_285 = arith.constant 0 : index
    %c0_286 = arith.constant 0 : index
    %682 = vector.load %arg32[%c0_284, %c0_285, %c0_286] : memref<2x1x32xf32, #tpu.memory_space<vmem>>, vector<1x1x32xf32>
    %683 = vector.shape_cast %682 : vector<1x1x32xf32> to vector<1x32xf32>
    %cst_287 = arith.constant dense<0.000000e+00> : vector<16xf32>
    %684 = vector.multi_reduction <add>, %679, %cst_287 [1] : vector<16x32xf32> to vector<16xf32>
    %685 = vector.shape_cast %684 : vector<16xf32> to vector<16x1xf32>
    %cst_288 = arith.constant 3.200000e+01 : f32
    %686 = vector.broadcast %cst_288 : f32 to vector<16x1xf32>
    %687 = arith.divf %685, %686 : vector<16x1xf32>
    %688 = vector.broadcast %687 : vector<16x1xf32> to vector<16x32xf32>
    %689 = arith.subf %679, %688 : vector<16x32xf32>
    %690 = arith.mulf %689, %689 : vector<16x32xf32>
    %cst_289 = arith.constant dense<0.000000e+00> : vector<16xf32>
    %691 = vector.multi_reduction <add>, %690, %cst_289 [1] : vector<16x32xf32> to vector<16xf32>
    %692 = vector.shape_cast %691 : vector<16xf32> to vector<16x1xf32>
    %cst_290 = arith.constant 3.200000e+01 : f32
    %693 = vector.broadcast %cst_290 : f32 to vector<16x1xf32>
    %694 = arith.divf %692, %693 : vector<16x1xf32>
    %695 = vector.broadcast %687 : vector<16x1xf32> to vector<16x32xf32>
    %696 = arith.subf %679, %695 : vector<16x32xf32>
    %cst_291 = arith.constant 9.99999974E-6 : f32
    %697 = vector.broadcast %cst_291 : f32 to vector<16x1xf32>
    %698 = arith.addf %694, %697 : vector<16x1xf32>
    %699 = math.rsqrt %698 : vector<16x1xf32>
    %700 = vector.broadcast %699 : vector<16x1xf32> to vector<16x32xf32>
    %701 = arith.mulf %696, %700 : vector<16x32xf32>
    %702 = vector.broadcast %681 : vector<1x32xf32> to vector<16x32xf32>
    %703 = arith.mulf %701, %702 : vector<16x32xf32>
    %704 = vector.broadcast %683 : vector<1x32xf32> to vector<16x32xf32>
    %705 = arith.addf %703, %704 : vector<16x32xf32>
    %c0_292 = arith.constant 0 : index
    %c0_293 = arith.constant 0 : index
    %c0_294 = arith.constant 0 : index
    %706 = vector.load %arg35[%c0_292, %c0_293, %c0_294] : memref<2x32x64xf32, #tpu.memory_space<vmem>>, vector<1x32x64xf32>
    %707 = vector.shape_cast %706 : vector<1x32x64xf32> to vector<32x64xf32>
    %cst_295 = arith.constant dense<0.000000e+00> : vector<16x64xf32>
    %708 = tpu.matmul %705, %707, %cst_295 {dimension_numbers = #tpu.dot_dimension_numbers<[1], [0], [0], [1], [0, 0, 1, 1], [], []>} : vector<16x32xf32>, vector<32x64xf32>, vector<16x64xf32> -> vector<16x64xf32>
    %c0_296 = arith.constant 0 : index
    %c0_297 = arith.constant 0 : index
    %c0_298 = arith.constant 0 : index
    %709 = vector.load %arg36[%c0_296, %c0_297, %c0_298] : memref<2x1x64xf32, #tpu.memory_space<vmem>>, vector<1x1x64xf32>
    %710 = vector.shape_cast %709 : vector<1x1x64xf32> to vector<1x64xf32>
    %711 = vector.broadcast %710 : vector<1x64xf32> to vector<16x64xf32>
    %712 = arith.addf %708, %711 : vector<16x64xf32>
    %cst_299 = arith.constant 5.000000e-01 : f32
    %713 = vector.broadcast %cst_299 : f32 to vector<16x64xf32>
    %714 = arith.mulf %713, %712 : vector<16x64xf32>
    %cst_300 = arith.constant 0.707106769 : f32
    %715 = vector.broadcast %cst_300 : f32 to vector<16x64xf32>
    %716 = arith.mulf %712, %715 : vector<16x64xf32>
    %cst_301 = arith.constant 0.000000e+00 : f32
    %717 = vector.broadcast %cst_301 : f32 to vector<16x64xf32>
    %718 = arith.cmpf olt, %716, %717 : vector<16x64xf32>
    %cst_302 = arith.constant -1.000000e+00 : f32
    %cst_303 = arith.constant 1.000000e+00 : f32
    %719 = vector.broadcast %cst_302 : f32 to vector<16x64xf32>
    %720 = vector.broadcast %cst_303 : f32 to vector<16x64xf32>
    %721 = arith.select %718, %719, %720 : vector<16x64xi1>, vector<16x64xf32>
    %722 = math.absf %716 : vector<16x64xf32>
    %cst_304 = arith.constant 0.327591091 : f32
    %723 = vector.broadcast %cst_304 : f32 to vector<16x64xf32>
    %724 = arith.mulf %723, %722 : vector<16x64xf32>
    %cst_305 = arith.constant 1.000000e+00 : f32
    %725 = vector.broadcast %cst_305 : f32 to vector<16x64xf32>
    %726 = arith.addf %725, %724 : vector<16x64xf32>
    %cst_306 = arith.constant 1.000000e+00 : f32
    %727 = vector.broadcast %cst_306 : f32 to vector<16x64xf32>
    %728 = arith.divf %727, %726 : vector<16x64xf32>
    %cst_307 = arith.constant 1.06140542 : f32
    %729 = vector.broadcast %cst_307 : f32 to vector<16x64xf32>
    %730 = arith.mulf %729, %728 : vector<16x64xf32>
    %cst_308 = arith.constant -1.45315206 : f32
    %731 = vector.broadcast %cst_308 : f32 to vector<16x64xf32>
    %732 = arith.addf %730, %731 : vector<16x64xf32>
    %733 = arith.mulf %732, %728 : vector<16x64xf32>
    %cst_309 = arith.constant 1.42141378 : f32
    %734 = vector.broadcast %cst_309 : f32 to vector<16x64xf32>
    %735 = arith.addf %733, %734 : vector<16x64xf32>
    %736 = arith.mulf %735, %728 : vector<16x64xf32>
    %cst_310 = arith.constant -0.284496725 : f32
    %737 = vector.broadcast %cst_310 : f32 to vector<16x64xf32>
    %738 = arith.addf %736, %737 : vector<16x64xf32>
    %739 = arith.mulf %738, %728 : vector<16x64xf32>
    %cst_311 = arith.constant 0.254829586 : f32
    %740 = vector.broadcast %cst_311 : f32 to vector<16x64xf32>
    %741 = arith.addf %739, %740 : vector<16x64xf32>
    %742 = arith.mulf %741, %728 : vector<16x64xf32>
    %cst_312 = arith.constant 0.000000e+00 : f32
    %743 = vector.broadcast %cst_312 : f32 to vector<16x64xf32>
    %744 = arith.subf %743, %722 : vector<16x64xf32>
    %745 = arith.mulf %744, %722 : vector<16x64xf32>
    %746 = math.exp %745 : vector<16x64xf32>
    %747 = arith.mulf %742, %746 : vector<16x64xf32>
    %cst_313 = arith.constant 1.000000e+00 : f32
    %748 = vector.broadcast %cst_313 : f32 to vector<16x64xf32>
    %749 = arith.subf %748, %747 : vector<16x64xf32>
    %750 = arith.mulf %721, %749 : vector<16x64xf32>
    %cst_314 = arith.constant 1.000000e+00 : f32
    %751 = vector.broadcast %cst_314 : f32 to vector<16x64xf32>
    %752 = arith.addf %751, %750 : vector<16x64xf32>
    %753 = arith.mulf %714, %752 : vector<16x64xf32>
    %c0_315 = arith.constant 0 : index
    %c0_316 = arith.constant 0 : index
    %c0_317 = arith.constant 0 : index
    %754 = vector.load %arg37[%c0_315, %c0_316, %c0_317] : memref<2x64x32xf32, #tpu.memory_space<vmem>>, vector<1x64x32xf32>
    %755 = vector.shape_cast %754 : vector<1x64x32xf32> to vector<64x32xf32>
    %cst_318 = arith.constant dense<0.000000e+00> : vector<16x32xf32>
    %756 = tpu.matmul %753, %755, %cst_318 {dimension_numbers = #tpu.dot_dimension_numbers<[1], [0], [0], [1], [0, 0, 1, 1], [], []>} : vector<16x64xf32>, vector<64x32xf32>, vector<16x32xf32> -> vector<16x32xf32>
    %c0_319 = arith.constant 0 : index
    %c0_320 = arith.constant 0 : index
    %c0_321 = arith.constant 0 : index
    %757 = vector.load %arg38[%c0_319, %c0_320, %c0_321] : memref<2x1x32xf32, #tpu.memory_space<vmem>>, vector<1x1x32xf32>
    %758 = vector.shape_cast %757 : vector<1x1x32xf32> to vector<1x32xf32>
    %759 = vector.broadcast %758 : vector<1x32xf32> to vector<16x32xf32>
    %760 = arith.addf %756, %759 : vector<16x32xf32>
    %761 = arith.addf %705, %760 : vector<16x32xf32>
    %c0_322 = arith.constant 0 : index
    %c0_323 = arith.constant 0 : index
    %c0_324 = arith.constant 0 : index
    %762 = vector.load %arg33[%c0_322, %c0_323, %c0_324] : memref<2x1x32xf32, #tpu.memory_space<vmem>>, vector<1x1x32xf32>
    %763 = vector.shape_cast %762 : vector<1x1x32xf32> to vector<1x32xf32>
    %c0_325 = arith.constant 0 : index
    %c0_326 = arith.constant 0 : index
    %c0_327 = arith.constant 0 : index
    %764 = vector.load %arg34[%c0_325, %c0_326, %c0_327] : memref<2x1x32xf32, #tpu.memory_space<vmem>>, vector<1x1x32xf32>
    %765 = vector.shape_cast %764 : vector<1x1x32xf32> to vector<1x32xf32>
    %cst_328 = arith.constant dense<0.000000e+00> : vector<16xf32>
    %766 = vector.multi_reduction <add>, %761, %cst_328 [1] : vector<16x32xf32> to vector<16xf32>
    %767 = vector.shape_cast %766 : vector<16xf32> to vector<16x1xf32>
    %cst_329 = arith.constant 3.200000e+01 : f32
    %768 = vector.broadcast %cst_329 : f32 to vector<16x1xf32>
    %769 = arith.divf %767, %768 : vector<16x1xf32>
    %770 = vector.broadcast %769 : vector<16x1xf32> to vector<16x32xf32>
    %771 = arith.subf %761, %770 : vector<16x32xf32>
    %772 = arith.mulf %771, %771 : vector<16x32xf32>
    %cst_330 = arith.constant dense<0.000000e+00> : vector<16xf32>
    %773 = vector.multi_reduction <add>, %772, %cst_330 [1] : vector<16x32xf32> to vector<16xf32>
    %774 = vector.shape_cast %773 : vector<16xf32> to vector<16x1xf32>
    %cst_331 = arith.constant 3.200000e+01 : f32
    %775 = vector.broadcast %cst_331 : f32 to vector<16x1xf32>
    %776 = arith.divf %774, %775 : vector<16x1xf32>
    %777 = vector.broadcast %769 : vector<16x1xf32> to vector<16x32xf32>
    %778 = arith.subf %761, %777 : vector<16x32xf32>
    %cst_332 = arith.constant 9.99999974E-6 : f32
    %779 = vector.broadcast %cst_332 : f32 to vector<16x1xf32>
    %780 = arith.addf %776, %779 : vector<16x1xf32>
    %781 = math.rsqrt %780 : vector<16x1xf32>
    %782 = vector.broadcast %781 : vector<16x1xf32> to vector<16x32xf32>
    %783 = arith.mulf %778, %782 : vector<16x32xf32>
    %784 = vector.broadcast %763 : vector<1x32xf32> to vector<16x32xf32>
    %785 = arith.mulf %783, %784 : vector<16x32xf32>
    %786 = vector.broadcast %765 : vector<1x32xf32> to vector<16x32xf32>
    %787 = arith.addf %785, %786 : vector<16x32xf32>
    %c1_333 = arith.constant 1 : index
    %c0_334 = arith.constant 0 : index
    %c0_335 = arith.constant 0 : index
    %788 = vector.load %arg19[%c1_333, %c0_334, %c0_335] : memref<2x32x96xf32, #tpu.memory_space<vmem>>, vector<1x32x96xf32>
    %789 = vector.shape_cast %788 : vector<1x32x96xf32> to vector<32x96xf32>
    %cst_336 = arith.constant dense<0.000000e+00> : vector<16x96xf32>
    %790 = tpu.matmul %787, %789, %cst_336 {dimension_numbers = #tpu.dot_dimension_numbers<[1], [0], [0], [1], [0, 0, 1, 1], [], []>} : vector<16x32xf32>, vector<32x96xf32>, vector<16x96xf32> -> vector<16x96xf32>
    %c1_337 = arith.constant 1 : index
    %c0_338 = arith.constant 0 : index
    %c0_339 = arith.constant 0 : index
    %791 = vector.load %arg20[%c1_337, %c0_338, %c0_339] : memref<2x1x96xf32, #tpu.memory_space<vmem>>, vector<1x1x96xf32>
    %792 = vector.shape_cast %791 : vector<1x1x96xf32> to vector<1x96xf32>
    %793 = vector.broadcast %792 : vector<1x96xf32> to vector<16x96xf32>
    %794 = arith.addf %790, %793 : vector<16x96xf32>
    %795 = vector.extract_strided_slice %794 {offsets = [0, 0], sizes = [16, 32], strides = [1, 1]} : vector<16x96xf32> to vector<16x32xf32>
    %796 = vector.extract_strided_slice %794 {offsets = [0, 32], sizes = [16, 32], strides = [1, 1]} : vector<16x96xf32> to vector<16x32xf32>
    %797 = vector.extract_strided_slice %794 {offsets = [0, 64], sizes = [16, 32], strides = [1, 1]} : vector<16x96xf32> to vector<16x32xf32>
    %798 = vector.shape_cast %795 : vector<16x32xf32> to vector<2x8x32xf32>
    %799 = vector.shape_cast %796 : vector<16x32xf32> to vector<2x8x32xf32>
    %800 = vector.shape_cast %797 : vector<16x32xf32> to vector<2x8x32xf32>
    %801 = vector.extract_strided_slice %798 {offsets = [0, 0, 0], sizes = [2, 8, 8], strides = [1, 1, 1]} : vector<2x8x32xf32> to vector<2x8x8xf32>
    %802 = vector.extract_strided_slice %799 {offsets = [0, 0, 0], sizes = [2, 8, 8], strides = [1, 1, 1]} : vector<2x8x32xf32> to vector<2x8x8xf32>
    "tpu.trace_start"() <{level = 10 : i32, message = "bqd,bkd->bqk"}> : () -> ()
    %cst_340 = arith.constant dense<0.000000e+00> : vector<2x8x8xf32>
    %803 = tpu.matmul %801, %802, %cst_340 {dimension_numbers = #tpu.dot_dimension_numbers<[2], [2], [1], [1], [0, 0, 0, 1, 1, 1], [0], [0]>} : vector<2x8x8xf32>, vector<2x8x8xf32>, vector<2x8x8xf32> -> vector<2x8x8xf32>
    "tpu.trace_stop"() : () -> ()
    %cst_341 = arith.constant 0.353553385 : f32
    %804 = vector.broadcast %cst_341 : f32 to vector<2x8x8xf32>
    %805 = arith.mulf %803, %804 : vector<2x8x8xf32>
    %806 = arith.addf %805, %452 : vector<2x8x8xf32>
    %cst_342 = arith.constant dense<0xFF800000> : vector<2x8xf32>
    %807 = vector.multi_reduction <maximumf>, %806, %cst_342 [2] : vector<2x8x8xf32> to vector<2x8xf32>
    %808 = vector.shape_cast %807 : vector<2x8xf32> to vector<2x8x1xf32>
    %809 = vector.broadcast %808 : vector<2x8x1xf32> to vector<2x8x8xf32>
    %810 = arith.subf %806, %809 : vector<2x8x8xf32>
    %811 = math.exp %810 : vector<2x8x8xf32>
    %cst_343 = arith.constant dense<0.000000e+00> : vector<2x8xf32>
    %812 = vector.multi_reduction <add>, %811, %cst_343 [2] : vector<2x8x8xf32> to vector<2x8xf32>
    %813 = vector.shape_cast %812 : vector<2x8xf32> to vector<2x8x1xf32>
    %814 = tpu.reciprocal %813 {approx = true} : vector<2x8x1xf32> -> vector<2x8x1xf32>
    %815 = vector.broadcast %814 : vector<2x8x1xf32> to vector<2x8x8xf32>
    %816 = arith.mulf %811, %815 : vector<2x8x8xf32>
    %817 = vector.extract_strided_slice %800 {offsets = [0, 0, 0], sizes = [2, 8, 8], strides = [1, 1, 1]} : vector<2x8x32xf32> to vector<2x8x8xf32>
    "tpu.trace_start"() <{level = 10 : i32, message = "bqk,bkd->bqd"}> : () -> ()
    %cst_344 = arith.constant dense<0.000000e+00> : vector<2x8x8xf32>
    %818 = tpu.matmul %816, %817, %cst_344 {dimension_numbers = #tpu.dot_dimension_numbers<[2], [1], [1], [2], [0, 0, 0, 1, 1, 2], [0], [0]>} : vector<2x8x8xf32>, vector<2x8x8xf32>, vector<2x8x8xf32> -> vector<2x8x8xf32>
    "tpu.trace_stop"() : () -> ()
    %819 = vector.extract_strided_slice %798 {offsets = [0, 0, 8], sizes = [2, 8, 8], strides = [1, 1, 1]} : vector<2x8x32xf32> to vector<2x8x8xf32>
    %820 = vector.extract_strided_slice %799 {offsets = [0, 0, 8], sizes = [2, 8, 8], strides = [1, 1, 1]} : vector<2x8x32xf32> to vector<2x8x8xf32>
    "tpu.trace_start"() <{level = 10 : i32, message = "bqd,bkd->bqk"}> : () -> ()
    %cst_345 = arith.constant dense<0.000000e+00> : vector<2x8x8xf32>
    %821 = tpu.matmul %819, %820, %cst_345 {dimension_numbers = #tpu.dot_dimension_numbers<[2], [2], [1], [1], [0, 0, 0, 1, 1, 1], [0], [0]>} : vector<2x8x8xf32>, vector<2x8x8xf32>, vector<2x8x8xf32> -> vector<2x8x8xf32>
    "tpu.trace_stop"() : () -> ()
    %cst_346 = arith.constant 0.353553385 : f32
    %822 = vector.broadcast %cst_346 : f32 to vector<2x8x8xf32>
    %823 = arith.mulf %821, %822 : vector<2x8x8xf32>
    %824 = arith.addf %823, %452 : vector<2x8x8xf32>
    %cst_347 = arith.constant dense<0xFF800000> : vector<2x8xf32>
    %825 = vector.multi_reduction <maximumf>, %824, %cst_347 [2] : vector<2x8x8xf32> to vector<2x8xf32>
    %826 = vector.shape_cast %825 : vector<2x8xf32> to vector<2x8x1xf32>
    %827 = vector.broadcast %826 : vector<2x8x1xf32> to vector<2x8x8xf32>
    %828 = arith.subf %824, %827 : vector<2x8x8xf32>
    %829 = math.exp %828 : vector<2x8x8xf32>
    %cst_348 = arith.constant dense<0.000000e+00> : vector<2x8xf32>
    %830 = vector.multi_reduction <add>, %829, %cst_348 [2] : vector<2x8x8xf32> to vector<2x8xf32>
    %831 = vector.shape_cast %830 : vector<2x8xf32> to vector<2x8x1xf32>
    %832 = tpu.reciprocal %831 {approx = true} : vector<2x8x1xf32> -> vector<2x8x1xf32>
    %833 = vector.broadcast %832 : vector<2x8x1xf32> to vector<2x8x8xf32>
    %834 = arith.mulf %829, %833 : vector<2x8x8xf32>
    %835 = vector.extract_strided_slice %800 {offsets = [0, 0, 8], sizes = [2, 8, 8], strides = [1, 1, 1]} : vector<2x8x32xf32> to vector<2x8x8xf32>
    "tpu.trace_start"() <{level = 10 : i32, message = "bqk,bkd->bqd"}> : () -> ()
    %cst_349 = arith.constant dense<0.000000e+00> : vector<2x8x8xf32>
    %836 = tpu.matmul %834, %835, %cst_349 {dimension_numbers = #tpu.dot_dimension_numbers<[2], [1], [1], [2], [0, 0, 0, 1, 1, 2], [0], [0]>} : vector<2x8x8xf32>, vector<2x8x8xf32>, vector<2x8x8xf32> -> vector<2x8x8xf32>
    "tpu.trace_stop"() : () -> ()
    %837 = vector.extract_strided_slice %798 {offsets = [0, 0, 16], sizes = [2, 8, 8], strides = [1, 1, 1]} : vector<2x8x32xf32> to vector<2x8x8xf32>
    %838 = vector.extract_strided_slice %799 {offsets = [0, 0, 16], sizes = [2, 8, 8], strides = [1, 1, 1]} : vector<2x8x32xf32> to vector<2x8x8xf32>
    "tpu.trace_start"() <{level = 10 : i32, message = "bqd,bkd->bqk"}> : () -> ()
    %cst_350 = arith.constant dense<0.000000e+00> : vector<2x8x8xf32>
    %839 = tpu.matmul %837, %838, %cst_350 {dimension_numbers = #tpu.dot_dimension_numbers<[2], [2], [1], [1], [0, 0, 0, 1, 1, 1], [0], [0]>} : vector<2x8x8xf32>, vector<2x8x8xf32>, vector<2x8x8xf32> -> vector<2x8x8xf32>
    "tpu.trace_stop"() : () -> ()
    %cst_351 = arith.constant 0.353553385 : f32
    %840 = vector.broadcast %cst_351 : f32 to vector<2x8x8xf32>
    %841 = arith.mulf %839, %840 : vector<2x8x8xf32>
    %842 = arith.addf %841, %452 : vector<2x8x8xf32>
    %cst_352 = arith.constant dense<0xFF800000> : vector<2x8xf32>
    %843 = vector.multi_reduction <maximumf>, %842, %cst_352 [2] : vector<2x8x8xf32> to vector<2x8xf32>
    %844 = vector.shape_cast %843 : vector<2x8xf32> to vector<2x8x1xf32>
    %845 = vector.broadcast %844 : vector<2x8x1xf32> to vector<2x8x8xf32>
    %846 = arith.subf %842, %845 : vector<2x8x8xf32>
    %847 = math.exp %846 : vector<2x8x8xf32>
    %cst_353 = arith.constant dense<0.000000e+00> : vector<2x8xf32>
    %848 = vector.multi_reduction <add>, %847, %cst_353 [2] : vector<2x8x8xf32> to vector<2x8xf32>
    %849 = vector.shape_cast %848 : vector<2x8xf32> to vector<2x8x1xf32>
    %850 = tpu.reciprocal %849 {approx = true} : vector<2x8x1xf32> -> vector<2x8x1xf32>
    %851 = vector.broadcast %850 : vector<2x8x1xf32> to vector<2x8x8xf32>
    %852 = arith.mulf %847, %851 : vector<2x8x8xf32>
    %853 = vector.extract_strided_slice %800 {offsets = [0, 0, 16], sizes = [2, 8, 8], strides = [1, 1, 1]} : vector<2x8x32xf32> to vector<2x8x8xf32>
    "tpu.trace_start"() <{level = 10 : i32, message = "bqk,bkd->bqd"}> : () -> ()
    %cst_354 = arith.constant dense<0.000000e+00> : vector<2x8x8xf32>
    %854 = tpu.matmul %852, %853, %cst_354 {dimension_numbers = #tpu.dot_dimension_numbers<[2], [1], [1], [2], [0, 0, 0, 1, 1, 2], [0], [0]>} : vector<2x8x8xf32>, vector<2x8x8xf32>, vector<2x8x8xf32> -> vector<2x8x8xf32>
    "tpu.trace_stop"() : () -> ()
    %855 = vector.extract_strided_slice %798 {offsets = [0, 0, 24], sizes = [2, 8, 8], strides = [1, 1, 1]} : vector<2x8x32xf32> to vector<2x8x8xf32>
    %856 = vector.extract_strided_slice %799 {offsets = [0, 0, 24], sizes = [2, 8, 8], strides = [1, 1, 1]} : vector<2x8x32xf32> to vector<2x8x8xf32>
    "tpu.trace_start"() <{level = 10 : i32, message = "bqd,bkd->bqk"}> : () -> ()
    %cst_355 = arith.constant dense<0.000000e+00> : vector<2x8x8xf32>
    %857 = tpu.matmul %855, %856, %cst_355 {dimension_numbers = #tpu.dot_dimension_numbers<[2], [2], [1], [1], [0, 0, 0, 1, 1, 1], [0], [0]>} : vector<2x8x8xf32>, vector<2x8x8xf32>, vector<2x8x8xf32> -> vector<2x8x8xf32>
    "tpu.trace_stop"() : () -> ()
    %cst_356 = arith.constant 0.353553385 : f32
    %858 = vector.broadcast %cst_356 : f32 to vector<2x8x8xf32>
    %859 = arith.mulf %857, %858 : vector<2x8x8xf32>
    %860 = arith.addf %859, %452 : vector<2x8x8xf32>
    %cst_357 = arith.constant dense<0xFF800000> : vector<2x8xf32>
    %861 = vector.multi_reduction <maximumf>, %860, %cst_357 [2] : vector<2x8x8xf32> to vector<2x8xf32>
    %862 = vector.shape_cast %861 : vector<2x8xf32> to vector<2x8x1xf32>
    %863 = vector.broadcast %862 : vector<2x8x1xf32> to vector<2x8x8xf32>
    %864 = arith.subf %860, %863 : vector<2x8x8xf32>
    %865 = math.exp %864 : vector<2x8x8xf32>
    %cst_358 = arith.constant dense<0.000000e+00> : vector<2x8xf32>
    %866 = vector.multi_reduction <add>, %865, %cst_358 [2] : vector<2x8x8xf32> to vector<2x8xf32>
    %867 = vector.shape_cast %866 : vector<2x8xf32> to vector<2x8x1xf32>
    %868 = tpu.reciprocal %867 {approx = true} : vector<2x8x1xf32> -> vector<2x8x1xf32>
    %869 = vector.broadcast %868 : vector<2x8x1xf32> to vector<2x8x8xf32>
    %870 = arith.mulf %865, %869 : vector<2x8x8xf32>
    %871 = vector.extract_strided_slice %800 {offsets = [0, 0, 24], sizes = [2, 8, 8], strides = [1, 1, 1]} : vector<2x8x32xf32> to vector<2x8x8xf32>
    "tpu.trace_start"() <{level = 10 : i32, message = "bqk,bkd->bqd"}> : () -> ()
    %cst_359 = arith.constant dense<0.000000e+00> : vector<2x8x8xf32>
    %872 = tpu.matmul %870, %871, %cst_359 {dimension_numbers = #tpu.dot_dimension_numbers<[2], [1], [1], [2], [0, 0, 0, 1, 1, 2], [0], [0]>} : vector<2x8x8xf32>, vector<2x8x8xf32>, vector<2x8x8xf32> -> vector<2x8x8xf32>
    "tpu.trace_stop"() : () -> ()
    %873 = tpu.concatenate %818, %836, %854, %872 in 2 : vector<2x8x8xf32>, vector<2x8x8xf32>, vector<2x8x8xf32>, vector<2x8x8xf32> -> vector<2x8x32xf32>
    %874 = vector.shape_cast %873 : vector<2x8x32xf32> to vector<16x32xf32>
    %c1_360 = arith.constant 1 : index
    %c0_361 = arith.constant 0 : index
    %c0_362 = arith.constant 0 : index
    %875 = vector.load %arg21[%c1_360, %c0_361, %c0_362] : memref<2x32x32xf32, #tpu.memory_space<vmem>>, vector<1x32x32xf32>
    %876 = vector.shape_cast %875 : vector<1x32x32xf32> to vector<32x32xf32>
    %cst_363 = arith.constant dense<0.000000e+00> : vector<16x32xf32>
    %877 = tpu.matmul %874, %876, %cst_363 {dimension_numbers = #tpu.dot_dimension_numbers<[1], [0], [0], [1], [0, 0, 1, 1], [], []>} : vector<16x32xf32>, vector<32x32xf32>, vector<16x32xf32> -> vector<16x32xf32>
    %c1_364 = arith.constant 1 : index
    %c0_365 = arith.constant 0 : index
    %c0_366 = arith.constant 0 : index
    %878 = vector.load %arg22[%c1_364, %c0_365, %c0_366] : memref<2x1x32xf32, #tpu.memory_space<vmem>>, vector<1x1x32xf32>
    %879 = vector.shape_cast %878 : vector<1x1x32xf32> to vector<1x32xf32>
    %880 = vector.broadcast %879 : vector<1x32xf32> to vector<16x32xf32>
    %881 = arith.addf %877, %880 : vector<16x32xf32>
    %882 = arith.addf %787, %881 : vector<16x32xf32>
    %c1_367 = arith.constant 1 : index
    %c0_368 = arith.constant 0 : index
    %c0_369 = arith.constant 0 : index
    %883 = vector.load %arg29[%c1_367, %c0_368, %c0_369] : memref<2x1x32xf32, #tpu.memory_space<vmem>>, vector<1x1x32xf32>
    %884 = vector.shape_cast %883 : vector<1x1x32xf32> to vector<1x32xf32>
    %c1_370 = arith.constant 1 : index
    %c0_371 = arith.constant 0 : index
    %c0_372 = arith.constant 0 : index
    %885 = vector.load %arg30[%c1_370, %c0_371, %c0_372] : memref<2x1x32xf32, #tpu.memory_space<vmem>>, vector<1x1x32xf32>
    %886 = vector.shape_cast %885 : vector<1x1x32xf32> to vector<1x32xf32>
    %cst_373 = arith.constant dense<0.000000e+00> : vector<16xf32>
    %887 = vector.multi_reduction <add>, %882, %cst_373 [1] : vector<16x32xf32> to vector<16xf32>
    %888 = vector.shape_cast %887 : vector<16xf32> to vector<16x1xf32>
    %cst_374 = arith.constant 3.200000e+01 : f32
    %889 = vector.broadcast %cst_374 : f32 to vector<16x1xf32>
    %890 = arith.divf %888, %889 : vector<16x1xf32>
    %891 = vector.broadcast %890 : vector<16x1xf32> to vector<16x32xf32>
    %892 = arith.subf %882, %891 : vector<16x32xf32>
    %893 = arith.mulf %892, %892 : vector<16x32xf32>
    %cst_375 = arith.constant dense<0.000000e+00> : vector<16xf32>
    %894 = vector.multi_reduction <add>, %893, %cst_375 [1] : vector<16x32xf32> to vector<16xf32>
    %895 = vector.shape_cast %894 : vector<16xf32> to vector<16x1xf32>
    %cst_376 = arith.constant 3.200000e+01 : f32
    %896 = vector.broadcast %cst_376 : f32 to vector<16x1xf32>
    %897 = arith.divf %895, %896 : vector<16x1xf32>
    %898 = vector.broadcast %890 : vector<16x1xf32> to vector<16x32xf32>
    %899 = arith.subf %882, %898 : vector<16x32xf32>
    %cst_377 = arith.constant 9.99999974E-6 : f32
    %900 = vector.broadcast %cst_377 : f32 to vector<16x1xf32>
    %901 = arith.addf %897, %900 : vector<16x1xf32>
    %902 = math.rsqrt %901 : vector<16x1xf32>
    %903 = vector.broadcast %902 : vector<16x1xf32> to vector<16x32xf32>
    %904 = arith.mulf %899, %903 : vector<16x32xf32>
    %905 = vector.broadcast %884 : vector<1x32xf32> to vector<16x32xf32>
    %906 = arith.mulf %904, %905 : vector<16x32xf32>
    %907 = vector.broadcast %886 : vector<1x32xf32> to vector<16x32xf32>
    %908 = arith.addf %906, %907 : vector<16x32xf32>
    %c1_378 = arith.constant 1 : index
    %c0_379 = arith.constant 0 : index
    %c0_380 = arith.constant 0 : index
    %909 = vector.load %arg23[%c1_378, %c0_379, %c0_380] : memref<2x32x32xf32, #tpu.memory_space<vmem>>, vector<1x32x32xf32>
    %910 = vector.shape_cast %909 : vector<1x32x32xf32> to vector<32x32xf32>
    %cst_381 = arith.constant dense<0.000000e+00> : vector<16x32xf32>
    %911 = tpu.matmul %908, %910, %cst_381 {dimension_numbers = #tpu.dot_dimension_numbers<[1], [0], [0], [1], [0, 0, 1, 1], [], []>} : vector<16x32xf32>, vector<32x32xf32>, vector<16x32xf32> -> vector<16x32xf32>
    %c1_382 = arith.constant 1 : index
    %c0_383 = arith.constant 0 : index
    %c0_384 = arith.constant 0 : index
    %912 = vector.load %arg24[%c1_382, %c0_383, %c0_384] : memref<2x1x32xf32, #tpu.memory_space<vmem>>, vector<1x1x32xf32>
    %913 = vector.shape_cast %912 : vector<1x1x32xf32> to vector<1x32xf32>
    %914 = vector.broadcast %913 : vector<1x32xf32> to vector<16x32xf32>
    %915 = arith.addf %911, %914 : vector<16x32xf32>
    %c1_385 = arith.constant 1 : index
    %c0_386 = arith.constant 0 : index
    %c0_387 = arith.constant 0 : index
    %916 = vector.load %arg25[%c1_385, %c0_386, %c0_387] : memref<2x32x64xf32, #tpu.memory_space<vmem>>, vector<1x32x64xf32>
    %917 = vector.shape_cast %916 : vector<1x32x64xf32> to vector<32x64xf32>
    %cst_388 = arith.constant dense<0.000000e+00> : vector<16x64xf32>
    %918 = tpu.matmul %440, %917, %cst_388 {dimension_numbers = #tpu.dot_dimension_numbers<[1], [0], [0], [1], [0, 0, 1, 1], [], []>} : vector<16x32xf32>, vector<32x64xf32>, vector<16x64xf32> -> vector<16x64xf32>
    %c1_389 = arith.constant 1 : index
    %c0_390 = arith.constant 0 : index
    %c0_391 = arith.constant 0 : index
    %919 = vector.load %arg26[%c1_389, %c0_390, %c0_391] : memref<2x1x64xf32, #tpu.memory_space<vmem>>, vector<1x1x64xf32>
    %920 = vector.shape_cast %919 : vector<1x1x64xf32> to vector<1x64xf32>
    %921 = vector.broadcast %920 : vector<1x64xf32> to vector<16x64xf32>
    %922 = arith.addf %918, %921 : vector<16x64xf32>
    %923 = vector.extract_strided_slice %922 {offsets = [0, 0], sizes = [16, 32], strides = [1, 1]} : vector<16x64xf32> to vector<16x32xf32>
    %924 = vector.extract_strided_slice %922 {offsets = [0, 32], sizes = [16, 32], strides = [1, 1]} : vector<16x64xf32> to vector<16x32xf32>
    %925 = vector.shape_cast %915 : vector<16x32xf32> to vector<2x8x32xf32>
    %926 = vector.shape_cast %923 : vector<16x32xf32> to vector<2x8x32xf32>
    %927 = vector.shape_cast %924 : vector<16x32xf32> to vector<2x8x32xf32>
    %928 = vector.extract_strided_slice %925 {offsets = [0, 0, 0], sizes = [2, 8, 8], strides = [1, 1, 1]} : vector<2x8x32xf32> to vector<2x8x8xf32>
    %929 = vector.extract_strided_slice %926 {offsets = [0, 0, 0], sizes = [2, 8, 8], strides = [1, 1, 1]} : vector<2x8x32xf32> to vector<2x8x8xf32>
    "tpu.trace_start"() <{level = 10 : i32, message = "bqd,bkd->bqk"}> : () -> ()
    %cst_392 = arith.constant dense<0.000000e+00> : vector<2x8x8xf32>
    %930 = tpu.matmul %928, %929, %cst_392 {dimension_numbers = #tpu.dot_dimension_numbers<[2], [2], [1], [1], [0, 0, 0, 1, 1, 1], [0], [0]>} : vector<2x8x8xf32>, vector<2x8x8xf32>, vector<2x8x8xf32> -> vector<2x8x8xf32>
    "tpu.trace_stop"() : () -> ()
    %cst_393 = arith.constant 0.353553385 : f32
    %931 = vector.broadcast %cst_393 : f32 to vector<2x8x8xf32>
    %932 = arith.mulf %930, %931 : vector<2x8x8xf32>
    %933 = vector.broadcast %453 : vector<2x1x8xf32> to vector<2x8x8xf32>
    %934 = arith.addf %932, %933 : vector<2x8x8xf32>
    %cst_394 = arith.constant dense<0xFF800000> : vector<2x8xf32>
    %935 = vector.multi_reduction <maximumf>, %934, %cst_394 [2] : vector<2x8x8xf32> to vector<2x8xf32>
    %936 = vector.shape_cast %935 : vector<2x8xf32> to vector<2x8x1xf32>
    %937 = vector.broadcast %936 : vector<2x8x1xf32> to vector<2x8x8xf32>
    %938 = arith.subf %934, %937 : vector<2x8x8xf32>
    %939 = math.exp %938 : vector<2x8x8xf32>
    %cst_395 = arith.constant dense<0.000000e+00> : vector<2x8xf32>
    %940 = vector.multi_reduction <add>, %939, %cst_395 [2] : vector<2x8x8xf32> to vector<2x8xf32>
    %941 = vector.shape_cast %940 : vector<2x8xf32> to vector<2x8x1xf32>
    %942 = tpu.reciprocal %941 {approx = true} : vector<2x8x1xf32> -> vector<2x8x1xf32>
    %943 = vector.broadcast %942 : vector<2x8x1xf32> to vector<2x8x8xf32>
    %944 = arith.mulf %939, %943 : vector<2x8x8xf32>
    %945 = vector.extract_strided_slice %927 {offsets = [0, 0, 0], sizes = [2, 8, 8], strides = [1, 1, 1]} : vector<2x8x32xf32> to vector<2x8x8xf32>
    "tpu.trace_start"() <{level = 10 : i32, message = "bqk,bkd->bqd"}> : () -> ()
    %cst_396 = arith.constant dense<0.000000e+00> : vector<2x8x8xf32>
    %946 = tpu.matmul %944, %945, %cst_396 {dimension_numbers = #tpu.dot_dimension_numbers<[2], [1], [1], [2], [0, 0, 0, 1, 1, 2], [0], [0]>} : vector<2x8x8xf32>, vector<2x8x8xf32>, vector<2x8x8xf32> -> vector<2x8x8xf32>
    "tpu.trace_stop"() : () -> ()
    %947 = vector.extract_strided_slice %925 {offsets = [0, 0, 8], sizes = [2, 8, 8], strides = [1, 1, 1]} : vector<2x8x32xf32> to vector<2x8x8xf32>
    %948 = vector.extract_strided_slice %926 {offsets = [0, 0, 8], sizes = [2, 8, 8], strides = [1, 1, 1]} : vector<2x8x32xf32> to vector<2x8x8xf32>
    "tpu.trace_start"() <{level = 10 : i32, message = "bqd,bkd->bqk"}> : () -> ()
    %cst_397 = arith.constant dense<0.000000e+00> : vector<2x8x8xf32>
    %949 = tpu.matmul %947, %948, %cst_397 {dimension_numbers = #tpu.dot_dimension_numbers<[2], [2], [1], [1], [0, 0, 0, 1, 1, 1], [0], [0]>} : vector<2x8x8xf32>, vector<2x8x8xf32>, vector<2x8x8xf32> -> vector<2x8x8xf32>
    "tpu.trace_stop"() : () -> ()
    %cst_398 = arith.constant 0.353553385 : f32
    %950 = vector.broadcast %cst_398 : f32 to vector<2x8x8xf32>
    %951 = arith.mulf %949, %950 : vector<2x8x8xf32>
    %952 = vector.broadcast %453 : vector<2x1x8xf32> to vector<2x8x8xf32>
    %953 = arith.addf %951, %952 : vector<2x8x8xf32>
    %cst_399 = arith.constant dense<0xFF800000> : vector<2x8xf32>
    %954 = vector.multi_reduction <maximumf>, %953, %cst_399 [2] : vector<2x8x8xf32> to vector<2x8xf32>
    %955 = vector.shape_cast %954 : vector<2x8xf32> to vector<2x8x1xf32>
    %956 = vector.broadcast %955 : vector<2x8x1xf32> to vector<2x8x8xf32>
    %957 = arith.subf %953, %956 : vector<2x8x8xf32>
    %958 = math.exp %957 : vector<2x8x8xf32>
    %cst_400 = arith.constant dense<0.000000e+00> : vector<2x8xf32>
    %959 = vector.multi_reduction <add>, %958, %cst_400 [2] : vector<2x8x8xf32> to vector<2x8xf32>
    %960 = vector.shape_cast %959 : vector<2x8xf32> to vector<2x8x1xf32>
    %961 = tpu.reciprocal %960 {approx = true} : vector<2x8x1xf32> -> vector<2x8x1xf32>
    %962 = vector.broadcast %961 : vector<2x8x1xf32> to vector<2x8x8xf32>
    %963 = arith.mulf %958, %962 : vector<2x8x8xf32>
    %964 = vector.extract_strided_slice %927 {offsets = [0, 0, 8], sizes = [2, 8, 8], strides = [1, 1, 1]} : vector<2x8x32xf32> to vector<2x8x8xf32>
    "tpu.trace_start"() <{level = 10 : i32, message = "bqk,bkd->bqd"}> : () -> ()
    %cst_401 = arith.constant dense<0.000000e+00> : vector<2x8x8xf32>
    %965 = tpu.matmul %963, %964, %cst_401 {dimension_numbers = #tpu.dot_dimension_numbers<[2], [1], [1], [2], [0, 0, 0, 1, 1, 2], [0], [0]>} : vector<2x8x8xf32>, vector<2x8x8xf32>, vector<2x8x8xf32> -> vector<2x8x8xf32>
    "tpu.trace_stop"() : () -> ()
    %966 = vector.extract_strided_slice %925 {offsets = [0, 0, 16], sizes = [2, 8, 8], strides = [1, 1, 1]} : vector<2x8x32xf32> to vector<2x8x8xf32>
    %967 = vector.extract_strided_slice %926 {offsets = [0, 0, 16], sizes = [2, 8, 8], strides = [1, 1, 1]} : vector<2x8x32xf32> to vector<2x8x8xf32>
    "tpu.trace_start"() <{level = 10 : i32, message = "bqd,bkd->bqk"}> : () -> ()
    %cst_402 = arith.constant dense<0.000000e+00> : vector<2x8x8xf32>
    %968 = tpu.matmul %966, %967, %cst_402 {dimension_numbers = #tpu.dot_dimension_numbers<[2], [2], [1], [1], [0, 0, 0, 1, 1, 1], [0], [0]>} : vector<2x8x8xf32>, vector<2x8x8xf32>, vector<2x8x8xf32> -> vector<2x8x8xf32>
    "tpu.trace_stop"() : () -> ()
    %cst_403 = arith.constant 0.353553385 : f32
    %969 = vector.broadcast %cst_403 : f32 to vector<2x8x8xf32>
    %970 = arith.mulf %968, %969 : vector<2x8x8xf32>
    %971 = vector.broadcast %453 : vector<2x1x8xf32> to vector<2x8x8xf32>
    %972 = arith.addf %970, %971 : vector<2x8x8xf32>
    %cst_404 = arith.constant dense<0xFF800000> : vector<2x8xf32>
    %973 = vector.multi_reduction <maximumf>, %972, %cst_404 [2] : vector<2x8x8xf32> to vector<2x8xf32>
    %974 = vector.shape_cast %973 : vector<2x8xf32> to vector<2x8x1xf32>
    %975 = vector.broadcast %974 : vector<2x8x1xf32> to vector<2x8x8xf32>
    %976 = arith.subf %972, %975 : vector<2x8x8xf32>
    %977 = math.exp %976 : vector<2x8x8xf32>
    %cst_405 = arith.constant dense<0.000000e+00> : vector<2x8xf32>
    %978 = vector.multi_reduction <add>, %977, %cst_405 [2] : vector<2x8x8xf32> to vector<2x8xf32>
    %979 = vector.shape_cast %978 : vector<2x8xf32> to vector<2x8x1xf32>
    %980 = tpu.reciprocal %979 {approx = true} : vector<2x8x1xf32> -> vector<2x8x1xf32>
    %981 = vector.broadcast %980 : vector<2x8x1xf32> to vector<2x8x8xf32>
    %982 = arith.mulf %977, %981 : vector<2x8x8xf32>
    %983 = vector.extract_strided_slice %927 {offsets = [0, 0, 16], sizes = [2, 8, 8], strides = [1, 1, 1]} : vector<2x8x32xf32> to vector<2x8x8xf32>
    "tpu.trace_start"() <{level = 10 : i32, message = "bqk,bkd->bqd"}> : () -> ()
    %cst_406 = arith.constant dense<0.000000e+00> : vector<2x8x8xf32>
    %984 = tpu.matmul %982, %983, %cst_406 {dimension_numbers = #tpu.dot_dimension_numbers<[2], [1], [1], [2], [0, 0, 0, 1, 1, 2], [0], [0]>} : vector<2x8x8xf32>, vector<2x8x8xf32>, vector<2x8x8xf32> -> vector<2x8x8xf32>
    "tpu.trace_stop"() : () -> ()
    %985 = vector.extract_strided_slice %925 {offsets = [0, 0, 24], sizes = [2, 8, 8], strides = [1, 1, 1]} : vector<2x8x32xf32> to vector<2x8x8xf32>
    %986 = vector.extract_strided_slice %926 {offsets = [0, 0, 24], sizes = [2, 8, 8], strides = [1, 1, 1]} : vector<2x8x32xf32> to vector<2x8x8xf32>
    "tpu.trace_start"() <{level = 10 : i32, message = "bqd,bkd->bqk"}> : () -> ()
    %cst_407 = arith.constant dense<0.000000e+00> : vector<2x8x8xf32>
    %987 = tpu.matmul %985, %986, %cst_407 {dimension_numbers = #tpu.dot_dimension_numbers<[2], [2], [1], [1], [0, 0, 0, 1, 1, 1], [0], [0]>} : vector<2x8x8xf32>, vector<2x8x8xf32>, vector<2x8x8xf32> -> vector<2x8x8xf32>
    "tpu.trace_stop"() : () -> ()
    %cst_408 = arith.constant 0.353553385 : f32
    %988 = vector.broadcast %cst_408 : f32 to vector<2x8x8xf32>
    %989 = arith.mulf %987, %988 : vector<2x8x8xf32>
    %990 = vector.broadcast %453 : vector<2x1x8xf32> to vector<2x8x8xf32>
    %991 = arith.addf %989, %990 : vector<2x8x8xf32>
    %cst_409 = arith.constant dense<0xFF800000> : vector<2x8xf32>
    %992 = vector.multi_reduction <maximumf>, %991, %cst_409 [2] : vector<2x8x8xf32> to vector<2x8xf32>
    %993 = vector.shape_cast %992 : vector<2x8xf32> to vector<2x8x1xf32>
    %994 = vector.broadcast %993 : vector<2x8x1xf32> to vector<2x8x8xf32>
    %995 = arith.subf %991, %994 : vector<2x8x8xf32>
    %996 = math.exp %995 : vector<2x8x8xf32>
    %cst_410 = arith.constant dense<0.000000e+00> : vector<2x8xf32>
    %997 = vector.multi_reduction <add>, %996, %cst_410 [2] : vector<2x8x8xf32> to vector<2x8xf32>
    %998 = vector.shape_cast %997 : vector<2x8xf32> to vector<2x8x1xf32>
    %999 = tpu.reciprocal %998 {approx = true} : vector<2x8x1xf32> -> vector<2x8x1xf32>
    %1000 = vector.broadcast %999 : vector<2x8x1xf32> to vector<2x8x8xf32>
    %1001 = arith.mulf %996, %1000 : vector<2x8x8xf32>
    %1002 = vector.extract_strided_slice %927 {offsets = [0, 0, 24], sizes = [2, 8, 8], strides = [1, 1, 1]} : vector<2x8x32xf32> to vector<2x8x8xf32>
    "tpu.trace_start"() <{level = 10 : i32, message = "bqk,bkd->bqd"}> : () -> ()
    %cst_411 = arith.constant dense<0.000000e+00> : vector<2x8x8xf32>
    %1003 = tpu.matmul %1001, %1002, %cst_411 {dimension_numbers = #tpu.dot_dimension_numbers<[2], [1], [1], [2], [0, 0, 0, 1, 1, 2], [0], [0]>} : vector<2x8x8xf32>, vector<2x8x8xf32>, vector<2x8x8xf32> -> vector<2x8x8xf32>
    "tpu.trace_stop"() : () -> ()
    %1004 = tpu.concatenate %946, %965, %984, %1003 in 2 : vector<2x8x8xf32>, vector<2x8x8xf32>, vector<2x8x8xf32>, vector<2x8x8xf32> -> vector<2x8x32xf32>
    %1005 = vector.shape_cast %1004 : vector<2x8x32xf32> to vector<16x32xf32>
    %c1_412 = arith.constant 1 : index
    %c0_413 = arith.constant 0 : index
    %c0_414 = arith.constant 0 : index
    %1006 = vector.load %arg27[%c1_412, %c0_413, %c0_414] : memref<2x32x32xf32, #tpu.memory_space<vmem>>, vector<1x32x32xf32>
    %1007 = vector.shape_cast %1006 : vector<1x32x32xf32> to vector<32x32xf32>
    %cst_415 = arith.constant dense<0.000000e+00> : vector<16x32xf32>
    %1008 = tpu.matmul %1005, %1007, %cst_415 {dimension_numbers = #tpu.dot_dimension_numbers<[1], [0], [0], [1], [0, 0, 1, 1], [], []>} : vector<16x32xf32>, vector<32x32xf32>, vector<16x32xf32> -> vector<16x32xf32>
    %c1_416 = arith.constant 1 : index
    %c0_417 = arith.constant 0 : index
    %c0_418 = arith.constant 0 : index
    %1009 = vector.load %arg28[%c1_416, %c0_417, %c0_418] : memref<2x1x32xf32, #tpu.memory_space<vmem>>, vector<1x1x32xf32>
    %1010 = vector.shape_cast %1009 : vector<1x1x32xf32> to vector<1x32xf32>
    %1011 = vector.broadcast %1010 : vector<1x32xf32> to vector<16x32xf32>
    %1012 = arith.addf %1008, %1011 : vector<16x32xf32>
    %1013 = arith.addf %908, %1012 : vector<16x32xf32>
    %c1_419 = arith.constant 1 : index
    %c0_420 = arith.constant 0 : index
    %c0_421 = arith.constant 0 : index
    %1014 = vector.load %arg31[%c1_419, %c0_420, %c0_421] : memref<2x1x32xf32, #tpu.memory_space<vmem>>, vector<1x1x32xf32>
    %1015 = vector.shape_cast %1014 : vector<1x1x32xf32> to vector<1x32xf32>
    %c1_422 = arith.constant 1 : index
    %c0_423 = arith.constant 0 : index
    %c0_424 = arith.constant 0 : index
    %1016 = vector.load %arg32[%c1_422, %c0_423, %c0_424] : memref<2x1x32xf32, #tpu.memory_space<vmem>>, vector<1x1x32xf32>
    %1017 = vector.shape_cast %1016 : vector<1x1x32xf32> to vector<1x32xf32>
    %cst_425 = arith.constant dense<0.000000e+00> : vector<16xf32>
    %1018 = vector.multi_reduction <add>, %1013, %cst_425 [1] : vector<16x32xf32> to vector<16xf32>
    %1019 = vector.shape_cast %1018 : vector<16xf32> to vector<16x1xf32>
    %cst_426 = arith.constant 3.200000e+01 : f32
    %1020 = vector.broadcast %cst_426 : f32 to vector<16x1xf32>
    %1021 = arith.divf %1019, %1020 : vector<16x1xf32>
    %1022 = vector.broadcast %1021 : vector<16x1xf32> to vector<16x32xf32>
    %1023 = arith.subf %1013, %1022 : vector<16x32xf32>
    %1024 = arith.mulf %1023, %1023 : vector<16x32xf32>
    %cst_427 = arith.constant dense<0.000000e+00> : vector<16xf32>
    %1025 = vector.multi_reduction <add>, %1024, %cst_427 [1] : vector<16x32xf32> to vector<16xf32>
    %1026 = vector.shape_cast %1025 : vector<16xf32> to vector<16x1xf32>
    %cst_428 = arith.constant 3.200000e+01 : f32
    %1027 = vector.broadcast %cst_428 : f32 to vector<16x1xf32>
    %1028 = arith.divf %1026, %1027 : vector<16x1xf32>
    %1029 = vector.broadcast %1021 : vector<16x1xf32> to vector<16x32xf32>
    %1030 = arith.subf %1013, %1029 : vector<16x32xf32>
    %cst_429 = arith.constant 9.99999974E-6 : f32
    %1031 = vector.broadcast %cst_429 : f32 to vector<16x1xf32>
    %1032 = arith.addf %1028, %1031 : vector<16x1xf32>
    %1033 = math.rsqrt %1032 : vector<16x1xf32>
    %1034 = vector.broadcast %1033 : vector<16x1xf32> to vector<16x32xf32>
    %1035 = arith.mulf %1030, %1034 : vector<16x32xf32>
    %1036 = vector.broadcast %1015 : vector<1x32xf32> to vector<16x32xf32>
    %1037 = arith.mulf %1035, %1036 : vector<16x32xf32>
    %1038 = vector.broadcast %1017 : vector<1x32xf32> to vector<16x32xf32>
    %1039 = arith.addf %1037, %1038 : vector<16x32xf32>
    %c1_430 = arith.constant 1 : index
    %c0_431 = arith.constant 0 : index
    %c0_432 = arith.constant 0 : index
    %1040 = vector.load %arg35[%c1_430, %c0_431, %c0_432] : memref<2x32x64xf32, #tpu.memory_space<vmem>>, vector<1x32x64xf32>
    %1041 = vector.shape_cast %1040 : vector<1x32x64xf32> to vector<32x64xf32>
    %cst_433 = arith.constant dense<0.000000e+00> : vector<16x64xf32>
    %1042 = tpu.matmul %1039, %1041, %cst_433 {dimension_numbers = #tpu.dot_dimension_numbers<[1], [0], [0], [1], [0, 0, 1, 1], [], []>} : vector<16x32xf32>, vector<32x64xf32>, vector<16x64xf32> -> vector<16x64xf32>
    %c1_434 = arith.constant 1 : index
    %c0_435 = arith.constant 0 : index
    %c0_436 = arith.constant 0 : index
    %1043 = vector.load %arg36[%c1_434, %c0_435, %c0_436] : memref<2x1x64xf32, #tpu.memory_space<vmem>>, vector<1x1x64xf32>
    %1044 = vector.shape_cast %1043 : vector<1x1x64xf32> to vector<1x64xf32>
    %1045 = vector.broadcast %1044 : vector<1x64xf32> to vector<16x64xf32>
    %1046 = arith.addf %1042, %1045 : vector<16x64xf32>
    %cst_437 = arith.constant 5.000000e-01 : f32
    %1047 = vector.broadcast %cst_437 : f32 to vector<16x64xf32>
    %1048 = arith.mulf %1047, %1046 : vector<16x64xf32>
    %cst_438 = arith.constant 0.707106769 : f32
    %1049 = vector.broadcast %cst_438 : f32 to vector<16x64xf32>
    %1050 = arith.mulf %1046, %1049 : vector<16x64xf32>
    %cst_439 = arith.constant 0.000000e+00 : f32
    %1051 = vector.broadcast %cst_439 : f32 to vector<16x64xf32>
    %1052 = arith.cmpf olt, %1050, %1051 : vector<16x64xf32>
    %cst_440 = arith.constant -1.000000e+00 : f32
    %cst_441 = arith.constant 1.000000e+00 : f32
    %1053 = vector.broadcast %cst_440 : f32 to vector<16x64xf32>
    %1054 = vector.broadcast %cst_441 : f32 to vector<16x64xf32>
    %1055 = arith.select %1052, %1053, %1054 : vector<16x64xi1>, vector<16x64xf32>
    %1056 = math.absf %1050 : vector<16x64xf32>
    %cst_442 = arith.constant 0.327591091 : f32
    %1057 = vector.broadcast %cst_442 : f32 to vector<16x64xf32>
    %1058 = arith.mulf %1057, %1056 : vector<16x64xf32>
    %cst_443 = arith.constant 1.000000e+00 : f32
    %1059 = vector.broadcast %cst_443 : f32 to vector<16x64xf32>
    %1060 = arith.addf %1059, %1058 : vector<16x64xf32>
    %cst_444 = arith.constant 1.000000e+00 : f32
    %1061 = vector.broadcast %cst_444 : f32 to vector<16x64xf32>
    %1062 = arith.divf %1061, %1060 : vector<16x64xf32>
    %cst_445 = arith.constant 1.06140542 : f32
    %1063 = vector.broadcast %cst_445 : f32 to vector<16x64xf32>
    %1064 = arith.mulf %1063, %1062 : vector<16x64xf32>
    %cst_446 = arith.constant -1.45315206 : f32
    %1065 = vector.broadcast %cst_446 : f32 to vector<16x64xf32>
    %1066 = arith.addf %1064, %1065 : vector<16x64xf32>
    %1067 = arith.mulf %1066, %1062 : vector<16x64xf32>
    %cst_447 = arith.constant 1.42141378 : f32
    %1068 = vector.broadcast %cst_447 : f32 to vector<16x64xf32>
    %1069 = arith.addf %1067, %1068 : vector<16x64xf32>
    %1070 = arith.mulf %1069, %1062 : vector<16x64xf32>
    %cst_448 = arith.constant -0.284496725 : f32
    %1071 = vector.broadcast %cst_448 : f32 to vector<16x64xf32>
    %1072 = arith.addf %1070, %1071 : vector<16x64xf32>
    %1073 = arith.mulf %1072, %1062 : vector<16x64xf32>
    %cst_449 = arith.constant 0.254829586 : f32
    %1074 = vector.broadcast %cst_449 : f32 to vector<16x64xf32>
    %1075 = arith.addf %1073, %1074 : vector<16x64xf32>
    %1076 = arith.mulf %1075, %1062 : vector<16x64xf32>
    %cst_450 = arith.constant 0.000000e+00 : f32
    %1077 = vector.broadcast %cst_450 : f32 to vector<16x64xf32>
    %1078 = arith.subf %1077, %1056 : vector<16x64xf32>
    %1079 = arith.mulf %1078, %1056 : vector<16x64xf32>
    %1080 = math.exp %1079 : vector<16x64xf32>
    %1081 = arith.mulf %1076, %1080 : vector<16x64xf32>
    %cst_451 = arith.constant 1.000000e+00 : f32
    %1082 = vector.broadcast %cst_451 : f32 to vector<16x64xf32>
    %1083 = arith.subf %1082, %1081 : vector<16x64xf32>
    %1084 = arith.mulf %1055, %1083 : vector<16x64xf32>
    %cst_452 = arith.constant 1.000000e+00 : f32
    %1085 = vector.broadcast %cst_452 : f32 to vector<16x64xf32>
    %1086 = arith.addf %1085, %1084 : vector<16x64xf32>
    %1087 = arith.mulf %1048, %1086 : vector<16x64xf32>
    %c1_453 = arith.constant 1 : index
    %c0_454 = arith.constant 0 : index
    %c0_455 = arith.constant 0 : index
    %1088 = vector.load %arg37[%c1_453, %c0_454, %c0_455] : memref<2x64x32xf32, #tpu.memory_space<vmem>>, vector<1x64x32xf32>
    %1089 = vector.shape_cast %1088 : vector<1x64x32xf32> to vector<64x32xf32>
    %cst_456 = arith.constant dense<0.000000e+00> : vector<16x32xf32>
    %1090 = tpu.matmul %1087, %1089, %cst_456 {dimension_numbers = #tpu.dot_dimension_numbers<[1], [0], [0], [1], [0, 0, 1, 1], [], []>} : vector<16x64xf32>, vector<64x32xf32>, vector<16x32xf32> -> vector<16x32xf32>
    %c1_457 = arith.constant 1 : index
    %c0_458 = arith.constant 0 : index
    %c0_459 = arith.constant 0 : index
    %1091 = vector.load %arg38[%c1_457, %c0_458, %c0_459] : memref<2x1x32xf32, #tpu.memory_space<vmem>>, vector<1x1x32xf32>
    %1092 = vector.shape_cast %1091 : vector<1x1x32xf32> to vector<1x32xf32>
    %1093 = vector.broadcast %1092 : vector<1x32xf32> to vector<16x32xf32>
    %1094 = arith.addf %1090, %1093 : vector<16x32xf32>
    %1095 = arith.addf %1039, %1094 : vector<16x32xf32>
    %c1_460 = arith.constant 1 : index
    %c0_461 = arith.constant 0 : index
    %c0_462 = arith.constant 0 : index
    %1096 = vector.load %arg33[%c1_460, %c0_461, %c0_462] : memref<2x1x32xf32, #tpu.memory_space<vmem>>, vector<1x1x32xf32>
    %1097 = vector.shape_cast %1096 : vector<1x1x32xf32> to vector<1x32xf32>
    %c1_463 = arith.constant 1 : index
    %c0_464 = arith.constant 0 : index
    %c0_465 = arith.constant 0 : index
    %1098 = vector.load %arg34[%c1_463, %c0_464, %c0_465] : memref<2x1x32xf32, #tpu.memory_space<vmem>>, vector<1x1x32xf32>
    %1099 = vector.shape_cast %1098 : vector<1x1x32xf32> to vector<1x32xf32>
    %cst_466 = arith.constant dense<0.000000e+00> : vector<16xf32>
    %1100 = vector.multi_reduction <add>, %1095, %cst_466 [1] : vector<16x32xf32> to vector<16xf32>
    %1101 = vector.shape_cast %1100 : vector<16xf32> to vector<16x1xf32>
    %cst_467 = arith.constant 3.200000e+01 : f32
    %1102 = vector.broadcast %cst_467 : f32 to vector<16x1xf32>
    %1103 = arith.divf %1101, %1102 : vector<16x1xf32>
    %1104 = vector.broadcast %1103 : vector<16x1xf32> to vector<16x32xf32>
    %1105 = arith.subf %1095, %1104 : vector<16x32xf32>
    %1106 = arith.mulf %1105, %1105 : vector<16x32xf32>
    %cst_468 = arith.constant dense<0.000000e+00> : vector<16xf32>
    %1107 = vector.multi_reduction <add>, %1106, %cst_468 [1] : vector<16x32xf32> to vector<16xf32>
    %1108 = vector.shape_cast %1107 : vector<16xf32> to vector<16x1xf32>
    %cst_469 = arith.constant 3.200000e+01 : f32
    %1109 = vector.broadcast %cst_469 : f32 to vector<16x1xf32>
    %1110 = arith.divf %1108, %1109 : vector<16x1xf32>
    %1111 = vector.broadcast %1103 : vector<16x1xf32> to vector<16x32xf32>
    %1112 = arith.subf %1095, %1111 : vector<16x32xf32>
    %cst_470 = arith.constant 9.99999974E-6 : f32
    %1113 = vector.broadcast %cst_470 : f32 to vector<16x1xf32>
    %1114 = arith.addf %1110, %1113 : vector<16x1xf32>
    %1115 = math.rsqrt %1114 : vector<16x1xf32>
    %1116 = vector.broadcast %1115 : vector<16x1xf32> to vector<16x32xf32>
    %1117 = arith.mulf %1112, %1116 : vector<16x32xf32>
    %1118 = vector.broadcast %1097 : vector<1x32xf32> to vector<16x32xf32>
    %1119 = arith.mulf %1117, %1118 : vector<16x32xf32>
    %1120 = vector.broadcast %1099 : vector<1x32xf32> to vector<16x32xf32>
    %1121 = arith.addf %1119, %1120 : vector<16x32xf32>
    %c0_471 = arith.constant 0 : index
    %c0_472 = arith.constant 0 : index
    %1122 = vector.load %arg39[%c0_471, %c0_472] : memref<1x32xf32, #tpu.memory_space<vmem>>, vector<1x32xf32>
    %c0_473 = arith.constant 0 : index
    %c0_474 = arith.constant 0 : index
    %1123 = vector.load %arg40[%c0_473, %c0_474] : memref<1x32xf32, #tpu.memory_space<vmem>>, vector<1x32xf32>
    %cst_475 = arith.constant dense<0.000000e+00> : vector<16xf32>
    %1124 = vector.multi_reduction <add>, %1121, %cst_475 [1] : vector<16x32xf32> to vector<16xf32>
    %1125 = vector.shape_cast %1124 : vector<16xf32> to vector<16x1xf32>
    %cst_476 = arith.constant 3.200000e+01 : f32
    %1126 = vector.broadcast %cst_476 : f32 to vector<16x1xf32>
    %1127 = arith.divf %1125, %1126 : vector<16x1xf32>
    %1128 = vector.broadcast %1127 : vector<16x1xf32> to vector<16x32xf32>
    %1129 = arith.subf %1121, %1128 : vector<16x32xf32>
    %1130 = arith.mulf %1129, %1129 : vector<16x32xf32>
    %cst_477 = arith.constant dense<0.000000e+00> : vector<16xf32>
    %1131 = vector.multi_reduction <add>, %1130, %cst_477 [1] : vector<16x32xf32> to vector<16xf32>
    %1132 = vector.shape_cast %1131 : vector<16xf32> to vector<16x1xf32>
    %cst_478 = arith.constant 3.200000e+01 : f32
    %1133 = vector.broadcast %cst_478 : f32 to vector<16x1xf32>
    %1134 = arith.divf %1132, %1133 : vector<16x1xf32>
    %1135 = vector.broadcast %1127 : vector<16x1xf32> to vector<16x32xf32>
    %1136 = arith.subf %1121, %1135 : vector<16x32xf32>
    %cst_479 = arith.constant 9.99999974E-6 : f32
    %1137 = vector.broadcast %cst_479 : f32 to vector<16x1xf32>
    %1138 = arith.addf %1134, %1137 : vector<16x1xf32>
    %1139 = math.rsqrt %1138 : vector<16x1xf32>
    %1140 = vector.broadcast %1139 : vector<16x1xf32> to vector<16x32xf32>
    %1141 = arith.mulf %1136, %1140 : vector<16x32xf32>
    %1142 = vector.broadcast %1122 : vector<1x32xf32> to vector<16x32xf32>
    %1143 = arith.mulf %1141, %1142 : vector<16x32xf32>
    %1144 = vector.broadcast %1123 : vector<1x32xf32> to vector<16x32xf32>
    %1145 = arith.addf %1143, %1144 : vector<16x32xf32>
    %c0_480 = arith.constant 0 : index
    %c0_481 = arith.constant 0 : index
    %1146 = vector.load %arg41[%c0_480, %c0_481] : memref<32x16xf32, #tpu.memory_space<vmem>>, vector<32x16xf32>
    %cst_482 = arith.constant dense<0.000000e+00> : vector<16x16xf32>
    %1147 = tpu.matmul %1145, %1146, %cst_482 {dimension_numbers = #tpu.dot_dimension_numbers<[1], [0], [0], [1], [0, 0, 1, 1], [], []>} : vector<16x32xf32>, vector<32x16xf32>, vector<16x16xf32> -> vector<16x16xf32>
    %c0_483 = arith.constant 0 : index
    %c0_484 = arith.constant 0 : index
    %1148 = vector.load %arg42[%c0_483, %c0_484] : memref<1x16xf32, #tpu.memory_space<vmem>>, vector<1x16xf32>
    %1149 = vector.broadcast %1148 : vector<1x16xf32> to vector<16x16xf32>
    %1150 = arith.addf %1147, %1149 : vector<16x16xf32>
    %cst_485 = arith.constant dense<0xFF800000> : vector<16xf32>
    %1151 = vector.multi_reduction <maximumf>, %1150, %cst_485 [1] : vector<16x16xf32> to vector<16xf32>
    %1152 = vector.shape_cast %1151 : vector<16xf32> to vector<16x1xf32>
    %1153 = vector.broadcast %1152 : vector<16x1xf32> to vector<16x16xf32>
    %1154 = arith.subf %1150, %1153 : vector<16x16xf32>
    %1155 = math.exp %1154 : vector<16x16xf32>
    %cst_486 = arith.constant dense<0.000000e+00> : vector<16xf32>
    %1156 = vector.multi_reduction <add>, %1155, %cst_486 [1] : vector<16x16xf32> to vector<16xf32>
    %1157 = vector.shape_cast %1156 : vector<16xf32> to vector<16x1xf32>
    %1158 = math.log %1157 : vector<16x1xf32>
    %1159 = vector.broadcast %1158 : vector<16x1xf32> to vector<16x16xf32>
    %1160 = arith.subf %1154, %1159 : vector<16x16xf32>
    %1161 = tpu.iota {dimensions = array<i32: 1>} : vector<16x16xi32>
    %1162 = arith.sitofp %1161 : vector<16x16xi32> to vector<16x16xf32>
    %cst_487 = arith.constant dense<0xFF800000> : vector<16xf32>
    %1163 = vector.multi_reduction <maximumf>, %1160, %cst_487 [1] : vector<16x16xf32> to vector<16xf32>
    %1164 = vector.shape_cast %1163 : vector<16xf32> to vector<16x1xf32>
    %1165 = vector.broadcast %1164 : vector<16x1xf32> to vector<16x16xf32>
    %1166 = arith.cmpf oge, %1160, %1165 : vector<16x16xf32>
    %cst_488 = arith.constant 1.600000e+01 : f32
    %1167 = vector.broadcast %cst_488 : f32 to vector<16x16xf32>
    %1168 = arith.select %1166, %1162, %1167 : vector<16x16xi1>, vector<16x16xf32>
    %cst_489 = arith.constant dense<0x7F800000> : vector<16xf32>
    %1169 = vector.multi_reduction <minimumf>, %1168, %cst_489 [1] : vector<16x16xf32> to vector<16xf32>
    %1170 = vector.shape_cast %1169 : vector<16xf32> to vector<16x1xf32>
    %1171 = arith.fptosi %1170 : vector<16x1xf32> to vector<16x1xi32>
    %c0_490 = arith.constant 0 : index
    %c0_491 = arith.constant 0 : index
    %1172 = vector.load %arg43[%c0_490, %c0_491] : memref<16x1xi32, #tpu.memory_space<vmem>>, vector<16x1xi32>
    tpu.vector_store %arg43[%c0_490, %c0_491], %1171 {strides = array<i32>} : memref<16x1xi32, #tpu.memory_space<vmem>>, vector<16x1xi32>,
    %c0_492 = arith.constant 0 : index
    %c0_493 = arith.constant 0 : index
    %1173 = vector.load %arg4[%c0_492, %c0_493] : memref<16x1xi32, #tpu.memory_space<vmem>>, vector<16x1xi32>
    %1174 = vector.broadcast %1173 : vector<16x1xi32> to vector<16x16xi32>
    %1175 = arith.cmpi eq, %1161, %1174 : vector<16x16xi32>
    %cst_494 = arith.constant 0.899999976 : f32
    %cst_495 = arith.constant 0.00714285718 : f32
    %1176 = vector.broadcast %cst_494 : f32 to vector<16x16xf32>
    %1177 = vector.broadcast %cst_495 : f32 to vector<16x16xf32>
    %1178 = arith.select %1175, %1176, %1177 : vector<16x16xi1>, vector<16x16xf32>
    %c1_i32 = arith.constant 1 : i32
    %1179 = vector.broadcast %c1_i32 : i32 to vector<16x16xi32>
    %1180 = arith.cmpi eq, %1161, %1179 : vector<16x16xi32>
    %cst_496 = arith.constant 0.000000e+00 : f32
    %1181 = vector.broadcast %cst_496 : f32 to vector<16x16xf32>
    %1182 = arith.select %1180, %1181, %1178 : vector<16x16xi1>, vector<16x16xf32>
    %c1_i32_497 = arith.constant 1 : i32
    %1183 = vector.broadcast %c1_i32_497 : i32 to vector<16x1xi32>
    %1184 = arith.cmpi eq, %1173, %1183 : vector<16x1xi32>
    %cst_498 = arith.constant 0.000000e+00 : f32
    %1185 = vector.shape_cast %1184 : vector<16x1xi1> to vector<16x1xi1>
    %1186 = vector.broadcast %1185 : vector<16x1xi1> to vector<16x16xi1>
    %1187 = vector.broadcast %cst_498 : f32 to vector<16x16xf32>
    %1188 = arith.select %1186, %1187, %1182 : vector<16x16xi1>, vector<16x16xf32>
    %cst_499 = arith.constant 0.000000e+00 : f32
    %1189 = vector.broadcast %cst_499 : f32 to vector<16x16xf32>
    %1190 = arith.cmpf ogt, %1188, %1189 : vector<16x16xf32>
    %cst_500 = arith.constant 9.99999935E-39 : f32
    %1191 = vector.broadcast %cst_500 : f32 to vector<16x16xf32>
    %1192 = arith.maximumf %1188, %1191 : vector<16x16xf32>
    %1193 = math.log %1192 : vector<16x16xf32>
    %1194 = arith.subf %1193, %1160 : vector<16x16xf32>
    %1195 = arith.mulf %1188, %1194 : vector<16x16xf32>
    %cst_501 = arith.constant 0.000000e+00 : f32
    %1196 = vector.broadcast %cst_501 : f32 to vector<16x16xf32>
    %1197 = arith.select %1190, %1195, %1196 : vector<16x16xi1>, vector<16x16xf32>
    %cst_502 = arith.constant dense<0.000000e+00> : vector<16xf32>
    %1198 = vector.multi_reduction <add>, %1197, %cst_502 [1] : vector<16x16xf32> to vector<16xf32>
    %1199 = vector.shape_cast %1198 : vector<16xf32> to vector<16x1xf32>
    %c0_503 = arith.constant 0 : index
    %c0_504 = arith.constant 0 : index
    %1200 = vector.load %arg44[%c0_503, %c0_504] : memref<16x1xf32, #tpu.memory_space<vmem>>, vector<16x1xf32>
    tpu.vector_store %arg44[%c0_503, %c0_504], %1199 {strides = array<i32>} : memref<16x1xf32, #tpu.memory_space<vmem>>, vector<16x1xf32>,
    return
  }
}

</mosaic_0001>

<llo_original>
// kernel: _decode_core.1
$region0: #{_decode_core.1}
  #allocation0 [shape = 'u32[]', space=smem, size = 0x4, offset = 0x4, fixed_abs, tag = 'smem constant byte address 0x4 - core index']
  #allocation1 [shape = 'u32[72,128]{1,0:T(1,128)}', space=vmem, size = 0x9000, scoped, tag = 'internal scratch']
  %s0 = inlined_call_operand.smem [shape: u32[45], index: -1, kind: input, shape index: {}]
  %s1 = sld [smem:[%s0]]
  %s2 = scalar_lea.smem %s0, 1
  %s3 = sld [smem:[%s2]]
  %s4 = scalar_lea.smem %s0, 2
  %s5 = sld [smem:[%s4]]
  %s6 = scalar_lea.smem %s0, 3
  %s7 = sld [smem:[%s6]]
  %s8 = scalar_lea.smem %s0, 4
  %s9 = sld [smem:[%s8]]
  %s10 = scalar_lea.smem %s0, 5
  %s11 = sld [smem:[%s10]]
  %s12 = scalar_lea.smem %s0, 6
  %s13 = sld [smem:[%s12]]
  %s14 = scalar_lea.smem %s0, 7
  %s15 = sld [smem:[%s14]]
  %s16 = scalar_lea.smem %s0, 8
  %s17 = sld [smem:[%s16]]
  %s18 = scalar_lea.smem %s0, 9
  %s19 = sld [smem:[%s18]]
  %s20 = scalar_lea.smem %s0, 10
  %s21 = sld [smem:[%s20]]
  %s22 = scalar_lea.smem %s0, 11
  %s23 = sld [smem:[%s22]]
  %s24 = scalar_lea.smem %s0, 12
  %s25 = sld [smem:[%s24]]
  %s26 = scalar_lea.smem %s0, 13
  %s27 = sld [smem:[%s26]]
  %s28 = scalar_lea.smem %s0, 14
  %s29 = sld [smem:[%s28]]
  %s30 = scalar_lea.smem %s0, 15
  %s31 = sld [smem:[%s30]]
  %s32 = scalar_lea.smem %s0, 16
  %s33 = sld [smem:[%s32]]
  %s34 = scalar_lea.smem %s0, 17
  %s35 = sld [smem:[%s34]]
  %s36 = scalar_lea.smem %s0, 18
  %s37 = sld [smem:[%s36]]
  %s38 = scalar_lea.smem %s0, 19
  %s39 = sld [smem:[%s38]]
  %s40 = scalar_lea.smem %s0, 20
  %s41 = sld [smem:[%s40]]
  %s42 = scalar_lea.smem %s0, 21
  %s43 = sld [smem:[%s42]]
  %s44 = scalar_lea.smem %s0, 22
  %s45 = sld [smem:[%s44]]
  %s46 = scalar_lea.smem %s0, 23
  %s47 = sld [smem:[%s46]]
  %s48 = scalar_lea.smem %s0, 24
  %s49 = sld [smem:[%s48]]
  %s50 = scalar_lea.smem %s0, 25
  %s51 = sld [smem:[%s50]]
  %s52 = scalar_lea.smem %s0, 26
  %s53 = sld [smem:[%s52]]
  %s54 = scalar_lea.smem %s0, 27
  %s55 = sld [smem:[%s54]]
  %s56 = scalar_lea.smem %s0, 28
  %s57 = sld [smem:[%s56]]
  %s58 = scalar_lea.smem %s0, 29
  %s59 = sld [smem:[%s58]]
  %s60 = scalar_lea.smem %s0, 30
  %s61 = sld [smem:[%s60]]
  %s62 = scalar_lea.smem %s0, 31
  %s63 = sld [smem:[%s62]]
  %s64 = scalar_lea.smem %s0, 32
  %s65 = sld [smem:[%s64]]
  %s66 = scalar_lea.smem %s0, 33
  %s67 = sld [smem:[%s66]]
  %s68 = scalar_lea.smem %s0, 34
  %s69 = sld [smem:[%s68]]
  %s70 = scalar_lea.smem %s0, 35
  %s71 = sld [smem:[%s70]]
  %s72 = scalar_lea.smem %s0, 36
  %s73 = sld [smem:[%s72]]
  %s74 = scalar_lea.smem %s0, 37
  %s75 = sld [smem:[%s74]]
  %s76 = scalar_lea.smem %s0, 38
  %s77 = sld [smem:[%s76]]
  %s78 = scalar_lea.smem %s0, 39
  %s79 = sld [smem:[%s78]]
  %s80 = scalar_lea.smem %s0, 40
  %s81 = sld [smem:[%s80]]
  %s82 = scalar_lea.smem %s0, 41
  %s83 = sld [smem:[%s82]]
  %s84 = scalar_lea.smem %s0, 42
  %s85 = sld [smem:[%s84]]
  %s86 = scalar_lea.smem %s0, 43
  %s87 = sld [smem:[%s86]]
  %s88 = scalar_lea.smem %s0, 44
  %s89 = sld [smem:[%s88]]
  %90 = xla_tuple %s87, %s89
  %s91 = sld [smem:[#allocation0]]
  $region190: #{_decode_core.1} parent=0
    _
  %s93 = ssub.s32 1, %s91
  %s94 = scalar_select 0, %s93, %s91
  // Predicated region
  $region2: #{_decode_core.1} parent=0 // pred_check
    _
  $region3: #{_decode_core.1} parent=0 // pred_check_branch
    %96 = sbr.rel (0) target = $region5
  $region4: #{_decode_core.1} parent=0 // pred_region
    _
  $region5: #{_decode_core.1} parent=0 // pred_fallthru
    _
  // Predicated region
  $region6: #{_decode_core.1} parent=0 // pred_check
    _
  $region7: #{_decode_core.1} parent=0 // pred_check_branch
    %98 = sbr.rel (0) target = $region9
  $region8: #{_decode_core.1} parent=0 // pred_region
    _
  $region9: #{_decode_core.1} parent=0 // pred_fallthru
    _
  // Predicated region
  $region10: #{_decode_core.1} parent=0 // pred_check
    _
  $region11: #{_decode_core.1} parent=0 // pred_check_branch
    %100 = sbr.rel (0) target = $region13
  $region12: #{_decode_core.1} parent=0 // pred_region
    _
  $region13: #{_decode_core.1} parent=0 // pred_fallthru
    _
  // Predicated region
  $region14: #{_decode_core.1} parent=0 // pred_check
    _
  $region15: #{_decode_core.1} parent=0 // pred_check_branch
    %102 = sbr.rel (0) target = $region17
  $region16: #{_decode_core.1} parent=0 // pred_region
    _
  $region17: #{_decode_core.1} parent=0 // pred_fallthru
    _
  // Predicated region
  $region18: #{_decode_core.1} parent=0 // pred_check
    _
  $region19: #{_decode_core.1} parent=0 // pred_check_branch
    %104 = sbr.rel (0) target = $region21
  $region20: #{_decode_core.1} parent=0 // pred_region
    _
  $region21: #{_decode_core.1} parent=0 // pred_fallthru
    _
  // Predicated region
  $region22: #{_decode_core.1} parent=0 // pred_check
    _
  $region23: #{_decode_core.1} parent=0 // pred_check_branch
    %106 = sbr.rel (0) target = $region25
  $region24: #{_decode_core.1} parent=0 // pred_region
    _
  $region25: #{_decode_core.1} parent=0 // pred_fallthru
    _
  // Predicated region
  $region26: #{_decode_core.1} parent=0 // pred_check
    _
  $region27: #{_decode_core.1} parent=0 // pred_check_branch
    %108 = sbr.rel (0) target = $region29
  $region28: #{_decode_core.1} parent=0 // pred_region
    _
  $region29: #{_decode_core.1} parent=0 // pred_fallthru
    _
  // Predicated region
  $region30: #{_decode_core.1} parent=0 // pred_check
    _
  $region31: #{_decode_core.1} parent=0 // pred_check_branch
    %110 = sbr.rel (0) target = $region33
  $region32: #{_decode_core.1} parent=0 // pred_region
    _
  $region33: #{_decode_core.1} parent=0 // pred_fallthru
    _
  // Predicated region
  $region34: #{_decode_core.1} parent=0 // pred_check
    _
  $region35: #{_decode_core.1} parent=0 // pred_check_branch
    %112 = sbr.rel (0) target = $region37
  $region36: #{_decode_core.1} parent=0 // pred_region
    _
  $region37: #{_decode_core.1} parent=0 // pred_fallthru
    _
  // Predicated region
  $region38: #{_decode_core.1} parent=0 // pred_check
    _
  $region39: #{_decode_core.1} parent=0 // pred_check_branch
    %114 = sbr.rel (0) target = $region41
  $region40: #{_decode_core.1} parent=0 // pred_region
    _
  $region41: #{_decode_core.1} parent=0 // pred_fallthru
    _
  // Predicated region
  $region42: #{_decode_core.1} parent=0 // pred_check
    _
  $region43: #{_decode_core.1} parent=0 // pred_check_branch
    %116 = sbr.rel (0) target = $region45
  $region44: #{_decode_core.1} parent=0 // pred_region
    _
  $region45: #{_decode_core.1} parent=0 // pred_fallthru
    _
  // Predicated region
  $region46: #{_decode_core.1} parent=0 // pred_check
    _
  $region47: #{_decode_core.1} parent=0 // pred_check_branch
    %118 = sbr.rel (0) target = $region49
  $region48: #{_decode_core.1} parent=0 // pred_region
    _
  $region49: #{_decode_core.1} parent=0 // pred_fallthru
    _
  // Predicated region
  $region50: #{_decode_core.1} parent=0 // pred_check
    _
  $region51: #{_decode_core.1} parent=0 // pred_check_branch
    %120 = sbr.rel (0) target = $region53
  $region52: #{_decode_core.1} parent=0 // pred_region
    _
  $region53: #{_decode_core.1} parent=0 // pred_fallthru
    _
  // Predicated region
  $region54: #{_decode_core.1} parent=0 // pred_check
    _
  $region55: #{_decode_core.1} parent=0 // pred_check_branch
    %122 = sbr.rel (0) target = $region57
  $region56: #{_decode_core.1} parent=0 // pred_region
    _
  $region57: #{_decode_core.1} parent=0 // pred_fallthru
    _
  // Predicated region
  $region58: #{_decode_core.1} parent=0 // pred_check
    _
  $region59: #{_decode_core.1} parent=0 // pred_check_branch
    %124 = sbr.rel (0) target = $region61
  $region60: #{_decode_core.1} parent=0 // pred_region
    _
  $region61: #{_decode_core.1} parent=0 // pred_fallthru
    _
  // Predicated region
  $region62: #{_decode_core.1} parent=0 // pred_check
    _
  $region63: #{_decode_core.1} parent=0 // pred_check_branch
    %126 = sbr.rel (0) target = $region65
  $region64: #{_decode_core.1} parent=0 // pred_region
    _
  $region65: #{_decode_core.1} parent=0 // pred_fallthru
    _
  // Predicated region
  $region66: #{_decode_core.1} parent=0 // pred_check
    _
  $region67: #{_decode_core.1} parent=0 // pred_check_branch
    %128 = sbr.rel (0) target = $region69
  $region68: #{_decode_core.1} parent=0 // pred_region
    _
  $region69: #{_decode_core.1} parent=0 // pred_fallthru
    _
  // Predicated region
  $region70: #{_decode_core.1} parent=0 // pred_check
    _
  $region71: #{_decode_core.1} parent=0 // pred_check_branch
    %130 = sbr.rel (0) target = $region73
  $region72: #{_decode_core.1} parent=0 // pred_region
    _
  $region73: #{_decode_core.1} parent=0 // pred_fallthru
    _
  // Predicated region
  $region74: #{_decode_core.1} parent=0 // pred_check
    _
  $region75: #{_decode_core.1} parent=0 // pred_check_branch
    %132 = sbr.rel (0) target = $region77
  $region76: #{_decode_core.1} parent=0 // pred_region
    _
  $region77: #{_decode_core.1} parent=0 // pred_fallthru
    _
  // Predicated region
  $region78: #{_decode_core.1} parent=0 // pred_check
    _
  $region79: #{_decode_core.1} parent=0 // pred_check_branch
    %134 = sbr.rel (0) target = $region81
  $region80: #{_decode_core.1} parent=0 // pred_region
    _
  $region81: #{_decode_core.1} parent=0 // pred_fallthru
    _
  // Predicated region
  $region82: #{_decode_core.1} parent=0 // pred_check
    _
  $region83: #{_decode_core.1} parent=0 // pred_check_branch
    %136 = sbr.rel (0) target = $region85
  $region84: #{_decode_core.1} parent=0 // pred_region
    _
  $region85: #{_decode_core.1} parent=0 // pred_fallthru
    _
  // Predicated region
  $region86: #{_decode_core.1} parent=0 // pred_check
    _
  $region87: #{_decode_core.1} parent=0 // pred_check_branch
    %138 = sbr.rel (0) target = $region89
  $region88: #{_decode_core.1} parent=0 // pred_region
    _
  $region89: #{_decode_core.1} parent=0 // pred_fallthru
    _
  // Predicated region
  $region90: #{_decode_core.1} parent=0 // pred_check
    _
  $region91: #{_decode_core.1} parent=0 // pred_check_branch
    %140 = sbr.rel (0) target = $region93
  $region92: #{_decode_core.1} parent=0 // pred_region
    _
  $region93: #{_decode_core.1} parent=0 // pred_fallthru
    _
  // Predicated region
  $region94: #{_decode_core.1} parent=0 // pred_check
    _
  $region95: #{_decode_core.1} parent=0 // pred_check_branch
    %142 = sbr.rel (0) target = $region97
  $region96: #{_decode_core.1} parent=0 // pred_region
    _
  $region97: #{_decode_core.1} parent=0 // pred_fallthru
    _
  // Predicated region
  $region98: #{_decode_core.1} parent=0 // pred_check
    _
  $region99: #{_decode_core.1} parent=0 // pred_check_branch
    %144 = sbr.rel (0) target = $region101
  $region100: #{_decode_core.1} parent=0 // pred_region
    _
  $region101: #{_decode_core.1} parent=0 // pred_fallthru
    _
  // Predicated region
  $region102: #{_decode_core.1} parent=0 // pred_check
    _
  $region103: #{_decode_core.1} parent=0 // pred_check_branch
    %146 = sbr.rel (0) target = $region105
  $region104: #{_decode_core.1} parent=0 // pred_region
    _
  $region105: #{_decode_core.1} parent=0 // pred_fallthru
    _
  // Predicated region
  $region106: #{_decode_core.1} parent=0 // pred_check
    _
  $region107: #{_decode_core.1} parent=0 // pred_check_branch
    %148 = sbr.rel (0) target = $region109
  $region108: #{_decode_core.1} parent=0 // pred_region
    _
  $region109: #{_decode_core.1} parent=0 // pred_fallthru
    _
  // Predicated region
  $region110: #{_decode_core.1} parent=0 // pred_check
    _
  $region111: #{_decode_core.1} parent=0 // pred_check_branch
    %150 = sbr.rel (0) target = $region113
  $region112: #{_decode_core.1} parent=0 // pred_region
    _
  $region113: #{_decode_core.1} parent=0 // pred_fallthru
    _
  // Predicated region
  $region114: #{_decode_core.1} parent=0 // pred_check
    _
  $region115: #{_decode_core.1} parent=0 // pred_check_branch
    %152 = sbr.rel (0) target = $region117
  $region116: #{_decode_core.1} parent=0 // pred_region
    _
  $region117: #{_decode_core.1} parent=0 // pred_fallthru
    _
  // Predicated region
  $region118: #{_decode_core.1} parent=0 // pred_check
    _
  $region119: #{_decode_core.1} parent=0 // pred_check_branch
    %154 = sbr.rel (0) target = $region121
  $region120: #{_decode_core.1} parent=0 // pred_region
    _
  $region121: #{_decode_core.1} parent=0 // pred_fallthru
    _
  // Predicated region
  $region122: #{_decode_core.1} parent=0 // pred_check
    _
  $region123: #{_decode_core.1} parent=0 // pred_check_branch
    %156 = sbr.rel (0) target = $region125
  $region124: #{_decode_core.1} parent=0 // pred_region
    _
  $region125: #{_decode_core.1} parent=0 // pred_fallthru
    _
  // Predicated region
  $region126: #{_decode_core.1} parent=0 // pred_check
    _
  $region127: #{_decode_core.1} parent=0 // pred_check_branch
    %158 = sbr.rel (0) target = $region129
  $region128: #{_decode_core.1} parent=0 // pred_region
    _
  $region129: #{_decode_core.1} parent=0 // pred_fallthru
    _
  // Predicated region
  $region130: #{_decode_core.1} parent=0 // pred_check
    _
  $region131: #{_decode_core.1} parent=0 // pred_check_branch
    %160 = sbr.rel (0) target = $region133
  $region132: #{_decode_core.1} parent=0 // pred_region
    _
  $region133: #{_decode_core.1} parent=0 // pred_fallthru
    _
  // Predicated region
  $region134: #{_decode_core.1} parent=0 // pred_check
    _
  $region135: #{_decode_core.1} parent=0 // pred_check_branch
    %162 = sbr.rel (0) target = $region137
  $region136: #{_decode_core.1} parent=0 // pred_region
    _
  $region137: #{_decode_core.1} parent=0 // pred_fallthru
    _
  // Predicated region
  $region138: #{_decode_core.1} parent=0 // pred_check
    _
  $region139: #{_decode_core.1} parent=0 // pred_check_branch
    %164 = sbr.rel (0) target = $region141
  $region140: #{_decode_core.1} parent=0 // pred_region
    _
  $region141: #{_decode_core.1} parent=0 // pred_fallthru
    _
  // Predicated region
  $region142: #{_decode_core.1} parent=0 // pred_check
    _
  $region143: #{_decode_core.1} parent=0 // pred_check_branch
    %166 = sbr.rel (0) target = $region145
  $region144: #{_decode_core.1} parent=0 // pred_region
    _
  $region145: #{_decode_core.1} parent=0 // pred_fallthru
    _
  // Predicated region
  $region146: #{_decode_core.1} parent=0 // pred_check
    _
  $region147: #{_decode_core.1} parent=0 // pred_check_branch
    %168 = sbr.rel (0) target = $region149
  $region148: #{_decode_core.1} parent=0 // pred_region
    _
  $region149: #{_decode_core.1} parent=0 // pred_fallthru
    _
  // Predicated region
  $region150: #{_decode_core.1} parent=0 // pred_check
    _
  $region151: #{_decode_core.1} parent=0 // pred_check_branch
    %170 = sbr.rel (0) target = $region153
  $region152: #{_decode_core.1} parent=0 // pred_region
    _
  $region153: #{_decode_core.1} parent=0 // pred_fallthru
    _
  // Predicated region
  $region154: #{_decode_core.1} parent=0 // pred_check
    _
  $region155: #{_decode_core.1} parent=0 // pred_check_branch
    %172 = sbr.rel (0) target = $region157
  $region156: #{_decode_core.1} parent=0 // pred_region
    _
  $region157: #{_decode_core.1} parent=0 // pred_fallthru
    _
  // Predicated region
  $region158: #{_decode_core.1} parent=0 // pred_check
    _
  $region159: #{_decode_core.1} parent=0 // pred_check_branch
    %174 = sbr.rel (0) target = $region161
  $region160: #{_decode_core.1} parent=0 // pred_region
    _
  $region161: #{_decode_core.1} parent=0 // pred_fallthru
    _
  // Predicated region
  $region162: #{_decode_core.1} parent=0 // pred_check
    _
  $region163: #{_decode_core.1} parent=0 // pred_check_branch
    %176 = sbr.rel (0) target = $region165
  $region164: #{_decode_core.1} parent=0 // pred_region
    _
  $region165: #{_decode_core.1} parent=0 // pred_fallthru
    _
  // Predicated region
  $region166: #{_decode_core.1} parent=0 // pred_check
    _
  $region167: #{_decode_core.1} parent=0 // pred_check_branch
    %178 = sbr.rel (0) target = $region169
  $region168: #{_decode_core.1} parent=0 // pred_region
    _
  $region169: #{_decode_core.1} parent=0 // pred_fallthru
    _
  // Predicated region
  $region170: #{_decode_core.1} parent=0 // pred_check
    _
  $region171: #{_decode_core.1} parent=0 // pred_check_branch
    %180 = sbr.rel (0) target = $region173
  $region172: #{_decode_core.1} parent=0 // pred_region
    _
  $region173: #{_decode_core.1} parent=0 // pred_fallthru
    _
  %v181 = vld [vmem:[%s1] sm:$0xff]
  %v182 = vld [vmem:[%s1 + $0x8] sm:$0xff]
  %v183 = vld [vmem:[%s5] sm:$0x1]
  %v184 = vld [vmem:[%s5 + $0x1] sm:$0x1]
  %v185 = vld [vmem:[%s11] sm:$0xff]
  %v186 = vld [vmem:[%s11 + $0x8] sm:$0xff]
  %v187 = vld [vmem:[%s11 + $0x10] sm:$0xff]
  %v188 = vld [vmem:[%s11 + $0x18] sm:$0xff]
  %v189 = vld [vmem:[%s13] sm:$0x1]
  %v191 = vperm.slane %v189, 0
  %vm193 = vcmask 261120
  %v195 = vsel %vm193, %v181, 0
  %v198 = vsel %vm193, %v182, 0
  %200 = vmatpush.msra.mxu0 0.0
  %201 = vmatpush.msra.mxu0 0.0
  %202 = vmatpush.msra.mxu0 0.0
  %203 = vmatpush.msra.mxu0 0.0
  %204 = vmatpush.msra.mxu0 0.0
  %205 = vmatpush.msra.mxu0 0.0
  %206 = vmatpush.msra.mxu0 0.0
  %207 = vmatpush.msra.mxu0 0.0
  %208 = vmatpush.msra.mxu0 0.0
  %209 = vmatpush.msra.mxu0 0.0
  %210 = vmatpush.msra.mxu0 0.0
  %211 = vmatpush.msra.mxu0 0.0
  %212 = vmatpush.msra.mxu0 %v188
  %213 = vmatpush.msra.mxu0 %v187
  %214 = vmatpush.msra.mxu0 %v186
  %215 = vmatpush.msra.mxu0 %v185
  %216 = vmatmul.f32.gmra.mxu0 %v195
  %v217 = vpop.f32.mrf.mxu0
  %v218 = vadd.f32 %v191, %v217
  %219 = vmatmul.f32.gmra.mxu0 %v198
  %v220 = vpop.f32.mrf.mxu0
  %v221 = vadd.f32 %v191, %v220
  %222 = vdwg.mxu0
  %224 = vrot.lane.b32.xlu0 %v218, 96
  %v225 = vpop.permute.xlu0 %224
  %vm226 = vcmask 64512
  %v227 = vsel %vm226, %v218, 0
  %v229 = vsel %vm226, %v225, 0
  %231 = vmatpush.xpose.msra.mxu0 0.0
  %232 = vmatpush.xpose.msra.mxu0 0.0
  %233 = vmatpush.xpose.msra.mxu0 0.0
  %234 = vmatpush.xpose.msra.mxu0 0.0
  %235 = vmatpush.xpose.msra.mxu0 0.0
  %236 = vmatpush.xpose.msra.mxu0 0.0
  %237 = vmatpush.xpose.msra.mxu0 0.0
  %238 = vmatpush.xpose.msra.mxu0 0.0
  %239 = vmatpush.xpose.msra.mxu0 0.0
  %240 = vmatpush.xpose.msra.mxu0 0.0
  %241 = vmatpush.xpose.msra.mxu0 0.0
  %242 = vmatpush.xpose.msra.mxu0 0.0
  %243 = vmatpush.xpose.msra.mxu0 0.0
  %244 = vmatpush.xpose.msra.mxu0 0.0
  %245 = vmatpush.xpose.msra.mxu0 0.0
  %246 = vmatpush.xpose.msra.mxu0 %v229
  %247 = vmatmul.f32.gmra.mxu0 %v227
  %v248 = vpop.f32.mrf.mxu0
  %v249 = vadd.f32 0.0, %v248
  %250 = vdwg.mxu0
  %252 = vrot.lane.b32.xlu0 %v221, 96
  %v253 = vpop.permute.xlu0 %252
  %v254 = vsel %vm226, %v221, 0
  %v256 = vsel %vm226, %v253, 0
  %258 = vmatpush.xpose.msra.mxu0 0.0
  %259 = vmatpush.xpose.msra.mxu0 0.0
  %260 = vmatpush.xpose.msra.mxu0 0.0
  %261 = vmatpush.xpose.msra.mxu0 0.0
  %262 = vmatpush.xpose.msra.mxu0 0.0
  %263 = vmatpush.xpose.msra.mxu0 0.0
  %264 = vmatpush.xpose.msra.mxu0 0.0
  %265 = vmatpush.xpose.msra.mxu0 0.0
  %266 = vmatpush.xpose.msra.mxu0 0.0
  %267 = vmatpush.xpose.msra.mxu0 0.0
  %268 = vmatpush.xpose.msra.mxu0 0.0
  %269 = vmatpush.xpose.msra.mxu0 0.0
  %270 = vmatpush.xpose.msra.mxu0 0.0
  %271 = vmatpush.xpose.msra.mxu0 0.0
  %272 = vmatpush.xpose.msra.mxu0 0.0
  %273 = vmatpush.xpose.msra.mxu0 %v256
  %274 = vmatmul.f32.gmra.mxu0 %v254
  %v275 = vpop.f32.mrf.mxu0
  %v276 = vadd.f32 0.0, %v275
  %277 = vdwg.mxu0
  %v278 = vmul.f32 %v249, 0.35355338
  %v279 = vmul.f32 %v276, 0.35355338
  %v282 = vperm.slane %v183, 0
  %v283 = vperm.slane %v184, 0
  %v286 = vadd.f32 %v278, %v282
  %v287 = vadd.f32 %v279, %v283
  %v288 = vsel %vm226, %v286, -inf
  %289 = vmax.xlane.f32.xlu0 %v288
  %v290 = vpop.xlane.xlu0 %289
  %v291 = vsel %vm226, %v287, -inf
  %292 = vmax.xlane.f32.xlu0 %v291
  %v293 = vpop.xlane.xlu0 %292
  %v294 = vsub.f32 %v286, %v290
  %v295 = vsub.f32 %v287, %v293
  %v296 = vmul.f32 %v294, 1.442695
  %v297 = vpow.pop %v296
  %v298 = vmul.f32 %v295, 1.442695
  %v299 = vpow.pop %v298
  %v300 = vsel %vm226, %v297, 0.0
  %301 = vadd.xlane.f32.xlu0 %v300
  %v302 = vpop.xlane.xlu0 %301
  %v303 = vsel %vm226, %v299, 0.0
  %304 = vadd.xlane.f32.xlu0 %v303
  %v305 = vpop.xlane.xlu0 %304
  %v306 = vrcp.pop %v302
  %v307 = vrcp.pop %v305
  %v308 = vmul.f32 %v297, %v306
  %v309 = vmul.f32 %v299, %v307
  %310 = vrot.lane.b32.xlu0 %v218, 64
  %v311 = vpop.permute.xlu0 %310
  %v314 = vsel %vm226, %v308, 0
  %316 = vmatpush.msra.mxu0 0.0
  %317 = vmatpush.msra.mxu0 0.0
  %318 = vmatpush.msra.mxu0 0.0
  %319 = vmatpush.msra.mxu0 0.0
  %320 = vmatpush.msra.mxu0 0.0
  %321 = vmatpush.msra.mxu0 0.0
  %322 = vmatpush.msra.mxu0 0.0
  %323 = vmatpush.msra.mxu0 0.0
  %324 = vmatpush.msra.mxu0 0.0
  %325 = vmatpush.msra.mxu0 0.0
  %326 = vmatpush.msra.mxu0 0.0
  %327 = vmatpush.msra.mxu0 0.0
  %328 = vmatpush.msra.mxu0 0.0
  %329 = vmatpush.msra.mxu0 0.0
  %330 = vmatpush.msra.mxu0 0.0
  %331 = vmatpush.msra.mxu0 %v311
  %332 = vmatmul.f32.gmra.mxu0 %v314
  %v333 = vpop.f32.mrf.mxu0
  %v334 = vadd.f32 0.0, %v333
  %335 = vdwg.mxu0
  %336 = vrot.lane.b32.xlu0 %v221, 64
  %v337 = vpop.permute.xlu0 %336
  %v340 = vsel %vm226, %v309, 0
  %342 = vmatpush.msra.mxu0 0.0
  %343 = vmatpush.msra.mxu0 0.0
  %344 = vmatpush.msra.mxu0 0.0
  %345 = vmatpush.msra.mxu0 0.0
  %346 = vmatpush.msra.mxu0 0.0
  %347 = vmatpush.msra.mxu0 0.0
  %348 = vmatpush.msra.mxu0 0.0
  %349 = vmatpush.msra.mxu0 0.0
  %350 = vmatpush.msra.mxu0 0.0
  %351 = vmatpush.msra.mxu0 0.0
  %352 = vmatpush.msra.mxu0 0.0
  %353 = vmatpush.msra.mxu0 0.0
  %354 = vmatpush.msra.mxu0 0.0
  %355 = vmatpush.msra.mxu0 0.0
  %356 = vmatpush.msra.mxu0 0.0
  %357 = vmatpush.msra.mxu0 %v337
  %358 = vmatmul.f32.gmra.mxu0 %v340
  %v359 = vpop.f32.mrf.mxu0
  %v360 = vadd.f32 0.0, %v359
  %361 = vdwg.mxu0
  %362 = vrot.lane.b32.xlu0 %v218, 120
  %v363 = vpop.permute.xlu0 %362
  %364 = vrot.lane.b32.xlu0 %v218, 88
  %v365 = vpop.permute.xlu0 %364
  %v366 = vsel %vm226, %v363, 0
  %v368 = vsel %vm226, %v365, 0
  %370 = vmatpush.xpose.msra.mxu0 0.0
  %371 = vmatpush.xpose.msra.mxu0 0.0
  %372 = vmatpush.xpose.msra.mxu0 0.0
  %373 = vmatpush.xpose.msra.mxu0 0.0
  %374 = vmatpush.xpose.msra.mxu0 0.0
  %375 = vmatpush.xpose.msra.mxu0 0.0
  %376 = vmatpush.xpose.msra.mxu0 0.0
  %377 = vmatpush.xpose.msra.mxu0 0.0
  %378 = vmatpush.xpose.msra.mxu0 0.0
  %379 = vmatpush.xpose.msra.mxu0 0.0
  %380 = vmatpush.xpose.msra.mxu0 0.0
  %381 = vmatpush.xpose.msra.mxu0 0.0
  %382 = vmatpush.xpose.msra.mxu0 0.0
  %383 = vmatpush.xpose.msra.mxu0 0.0
  %384 = vmatpush.xpose.msra.mxu0 0.0
  %385 = vmatpush.xpose.msra.mxu0 %v368
  %386 = vmatmul.f32.gmra.mxu0 %v366
  %v387 = vpop.f32.mrf.mxu0
  %v388 = vadd.f32 0.0, %v387
  %389 = vdwg.mxu0
  %390 = vrot.lane.b32.xlu0 %v221, 120
  %v391 = vpop.permute.xlu0 %390
  %392 = vrot.lane.b32.xlu0 %v221, 88
  %v393 = vpop.permute.xlu0 %392
  %v394 = vsel %vm226, %v391, 0
  %v396 = vsel %vm226, %v393, 0
  %398 = vmatpush.xpose.msra.mxu0 0.0
  %399 = vmatpush.xpose.msra.mxu0 0.0
  %400 = vmatpush.xpose.msra.mxu0 0.0
  %401 = vmatpush.xpose.msra.mxu0 0.0
  %402 = vmatpush.xpose.msra.mxu0 0.0
  %403 = vmatpush.xpose.msra.mxu0 0.0
  %404 = vmatpush.xpose.msra.mxu0 0.0
  %405 = vmatpush.xpose.msra.mxu0 0.0
  %406 = vmatpush.xpose.msra.mxu0 0.0
  %407 = vmatpush.xpose.msra.mxu0 0.0
  %408 = vmatpush.xpose.msra.mxu0 0.0
  %409 = vmatpush.xpose.msra.mxu0 0.0
  %410 = vmatpush.xpose.msra.mxu0 0.0
  %411 = vmatpush.xpose.msra.mxu0 0.0
  %412 = vmatpush.xpose.msra.mxu0 0.0
  %413 = vmatpush.xpose.msra.mxu0 %v396
  %414 = vmatmul.f32.gmra.mxu0 %v394
  %v415 = vpop.f32.mrf.mxu0
  %v416 = vadd.f32 0.0, %v415
  %417 = vdwg.mxu0
  %v418 = vmul.f32 %v388, 0.35355338
  %v419 = vmul.f32 %v416, 0.35355338
  %v420 = vadd.f32 %v418, %v282
  %v421 = vadd.f32 %v419, %v283
  %v422 = vsel %vm226, %v420, -inf
  %423 = vmax.xlane.f32.xlu0 %v422
  %v424 = vpop.xlane.xlu0 %423
  %v425 = vsel %vm226, %v421, -inf
  %426 = vmax.xlane.f32.xlu0 %v425
  %v427 = vpop.xlane.xlu0 %426
  %v428 = vsub.f32 %v420, %v424
  %v429 = vsub.f32 %v421, %v427
  %v430 = vmul.f32 %v428, 1.442695
  %v431 = vpow.pop %v430
  %v432 = vmul.f32 %v429, 1.442695
  %v433 = vpow.pop %v432
  %v434 = vsel %vm226, %v431, 0.0
  %435 = vadd.xlane.f32.xlu0 %v434
  %v436 = vpop.xlane.xlu0 %435
  %v437 = vsel %vm226, %v433, 0.0
  %438 = vadd.xlane.f32.xlu0 %v437
  %v439 = vpop.xlane.xlu0 %438
  %v440 = vrcp.pop %v436
  %v441 = vrcp.pop %v439
  %v442 = vmul.f32 %v431, %v440
  %v443 = vmul.f32 %v433, %v441
  %444 = vrot.lane.b32.xlu0 %v218, 56
  %v445 = vpop.permute.xlu0 %444
  %v448 = vsel %vm226, %v442, 0
  %450 = vmatpush.msra.mxu0 0.0
  %451 = vmatpush.msra.mxu0 0.0
  %452 = vmatpush.msra.mxu0 0.0
  %453 = vmatpush.msra.mxu0 0.0
  %454 = vmatpush.msra.mxu0 0.0
  %455 = vmatpush.msra.mxu0 0.0
  %456 = vmatpush.msra.mxu0 0.0
  %457 = vmatpush.msra.mxu0 0.0
  %458 = vmatpush.msra.mxu0 0.0
  %459 = vmatpush.msra.mxu0 0.0
  %460 = vmatpush.msra.mxu0 0.0
  %461 = vmatpush.msra.mxu0 0.0
  %462 = vmatpush.msra.mxu0 0.0
  %463 = vmatpush.msra.mxu0 0.0
  %464 = vmatpush.msra.mxu0 0.0
  %465 = vmatpush.msra.mxu0 %v445
  %466 = vmatmul.f32.gmra.mxu0 %v448
  %v467 = vpop.f32.mrf.mxu0
  %v468 = vadd.f32 0.0, %v467
  %469 = vdwg.mxu0
  %470 = vrot.lane.b32.xlu0 %v221, 56
  %v471 = vpop.permute.xlu0 %470
  %v474 = vsel %vm226, %v443, 0
  %476 = vmatpush.msra.mxu0 0.0
  %477 = vmatpush.msra.mxu0 0.0
  %478 = vmatpush.msra.mxu0 0.0
  %479 = vmatpush.msra.mxu0 0.0
  %480 = vmatpush.msra.mxu0 0.0
  %481 = vmatpush.msra.mxu0 0.0
  %482 = vmatpush.msra.mxu0 0.0
  %483 = vmatpush.msra.mxu0 0.0
  %484 = vmatpush.msra.mxu0 0.0
  %485 = vmatpush.msra.mxu0 0.0
  %486 = vmatpush.msra.mxu0 0.0
  %487 = vmatpush.msra.mxu0 0.0
  %488 = vmatpush.msra.mxu0 0.0
  %489 = vmatpush.msra.mxu0 0.0
  %490 = vmatpush.msra.mxu0 0.0
  %491 = vmatpush.msra.mxu0 %v471
  %492 = vmatmul.f32.gmra.mxu0 %v474
  %v493 = vpop.f32.mrf.mxu0
  %v494 = vadd.f32 0.0, %v493
  %495 = vdwg.mxu0
  %496 = vrot.lane.b32.xlu0 %v218, 112
  %v497 = vpop.permute.xlu0 %496
  %498 = vrot.lane.b32.xlu0 %v218, 80
  %v499 = vpop.permute.xlu0 %498
  %v500 = vsel %vm226, %v497, 0
  %v502 = vsel %vm226, %v499, 0
  %504 = vmatpush.xpose.msra.mxu0 0.0
  %505 = vmatpush.xpose.msra.mxu0 0.0
  %506 = vmatpush.xpose.msra.mxu0 0.0
  %507 = vmatpush.xpose.msra.mxu0 0.0
  %508 = vmatpush.xpose.msra.mxu0 0.0
  %509 = vmatpush.xpose.msra.mxu0 0.0
  %510 = vmatpush.xpose.msra.mxu0 0.0
  %511 = vmatpush.xpose.msra.mxu0 0.0
  %512 = vmatpush.xpose.msra.mxu0 0.0
  %513 = vmatpush.xpose.msra.mxu0 0.0
  %514 = vmatpush.xpose.msra.mxu0 0.0
  %515 = vmatpush.xpose.msra.mxu0 0.0
  %516 = vmatpush.xpose.msra.mxu0 0.0
  %517 = vmatpush.xpose.msra.mxu0 0.0
  %518 = vmatpush.xpose.msra.mxu0 0.0
  %519 = vmatpush.xpose.msra.mxu0 %v502
  %520 = vmatmul.f32.gmra.mxu0 %v500
  %v521 = vpop.f32.mrf.mxu0
  %v522 = vadd.f32 0.0, %v521
  %523 = vdwg.mxu0
  %524 = vrot.lane.b32.xlu0 %v221, 112
  %v525 = vpop.permute.xlu0 %524
  %526 = vrot.lane.b32.xlu0 %v221, 80
  %v527 = vpop.permute.xlu0 %526
  %v528 = vsel %vm226, %v525, 0
  %v530 = vsel %vm226, %v527, 0
  %532 = vmatpush.xpose.msra.mxu0 0.0
  %533 = vmatpush.xpose.msra.mxu0 0.0
  %534 = vmatpush.xpose.msra.mxu0 0.0
  %535 = vmatpush.xpose.msra.mxu0 0.0
  %536 = vmatpush.xpose.msra.mxu0 0.0
  %537 = vmatpush.xpose.msra.mxu0 0.0
  %538 = vmatpush.xpose.msra.mxu0 0.0
  %539 = vmatpush.xpose.msra.mxu0 0.0
  %540 = vmatpush.xpose.msra.mxu0 0.0
  %541 = vmatpush.xpose.msra.mxu0 0.0
  %542 = vmatpush.xpose.msra.mxu0 0.0
  %543 = vmatpush.xpose.msra.mxu0 0.0
  %544 = vmatpush.xpose.msra.mxu0 0.0
  %545 = vmatpush.xpose.msra.mxu0 0.0
  %546 = vmatpush.xpose.msra.mxu0 0.0
  %547 = vmatpush.xpose.msra.mxu0 %v530
  %548 = vmatmul.f32.gmra.mxu0 %v528
  %v549 = vpop.f32.mrf.mxu0
  %v550 = vadd.f32 0.0, %v549
  %551 = vdwg.mxu0
  %v552 = vmul.f32 %v522, 0.35355338
  %v553 = vmul.f32 %v550, 0.35355338
  %v554 = vadd.f32 %v552, %v282
  %v555 = vadd.f32 %v553, %v283
  %v556 = vsel %vm226, %v554, -inf
  %557 = vmax.xlane.f32.xlu0 %v556
  %v558 = vpop.xlane.xlu0 %557
  %v559 = vsel %vm226, %v555, -inf
  %560 = vmax.xlane.f32.xlu0 %v559
  %v561 = vpop.xlane.xlu0 %560
  %v562 = vsub.f32 %v554, %v558
  %v563 = vsub.f32 %v555, %v561
  %v564 = vmul.f32 %v562, 1.442695
  %v565 = vpow.pop %v564
  %v566 = vmul.f32 %v563, 1.442695
  %v567 = vpow.pop %v566
  %v568 = vsel %vm226, %v565, 0.0
  %569 = vadd.xlane.f32.xlu0 %v568
  %v570 = vpop.xlane.xlu0 %569
  %v571 = vsel %vm226, %v567, 0.0
  %572 = vadd.xlane.f32.xlu0 %v571
  %v573 = vpop.xlane.xlu0 %572
  %v574 = vrcp.pop %v570
  %v575 = vrcp.pop %v573
  %v576 = vmul.f32 %v565, %v574
  %v577 = vmul.f32 %v567, %v575
  %578 = vrot.lane.b32.xlu0 %v218, 48
  %v579 = vpop.permute.xlu0 %578
  %v582 = vsel %vm226, %v576, 0
  %584 = vmatpush.msra.mxu0 0.0
  %585 = vmatpush.msra.mxu0 0.0
  %586 = vmatpush.msra.mxu0 0.0
  %587 = vmatpush.msra.mxu0 0.0
  %588 = vmatpush.msra.mxu0 0.0
  %589 = vmatpush.msra.mxu0 0.0
  %590 = vmatpush.msra.mxu0 0.0
  %591 = vmatpush.msra.mxu0 0.0
  %592 = vmatpush.msra.mxu0 0.0
  %593 = vmatpush.msra.mxu0 0.0
  %594 = vmatpush.msra.mxu0 0.0
  %595 = vmatpush.msra.mxu0 0.0
  %596 = vmatpush.msra.mxu0 0.0
  %597 = vmatpush.msra.mxu0 0.0
  %598 = vmatpush.msra.mxu0 0.0
  %599 = vmatpush.msra.mxu0 %v579
  %600 = vmatmul.f32.gmra.mxu0 %v582
  %v601 = vpop.f32.mrf.mxu0
  %v602 = vadd.f32 0.0, %v601
  %603 = vdwg.mxu0
  %604 = vrot.lane.b32.xlu0 %v221, 48
  %v605 = vpop.permute.xlu0 %604
  %v608 = vsel %vm226, %v577, 0
  %610 = vmatpush.msra.mxu0 0.0
  %611 = vmatpush.msra.mxu0 0.0
  %612 = vmatpush.msra.mxu0 0.0
  %613 = vmatpush.msra.mxu0 0.0
  %614 = vmatpush.msra.mxu0 0.0
  %615 = vmatpush.msra.mxu0 0.0
  %616 = vmatpush.msra.mxu0 0.0
  %617 = vmatpush.msra.mxu0 0.0
  %618 = vmatpush.msra.mxu0 0.0
  %619 = vmatpush.msra.mxu0 0.0
  %620 = vmatpush.msra.mxu0 0.0
  %621 = vmatpush.msra.mxu0 0.0
  %622 = vmatpush.msra.mxu0 0.0
  %623 = vmatpush.msra.mxu0 0.0
  %624 = vmatpush.msra.mxu0 0.0
  %625 = vmatpush.msra.mxu0 %v605
  %626 = vmatmul.f32.gmra.mxu0 %v608
  %v627 = vpop.f32.mrf.mxu0
  %v628 = vadd.f32 0.0, %v627
  %629 = vdwg.mxu0
  %630 = vrot.lane.b32.xlu0 %v218, 104
  %v631 = vpop.permute.xlu0 %630
  %632 = vrot.lane.b32.xlu0 %v218, 72
  %v633 = vpop.permute.xlu0 %632
  %v634 = vsel %vm226, %v631, 0
  %v636 = vsel %vm226, %v633, 0
  %638 = vmatpush.xpose.msra.mxu0 0.0
  %639 = vmatpush.xpose.msra.mxu0 0.0
  %640 = vmatpush.xpose.msra.mxu0 0.0
  %641 = vmatpush.xpose.msra.mxu0 0.0
  %642 = vmatpush.xpose.msra.mxu0 0.0
  %643 = vmatpush.xpose.msra.mxu0 0.0
  %644 = vmatpush.xpose.msra.mxu0 0.0
  %645 = vmatpush.xpose.msra.mxu0 0.0
  %646 = vmatpush.xpose.msra.mxu0 0.0
  %647 = vmatpush.xpose.msra.mxu0 0.0
  %648 = vmatpush.xpose.msra.mxu0 0.0
  %649 = vmatpush.xpose.msra.mxu0 0.0
  %650 = vmatpush.xpose.msra.mxu0 0.0
  %651 = vmatpush.xpose.msra.mxu0 0.0
  %652 = vmatpush.xpose.msra.mxu0 0.0
  %653 = vmatpush.xpose.msra.mxu0 %v636
  %654 = vmatmul.f32.gmra.mxu0 %v634
  %v655 = vpop.f32.mrf.mxu0
  %v656 = vadd.f32 0.0, %v655
  %657 = vdwg.mxu0
  %658 = vrot.lane.b32.xlu0 %v221, 104
  %v659 = vpop.permute.xlu0 %658
  %660 = vrot.lane.b32.xlu0 %v221, 72
  %v661 = vpop.permute.xlu0 %660
  %v662 = vsel %vm226, %v659, 0
  %v664 = vsel %vm226, %v661, 0
  %666 = vmatpush.xpose.msra.mxu0 0.0
  %667 = vmatpush.xpose.msra.mxu0 0.0
  %668 = vmatpush.xpose.msra.mxu0 0.0
  %669 = vmatpush.xpose.msra.mxu0 0.0
  %670 = vmatpush.xpose.msra.mxu0 0.0
  %671 = vmatpush.xpose.msra.mxu0 0.0
  %672 = vmatpush.xpose.msra.mxu0 0.0
  %673 = vmatpush.xpose.msra.mxu0 0.0
  %674 = vmatpush.xpose.msra.mxu0 0.0
  %675 = vmatpush.xpose.msra.mxu0 0.0
  %676 = vmatpush.xpose.msra.mxu0 0.0
  %677 = vmatpush.xpose.msra.mxu0 0.0
  %678 = vmatpush.xpose.msra.mxu0 0.0
  %679 = vmatpush.xpose.msra.mxu0 0.0
  %680 = vmatpush.xpose.msra.mxu0 0.0
  %681 = vmatpush.xpose.msra.mxu0 %v664
  %682 = vmatmul.f32.gmra.mxu0 %v662
  %v683 = vpop.f32.mrf.mxu0
  %v684 = vadd.f32 0.0, %v683
  %685 = vdwg.mxu0
  %v686 = vmul.f32 %v656, 0.35355338
  %v687 = vmul.f32 %v684, 0.35355338
  %v688 = vadd.f32 %v686, %v282
  %v689 = vadd.f32 %v687, %v283
  %v690 = vsel %vm226, %v688, -inf
  %691 = vmax.xlane.f32.xlu0 %v690
  %v692 = vpop.xlane.xlu0 %691
  %v693 = vsel %vm226, %v689, -inf
  %694 = vmax.xlane.f32.xlu0 %v693
  %v695 = vpop.xlane.xlu0 %694
  %v696 = vsub.f32 %v688, %v692
  %v697 = vsub.f32 %v689, %v695
  %v698 = vmul.f32 %v696, 1.442695
  %v699 = vpow.pop %v698
  %v700 = vmul.f32 %v697, 1.442695
  %v701 = vpow.pop %v700
  %v702 = vsel %vm226, %v699, 0.0
  %703 = vadd.xlane.f32.xlu0 %v702
  %v704 = vpop.xlane.xlu0 %703
  %v705 = vsel %vm226, %v701, 0.0
  %706 = vadd.xlane.f32.xlu0 %v705
  %v707 = vpop.xlane.xlu0 %706
  %v708 = vrcp.pop %v704
  %v709 = vrcp.pop %v707
  %v710 = vmul.f32 %v699, %v708
  %v711 = vmul.f32 %v701, %v709
  %712 = vrot.lane.b32.xlu0 %v218, 40
  %v713 = vpop.permute.xlu0 %712
  %v716 = vsel %vm226, %v710, 0
  %718 = vmatpush.msra.mxu0 0.0
  %719 = vmatpush.msra.mxu0 0.0
  %720 = vmatpush.msra.mxu0 0.0
  %721 = vmatpush.msra.mxu0 0.0
  %722 = vmatpush.msra.mxu0 0.0
  %723 = vmatpush.msra.mxu0 0.0
  %724 = vmatpush.msra.mxu0 0.0
  %725 = vmatpush.msra.mxu0 0.0
  %726 = vmatpush.msra.mxu0 0.0
  %727 = vmatpush.msra.mxu0 0.0
  %728 = vmatpush.msra.mxu0 0.0
  %729 = vmatpush.msra.mxu0 0.0
  %730 = vmatpush.msra.mxu0 0.0
  %731 = vmatpush.msra.mxu0 0.0
  %732 = vmatpush.msra.mxu0 0.0
  %733 = vmatpush.msra.mxu0 %v713
  %734 = vmatmul.f32.gmra.mxu0 %v716
  %v735 = vpop.f32.mrf.mxu0
  %v736 = vadd.f32 0.0, %v735
  %737 = vdwg.mxu0
  %738 = vrot.lane.b32.xlu0 %v221, 40
  %v739 = vpop.permute.xlu0 %738
  %v742 = vsel %vm226, %v711, 0
  %744 = vmatpush.msra.mxu0 0.0
  %745 = vmatpush.msra.mxu0 0.0
  %746 = vmatpush.msra.mxu0 0.0
  %747 = vmatpush.msra.mxu0 0.0
  %748 = vmatpush.msra.mxu0 0.0
  %749 = vmatpush.msra.mxu0 0.0
  %750 = vmatpush.msra.mxu0 0.0
  %751 = vmatpush.msra.mxu0 0.0
  %752 = vmatpush.msra.mxu0 0.0
  %753 = vmatpush.msra.mxu0 0.0
  %754 = vmatpush.msra.mxu0 0.0
  %755 = vmatpush.msra.mxu0 0.0
  %756 = vmatpush.msra.mxu0 0.0
  %757 = vmatpush.msra.mxu0 0.0
  %758 = vmatpush.msra.mxu0 0.0
  %759 = vmatpush.msra.mxu0 %v739
  %760 = vmatmul.f32.gmra.mxu0 %v742
  %v761 = vpop.f32.mrf.mxu0
  %v762 = vadd.f32 0.0, %v761
  %763 = vdwg.mxu0
  %766 = vrot.lane.b32.xlu0 %v468, 8
  %v767 = vpop.permute.xlu0 %766
  %768 = vrot.lane.b32.xlu0 %v494, 8
  %v769 = vpop.permute.xlu0 %768
  %774 = vrot.lane.b32.xlu0 %v602, 16
  %v775 = vpop.permute.xlu0 %774
  %776 = vrot.lane.b32.xlu0 %v628, 16
  %v777 = vpop.permute.xlu0 %776
  %782 = vrot.lane.b32.xlu0 %v736, 24
  %v783 = vpop.permute.xlu0 %782
  %784 = vrot.lane.b32.xlu0 %v762, 24
  %v785 = vpop.permute.xlu0 %784
  %v788 = vsel %vm226, %v334, %v767
  %v789 = vsel %vm226, %v360, %v769
  %vm790 = vcmask 130048
  %v791 = vsel %vm790, %v788, %v775
  %v792 = vsel %vm790, %v789, %v777
  %vm793 = vcmask 195584
  %v794 = vsel %vm793, %v791, %v783
  %v795 = vsel %vm793, %v792, %v785
  %v796 = vld [vmem:[%s15] sm:$0xff]
  %v797 = vld [vmem:[%s15 + $0x8] sm:$0xff]
  %v798 = vld [vmem:[%s15 + $0x10] sm:$0xff]
  %v799 = vld [vmem:[%s15 + $0x18] sm:$0xff]
  %v800 = vld [vmem:[%s17] sm:$0x1]
  %v802 = vperm.slane %v800, 0
  %v805 = vsel %vm193, %v794, 0
  %v808 = vsel %vm193, %v795, 0
  %810 = vmatpush.msra.mxu0 0.0
  %811 = vmatpush.msra.mxu0 0.0
  %812 = vmatpush.msra.mxu0 0.0
  %813 = vmatpush.msra.mxu0 0.0
  %814 = vmatpush.msra.mxu0 0.0
  %815 = vmatpush.msra.mxu0 0.0
  %816 = vmatpush.msra.mxu0 0.0
  %817 = vmatpush.msra.mxu0 0.0
  %818 = vmatpush.msra.mxu0 0.0
  %819 = vmatpush.msra.mxu0 0.0
  %820 = vmatpush.msra.mxu0 0.0
  %821 = vmatpush.msra.mxu0 0.0
  %822 = vmatpush.msra.mxu0 %v799
  %823 = vmatpush.msra.mxu0 %v798
  %824 = vmatpush.msra.mxu0 %v797
  %825 = vmatpush.msra.mxu0 %v796
  %826 = vmatmul.f32.gmra.mxu0 %v805
  %v827 = vpop.f32.mrf.mxu0
  %v828 = vadd.f32 %v802, %v827
  %829 = vmatmul.f32.gmra.mxu0 %v808
  %v830 = vpop.f32.mrf.mxu0
  %v831 = vadd.f32 %v802, %v830
  %832 = vdwg.mxu0
  %v833 = vadd.f32 %v181, %v828
  %v834 = vadd.f32 %v182, %v831
  %v835 = vld [vmem:[%s19] sm:$0x1]
  %v836 = vld [vmem:[%s21] sm:$0x1]
  %v837 = vsel %vm193, %v833, 0.0
  %838 = vadd.xlane.f32.xlu0 %v837
  %v839 = vpop.xlane.xlu0 %838
  %v840 = vsel %vm193, %v834, 0.0
  %841 = vadd.xlane.f32.xlu0 %v840
  %v842 = vpop.xlane.xlu0 %841
  %v843 = vrcp.pop 32.0
  %v844 = vmul.f32 32.0, %v843
  %v845 = vsub.f32 1.0, %v844
  %v846 = vmul.f32 %v843, %v845
  %v847 = vadd.f32 %v843, %v846
  %vm848 = vweird.f32 %v843
  %v849 = vsel %vm848, %v843, %v847
  %v850 = vmul.f32 %v839, %v849
  %v851 = vmul.f32 %v842, %v849
  %v852 = vsub.f32 %v833, %v850
  %v853 = vsub.f32 %v834, %v851
  %v854 = vmul.f32 %v852, %v852
  %v855 = vmul.f32 %v853, %v853
  %v856 = vsel %vm193, %v854, 0.0
  %857 = vadd.xlane.f32.xlu0 %v856
  %v858 = vpop.xlane.xlu0 %857
  %v859 = vsel %vm193, %v855, 0.0
  %860 = vadd.xlane.f32.xlu0 %v859
  %v861 = vpop.xlane.xlu0 %860
  %v862 = vmul.f32 %v858, %v849
  %v863 = vmul.f32 %v861, %v849
  %v864 = vadd.f32 %v862, 1e-05
  %v865 = vadd.f32 %v863, 1e-05
  %v866 = vrsqrt.pop %v864
  %v867 = vmul.f32 %v866, %v864
  %v868 = vmul.f32 %v867, %v866
  %v869 = vmul.f32 0.5, %v868
  %v870 = vsub.f32 1.5, %v869
  %v871 = vmul.f32 %v866, %v870
  %vm872 = vweird.f32 %v864
  %vm873 = vweird.f32 %v866
  %vm874 = vmor %vm872, %vm873
  %v875 = vsel %vm874, %v866, %v871
  %v876 = vrsqrt.pop %v865
  %v877 = vmul.f32 %v876, %v865
  %v878 = vmul.f32 %v877, %v876
  %v879 = vmul.f32 0.5, %v878
  %v880 = vsub.f32 1.5, %v879
  %v881 = vmul.f32 %v876, %v880
  %vm882 = vweird.f32 %v865
  %vm883 = vweird.f32 %v876
  %vm884 = vmor %vm882, %vm883
  %v885 = vsel %vm884, %v876, %v881
  %v886 = vmul.f32 %v852, %v875
  %v887 = vmul.f32 %v853, %v885
  %v889 = vperm.slane %v835, 0
  %v891 = vmul.f32 %v886, %v889
  %v892 = vmul.f32 %v887, %v889
  %v894 = vperm.slane %v836, 0
  %v896 = vadd.f32 %v891, %v894
  %v897 = vadd.f32 %v892, %v894
  %v898 = vld [vmem:[%s27] sm:$0xff]
  %v899 = vld [vmem:[%s27 + $0x8] sm:$0xff]
  %v900 = vld [vmem:[%s27 + $0x10] sm:$0xff]
  %v901 = vld [vmem:[%s27 + $0x18] sm:$0xff]
  %v902 = vld [vmem:[%s29] sm:$0x1]
  %v904 = vperm.slane %v902, 0
  %v907 = vsel %vm193, %v896, 0
  %v910 = vsel %vm193, %v897, 0
  %912 = vmatpush.msra.mxu0 0.0
  %913 = vmatpush.msra.mxu0 0.0
  %914 = vmatpush.msra.mxu0 0.0
  %915 = vmatpush.msra.mxu0 0.0
  %916 = vmatpush.msra.mxu0 0.0
  %917 = vmatpush.msra.mxu0 0.0
  %918 = vmatpush.msra.mxu0 0.0
  %919 = vmatpush.msra.mxu0 0.0
  %920 = vmatpush.msra.mxu0 0.0
  %921 = vmatpush.msra.mxu0 0.0
  %922 = vmatpush.msra.mxu0 0.0
  %923 = vmatpush.msra.mxu0 0.0
  %924 = vmatpush.msra.mxu0 %v901
  %925 = vmatpush.msra.mxu0 %v900
  %926 = vmatpush.msra.mxu0 %v899
  %927 = vmatpush.msra.mxu0 %v898
  %928 = vmatmul.f32.gmra.mxu0 %v907
  %v929 = vpop.f32.mrf.mxu0
  %v930 = vadd.f32 %v904, %v929
  %931 = vmatmul.f32.gmra.mxu0 %v910
  %v932 = vpop.f32.mrf.mxu0
  %v933 = vadd.f32 %v904, %v932
  %934 = vdwg.mxu0
  %v935 = vmul.f32 %v930, 0.5
  %v936 = vmul.f32 %v933, 0.5
  %v937 = vmul.f32 %v930, 0.70710677
  %v938 = vmul.f32 %v933, 0.70710677
  %vm939 = vcmp.lt.f32.partialorder %v937, 0.0
  %vm940 = vcmp.lt.f32.partialorder %v938, 0.0
  %v941 = vsel %vm939, -1.0, 1.0
  %v942 = vsel %vm940, -1.0, 1.0
  %v943 = vand.u32 2147483647, %v937
  %v944 = vand.u32 2147483647, %v938
  %v945 = vmul.f32 %v943, 0.3275911
  %v946 = vmul.f32 %v944, 0.3275911
  %v947 = vadd.f32 %v945, 1.0
  %v948 = vadd.f32 %v946, 1.0
  %v949 = vrcp.pop %v947
  %v950 = vmul.f32 %v947, %v949
  %v951 = vsub.f32 1.0, %v950
  %v952 = vmul.f32 %v949, %v951
  %v953 = vadd.f32 %v949, %v952
  %vm954 = vweird.f32 %v947
  %vm955 = vweird.f32 %v949
  %vm956 = vmor %vm954, %vm955
  %v957 = vsel %vm956, %v949, %v953
  %v958 = vand.u32 2147483647, %v947
  %vm959 = vcmp.eq.f32.partialorder %v958, 8.507059e+37
  %v960 = vand.u32 %v947, 2147483648
  %v961 = vor.u32 1.1754944e-38, %v960
  %v962 = vsel %vm959, %v961, %v957
  %v963 = vmul.f32 1.0, %v962
  %v964 = vrcp.pop %v948
  %v965 = vmul.f32 %v948, %v964
  %v966 = vsub.f32 1.0, %v965
  %v967 = vmul.f32 %v964, %v966
  %v968 = vadd.f32 %v964, %v967
  %vm969 = vweird.f32 %v948
  %vm970 = vweird.f32 %v964
  %vm971 = vmor %vm969, %vm970
  %v972 = vsel %vm971, %v964, %v968
  %v973 = vand.u32 2147483647, %v948
  %vm974 = vcmp.eq.f32.partialorder %v973, 8.507059e+37
  %v975 = vand.u32 %v948, 2147483648
  %v976 = vor.u32 1.1754944e-38, %v975
  %v977 = vsel %vm974, %v976, %v972
  %v978 = vmul.f32 1.0, %v977
  %v979 = vmul.f32 %v963, 1.0614054
  %v980 = vmul.f32 %v978, 1.0614054
  %v981 = vadd.f32 %v979, -1.4531521
  %v982 = vadd.f32 %v980, -1.4531521
  %v983 = vmul.f32 %v981, %v963
  %v984 = vmul.f32 %v982, %v978
  %v985 = vadd.f32 %v983, 1.4214138
  %v986 = vadd.f32 %v984, 1.4214138
  %v987 = vmul.f32 %v985, %v963
  %v988 = vmul.f32 %v986, %v978
  %v989 = vadd.f32 %v987, -0.28449672
  %v990 = vadd.f32 %v988, -0.28449672
  %v991 = vmul.f32 %v989, %v963
  %v992 = vmul.f32 %v990, %v978
  %v993 = vadd.f32 %v991, 0.2548296
  %v994 = vadd.f32 %v992, 0.2548296
  %v995 = vmul.f32 %v993, %v963
  %v996 = vmul.f32 %v994, %v978
  %v997 = vsub.f32 0.0, %v943
  %v998 = vsub.f32 0.0, %v944
  %v999 = vmul.f32 %v997, %v943
  %v1000 = vmul.f32 %v998, %v944
  %v1001 = vmul.f32 %v999, 1.442695
  %v1002 = vpow.pop %v1001
  %v1003 = vmul.f32 %v1000, 1.442695
  %v1004 = vpow.pop %v1003
  %v1005 = vmul.f32 %v995, %v1002
  %v1006 = vmul.f32 %v996, %v1004
  %v1007 = vsub.f32 1.0, %v1005
  %v1008 = vsub.f32 1.0, %v1006
  %v1009 = vmul.f32 %v941, %v1007
  %v1010 = vmul.f32 %v942, %v1008
  %v1011 = vadd.f32 %v1009, 1.0
  %v1012 = vadd.f32 %v1010, 1.0
  %v1013 = vmul.f32 %v935, %v1011
  %v1014 = vmul.f32 %v936, %v1012
  %v1015 = vld [vmem:[%s31] sm:$0xff]
  %v1016 = vld [vmem:[%s31 + $0x8] sm:$0xff]
  %v1017 = vld [vmem:[%s31 + $0x10] sm:$0xff]
  %v1018 = vld [vmem:[%s31 + $0x18] sm:$0xff]
  %v1019 = vld [vmem:[%s31 + $0x20] sm:$0xff]
  %v1020 = vld [vmem:[%s31 + $0x28] sm:$0xff]
  %v1021 = vld [vmem:[%s31 + $0x30] sm:$0xff]
  %v1022 = vld [vmem:[%s31 + $0x38] sm:$0xff]
  %v1023 = vld [vmem:[%s33] sm:$0x1]
  %v1025 = vperm.slane %v1023, 0
  %vm1027 = vcmask 523264
  %v1029 = vsel %vm1027, %v1013, 0
  %v1032 = vsel %vm1027, %v1014, 0
  %1034 = vmatpush.msra.mxu0 0.0
  %1035 = vmatpush.msra.mxu0 0.0
  %1036 = vmatpush.msra.mxu0 0.0
  %1037 = vmatpush.msra.mxu0 0.0
  %1038 = vmatpush.msra.mxu0 0.0
  %1039 = vmatpush.msra.mxu0 0.0
  %1040 = vmatpush.msra.mxu0 0.0
  %1041 = vmatpush.msra.mxu0 0.0
  %1042 = vmatpush.msra.mxu0 %v1022
  %1043 = vmatpush.msra.mxu0 %v1021
  %1044 = vmatpush.msra.mxu0 %v1020
  %1045 = vmatpush.msra.mxu0 %v1019
  %1046 = vmatpush.msra.mxu0 %v1018
  %1047 = vmatpush.msra.mxu0 %v1017
  %1048 = vmatpush.msra.mxu0 %v1016
  %1049 = vmatpush.msra.mxu0 %v1015
  %1050 = vmatmul.f32.gmra.mxu0 %v1029
  %v1051 = vpop.f32.mrf.mxu0
  %v1052 = vadd.f32 %v1025, %v1051
  %1053 = vmatmul.f32.gmra.mxu0 %v1032
  %v1054 = vpop.f32.mrf.mxu0
  %v1055 = vadd.f32 %v1025, %v1054
  %1056 = vdwg.mxu0
  %v1057 = vadd.f32 %v896, %v1052
  %v1058 = vadd.f32 %v897, %v1055
  %v1059 = vld [vmem:[%s23] sm:$0x1]
  %v1060 = vld [vmem:[%s25] sm:$0x1]
  %v1061 = vsel %vm193, %v1057, 0.0
  %1062 = vadd.xlane.f32.xlu0 %v1061
  %v1063 = vpop.xlane.xlu0 %1062
  %v1064 = vsel %vm193, %v1058, 0.0
  %1065 = vadd.xlane.f32.xlu0 %v1064
  %v1066 = vpop.xlane.xlu0 %1065
  %v1067 = vmul.f32 %v1063, %v849
  %v1068 = vmul.f32 %v1066, %v849
  %v1069 = vsub.f32 %v1057, %v1067
  %v1070 = vsub.f32 %v1058, %v1068
  %v1071 = vmul.f32 %v1069, %v1069
  %v1072 = vmul.f32 %v1070, %v1070
  %v1073 = vsel %vm193, %v1071, 0.0
  %1074 = vadd.xlane.f32.xlu0 %v1073
  %v1075 = vpop.xlane.xlu0 %1074
  %v1076 = vsel %vm193, %v1072, 0.0
  %1077 = vadd.xlane.f32.xlu0 %v1076
  %v1078 = vpop.xlane.xlu0 %1077
  %v1079 = vmul.f32 %v1075, %v849
  %v1080 = vmul.f32 %v1078, %v849
  %v1081 = vadd.f32 %v1079, 1e-05
  %v1082 = vadd.f32 %v1080, 1e-05
  %v1083 = vrsqrt.pop %v1081
  %v1084 = vmul.f32 %v1083, %v1081
  %v1085 = vmul.f32 %v1084, %v1083
  %v1086 = vmul.f32 0.5, %v1085
  %v1087 = vsub.f32 1.5, %v1086
  %v1088 = vmul.f32 %v1083, %v1087
  %vm1089 = vweird.f32 %v1081
  %vm1090 = vweird.f32 %v1083
  %vm1091 = vmor %vm1089, %vm1090
  %v1092 = vsel %vm1091, %v1083, %v1088
  %v1093 = vrsqrt.pop %v1082
  %v1094 = vmul.f32 %v1093, %v1082
  %v1095 = vmul.f32 %v1094, %v1093
  %v1096 = vmul.f32 0.5, %v1095
  %v1097 = vsub.f32 1.5, %v1096
  %v1098 = vmul.f32 %v1093, %v1097
  %vm1099 = vweird.f32 %v1082
  %vm1100 = vweird.f32 %v1093
  %vm1101 = vmor %vm1099, %vm1100
  %v1102 = vsel %vm1101, %v1093, %v1098
  %v1103 = vmul.f32 %v1069, %v1092
  %v1104 = vmul.f32 %v1070, %v1102
  %v1106 = vperm.slane %v1059, 0
  %v1108 = vmul.f32 %v1103, %v1106
  %v1109 = vmul.f32 %v1104, %v1106
  %v1111 = vperm.slane %v1060, 0
  %v1113 = vadd.f32 %v1108, %v1111
  %v1114 = vadd.f32 %v1109, %v1111
  %s1115 = scalar_lea.vmem %s11, 32
  %v1116 = vld [vmem:[%s1115] sm:$0xff]
  %v1117 = vld [vmem:[%s1115 + $0x8] sm:$0xff]
  %v1118 = vld [vmem:[%s1115 + $0x10] sm:$0xff]
  %v1119 = vld [vmem:[%s1115 + $0x18] sm:$0xff]
  %s1120 = scalar_lea.vmem %s13, 1
  %v1121 = vld [vmem:[%s1120] sm:$0x1]
  %v1123 = vperm.slane %v1121, 0
  %v1126 = vsel %vm193, %v1113, 0
  %v1129 = vsel %vm193, %v1114, 0
  %1131 = vmatpush.msra.mxu0 0.0
  %1132 = vmatpush.msra.mxu0 0.0
  %1133 = vmatpush.msra.mxu0 0.0
  %1134 = vmatpush.msra.mxu0 0.0
  %1135 = vmatpush.msra.mxu0 0.0
  %1136 = vmatpush.msra.mxu0 0.0
  %1137 = vmatpush.msra.mxu0 0.0
  %1138 = vmatpush.msra.mxu0 0.0
  %1139 = vmatpush.msra.mxu0 0.0
  %1140 = vmatpush.msra.mxu0 0.0
  %1141 = vmatpush.msra.mxu0 0.0
  %1142 = vmatpush.msra.mxu0 0.0
  %1143 = vmatpush.msra.mxu0 %v1119
  %1144 = vmatpush.msra.mxu0 %v1118
  %1145 = vmatpush.msra.mxu0 %v1117
  %1146 = vmatpush.msra.mxu0 %v1116
  %1147 = vmatmul.f32.gmra.mxu0 %v1126
  %v1148 = vpop.f32.mrf.mxu0
  %v1149 = vadd.f32 %v1123, %v1148
  %1150 = vmatmul.f32.gmra.mxu0 %v1129
  %v1151 = vpop.f32.mrf.mxu0
  %v1152 = vadd.f32 %v1123, %v1151
  %1153 = vdwg.mxu0
  %1155 = vrot.lane.b32.xlu0 %v1149, 96
  %v1156 = vpop.permute.xlu0 %1155
  %v1157 = vsel %vm226, %v1149, 0
  %v1159 = vsel %vm226, %v1156, 0
  %1161 = vmatpush.xpose.msra.mxu0 0.0
  %1162 = vmatpush.xpose.msra.mxu0 0.0
  %1163 = vmatpush.xpose.msra.mxu0 0.0
  %1164 = vmatpush.xpose.msra.mxu0 0.0
  %1165 = vmatpush.xpose.msra.mxu0 0.0
  %1166 = vmatpush.xpose.msra.mxu0 0.0
  %1167 = vmatpush.xpose.msra.mxu0 0.0
  %1168 = vmatpush.xpose.msra.mxu0 0.0
  %1169 = vmatpush.xpose.msra.mxu0 0.0
  %1170 = vmatpush.xpose.msra.mxu0 0.0
  %1171 = vmatpush.xpose.msra.mxu0 0.0
  %1172 = vmatpush.xpose.msra.mxu0 0.0
  %1173 = vmatpush.xpose.msra.mxu0 0.0
  %1174 = vmatpush.xpose.msra.mxu0 0.0
  %1175 = vmatpush.xpose.msra.mxu0 0.0
  %1176 = vmatpush.xpose.msra.mxu0 %v1159
  %1177 = vmatmul.f32.gmra.mxu0 %v1157
  %v1178 = vpop.f32.mrf.mxu0
  %v1179 = vadd.f32 0.0, %v1178
  %1180 = vdwg.mxu0
  %1182 = vrot.lane.b32.xlu0 %v1152, 96
  %v1183 = vpop.permute.xlu0 %1182
  %v1184 = vsel %vm226, %v1152, 0
  %v1186 = vsel %vm226, %v1183, 0
  %1188 = vmatpush.xpose.msra.mxu0 0.0
  %1189 = vmatpush.xpose.msra.mxu0 0.0
  %1190 = vmatpush.xpose.msra.mxu0 0.0
  %1191 = vmatpush.xpose.msra.mxu0 0.0
  %1192 = vmatpush.xpose.msra.mxu0 0.0
  %1193 = vmatpush.xpose.msra.mxu0 0.0
  %1194 = vmatpush.xpose.msra.mxu0 0.0
  %1195 = vmatpush.xpose.msra.mxu0 0.0
  %1196 = vmatpush.xpose.msra.mxu0 0.0
  %1197 = vmatpush.xpose.msra.mxu0 0.0
  %1198 = vmatpush.xpose.msra.mxu0 0.0
  %1199 = vmatpush.xpose.msra.mxu0 0.0
  %1200 = vmatpush.xpose.msra.mxu0 0.0
  %1201 = vmatpush.xpose.msra.mxu0 0.0
  %1202 = vmatpush.xpose.msra.mxu0 0.0
  %1203 = vmatpush.xpose.msra.mxu0 %v1186
  %1204 = vmatmul.f32.gmra.mxu0 %v1184
  %v1205 = vpop.f32.mrf.mxu0
  %v1206 = vadd.f32 0.0, %v1205
  %1207 = vdwg.mxu0
  %v1208 = vmul.f32 %v1179, 0.35355338
  %v1209 = vmul.f32 %v1206, 0.35355338
  %v1210 = vadd.f32 %v1208, %v282
  %v1211 = vadd.f32 %v1209, %v283
  %v1212 = vsel %vm226, %v1210, -inf
  %1213 = vmax.xlane.f32.xlu0 %v1212
  %v1214 = vpop.xlane.xlu0 %1213
  %v1215 = vsel %vm226, %v1211, -inf
  %1216 = vmax.xlane.f32.xlu0 %v1215
  %v1217 = vpop.xlane.xlu0 %1216
  %v1218 = vsub.f32 %v1210, %v1214
  %v1219 = vsub.f32 %v1211, %v1217
  %v1220 = vmul.f32 %v1218, 1.442695
  %v1221 = vpow.pop %v1220
  %v1222 = vmul.f32 %v1219, 1.442695
  %v1223 = vpow.pop %v1222
  %v1224 = vsel %vm226, %v1221, 0.0
  %1225 = vadd.xlane.f32.xlu0 %v1224
  %v1226 = vpop.xlane.xlu0 %1225
  %v1227 = vsel %vm226, %v1223, 0.0
  %1228 = vadd.xlane.f32.xlu0 %v1227
  %v1229 = vpop.xlane.xlu0 %1228
  %v1230 = vrcp.pop %v1226
  %v1231 = vrcp.pop %v1229
  %v1232 = vmul.f32 %v1221, %v1230
  %v1233 = vmul.f32 %v1223, %v1231
  %1234 = vrot.lane.b32.xlu0 %v1149, 64
  %v1235 = vpop.permute.xlu0 %1234
  %v1238 = vsel %vm226, %v1232, 0
  %1240 = vmatpush.msra.mxu0 0.0
  %1241 = vmatpush.msra.mxu0 0.0
  %1242 = vmatpush.msra.mxu0 0.0
  %1243 = vmatpush.msra.mxu0 0.0
  %1244 = vmatpush.msra.mxu0 0.0
  %1245 = vmatpush.msra.mxu0 0.0
  %1246 = vmatpush.msra.mxu0 0.0
  %1247 = vmatpush.msra.mxu0 0.0
  %1248 = vmatpush.msra.mxu0 0.0
  %1249 = vmatpush.msra.mxu0 0.0
  %1250 = vmatpush.msra.mxu0 0.0
  %1251 = vmatpush.msra.mxu0 0.0
  %1252 = vmatpush.msra.mxu0 0.0
  %1253 = vmatpush.msra.mxu0 0.0
  %1254 = vmatpush.msra.mxu0 0.0
  %1255 = vmatpush.msra.mxu0 %v1235
  %1256 = vmatmul.f32.gmra.mxu0 %v1238
  %v1257 = vpop.f32.mrf.mxu0
  %v1258 = vadd.f32 0.0, %v1257
  %1259 = vdwg.mxu0
  %1260 = vrot.lane.b32.xlu0 %v1152, 64
  %v1261 = vpop.permute.xlu0 %1260
  %v1264 = vsel %vm226, %v1233, 0
  %1266 = vmatpush.msra.mxu0 0.0
  %1267 = vmatpush.msra.mxu0 0.0
  %1268 = vmatpush.msra.mxu0 0.0
  %1269 = vmatpush.msra.mxu0 0.0
  %1270 = vmatpush.msra.mxu0 0.0
  %1271 = vmatpush.msra.mxu0 0.0
  %1272 = vmatpush.msra.mxu0 0.0
  %1273 = vmatpush.msra.mxu0 0.0
  %1274 = vmatpush.msra.mxu0 0.0
  %1275 = vmatpush.msra.mxu0 0.0
  %1276 = vmatpush.msra.mxu0 0.0
  %1277 = vmatpush.msra.mxu0 0.0
  %1278 = vmatpush.msra.mxu0 0.0
  %1279 = vmatpush.msra.mxu0 0.0
  %1280 = vmatpush.msra.mxu0 0.0
  %1281 = vmatpush.msra.mxu0 %v1261
  %1282 = vmatmul.f32.gmra.mxu0 %v1264
  %v1283 = vpop.f32.mrf.mxu0
  %v1284 = vadd.f32 0.0, %v1283
  %1285 = vdwg.mxu0
  %1286 = vrot.lane.b32.xlu0 %v1149, 120
  %v1287 = vpop.permute.xlu0 %1286
  %1288 = vrot.lane.b32.xlu0 %v1149, 88
  %v1289 = vpop.permute.xlu0 %1288
  %v1290 = vsel %vm226, %v1287, 0
  %v1292 = vsel %vm226, %v1289, 0
  %1294 = vmatpush.xpose.msra.mxu0 0.0
  %1295 = vmatpush.xpose.msra.mxu0 0.0
  %1296 = vmatpush.xpose.msra.mxu0 0.0
  %1297 = vmatpush.xpose.msra.mxu0 0.0
  %1298 = vmatpush.xpose.msra.mxu0 0.0
  %1299 = vmatpush.xpose.msra.mxu0 0.0
  %1300 = vmatpush.xpose.msra.mxu0 0.0
  %1301 = vmatpush.xpose.msra.mxu0 0.0
  %1302 = vmatpush.xpose.msra.mxu0 0.0
  %1303 = vmatpush.xpose.msra.mxu0 0.0
  %1304 = vmatpush.xpose.msra.mxu0 0.0
  %1305 = vmatpush.xpose.msra.mxu0 0.0
  %1306 = vmatpush.xpose.msra.mxu0 0.0
  %1307 = vmatpush.xpose.msra.mxu0 0.0
  %1308 = vmatpush.xpose.msra.mxu0 0.0
  %1309 = vmatpush.xpose.msra.mxu0 %v1292
  %1310 = vmatmul.f32.gmra.mxu0 %v1290
  %v1311 = vpop.f32.mrf.mxu0
  %v1312 = vadd.f32 0.0, %v1311
  %1313 = vdwg.mxu0
  %1314 = vrot.lane.b32.xlu0 %v1152, 120
  %v1315 = vpop.permute.xlu0 %1314
  %1316 = vrot.lane.b32.xlu0 %v1152, 88
  %v1317 = vpop.permute.xlu0 %1316
  %v1318 = vsel %vm226, %v1315, 0
  %v1320 = vsel %vm226, %v1317, 0
  %1322 = vmatpush.xpose.msra.mxu0 0.0
  %1323 = vmatpush.xpose.msra.mxu0 0.0
  %1324 = vmatpush.xpose.msra.mxu0 0.0
  %1325 = vmatpush.xpose.msra.mxu0 0.0
  %1326 = vmatpush.xpose.msra.mxu0 0.0
  %1327 = vmatpush.xpose.msra.mxu0 0.0
  %1328 = vmatpush.xpose.msra.mxu0 0.0
  %1329 = vmatpush.xpose.msra.mxu0 0.0
  %1330 = vmatpush.xpose.msra.mxu0 0.0
  %1331 = vmatpush.xpose.msra.mxu0 0.0
  %1332 = vmatpush.xpose.msra.mxu0 0.0
  %1333 = vmatpush.xpose.msra.mxu0 0.0
  %1334 = vmatpush.xpose.msra.mxu0 0.0
  %1335 = vmatpush.xpose.msra.mxu0 0.0
  %1336 = vmatpush.xpose.msra.mxu0 0.0
  %1337 = vmatpush.xpose.msra.mxu0 %v1320
  %1338 = vmatmul.f32.gmra.mxu0 %v1318
  %v1339 = vpop.f32.mrf.mxu0
  %v1340 = vadd.f32 0.0, %v1339
  %1341 = vdwg.mxu0
  %v1342 = vmul.f32 %v1312, 0.35355338
  %v1343 = vmul.f32 %v1340, 0.35355338
  %v1344 = vadd.f32 %v1342, %v282
  %v1345 = vadd.f32 %v1343, %v283
  %v1346 = vsel %vm226, %v1344, -inf
  %1347 = vmax.xlane.f32.xlu0 %v1346
  %v1348 = vpop.xlane.xlu0 %1347
  %v1349 = vsel %vm226, %v1345, -inf
  %1350 = vmax.xlane.f32.xlu0 %v1349
  %v1351 = vpop.xlane.xlu0 %1350
  %v1352 = vsub.f32 %v1344, %v1348
  %v1353 = vsub.f32 %v1345, %v1351
  %v1354 = vmul.f32 %v1352, 1.442695
  %v1355 = vpow.pop %v1354
  %v1356 = vmul.f32 %v1353, 1.442695
  %v1357 = vpow.pop %v1356
  %v1358 = vsel %vm226, %v1355, 0.0
  %1359 = vadd.xlane.f32.xlu0 %v1358
  %v1360 = vpop.xlane.xlu0 %1359
  %v1361 = vsel %vm226, %v1357, 0.0
  %1362 = vadd.xlane.f32.xlu0 %v1361
  %v1363 = vpop.xlane.xlu0 %1362
  %v1364 = vrcp.pop %v1360
  %v1365 = vrcp.pop %v1363
  %v1366 = vmul.f32 %v1355, %v1364
  %v1367 = vmul.f32 %v1357, %v1365
  %1368 = vrot.lane.b32.xlu0 %v1149, 56
  %v1369 = vpop.permute.xlu0 %1368
  %v1372 = vsel %vm226, %v1366, 0
  %1374 = vmatpush.msra.mxu0 0.0
  %1375 = vmatpush.msra.mxu0 0.0
  %1376 = vmatpush.msra.mxu0 0.0
  %1377 = vmatpush.msra.mxu0 0.0
  %1378 = vmatpush.msra.mxu0 0.0
  %1379 = vmatpush.msra.mxu0 0.0
  %1380 = vmatpush.msra.mxu0 0.0
  %1381 = vmatpush.msra.mxu0 0.0
  %1382 = vmatpush.msra.mxu0 0.0
  %1383 = vmatpush.msra.mxu0 0.0
  %1384 = vmatpush.msra.mxu0 0.0
  %1385 = vmatpush.msra.mxu0 0.0
  %1386 = vmatpush.msra.mxu0 0.0
  %1387 = vmatpush.msra.mxu0 0.0
  %1388 = vmatpush.msra.mxu0 0.0
  %1389 = vmatpush.msra.mxu0 %v1369
  %1390 = vmatmul.f32.gmra.mxu0 %v1372
  %v1391 = vpop.f32.mrf.mxu0
  %v1392 = vadd.f32 0.0, %v1391
  %1393 = vdwg.mxu0
  %1394 = vrot.lane.b32.xlu0 %v1152, 56
  %v1395 = vpop.permute.xlu0 %1394
  %v1398 = vsel %vm226, %v1367, 0
  %1400 = vmatpush.msra.mxu0 0.0
  %1401 = vmatpush.msra.mxu0 0.0
  %1402 = vmatpush.msra.mxu0 0.0
  %1403 = vmatpush.msra.mxu0 0.0
  %1404 = vmatpush.msra.mxu0 0.0
  %1405 = vmatpush.msra.mxu0 0.0
  %1406 = vmatpush.msra.mxu0 0.0
  %1407 = vmatpush.msra.mxu0 0.0
  %1408 = vmatpush.msra.mxu0 0.0
  %1409 = vmatpush.msra.mxu0 0.0
  %1410 = vmatpush.msra.mxu0 0.0
  %1411 = vmatpush.msra.mxu0 0.0
  %1412 = vmatpush.msra.mxu0 0.0
  %1413 = vmatpush.msra.mxu0 0.0
  %1414 = vmatpush.msra.mxu0 0.0
  %1415 = vmatpush.msra.mxu0 %v1395
  %1416 = vmatmul.f32.gmra.mxu0 %v1398
  %v1417 = vpop.f32.mrf.mxu0
  %v1418 = vadd.f32 0.0, %v1417
  %1419 = vdwg.mxu0
  %1420 = vrot.lane.b32.xlu0 %v1149, 112
  %v1421 = vpop.permute.xlu0 %1420
  %1422 = vrot.lane.b32.xlu0 %v1149, 80
  %v1423 = vpop.permute.xlu0 %1422
  %v1424 = vsel %vm226, %v1421, 0
  %v1426 = vsel %vm226, %v1423, 0
  %1428 = vmatpush.xpose.msra.mxu0 0.0
  %1429 = vmatpush.xpose.msra.mxu0 0.0
  %1430 = vmatpush.xpose.msra.mxu0 0.0
  %1431 = vmatpush.xpose.msra.mxu0 0.0
  %1432 = vmatpush.xpose.msra.mxu0 0.0
  %1433 = vmatpush.xpose.msra.mxu0 0.0
  %1434 = vmatpush.xpose.msra.mxu0 0.0
  %1435 = vmatpush.xpose.msra.mxu0 0.0
  %1436 = vmatpush.xpose.msra.mxu0 0.0
  %1437 = vmatpush.xpose.msra.mxu0 0.0
  %1438 = vmatpush.xpose.msra.mxu0 0.0
  %1439 = vmatpush.xpose.msra.mxu0 0.0
  %1440 = vmatpush.xpose.msra.mxu0 0.0
  %1441 = vmatpush.xpose.msra.mxu0 0.0
  %1442 = vmatpush.xpose.msra.mxu0 0.0
  %1443 = vmatpush.xpose.msra.mxu0 %v1426
  %1444 = vmatmul.f32.gmra.mxu0 %v1424
  %v1445 = vpop.f32.mrf.mxu0
  %v1446 = vadd.f32 0.0, %v1445
  %1447 = vdwg.mxu0
  %1448 = vrot.lane.b32.xlu0 %v1152, 112
  %v1449 = vpop.permute.xlu0 %1448
  %1450 = vrot.lane.b32.xlu0 %v1152, 80
  %v1451 = vpop.permute.xlu0 %1450
  %v1452 = vsel %vm226, %v1449, 0
  %v1454 = vsel %vm226, %v1451, 0
  %1456 = vmatpush.xpose.msra.mxu0 0.0
  %1457 = vmatpush.xpose.msra.mxu0 0.0
  %1458 = vmatpush.xpose.msra.mxu0 0.0
  %1459 = vmatpush.xpose.msra.mxu0 0.0
  %1460 = vmatpush.xpose.msra.mxu0 0.0
  %1461 = vmatpush.xpose.msra.mxu0 0.0
  %1462 = vmatpush.xpose.msra.mxu0 0.0
  %1463 = vmatpush.xpose.msra.mxu0 0.0
  %1464 = vmatpush.xpose.msra.mxu0 0.0
  %1465 = vmatpush.xpose.msra.mxu0 0.0
  %1466 = vmatpush.xpose.msra.mxu0 0.0
  %1467 = vmatpush.xpose.msra.mxu0 0.0
  %1468 = vmatpush.xpose.msra.mxu0 0.0
  %1469 = vmatpush.xpose.msra.mxu0 0.0
  %1470 = vmatpush.xpose.msra.mxu0 0.0
  %1471 = vmatpush.xpose.msra.mxu0 %v1454
  %1472 = vmatmul.f32.gmra.mxu0 %v1452
  %v1473 = vpop.f32.mrf.mxu0
  %v1474 = vadd.f32 0.0, %v1473
  %1475 = vdwg.mxu0
  %v1476 = vmul.f32 %v1446, 0.35355338
  %v1477 = vmul.f32 %v1474, 0.35355338
  %v1478 = vadd.f32 %v1476, %v282
  %v1479 = vadd.f32 %v1477, %v283
  %v1480 = vsel %vm226, %v1478, -inf
  %1481 = vmax.xlane.f32.xlu0 %v1480
  %v1482 = vpop.xlane.xlu0 %1481
  %v1483 = vsel %vm226, %v1479, -inf
  %1484 = vmax.xlane.f32.xlu0 %v1483
  %v1485 = vpop.xlane.xlu0 %1484
  %v1486 = vsub.f32 %v1478, %v1482
  %v1487 = vsub.f32 %v1479, %v1485
  %v1488 = vmul.f32 %v1486, 1.442695
  %v1489 = vpow.pop %v1488
  %v1490 = vmul.f32 %v1487, 1.442695
  %v1491 = vpow.pop %v1490
  %v1492 = vsel %vm226, %v1489, 0.0
  %1493 = vadd.xlane.f32.xlu0 %v1492
  %v1494 = vpop.xlane.xlu0 %1493
  %v1495 = vsel %vm226, %v1491, 0.0
  %1496 = vadd.xlane.f32.xlu0 %v1495
  %v1497 = vpop.xlane.xlu0 %1496
  %v1498 = vrcp.pop %v1494
  %v1499 = vrcp.pop %v1497
  %v1500 = vmul.f32 %v1489, %v1498
  %v1501 = vmul.f32 %v1491, %v1499
  %1502 = vrot.lane.b32.xlu0 %v1149, 48
  %v1503 = vpop.permute.xlu0 %1502
  %v1506 = vsel %vm226, %v1500, 0
  %1508 = vmatpush.msra.mxu0 0.0
  %1509 = vmatpush.msra.mxu0 0.0
  %1510 = vmatpush.msra.mxu0 0.0
  %1511 = vmatpush.msra.mxu0 0.0
  %1512 = vmatpush.msra.mxu0 0.0
  %1513 = vmatpush.msra.mxu0 0.0
  %1514 = vmatpush.msra.mxu0 0.0
  %1515 = vmatpush.msra.mxu0 0.0
  %1516 = vmatpush.msra.mxu0 0.0
  %1517 = vmatpush.msra.mxu0 0.0
  %1518 = vmatpush.msra.mxu0 0.0
  %1519 = vmatpush.msra.mxu0 0.0
  %1520 = vmatpush.msra.mxu0 0.0
  %1521 = vmatpush.msra.mxu0 0.0
  %1522 = vmatpush.msra.mxu0 0.0
  %1523 = vmatpush.msra.mxu0 %v1503
  %1524 = vmatmul.f32.gmra.mxu0 %v1506
  %v1525 = vpop.f32.mrf.mxu0
  %v1526 = vadd.f32 0.0, %v1525
  %1527 = vdwg.mxu0
  %1528 = vrot.lane.b32.xlu0 %v1152, 48
  %v1529 = vpop.permute.xlu0 %1528
  %v1532 = vsel %vm226, %v1501, 0
  %1534 = vmatpush.msra.mxu0 0.0
  %1535 = vmatpush.msra.mxu0 0.0
  %1536 = vmatpush.msra.mxu0 0.0
  %1537 = vmatpush.msra.mxu0 0.0
  %1538 = vmatpush.msra.mxu0 0.0
  %1539 = vmatpush.msra.mxu0 0.0
  %1540 = vmatpush.msra.mxu0 0.0
  %1541 = vmatpush.msra.mxu0 0.0
  %1542 = vmatpush.msra.mxu0 0.0
  %1543 = vmatpush.msra.mxu0 0.0
  %1544 = vmatpush.msra.mxu0 0.0
  %1545 = vmatpush.msra.mxu0 0.0
  %1546 = vmatpush.msra.mxu0 0.0
  %1547 = vmatpush.msra.mxu0 0.0
  %1548 = vmatpush.msra.mxu0 0.0
  %1549 = vmatpush.msra.mxu0 %v1529
  %1550 = vmatmul.f32.gmra.mxu0 %v1532
  %v1551 = vpop.f32.mrf.mxu0
  %v1552 = vadd.f32 0.0, %v1551
  %1553 = vdwg.mxu0
  %1554 = vrot.lane.b32.xlu0 %v1149, 104
  %v1555 = vpop.permute.xlu0 %1554
  %1556 = vrot.lane.b32.xlu0 %v1149, 72
  %v1557 = vpop.permute.xlu0 %1556
  %v1558 = vsel %vm226, %v1555, 0
  %v1560 = vsel %vm226, %v1557, 0
  %1562 = vmatpush.xpose.msra.mxu0 0.0
  %1563 = vmatpush.xpose.msra.mxu0 0.0
  %1564 = vmatpush.xpose.msra.mxu0 0.0
  %1565 = vmatpush.xpose.msra.mxu0 0.0
  %1566 = vmatpush.xpose.msra.mxu0 0.0
  %1567 = vmatpush.xpose.msra.mxu0 0.0
  %1568 = vmatpush.xpose.msra.mxu0 0.0
  %1569 = vmatpush.xpose.msra.mxu0 0.0
  %1570 = vmatpush.xpose.msra.mxu0 0.0
  %1571 = vmatpush.xpose.msra.mxu0 0.0
  %1572 = vmatpush.xpose.msra.mxu0 0.0
  %1573 = vmatpush.xpose.msra.mxu0 0.0
  %1574 = vmatpush.xpose.msra.mxu0 0.0
  %1575 = vmatpush.xpose.msra.mxu0 0.0
  %1576 = vmatpush.xpose.msra.mxu0 0.0
  %1577 = vmatpush.xpose.msra.mxu0 %v1560
  %1578 = vmatmul.f32.gmra.mxu0 %v1558
  %v1579 = vpop.f32.mrf.mxu0
  %v1580 = vadd.f32 0.0, %v1579
  %1581 = vdwg.mxu0
  %1582 = vrot.lane.b32.xlu0 %v1152, 104
  %v1583 = vpop.permute.xlu0 %1582
  %1584 = vrot.lane.b32.xlu0 %v1152, 72
  %v1585 = vpop.permute.xlu0 %1584
  %v1586 = vsel %vm226, %v1583, 0
  %v1588 = vsel %vm226, %v1585, 0
  %1590 = vmatpush.xpose.msra.mxu0 0.0
  %1591 = vmatpush.xpose.msra.mxu0 0.0
  %1592 = vmatpush.xpose.msra.mxu0 0.0
  %1593 = vmatpush.xpose.msra.mxu0 0.0
  %1594 = vmatpush.xpose.msra.mxu0 0.0
  %1595 = vmatpush.xpose.msra.mxu0 0.0
  %1596 = vmatpush.xpose.msra.mxu0 0.0
  %1597 = vmatpush.xpose.msra.mxu0 0.0
  %1598 = vmatpush.xpose.msra.mxu0 0.0
  %1599 = vmatpush.xpose.msra.mxu0 0.0
  %1600 = vmatpush.xpose.msra.mxu0 0.0
  %1601 = vmatpush.xpose.msra.mxu0 0.0
  %1602 = vmatpush.xpose.msra.mxu0 0.0
  %1603 = vmatpush.xpose.msra.mxu0 0.0
  %1604 = vmatpush.xpose.msra.mxu0 0.0
  %1605 = vmatpush.xpose.msra.mxu0 %v1588
  %1606 = vmatmul.f32.gmra.mxu0 %v1586
  %v1607 = vpop.f32.mrf.mxu0
  %v1608 = vadd.f32 0.0, %v1607
  %1609 = vdwg.mxu0
  %v1610 = vmul.f32 %v1580, 0.35355338
  %v1611 = vmul.f32 %v1608, 0.35355338
  %v1612 = vadd.f32 %v1610, %v282
  %v1613 = vadd.f32 %v1611, %v283
  %v1614 = vsel %vm226, %v1612, -inf
  %1615 = vmax.xlane.f32.xlu0 %v1614
  %v1616 = vpop.xlane.xlu0 %1615
  %v1617 = vsel %vm226, %v1613, -inf
  %1618 = vmax.xlane.f32.xlu0 %v1617
  %v1619 = vpop.xlane.xlu0 %1618
  %v1620 = vsub.f32 %v1612, %v1616
  %v1621 = vsub.f32 %v1613, %v1619
  %v1622 = vmul.f32 %v1620, 1.442695
  %v1623 = vpow.pop %v1622
  %v1624 = vmul.f32 %v1621, 1.442695
  %v1625 = vpow.pop %v1624
  %v1626 = vsel %vm226, %v1623, 0.0
  %1627 = vadd.xlane.f32.xlu0 %v1626
  %v1628 = vpop.xlane.xlu0 %1627
  %v1629 = vsel %vm226, %v1625, 0.0
  %1630 = vadd.xlane.f32.xlu0 %v1629
  %v1631 = vpop.xlane.xlu0 %1630
  %v1632 = vrcp.pop %v1628
  %v1633 = vrcp.pop %v1631
  %v1634 = vmul.f32 %v1623, %v1632
  %v1635 = vmul.f32 %v1625, %v1633
  %1636 = vrot.lane.b32.xlu0 %v1149, 40
  %v1637 = vpop.permute.xlu0 %1636
  %v1640 = vsel %vm226, %v1634, 0
  %1642 = vmatpush.msra.mxu0 0.0
  %1643 = vmatpush.msra.mxu0 0.0
  %1644 = vmatpush.msra.mxu0 0.0
  %1645 = vmatpush.msra.mxu0 0.0
  %1646 = vmatpush.msra.mxu0 0.0
  %1647 = vmatpush.msra.mxu0 0.0
  %1648 = vmatpush.msra.mxu0 0.0
  %1649 = vmatpush.msra.mxu0 0.0
  %1650 = vmatpush.msra.mxu0 0.0
  %1651 = vmatpush.msra.mxu0 0.0
  %1652 = vmatpush.msra.mxu0 0.0
  %1653 = vmatpush.msra.mxu0 0.0
  %1654 = vmatpush.msra.mxu0 0.0
  %1655 = vmatpush.msra.mxu0 0.0
  %1656 = vmatpush.msra.mxu0 0.0
  %1657 = vmatpush.msra.mxu0 %v1637
  %1658 = vmatmul.f32.gmra.mxu0 %v1640
  %v1659 = vpop.f32.mrf.mxu0
  %v1660 = vadd.f32 0.0, %v1659
  %1661 = vdwg.mxu0
  %1662 = vrot.lane.b32.xlu0 %v1152, 40
  %v1663 = vpop.permute.xlu0 %1662
  %v1666 = vsel %vm226, %v1635, 0
  %1668 = vmatpush.msra.mxu0 0.0
  %1669 = vmatpush.msra.mxu0 0.0
  %1670 = vmatpush.msra.mxu0 0.0
  %1671 = vmatpush.msra.mxu0 0.0
  %1672 = vmatpush.msra.mxu0 0.0
  %1673 = vmatpush.msra.mxu0 0.0
  %1674 = vmatpush.msra.mxu0 0.0
  %1675 = vmatpush.msra.mxu0 0.0
  %1676 = vmatpush.msra.mxu0 0.0
  %1677 = vmatpush.msra.mxu0 0.0
  %1678 = vmatpush.msra.mxu0 0.0
  %1679 = vmatpush.msra.mxu0 0.0
  %1680 = vmatpush.msra.mxu0 0.0
  %1681 = vmatpush.msra.mxu0 0.0
  %1682 = vmatpush.msra.mxu0 0.0
  %1683 = vmatpush.msra.mxu0 %v1663
  %1684 = vmatmul.f32.gmra.mxu0 %v1666
  %v1685 = vpop.f32.mrf.mxu0
  %v1686 = vadd.f32 0.0, %v1685
  %1687 = vdwg.mxu0
  %1690 = vrot.lane.b32.xlu0 %v1392, 8
  %v1691 = vpop.permute.xlu0 %1690
  %1692 = vrot.lane.b32.xlu0 %v1418, 8
  %v1693 = vpop.permute.xlu0 %1692
  %1698 = vrot.lane.b32.xlu0 %v1526, 16
  %v1699 = vpop.permute.xlu0 %1698
  %1700 = vrot.lane.b32.xlu0 %v1552, 16
  %v1701 = vpop.permute.xlu0 %1700
  %1706 = vrot.lane.b32.xlu0 %v1660, 24
  %v1707 = vpop.permute.xlu0 %1706
  %1708 = vrot.lane.b32.xlu0 %v1686, 24
  %v1709 = vpop.permute.xlu0 %1708
  %v1712 = vsel %vm226, %v1258, %v1691
  %v1713 = vsel %vm226, %v1284, %v1693
  %v1714 = vsel %vm790, %v1712, %v1699
  %v1715 = vsel %vm790, %v1713, %v1701
  %v1716 = vsel %vm793, %v1714, %v1707
  %v1717 = vsel %vm793, %v1715, %v1709
  %s1718 = scalar_lea.vmem %s15, 32
  %v1719 = vld [vmem:[%s1718] sm:$0xff]
  %v1720 = vld [vmem:[%s1718 + $0x8] sm:$0xff]
  %v1721 = vld [vmem:[%s1718 + $0x10] sm:$0xff]
  %v1722 = vld [vmem:[%s1718 + $0x18] sm:$0xff]
  %s1723 = scalar_lea.vmem %s17, 1
  %v1724 = vld [vmem:[%s1723] sm:$0x1]
  %v1726 = vperm.slane %v1724, 0
  %v1729 = vsel %vm193, %v1716, 0
  %v1732 = vsel %vm193, %v1717, 0
  %1734 = vmatpush.msra.mxu0 0.0
  %1735 = vmatpush.msra.mxu0 0.0
  %1736 = vmatpush.msra.mxu0 0.0
  %1737 = vmatpush.msra.mxu0 0.0
  %1738 = vmatpush.msra.mxu0 0.0
  %1739 = vmatpush.msra.mxu0 0.0
  %1740 = vmatpush.msra.mxu0 0.0
  %1741 = vmatpush.msra.mxu0 0.0
  %1742 = vmatpush.msra.mxu0 0.0
  %1743 = vmatpush.msra.mxu0 0.0
  %1744 = vmatpush.msra.mxu0 0.0
  %1745 = vmatpush.msra.mxu0 0.0
  %1746 = vmatpush.msra.mxu0 %v1722
  %1747 = vmatpush.msra.mxu0 %v1721
  %1748 = vmatpush.msra.mxu0 %v1720
  %1749 = vmatpush.msra.mxu0 %v1719
  %1750 = vmatmul.f32.gmra.mxu0 %v1729
  %v1751 = vpop.f32.mrf.mxu0
  %v1752 = vadd.f32 %v1726, %v1751
  %1753 = vmatmul.f32.gmra.mxu0 %v1732
  %v1754 = vpop.f32.mrf.mxu0
  %v1755 = vadd.f32 %v1726, %v1754
  %1756 = vdwg.mxu0
  %v1757 = vadd.f32 %v1113, %v1752
  %v1758 = vadd.f32 %v1114, %v1755
  %s1759 = scalar_lea.vmem %s19, 1
  %v1760 = vld [vmem:[%s1759] sm:$0x1]
  %s1761 = scalar_lea.vmem %s21, 1
  %v1762 = vld [vmem:[%s1761] sm:$0x1]
  %v1763 = vsel %vm193, %v1757, 0.0
  %1764 = vadd.xlane.f32.xlu0 %v1763
  %v1765 = vpop.xlane.xlu0 %1764
  %v1766 = vsel %vm193, %v1758, 0.0
  %1767 = vadd.xlane.f32.xlu0 %v1766
  %v1768 = vpop.xlane.xlu0 %1767
  %v1769 = vmul.f32 %v1765, %v849
  %v1770 = vmul.f32 %v1768, %v849
  %v1771 = vsub.f32 %v1757, %v1769
  %v1772 = vsub.f32 %v1758, %v1770
  %v1773 = vmul.f32 %v1771, %v1771
  %v1774 = vmul.f32 %v1772, %v1772
  %v1775 = vsel %vm193, %v1773, 0.0
  %1776 = vadd.xlane.f32.xlu0 %v1775
  %v1777 = vpop.xlane.xlu0 %1776
  %v1778 = vsel %vm193, %v1774, 0.0
  %1779 = vadd.xlane.f32.xlu0 %v1778
  %v1780 = vpop.xlane.xlu0 %1779
  %v1781 = vmul.f32 %v1777, %v849
  %v1782 = vmul.f32 %v1780, %v849
  %v1783 = vadd.f32 %v1781, 1e-05
  %v1784 = vadd.f32 %v1782, 1e-05
  %v1785 = vrsqrt.pop %v1783
  %v1786 = vmul.f32 %v1785, %v1783
  %v1787 = vmul.f32 %v1786, %v1785
  %v1788 = vmul.f32 0.5, %v1787
  %v1789 = vsub.f32 1.5, %v1788
  %v1790 = vmul.f32 %v1785, %v1789
  %vm1791 = vweird.f32 %v1783
  %vm1792 = vweird.f32 %v1785
  %vm1793 = vmor %vm1791, %vm1792
  %v1794 = vsel %vm1793, %v1785, %v1790
  %v1795 = vrsqrt.pop %v1784
  %v1796 = vmul.f32 %v1795, %v1784
  %v1797 = vmul.f32 %v1796, %v1795
  %v1798 = vmul.f32 0.5, %v1797
  %v1799 = vsub.f32 1.5, %v1798
  %v1800 = vmul.f32 %v1795, %v1799
  %vm1801 = vweird.f32 %v1784
  %vm1802 = vweird.f32 %v1795
  %vm1803 = vmor %vm1801, %vm1802
  %v1804 = vsel %vm1803, %v1795, %v1800
  %v1805 = vmul.f32 %v1771, %v1794
  %v1806 = vmul.f32 %v1772, %v1804
  %v1808 = vperm.slane %v1760, 0
  %v1810 = vmul.f32 %v1805, %v1808
  %v1811 = vmul.f32 %v1806, %v1808
  %v1813 = vperm.slane %v1762, 0
  %v1815 = vadd.f32 %v1810, %v1813
  %v1816 = vadd.f32 %v1811, %v1813
  %s1817 = scalar_lea.vmem %s27, 32
  %v1818 = vld [vmem:[%s1817] sm:$0xff]
  %v1819 = vld [vmem:[%s1817 + $0x8] sm:$0xff]
  %v1820 = vld [vmem:[%s1817 + $0x10] sm:$0xff]
  %v1821 = vld [vmem:[%s1817 + $0x18] sm:$0xff]
  %s1822 = scalar_lea.vmem %s29, 1
  %v1823 = vld [vmem:[%s1822] sm:$0x1]
  %v1825 = vperm.slane %v1823, 0
  %v1828 = vsel %vm193, %v1815, 0
  %v1831 = vsel %vm193, %v1816, 0
  %1833 = vmatpush.msra.mxu0 0.0
  %1834 = vmatpush.msra.mxu0 0.0
  %1835 = vmatpush.msra.mxu0 0.0
  %1836 = vmatpush.msra.mxu0 0.0
  %1837 = vmatpush.msra.mxu0 0.0
  %1838 = vmatpush.msra.mxu0 0.0
  %1839 = vmatpush.msra.mxu0 0.0
  %1840 = vmatpush.msra.mxu0 0.0
  %1841 = vmatpush.msra.mxu0 0.0
  %1842 = vmatpush.msra.mxu0 0.0
  %1843 = vmatpush.msra.mxu0 0.0
  %1844 = vmatpush.msra.mxu0 0.0
  %1845 = vmatpush.msra.mxu0 %v1821
  %1846 = vmatpush.msra.mxu0 %v1820
  %1847 = vmatpush.msra.mxu0 %v1819
  %1848 = vmatpush.msra.mxu0 %v1818
  %1849 = vmatmul.f32.gmra.mxu0 %v1828
  %v1850 = vpop.f32.mrf.mxu0
  %v1851 = vadd.f32 %v1825, %v1850
  %1852 = vmatmul.f32.gmra.mxu0 %v1831
  %v1853 = vpop.f32.mrf.mxu0
  %v1854 = vadd.f32 %v1825, %v1853
  %1855 = vdwg.mxu0
  %v1856 = vmul.f32 %v1851, 0.5
  %v1857 = vmul.f32 %v1854, 0.5
  %v1858 = vmul.f32 %v1851, 0.70710677
  %v1859 = vmul.f32 %v1854, 0.70710677
  %vm1860 = vcmp.lt.f32.partialorder %v1858, 0.0
  %vm1861 = vcmp.lt.f32.partialorder %v1859, 0.0
  %v1862 = vsel %vm1860, -1.0, 1.0
  %v1863 = vsel %vm1861, -1.0, 1.0
  %v1864 = vand.u32 2147483647, %v1858
  %v1865 = vand.u32 2147483647, %v1859
  %v1866 = vmul.f32 %v1864, 0.3275911
  %v1867 = vmul.f32 %v1865, 0.3275911
  %v1868 = vadd.f32 %v1866, 1.0
  %v1869 = vadd.f32 %v1867, 1.0
  %v1870 = vrcp.pop %v1868
  %v1871 = vmul.f32 %v1868, %v1870
  %v1872 = vsub.f32 1.0, %v1871
  %v1873 = vmul.f32 %v1870, %v1872
  %v1874 = vadd.f32 %v1870, %v1873
  %vm1875 = vweird.f32 %v1868
  %vm1876 = vweird.f32 %v1870
  %vm1877 = vmor %vm1875, %vm1876
  %v1878 = vsel %vm1877, %v1870, %v1874
  %v1879 = vand.u32 2147483647, %v1868
  %vm1880 = vcmp.eq.f32.partialorder %v1879, 8.507059e+37
  %v1881 = vand.u32 %v1868, 2147483648
  %v1882 = vor.u32 1.1754944e-38, %v1881
  %v1883 = vsel %vm1880, %v1882, %v1878
  %v1884 = vmul.f32 1.0, %v1883
  %v1885 = vrcp.pop %v1869
  %v1886 = vmul.f32 %v1869, %v1885
  %v1887 = vsub.f32 1.0, %v1886
  %v1888 = vmul.f32 %v1885, %v1887
  %v1889 = vadd.f32 %v1885, %v1888
  %vm1890 = vweird.f32 %v1869
  %vm1891 = vweird.f32 %v1885
  %vm1892 = vmor %vm1890, %vm1891
  %v1893 = vsel %vm1892, %v1885, %v1889
  %v1894 = vand.u32 2147483647, %v1869
  %vm1895 = vcmp.eq.f32.partialorder %v1894, 8.507059e+37
  %v1896 = vand.u32 %v1869, 2147483648
  %v1897 = vor.u32 1.1754944e-38, %v1896
  %v1898 = vsel %vm1895, %v1897, %v1893
  %v1899 = vmul.f32 1.0, %v1898
  %v1900 = vmul.f32 %v1884, 1.0614054
  %v1901 = vmul.f32 %v1899, 1.0614054
  %v1902 = vadd.f32 %v1900, -1.4531521
  %v1903 = vadd.f32 %v1901, -1.4531521
  %v1904 = vmul.f32 %v1902, %v1884
  %v1905 = vmul.f32 %v1903, %v1899
  %v1906 = vadd.f32 %v1904, 1.4214138
  %v1907 = vadd.f32 %v1905, 1.4214138
  %v1908 = vmul.f32 %v1906, %v1884
  %v1909 = vmul.f32 %v1907, %v1899
  %v1910 = vadd.f32 %v1908, -0.28449672
  %v1911 = vadd.f32 %v1909, -0.28449672
  %v1912 = vmul.f32 %v1910, %v1884
  %v1913 = vmul.f32 %v1911, %v1899
  %v1914 = vadd.f32 %v1912, 0.2548296
  %v1915 = vadd.f32 %v1913, 0.2548296
  %v1916 = vmul.f32 %v1914, %v1884
  %v1917 = vmul.f32 %v1915, %v1899
  %v1918 = vsub.f32 0.0, %v1864
  %v1919 = vsub.f32 0.0, %v1865
  %v1920 = vmul.f32 %v1918, %v1864
  %v1921 = vmul.f32 %v1919, %v1865
  %v1922 = vmul.f32 %v1920, 1.442695
  %v1923 = vpow.pop %v1922
  %v1924 = vmul.f32 %v1921, 1.442695
  %v1925 = vpow.pop %v1924
  %v1926 = vmul.f32 %v1916, %v1923
  %v1927 = vmul.f32 %v1917, %v1925
  %v1928 = vsub.f32 1.0, %v1926
  %v1929 = vsub.f32 1.0, %v1927
  %v1930 = vmul.f32 %v1862, %v1928
  %v1931 = vmul.f32 %v1863, %v1929
  %v1932 = vadd.f32 %v1930, 1.0
  %v1933 = vadd.f32 %v1931, 1.0
  %v1934 = vmul.f32 %v1856, %v1932
  %v1935 = vmul.f32 %v1857, %v1933
  %s1936 = scalar_lea.vmem %s31, 64
  %v1937 = vld [vmem:[%s1936] sm:$0xff]
  %v1938 = vld [vmem:[%s1936 + $0x8] sm:$0xff]
  %v1939 = vld [vmem:[%s1936 + $0x10] sm:$0xff]
  %v1940 = vld [vmem:[%s1936 + $0x18] sm:$0xff]
  %v1941 = vld [vmem:[%s1936 + $0x20] sm:$0xff]
  %v1942 = vld [vmem:[%s1936 + $0x28] sm:$0xff]
  %v1943 = vld [vmem:[%s1936 + $0x30] sm:$0xff]
  %v1944 = vld [vmem:[%s1936 + $0x38] sm:$0xff]
  %s1945 = scalar_lea.vmem %s33, 1
  %v1946 = vld [vmem:[%s1945] sm:$0x1]
  %v1948 = vperm.slane %v1946, 0
  %v1951 = vsel %vm1027, %v1934, 0
  %v1954 = vsel %vm1027, %v1935, 0
  %1956 = vmatpush.msra.mxu0 0.0
  %1957 = vmatpush.msra.mxu0 0.0
  %1958 = vmatpush.msra.mxu0 0.0
  %1959 = vmatpush.msra.mxu0 0.0
  %1960 = vmatpush.msra.mxu0 0.0
  %1961 = vmatpush.msra.mxu0 0.0
  %1962 = vmatpush.msra.mxu0 0.0
  %1963 = vmatpush.msra.mxu0 0.0
  %1964 = vmatpush.msra.mxu0 %v1944
  %1965 = vmatpush.msra.mxu0 %v1943
  %1966 = vmatpush.msra.mxu0 %v1942
  %1967 = vmatpush.msra.mxu0 %v1941
  %1968 = vmatpush.msra.mxu0 %v1940
  %1969 = vmatpush.msra.mxu0 %v1939
  %1970 = vmatpush.msra.mxu0 %v1938
  %1971 = vmatpush.msra.mxu0 %v1937
  %1972 = vmatmul.f32.gmra.mxu0 %v1951
  %v1973 = vpop.f32.mrf.mxu0
  %v1974 = vadd.f32 %v1948, %v1973
  %1975 = vmatmul.f32.gmra.mxu0 %v1954
  %v1976 = vpop.f32.mrf.mxu0
  %v1977 = vadd.f32 %v1948, %v1976
  %1978 = vdwg.mxu0
  %v1979 = vadd.f32 %v1815, %v1974
  %v1980 = vadd.f32 %v1816, %v1977
  %s1981 = scalar_lea.vmem %s23, 1
  %v1982 = vld [vmem:[%s1981] sm:$0x1]
  %s1983 = scalar_lea.vmem %s25, 1
  %v1984 = vld [vmem:[%s1983] sm:$0x1]
  %v1985 = vsel %vm193, %v1979, 0.0
  %1986 = vadd.xlane.f32.xlu0 %v1985
  %v1987 = vpop.xlane.xlu0 %1986
  %v1988 = vsel %vm193, %v1980, 0.0
  %1989 = vadd.xlane.f32.xlu0 %v1988
  %v1990 = vpop.xlane.xlu0 %1989
  %v1991 = vmul.f32 %v1987, %v849
  %v1992 = vmul.f32 %v1990, %v849
  %v1993 = vsub.f32 %v1979, %v1991
  %v1994 = vsub.f32 %v1980, %v1992
  %v1995 = vmul.f32 %v1993, %v1993
  %v1996 = vmul.f32 %v1994, %v1994
  %v1997 = vsel %vm193, %v1995, 0.0
  %1998 = vadd.xlane.f32.xlu0 %v1997
  %v1999 = vpop.xlane.xlu0 %1998
  %v2000 = vsel %vm193, %v1996, 0.0
  %2001 = vadd.xlane.f32.xlu0 %v2000
  %v2002 = vpop.xlane.xlu0 %2001
  %v2003 = vmul.f32 %v1999, %v849
  %v2004 = vmul.f32 %v2002, %v849
  %v2005 = vadd.f32 %v2003, 1e-05
  %v2006 = vadd.f32 %v2004, 1e-05
  %v2007 = vrsqrt.pop %v2005
  %v2008 = vmul.f32 %v2007, %v2005
  %v2009 = vmul.f32 %v2008, %v2007
  %v2010 = vmul.f32 0.5, %v2009
  %v2011 = vsub.f32 1.5, %v2010
  %v2012 = vmul.f32 %v2007, %v2011
  %vm2013 = vweird.f32 %v2005
  %vm2014 = vweird.f32 %v2007
  %vm2015 = vmor %vm2013, %vm2014
  %v2016 = vsel %vm2015, %v2007, %v2012
  %v2017 = vrsqrt.pop %v2006
  %v2018 = vmul.f32 %v2017, %v2006
  %v2019 = vmul.f32 %v2018, %v2017
  %v2020 = vmul.f32 0.5, %v2019
  %v2021 = vsub.f32 1.5, %v2020
  %v2022 = vmul.f32 %v2017, %v2021
  %vm2023 = vweird.f32 %v2006
  %vm2024 = vweird.f32 %v2017
  %vm2025 = vmor %vm2023, %vm2024
  %v2026 = vsel %vm2025, %v2017, %v2022
  %v2027 = vmul.f32 %v1993, %v2016
  %v2028 = vmul.f32 %v1994, %v2026
  %v2030 = vperm.slane %v1982, 0
  %v2032 = vmul.f32 %v2027, %v2030
  %v2033 = vmul.f32 %v2028, %v2030
  %v2035 = vperm.slane %v1984, 0
  %v2037 = vadd.f32 %v2032, %v2035
  %v2038 = vadd.f32 %v2033, %v2035
  %v2039 = vld [vmem:[%s35] sm:$0x1]
  %v2040 = vld [vmem:[%s37] sm:$0x1]
  %v2041 = vsel %vm193, %v2037, 0.0
  %2042 = vadd.xlane.f32.xlu0 %v2041
  %v2043 = vpop.xlane.xlu0 %2042
  %v2044 = vsel %vm193, %v2038, 0.0
  %2045 = vadd.xlane.f32.xlu0 %v2044
  %v2046 = vpop.xlane.xlu0 %2045
  %v2047 = vmul.f32 %v2043, %v849
  %v2048 = vmul.f32 %v2046, %v849
  %v2049 = vsub.f32 %v2037, %v2047
  %v2050 = vsub.f32 %v2038, %v2048
  %v2051 = vmul.f32 %v2049, %v2049
  %v2052 = vmul.f32 %v2050, %v2050
  %v2053 = vsel %vm193, %v2051, 0.0
  %2054 = vadd.xlane.f32.xlu0 %v2053
  %v2055 = vpop.xlane.xlu0 %2054
  %v2056 = vsel %vm193, %v2052, 0.0
  %2057 = vadd.xlane.f32.xlu0 %v2056
  %v2058 = vpop.xlane.xlu0 %2057
  %v2059 = vmul.f32 %v2055, %v849
  %v2060 = vmul.f32 %v2058, %v849
  %v2061 = vadd.f32 %v2059, 1e-05
  %v2062 = vadd.f32 %v2060, 1e-05
  %v2063 = vrsqrt.pop %v2061
  %v2064 = vmul.f32 %v2063, %v2061
  %v2065 = vmul.f32 %v2064, %v2063
  %v2066 = vmul.f32 0.5, %v2065
  %v2067 = vsub.f32 1.5, %v2066
  %v2068 = vmul.f32 %v2063, %v2067
  %vm2069 = vweird.f32 %v2061
  %vm2070 = vweird.f32 %v2063
  %vm2071 = vmor %vm2069, %vm2070
  %v2072 = vsel %vm2071, %v2063, %v2068
  %v2073 = vrsqrt.pop %v2062
  %v2074 = vmul.f32 %v2073, %v2062
  %v2075 = vmul.f32 %v2074, %v2073
  %v2076 = vmul.f32 0.5, %v2075
  %v2077 = vsub.f32 1.5, %v2076
  %v2078 = vmul.f32 %v2073, %v2077
  %vm2079 = vweird.f32 %v2062
  %vm2080 = vweird.f32 %v2073
  %vm2081 = vmor %vm2079, %vm2080
  %v2082 = vsel %vm2081, %v2073, %v2078
  %v2083 = vmul.f32 %v2049, %v2072
  %v2084 = vmul.f32 %v2050, %v2082
  %v2086 = vperm.slane %v2039, 0
  %v2088 = vmul.f32 %v2083, %v2086
  %v2089 = vmul.f32 %v2084, %v2086
  %v2091 = vperm.slane %v2040, 0
  %v2093 = vadd.f32 %v2088, %v2091
  %v2094 = vadd.f32 %v2089, %v2091
  %v2095 = vld [vmem:[%s3] sm:$0xff]
  %v2096 = vld [vmem:[%s3 + $0x8] sm:$0xff]
  %v2097 = vlaneseq
  %v2098 = vshrl.u32 %v2097, 7
  %v2099 = vlaneseq
  %v2100 = vand.u32 %v2099, 127
  %vm2101 = vcmp.gt.s32.totalorder %v2100, %v2098
  %v2102 = vsel %vm2101, -1e+30, 0.0
  %v2103 = vld [vmem:[%s7] sm:$0x1]
  %v2104 = vld [vmem:[%s7 + $0x1] sm:$0x1]
  %v2107 = vperm.slane %v2103, 0
  %v2108 = vperm.slane %v2104, 0
  %v2111 = vadd.f32 %v2102, %v2107
  %v2112 = vadd.f32 %v2102, %v2108
  %v2113 = vld [vmem:[%s5] sm:$0x1]
  %v2114 = vld [vmem:[%s5 + $0x1] sm:$0x1]
  %v2115 = vld [vmem:[%s39] sm:$0xff]
  %v2116 = vld [vmem:[%s39 + $0x8] sm:$0xff]
  %v2117 = vld [vmem:[%s39 + $0x10] sm:$0xff]
  %v2118 = vld [vmem:[%s39 + $0x18] sm:$0xff]
  %v2119 = vld [vmem:[%s41] sm:$0x1]
  %v2121 = vperm.slane %v2119, 0
  %v2124 = vsel %vm193, %v2095, 0
  %v2127 = vsel %vm193, %v2096, 0
  %2129 = vmatpush.msra.mxu0 0.0
  %2130 = vmatpush.msra.mxu0 0.0
  %2131 = vmatpush.msra.mxu0 0.0
  %2132 = vmatpush.msra.mxu0 0.0
  %2133 = vmatpush.msra.mxu0 0.0
  %2134 = vmatpush.msra.mxu0 0.0
  %2135 = vmatpush.msra.mxu0 0.0
  %2136 = vmatpush.msra.mxu0 0.0
  %2137 = vmatpush.msra.mxu0 0.0
  %2138 = vmatpush.msra.mxu0 0.0
  %2139 = vmatpush.msra.mxu0 0.0
  %2140 = vmatpush.msra.mxu0 0.0
  %2141 = vmatpush.msra.mxu0 %v2118
  %2142 = vmatpush.msra.mxu0 %v2117
  %2143 = vmatpush.msra.mxu0 %v2116
  %2144 = vmatpush.msra.mxu0 %v2115
  %2145 = vmatmul.f32.gmra.mxu0 %v2124
  %v2146 = vpop.f32.mrf.mxu0
  %v2147 = vadd.f32 %v2121, %v2146
  %2148 = vmatmul.f32.gmra.mxu0 %v2127
  %v2149 = vpop.f32.mrf.mxu0
  %v2150 = vadd.f32 %v2121, %v2149
  %2151 = vdwg.mxu0
  %2153 = vrot.lane.b32.xlu0 %v2147, 96
  %v2154 = vpop.permute.xlu0 %2153
  %v2155 = vsel %vm226, %v2147, 0
  %v2157 = vsel %vm226, %v2154, 0
  %2159 = vmatpush.xpose.msra.mxu0 0.0
  %2160 = vmatpush.xpose.msra.mxu0 0.0
  %2161 = vmatpush.xpose.msra.mxu0 0.0
  %2162 = vmatpush.xpose.msra.mxu0 0.0
  %2163 = vmatpush.xpose.msra.mxu0 0.0
  %2164 = vmatpush.xpose.msra.mxu0 0.0
  %2165 = vmatpush.xpose.msra.mxu0 0.0
  %2166 = vmatpush.xpose.msra.mxu0 0.0
  %2167 = vmatpush.xpose.msra.mxu0 0.0
  %2168 = vmatpush.xpose.msra.mxu0 0.0
  %2169 = vmatpush.xpose.msra.mxu0 0.0
  %2170 = vmatpush.xpose.msra.mxu0 0.0
  %2171 = vmatpush.xpose.msra.mxu0 0.0
  %2172 = vmatpush.xpose.msra.mxu0 0.0
  %2173 = vmatpush.xpose.msra.mxu0 0.0
  %2174 = vmatpush.xpose.msra.mxu0 %v2157
  %2175 = vmatmul.f32.gmra.mxu0 %v2155
  %v2176 = vpop.f32.mrf.mxu0
  %v2177 = vadd.f32 0.0, %v2176
  %2178 = vdwg.mxu0
  %2180 = vrot.lane.b32.xlu0 %v2150, 96
  %v2181 = vpop.permute.xlu0 %2180
  %v2182 = vsel %vm226, %v2150, 0
  %v2184 = vsel %vm226, %v2181, 0
  %2186 = vmatpush.xpose.msra.mxu0 0.0
  %2187 = vmatpush.xpose.msra.mxu0 0.0
  %2188 = vmatpush.xpose.msra.mxu0 0.0
  %2189 = vmatpush.xpose.msra.mxu0 0.0
  %2190 = vmatpush.xpose.msra.mxu0 0.0
  %2191 = vmatpush.xpose.msra.mxu0 0.0
  %2192 = vmatpush.xpose.msra.mxu0 0.0
  %2193 = vmatpush.xpose.msra.mxu0 0.0
  %2194 = vmatpush.xpose.msra.mxu0 0.0
  %2195 = vmatpush.xpose.msra.mxu0 0.0
  %2196 = vmatpush.xpose.msra.mxu0 0.0
  %2197 = vmatpush.xpose.msra.mxu0 0.0
  %2198 = vmatpush.xpose.msra.mxu0 0.0
  %2199 = vmatpush.xpose.msra.mxu0 0.0
  %2200 = vmatpush.xpose.msra.mxu0 0.0
  %2201 = vmatpush.xpose.msra.mxu0 %v2184
  %2202 = vmatmul.f32.gmra.mxu0 %v2182
  %v2203 = vpop.f32.mrf.mxu0
  %v2204 = vadd.f32 0.0, %v2203
  %2205 = vdwg.mxu0
  %v2206 = vmul.f32 %v2177, 0.35355338
  %v2207 = vmul.f32 %v2204, 0.35355338
  %v2208 = vadd.f32 %v2206, %v2111
  %v2209 = vadd.f32 %v2207, %v2112
  %v2210 = vsel %vm226, %v2208, -inf
  %2211 = vmax.xlane.f32.xlu0 %v2210
  %v2212 = vpop.xlane.xlu0 %2211
  %v2213 = vsel %vm226, %v2209, -inf
  %2214 = vmax.xlane.f32.xlu0 %v2213
  %v2215 = vpop.xlane.xlu0 %2214
  %v2216 = vsub.f32 %v2208, %v2212
  %v2217 = vsub.f32 %v2209, %v2215
  %v2218 = vmul.f32 %v2216, 1.442695
  %v2219 = vpow.pop %v2218
  %v2220 = vmul.f32 %v2217, 1.442695
  %v2221 = vpow.pop %v2220
  %v2222 = vsel %vm226, %v2219, 0.0
  %2223 = vadd.xlane.f32.xlu0 %v2222
  %v2224 = vpop.xlane.xlu0 %2223
  %v2225 = vsel %vm226, %v2221, 0.0
  %2226 = vadd.xlane.f32.xlu0 %v2225
  %v2227 = vpop.xlane.xlu0 %2226
  %v2228 = vrcp.pop %v2224
  %v2229 = vrcp.pop %v2227
  %v2230 = vmul.f32 %v2219, %v2228
  %v2231 = vmul.f32 %v2221, %v2229
  %2232 = vrot.lane.b32.xlu0 %v2147, 64
  %v2233 = vpop.permute.xlu0 %2232
  %v2236 = vsel %vm226, %v2230, 0
  %2238 = vmatpush.msra.mxu0 0.0
  %2239 = vmatpush.msra.mxu0 0.0
  %2240 = vmatpush.msra.mxu0 0.0
  %2241 = vmatpush.msra.mxu0 0.0
  %2242 = vmatpush.msra.mxu0 0.0
  %2243 = vmatpush.msra.mxu0 0.0
  %2244 = vmatpush.msra.mxu0 0.0
  %2245 = vmatpush.msra.mxu0 0.0
  %2246 = vmatpush.msra.mxu0 0.0
  %2247 = vmatpush.msra.mxu0 0.0
  %2248 = vmatpush.msra.mxu0 0.0
  %2249 = vmatpush.msra.mxu0 0.0
  %2250 = vmatpush.msra.mxu0 0.0
  %2251 = vmatpush.msra.mxu0 0.0
  %2252 = vmatpush.msra.mxu0 0.0
  %2253 = vmatpush.msra.mxu0 %v2233
  %2254 = vmatmul.f32.gmra.mxu0 %v2236
  %v2255 = vpop.f32.mrf.mxu0
  %v2256 = vadd.f32 0.0, %v2255
  %2257 = vdwg.mxu0
  %2258 = vrot.lane.b32.xlu0 %v2150, 64
  %v2259 = vpop.permute.xlu0 %2258
  %v2262 = vsel %vm226, %v2231, 0
  %2264 = vmatpush.msra.mxu0 0.0
  %2265 = vmatpush.msra.mxu0 0.0
  %2266 = vmatpush.msra.mxu0 0.0
  %2267 = vmatpush.msra.mxu0 0.0
  %2268 = vmatpush.msra.mxu0 0.0
  %2269 = vmatpush.msra.mxu0 0.0
  %2270 = vmatpush.msra.mxu0 0.0
  %2271 = vmatpush.msra.mxu0 0.0
  %2272 = vmatpush.msra.mxu0 0.0
  %2273 = vmatpush.msra.mxu0 0.0
  %2274 = vmatpush.msra.mxu0 0.0
  %2275 = vmatpush.msra.mxu0 0.0
  %2276 = vmatpush.msra.mxu0 0.0
  %2277 = vmatpush.msra.mxu0 0.0
  %2278 = vmatpush.msra.mxu0 0.0
  %2279 = vmatpush.msra.mxu0 %v2259
  %2280 = vmatmul.f32.gmra.mxu0 %v2262
  %v2281 = vpop.f32.mrf.mxu0
  %v2282 = vadd.f32 0.0, %v2281
  %2283 = vdwg.mxu0
  %2284 = vrot.lane.b32.xlu0 %v2147, 120
  %v2285 = vpop.permute.xlu0 %2284
  %2286 = vrot.lane.b32.xlu0 %v2147, 88
  %v2287 = vpop.permute.xlu0 %2286
  %v2288 = vsel %vm226, %v2285, 0
  %v2290 = vsel %vm226, %v2287, 0
  %2292 = vmatpush.xpose.msra.mxu0 0.0
  %2293 = vmatpush.xpose.msra.mxu0 0.0
  %2294 = vmatpush.xpose.msra.mxu0 0.0
  %2295 = vmatpush.xpose.msra.mxu0 0.0
  %2296 = vmatpush.xpose.msra.mxu0 0.0
  %2297 = vmatpush.xpose.msra.mxu0 0.0
  %2298 = vmatpush.xpose.msra.mxu0 0.0
  %2299 = vmatpush.xpose.msra.mxu0 0.0
  %2300 = vmatpush.xpose.msra.mxu0 0.0
  %2301 = vmatpush.xpose.msra.mxu0 0.0
  %2302 = vmatpush.xpose.msra.mxu0 0.0
  %2303 = vmatpush.xpose.msra.mxu0 0.0
  %2304 = vmatpush.xpose.msra.mxu0 0.0
  %2305 = vmatpush.xpose.msra.mxu0 0.0
  %2306 = vmatpush.xpose.msra.mxu0 0.0
  %2307 = vmatpush.xpose.msra.mxu0 %v2290
  %2308 = vmatmul.f32.gmra.mxu0 %v2288
  %v2309 = vpop.f32.mrf.mxu0
  %v2310 = vadd.f32 0.0, %v2309
  %2311 = vdwg.mxu0
  %2312 = vrot.lane.b32.xlu0 %v2150, 120
  %v2313 = vpop.permute.xlu0 %2312
  %2314 = vrot.lane.b32.xlu0 %v2150, 88
  %v2315 = vpop.permute.xlu0 %2314
  %v2316 = vsel %vm226, %v2313, 0
  %v2318 = vsel %vm226, %v2315, 0
  %2320 = vmatpush.xpose.msra.mxu0 0.0
  %2321 = vmatpush.xpose.msra.mxu0 0.0
  %2322 = vmatpush.xpose.msra.mxu0 0.0
  %2323 = vmatpush.xpose.msra.mxu0 0.0
  %2324 = vmatpush.xpose.msra.mxu0 0.0
  %2325 = vmatpush.xpose.msra.mxu0 0.0
  %2326 = vmatpush.xpose.msra.mxu0 0.0
  %2327 = vmatpush.xpose.msra.mxu0 0.0
  %2328 = vmatpush.xpose.msra.mxu0 0.0
  %2329 = vmatpush.xpose.msra.mxu0 0.0
  %2330 = vmatpush.xpose.msra.mxu0 0.0
  %2331 = vmatpush.xpose.msra.mxu0 0.0
  %2332 = vmatpush.xpose.msra.mxu0 0.0
  %2333 = vmatpush.xpose.msra.mxu0 0.0
  %2334 = vmatpush.xpose.msra.mxu0 0.0
  %2335 = vmatpush.xpose.msra.mxu0 %v2318
  %2336 = vmatmul.f32.gmra.mxu0 %v2316
  %v2337 = vpop.f32.mrf.mxu0
  %v2338 = vadd.f32 0.0, %v2337
  %2339 = vdwg.mxu0
  %v2340 = vmul.f32 %v2310, 0.35355338
  %v2341 = vmul.f32 %v2338, 0.35355338
  %v2342 = vadd.f32 %v2340, %v2111
  %v2343 = vadd.f32 %v2341, %v2112
  %v2344 = vsel %vm226, %v2342, -inf
  %2345 = vmax.xlane.f32.xlu0 %v2344
  %v2346 = vpop.xlane.xlu0 %2345
  %v2347 = vsel %vm226, %v2343, -inf
  %2348 = vmax.xlane.f32.xlu0 %v2347
  %v2349 = vpop.xlane.xlu0 %2348
  %v2350 = vsub.f32 %v2342, %v2346
  %v2351 = vsub.f32 %v2343, %v2349
  %v2352 = vmul.f32 %v2350, 1.442695
  %v2353 = vpow.pop %v2352
  %v2354 = vmul.f32 %v2351, 1.442695
  %v2355 = vpow.pop %v2354
  %v2356 = vsel %vm226, %v2353, 0.0
  %2357 = vadd.xlane.f32.xlu0 %v2356
  %v2358 = vpop.xlane.xlu0 %2357
  %v2359 = vsel %vm226, %v2355, 0.0
  %2360 = vadd.xlane.f32.xlu0 %v2359
  %v2361 = vpop.xlane.xlu0 %2360
  %v2362 = vrcp.pop %v2358
  %v2363 = vrcp.pop %v2361
  %v2364 = vmul.f32 %v2353, %v2362
  %v2365 = vmul.f32 %v2355, %v2363
  %2366 = vrot.lane.b32.xlu0 %v2147, 56
  %v2367 = vpop.permute.xlu0 %2366
  %v2370 = vsel %vm226, %v2364, 0
  %2372 = vmatpush.msra.mxu0 0.0
  %2373 = vmatpush.msra.mxu0 0.0
  %2374 = vmatpush.msra.mxu0 0.0
  %2375 = vmatpush.msra.mxu0 0.0
  %2376 = vmatpush.msra.mxu0 0.0
  %2377 = vmatpush.msra.mxu0 0.0
  %2378 = vmatpush.msra.mxu0 0.0
  %2379 = vmatpush.msra.mxu0 0.0
  %2380 = vmatpush.msra.mxu0 0.0
  %2381 = vmatpush.msra.mxu0 0.0
  %2382 = vmatpush.msra.mxu0 0.0
  %2383 = vmatpush.msra.mxu0 0.0
  %2384 = vmatpush.msra.mxu0 0.0
  %2385 = vmatpush.msra.mxu0 0.0
  %2386 = vmatpush.msra.mxu0 0.0
  %2387 = vmatpush.msra.mxu0 %v2367
  %2388 = vmatmul.f32.gmra.mxu0 %v2370
  %v2389 = vpop.f32.mrf.mxu0
  %v2390 = vadd.f32 0.0, %v2389
  %2391 = vdwg.mxu0
  %2392 = vrot.lane.b32.xlu0 %v2150, 56
  %v2393 = vpop.permute.xlu0 %2392
  %v2396 = vsel %vm226, %v2365, 0
  %2398 = vmatpush.msra.mxu0 0.0
  %2399 = vmatpush.msra.mxu0 0.0
  %2400 = vmatpush.msra.mxu0 0.0
  %2401 = vmatpush.msra.mxu0 0.0
  %2402 = vmatpush.msra.mxu0 0.0
  %2403 = vmatpush.msra.mxu0 0.0
  %2404 = vmatpush.msra.mxu0 0.0
  %2405 = vmatpush.msra.mxu0 0.0
  %2406 = vmatpush.msra.mxu0 0.0
  %2407 = vmatpush.msra.mxu0 0.0
  %2408 = vmatpush.msra.mxu0 0.0
  %2409 = vmatpush.msra.mxu0 0.0
  %2410 = vmatpush.msra.mxu0 0.0
  %2411 = vmatpush.msra.mxu0 0.0
  %2412 = vmatpush.msra.mxu0 0.0
  %2413 = vmatpush.msra.mxu0 %v2393
  %2414 = vmatmul.f32.gmra.mxu0 %v2396
  %v2415 = vpop.f32.mrf.mxu0
  %v2416 = vadd.f32 0.0, %v2415
  %2417 = vdwg.mxu0
  %2418 = vrot.lane.b32.xlu0 %v2147, 112
  %v2419 = vpop.permute.xlu0 %2418
  %2420 = vrot.lane.b32.xlu0 %v2147, 80
  %v2421 = vpop.permute.xlu0 %2420
  %v2422 = vsel %vm226, %v2419, 0
  %v2424 = vsel %vm226, %v2421, 0
  %2426 = vmatpush.xpose.msra.mxu0 0.0
  %2427 = vmatpush.xpose.msra.mxu0 0.0
  %2428 = vmatpush.xpose.msra.mxu0 0.0
  %2429 = vmatpush.xpose.msra.mxu0 0.0
  %2430 = vmatpush.xpose.msra.mxu0 0.0
  %2431 = vmatpush.xpose.msra.mxu0 0.0
  %2432 = vmatpush.xpose.msra.mxu0 0.0
  %2433 = vmatpush.xpose.msra.mxu0 0.0
  %2434 = vmatpush.xpose.msra.mxu0 0.0
  %2435 = vmatpush.xpose.msra.mxu0 0.0
  %2436 = vmatpush.xpose.msra.mxu0 0.0
  %2437 = vmatpush.xpose.msra.mxu0 0.0
  %2438 = vmatpush.xpose.msra.mxu0 0.0
  %2439 = vmatpush.xpose.msra.mxu0 0.0
  %2440 = vmatpush.xpose.msra.mxu0 0.0
  %2441 = vmatpush.xpose.msra.mxu0 %v2424
  %2442 = vmatmul.f32.gmra.mxu0 %v2422
  %v2443 = vpop.f32.mrf.mxu0
  %v2444 = vadd.f32 0.0, %v2443
  %2445 = vdwg.mxu0
  %2446 = vrot.lane.b32.xlu0 %v2150, 112
  %v2447 = vpop.permute.xlu0 %2446
  %2448 = vrot.lane.b32.xlu0 %v2150, 80
  %v2449 = vpop.permute.xlu0 %2448
  %v2450 = vsel %vm226, %v2447, 0
  %v2452 = vsel %vm226, %v2449, 0
  %2454 = vmatpush.xpose.msra.mxu0 0.0
  %2455 = vmatpush.xpose.msra.mxu0 0.0
  %2456 = vmatpush.xpose.msra.mxu0 0.0
  %2457 = vmatpush.xpose.msra.mxu0 0.0
  %2458 = vmatpush.xpose.msra.mxu0 0.0
  %2459 = vmatpush.xpose.msra.mxu0 0.0
  %2460 = vmatpush.xpose.msra.mxu0 0.0
  %2461 = vmatpush.xpose.msra.mxu0 0.0
  %2462 = vmatpush.xpose.msra.mxu0 0.0
  %2463 = vmatpush.xpose.msra.mxu0 0.0
  %2464 = vmatpush.xpose.msra.mxu0 0.0
  %2465 = vmatpush.xpose.msra.mxu0 0.0
  %2466 = vmatpush.xpose.msra.mxu0 0.0
  %2467 = vmatpush.xpose.msra.mxu0 0.0
  %2468 = vmatpush.xpose.msra.mxu0 0.0
  %2469 = vmatpush.xpose.msra.mxu0 %v2452
  %2470 = vmatmul.f32.gmra.mxu0 %v2450
  %v2471 = vpop.f32.mrf.mxu0
  %v2472 = vadd.f32 0.0, %v2471
  %2473 = vdwg.mxu0
  %v2474 = vmul.f32 %v2444, 0.35355338
  %v2475 = vmul.f32 %v2472, 0.35355338
  %v2476 = vadd.f32 %v2474, %v2111
  %v2477 = vadd.f32 %v2475, %v2112
  %v2478 = vsel %vm226, %v2476, -inf
  %2479 = vmax.xlane.f32.xlu0 %v2478
  %v2480 = vpop.xlane.xlu0 %2479
  %v2481 = vsel %vm226, %v2477, -inf
  %2482 = vmax.xlane.f32.xlu0 %v2481
  %v2483 = vpop.xlane.xlu0 %2482
  %v2484 = vsub.f32 %v2476, %v2480
  %v2485 = vsub.f32 %v2477, %v2483
  %v2486 = vmul.f32 %v2484, 1.442695
  %v2487 = vpow.pop %v2486
  %v2488 = vmul.f32 %v2485, 1.442695
  %v2489 = vpow.pop %v2488
  %v2490 = vsel %vm226, %v2487, 0.0
  %2491 = vadd.xlane.f32.xlu0 %v2490
  %v2492 = vpop.xlane.xlu0 %2491
  %v2493 = vsel %vm226, %v2489, 0.0
  %2494 = vadd.xlane.f32.xlu0 %v2493
  %v2495 = vpop.xlane.xlu0 %2494
  %v2496 = vrcp.pop %v2492
  %v2497 = vrcp.pop %v2495
  %v2498 = vmul.f32 %v2487, %v2496
  %v2499 = vmul.f32 %v2489, %v2497
  %2500 = vrot.lane.b32.xlu0 %v2147, 48
  %v2501 = vpop.permute.xlu0 %2500
  %v2504 = vsel %vm226, %v2498, 0
  %2506 = vmatpush.msra.mxu0 0.0
  %2507 = vmatpush.msra.mxu0 0.0
  %2508 = vmatpush.msra.mxu0 0.0
  %2509 = vmatpush.msra.mxu0 0.0
  %2510 = vmatpush.msra.mxu0 0.0
  %2511 = vmatpush.msra.mxu0 0.0
  %2512 = vmatpush.msra.mxu0 0.0
  %2513 = vmatpush.msra.mxu0 0.0
  %2514 = vmatpush.msra.mxu0 0.0
  %2515 = vmatpush.msra.mxu0 0.0
  %2516 = vmatpush.msra.mxu0 0.0
  %2517 = vmatpush.msra.mxu0 0.0
  %2518 = vmatpush.msra.mxu0 0.0
  %2519 = vmatpush.msra.mxu0 0.0
  %2520 = vmatpush.msra.mxu0 0.0
  %2521 = vmatpush.msra.mxu0 %v2501
  %2522 = vmatmul.f32.gmra.mxu0 %v2504
  %v2523 = vpop.f32.mrf.mxu0
  %v2524 = vadd.f32 0.0, %v2523
  %2525 = vdwg.mxu0
  %2526 = vrot.lane.b32.xlu0 %v2150, 48
  %v2527 = vpop.permute.xlu0 %2526
  %v2530 = vsel %vm226, %v2499, 0
  %2532 = vmatpush.msra.mxu0 0.0
  %2533 = vmatpush.msra.mxu0 0.0
  %2534 = vmatpush.msra.mxu0 0.0
  %2535 = vmatpush.msra.mxu0 0.0
  %2536 = vmatpush.msra.mxu0 0.0
  %2537 = vmatpush.msra.mxu0 0.0
  %2538 = vmatpush.msra.mxu0 0.0
  %2539 = vmatpush.msra.mxu0 0.0
  %2540 = vmatpush.msra.mxu0 0.0
  %2541 = vmatpush.msra.mxu0 0.0
  %2542 = vmatpush.msra.mxu0 0.0
  %2543 = vmatpush.msra.mxu0 0.0
  %2544 = vmatpush.msra.mxu0 0.0
  %2545 = vmatpush.msra.mxu0 0.0
  %2546 = vmatpush.msra.mxu0 0.0
  %2547 = vmatpush.msra.mxu0 %v2527
  %2548 = vmatmul.f32.gmra.mxu0 %v2530
  %v2549 = vpop.f32.mrf.mxu0
  %v2550 = vadd.f32 0.0, %v2549
  %2551 = vdwg.mxu0
  %2552 = vrot.lane.b32.xlu0 %v2147, 104
  %v2553 = vpop.permute.xlu0 %2552
  %2554 = vrot.lane.b32.xlu0 %v2147, 72
  %v2555 = vpop.permute.xlu0 %2554
  %v2556 = vsel %vm226, %v2553, 0
  %v2558 = vsel %vm226, %v2555, 0
  %2560 = vmatpush.xpose.msra.mxu0 0.0
  %2561 = vmatpush.xpose.msra.mxu0 0.0
  %2562 = vmatpush.xpose.msra.mxu0 0.0
  %2563 = vmatpush.xpose.msra.mxu0 0.0
  %2564 = vmatpush.xpose.msra.mxu0 0.0
  %2565 = vmatpush.xpose.msra.mxu0 0.0
  %2566 = vmatpush.xpose.msra.mxu0 0.0
  %2567 = vmatpush.xpose.msra.mxu0 0.0
  %2568 = vmatpush.xpose.msra.mxu0 0.0
  %2569 = vmatpush.xpose.msra.mxu0 0.0
  %2570 = vmatpush.xpose.msra.mxu0 0.0
  %2571 = vmatpush.xpose.msra.mxu0 0.0
  %2572 = vmatpush.xpose.msra.mxu0 0.0
  %2573 = vmatpush.xpose.msra.mxu0 0.0
  %2574 = vmatpush.xpose.msra.mxu0 0.0
  %2575 = vmatpush.xpose.msra.mxu0 %v2558
  %2576 = vmatmul.f32.gmra.mxu0 %v2556
  %v2577 = vpop.f32.mrf.mxu0
  %v2578 = vadd.f32 0.0, %v2577
  %2579 = vdwg.mxu0
  %2580 = vrot.lane.b32.xlu0 %v2150, 104
  %v2581 = vpop.permute.xlu0 %2580
  %2582 = vrot.lane.b32.xlu0 %v2150, 72
  %v2583 = vpop.permute.xlu0 %2582
  %v2584 = vsel %vm226, %v2581, 0
  %v2586 = vsel %vm226, %v2583, 0
  %2588 = vmatpush.xpose.msra.mxu0 0.0
  %2589 = vmatpush.xpose.msra.mxu0 0.0
  %2590 = vmatpush.xpose.msra.mxu0 0.0
  %2591 = vmatpush.xpose.msra.mxu0 0.0
  %2592 = vmatpush.xpose.msra.mxu0 0.0
  %2593 = vmatpush.xpose.msra.mxu0 0.0
  %2594 = vmatpush.xpose.msra.mxu0 0.0
  %2595 = vmatpush.xpose.msra.mxu0 0.0
  %2596 = vmatpush.xpose.msra.mxu0 0.0
  %2597 = vmatpush.xpose.msra.mxu0 0.0
  %2598 = vmatpush.xpose.msra.mxu0 0.0
  %2599 = vmatpush.xpose.msra.mxu0 0.0
  %2600 = vmatpush.xpose.msra.mxu0 0.0
  %2601 = vmatpush.xpose.msra.mxu0 0.0
  %2602 = vmatpush.xpose.msra.mxu0 0.0
  %2603 = vmatpush.xpose.msra.mxu0 %v2586
  %2604 = vmatmul.f32.gmra.mxu0 %v2584
  %v2605 = vpop.f32.mrf.mxu0
  %v2606 = vadd.f32 0.0, %v2605
  %2607 = vdwg.mxu0
  %v2608 = vmul.f32 %v2578, 0.35355338
  %v2609 = vmul.f32 %v2606, 0.35355338
  %v2610 = vadd.f32 %v2608, %v2111
  %v2611 = vadd.f32 %v2609, %v2112
  %v2612 = vsel %vm226, %v2610, -inf
  %2613 = vmax.xlane.f32.xlu0 %v2612
  %v2614 = vpop.xlane.xlu0 %2613
  %v2615 = vsel %vm226, %v2611, -inf
  %2616 = vmax.xlane.f32.xlu0 %v2615
  %v2617 = vpop.xlane.xlu0 %2616
  %v2618 = vsub.f32 %v2610, %v2614
  %v2619 = vsub.f32 %v2611, %v2617
  %v2620 = vmul.f32 %v2618, 1.442695
  %v2621 = vpow.pop %v2620
  %v2622 = vmul.f32 %v2619, 1.442695
  %v2623 = vpow.pop %v2622
  %v2624 = vsel %vm226, %v2621, 0.0
  %2625 = vadd.xlane.f32.xlu0 %v2624
  %v2626 = vpop.xlane.xlu0 %2625
  %v2627 = vsel %vm226, %v2623, 0.0
  %2628 = vadd.xlane.f32.xlu0 %v2627
  %v2629 = vpop.xlane.xlu0 %2628
  %v2630 = vrcp.pop %v2626
  %v2631 = vrcp.pop %v2629
  %v2632 = vmul.f32 %v2621, %v2630
  %v2633 = vmul.f32 %v2623, %v2631
  %2634 = vrot.lane.b32.xlu0 %v2147, 40
  %v2635 = vpop.permute.xlu0 %2634
  %v2638 = vsel %vm226, %v2632, 0
  %2640 = vmatpush.msra.mxu0 0.0
  %2641 = vmatpush.msra.mxu0 0.0
  %2642 = vmatpush.msra.mxu0 0.0
  %2643 = vmatpush.msra.mxu0 0.0
  %2644 = vmatpush.msra.mxu0 0.0
  %2645 = vmatpush.msra.mxu0 0.0
  %2646 = vmatpush.msra.mxu0 0.0
  %2647 = vmatpush.msra.mxu0 0.0
  %2648 = vmatpush.msra.mxu0 0.0
  %2649 = vmatpush.msra.mxu0 0.0
  %2650 = vmatpush.msra.mxu0 0.0
  %2651 = vmatpush.msra.mxu0 0.0
  %2652 = vmatpush.msra.mxu0 0.0
  %2653 = vmatpush.msra.mxu0 0.0
  %2654 = vmatpush.msra.mxu0 0.0
  %2655 = vmatpush.msra.mxu0 %v2635
  %2656 = vmatmul.f32.gmra.mxu0 %v2638
  %v2657 = vpop.f32.mrf.mxu0
  %v2658 = vadd.f32 0.0, %v2657
  %2659 = vdwg.mxu0
  %2660 = vrot.lane.b32.xlu0 %v2150, 40
  %v2661 = vpop.permute.xlu0 %2660
  %v2664 = vsel %vm226, %v2633, 0
  %2666 = vmatpush.msra.mxu0 0.0
  %2667 = vmatpush.msra.mxu0 0.0
  %2668 = vmatpush.msra.mxu0 0.0
  %2669 = vmatpush.msra.mxu0 0.0
  %2670 = vmatpush.msra.mxu0 0.0
  %2671 = vmatpush.msra.mxu0 0.0
  %2672 = vmatpush.msra.mxu0 0.0
  %2673 = vmatpush.msra.mxu0 0.0
  %2674 = vmatpush.msra.mxu0 0.0
  %2675 = vmatpush.msra.mxu0 0.0
  %2676 = vmatpush.msra.mxu0 0.0
  %2677 = vmatpush.msra.mxu0 0.0
  %2678 = vmatpush.msra.mxu0 0.0
  %2679 = vmatpush.msra.mxu0 0.0
  %2680 = vmatpush.msra.mxu0 0.0
  %2681 = vmatpush.msra.mxu0 %v2661
  %2682 = vmatmul.f32.gmra.mxu0 %v2664
  %v2683 = vpop.f32.mrf.mxu0
  %v2684 = vadd.f32 0.0, %v2683
  %2685 = vdwg.mxu0
  %2688 = vrot.lane.b32.xlu0 %v2390, 8
  %v2689 = vpop.permute.xlu0 %2688
  %2690 = vrot.lane.b32.xlu0 %v2416, 8
  %v2691 = vpop.permute.xlu0 %2690
  %2696 = vrot.lane.b32.xlu0 %v2524, 16
  %v2697 = vpop.permute.xlu0 %2696
  %2698 = vrot.lane.b32.xlu0 %v2550, 16
  %v2699 = vpop.permute.xlu0 %2698
  %2704 = vrot.lane.b32.xlu0 %v2658, 24
  %v2705 = vpop.permute.xlu0 %2704
  %2706 = vrot.lane.b32.xlu0 %v2684, 24
  %v2707 = vpop.permute.xlu0 %2706
  %v2710 = vsel %vm226, %v2256, %v2689
  %v2711 = vsel %vm226, %v2282, %v2691
  %v2712 = vsel %vm790, %v2710, %v2697
  %v2713 = vsel %vm790, %v2711, %v2699
  %v2714 = vsel %vm793, %v2712, %v2705
  %v2715 = vsel %vm793, %v2713, %v2707
  %v2716 = vld [vmem:[%s43] sm:$0xff]
  %v2717 = vld [vmem:[%s43 + $0x8] sm:$0xff]
  %v2718 = vld [vmem:[%s43 + $0x10] sm:$0xff]
  %v2719 = vld [vmem:[%s43 + $0x18] sm:$0xff]
  %v2720 = vld [vmem:[%s45] sm:$0x1]
  %v2722 = vperm.slane %v2720, 0
  %v2725 = vsel %vm193, %v2714, 0
  %v2728 = vsel %vm193, %v2715, 0
  %2730 = vmatpush.msra.mxu0 0.0
  %2731 = vmatpush.msra.mxu0 0.0
  %2732 = vmatpush.msra.mxu0 0.0
  %2733 = vmatpush.msra.mxu0 0.0
  %2734 = vmatpush.msra.mxu0 0.0
  %2735 = vmatpush.msra.mxu0 0.0
  %2736 = vmatpush.msra.mxu0 0.0
  %2737 = vmatpush.msra.mxu0 0.0
  %2738 = vmatpush.msra.mxu0 0.0
  %2739 = vmatpush.msra.mxu0 0.0
  %2740 = vmatpush.msra.mxu0 0.0
  %2741 = vmatpush.msra.mxu0 0.0
  %2742 = vmatpush.msra.mxu0 %v2719
  %2743 = vmatpush.msra.mxu0 %v2718
  %2744 = vmatpush.msra.mxu0 %v2717
  %2745 = vmatpush.msra.mxu0 %v2716
  %2746 = vmatmul.f32.gmra.mxu0 %v2725
  %v2747 = vpop.f32.mrf.mxu0
  %v2748 = vadd.f32 %v2722, %v2747
  %2749 = vmatmul.f32.gmra.mxu0 %v2728
  %v2750 = vpop.f32.mrf.mxu0
  %v2751 = vadd.f32 %v2722, %v2750
  %2752 = vdwg.mxu0
  %v2753 = vadd.f32 %v2095, %v2748
  %v2754 = vadd.f32 %v2096, %v2751
  %v2755 = vld [vmem:[%s59] sm:$0x1]
  %v2756 = vld [vmem:[%s61] sm:$0x1]
  %v2757 = vsel %vm193, %v2753, 0.0
  %2758 = vadd.xlane.f32.xlu0 %v2757
  %v2759 = vpop.xlane.xlu0 %2758
  %v2760 = vsel %vm193, %v2754, 0.0
  %2761 = vadd.xlane.f32.xlu0 %v2760
  %v2762 = vpop.xlane.xlu0 %2761
  %v2763 = vmul.f32 %v2759, %v849
  %v2764 = vmul.f32 %v2762, %v849
  %v2765 = vsub.f32 %v2753, %v2763
  %v2766 = vsub.f32 %v2754, %v2764
  %v2767 = vmul.f32 %v2765, %v2765
  %v2768 = vmul.f32 %v2766, %v2766
  %v2769 = vsel %vm193, %v2767, 0.0
  %2770 = vadd.xlane.f32.xlu0 %v2769
  %v2771 = vpop.xlane.xlu0 %2770
  %v2772 = vsel %vm193, %v2768, 0.0
  %2773 = vadd.xlane.f32.xlu0 %v2772
  %v2774 = vpop.xlane.xlu0 %2773
  %v2775 = vmul.f32 %v2771, %v849
  %v2776 = vmul.f32 %v2774, %v849
  %v2777 = vadd.f32 %v2775, 1e-05
  %v2778 = vadd.f32 %v2776, 1e-05
  %v2779 = vrsqrt.pop %v2777
  %v2780 = vmul.f32 %v2779, %v2777
  %v2781 = vmul.f32 %v2780, %v2779
  %v2782 = vmul.f32 0.5, %v2781
  %v2783 = vsub.f32 1.5, %v2782
  %v2784 = vmul.f32 %v2779, %v2783
  %vm2785 = vweird.f32 %v2777
  %vm2786 = vweird.f32 %v2779
  %vm2787 = vmor %vm2785, %vm2786
  %v2788 = vsel %vm2787, %v2779, %v2784
  %v2789 = vrsqrt.pop %v2778
  %v2790 = vmul.f32 %v2789, %v2778
  %v2791 = vmul.f32 %v2790, %v2789
  %v2792 = vmul.f32 0.5, %v2791
  %v2793 = vsub.f32 1.5, %v2792
  %v2794 = vmul.f32 %v2789, %v2793
  %vm2795 = vweird.f32 %v2778
  %vm2796 = vweird.f32 %v2789
  %vm2797 = vmor %vm2795, %vm2796
  %v2798 = vsel %vm2797, %v2789, %v2794
  %v2799 = vmul.f32 %v2765, %v2788
  %v2800 = vmul.f32 %v2766, %v2798
  %v2802 = vperm.slane %v2755, 0
  %v2804 = vmul.f32 %v2799, %v2802
  %v2805 = vmul.f32 %v2800, %v2802
  %v2807 = vperm.slane %v2756, 0
  %v2809 = vadd.f32 %v2804, %v2807
  %v2810 = vadd.f32 %v2805, %v2807
  %v2811 = vld [vmem:[%s47] sm:$0xff]
  %v2812 = vld [vmem:[%s47 + $0x8] sm:$0xff]
  %v2813 = vld [vmem:[%s47 + $0x10] sm:$0xff]
  %v2814 = vld [vmem:[%s47 + $0x18] sm:$0xff]
  %v2815 = vld [vmem:[%s49] sm:$0x1]
  %v2817 = vperm.slane %v2815, 0
  %v2820 = vsel %vm193, %v2809, 0
  %v2823 = vsel %vm193, %v2810, 0
  %2825 = vmatpush.msra.mxu0 0.0
  %2826 = vmatpush.msra.mxu0 0.0
  %2827 = vmatpush.msra.mxu0 0.0
  %2828 = vmatpush.msra.mxu0 0.0
  %2829 = vmatpush.msra.mxu0 0.0
  %2830 = vmatpush.msra.mxu0 0.0
  %2831 = vmatpush.msra.mxu0 0.0
  %2832 = vmatpush.msra.mxu0 0.0
  %2833 = vmatpush.msra.mxu0 0.0
  %2834 = vmatpush.msra.mxu0 0.0
  %2835 = vmatpush.msra.mxu0 0.0
  %2836 = vmatpush.msra.mxu0 0.0
  %2837 = vmatpush.msra.mxu0 %v2814
  %2838 = vmatpush.msra.mxu0 %v2813
  %2839 = vmatpush.msra.mxu0 %v2812
  %2840 = vmatpush.msra.mxu0 %v2811
  %2841 = vmatmul.f32.gmra.mxu0 %v2820
  %v2842 = vpop.f32.mrf.mxu0
  %v2843 = vadd.f32 %v2817, %v2842
  %2844 = vmatmul.f32.gmra.mxu0 %v2823
  %v2845 = vpop.f32.mrf.mxu0
  %v2846 = vadd.f32 %v2817, %v2845
  %2847 = vdwg.mxu0
  %v2848 = vld [vmem:[%s51] sm:$0xff]
  %v2849 = vld [vmem:[%s51 + $0x8] sm:$0xff]
  %v2850 = vld [vmem:[%s51 + $0x10] sm:$0xff]
  %v2851 = vld [vmem:[%s51 + $0x18] sm:$0xff]
  %v2852 = vld [vmem:[%s53] sm:$0x1]
  %v2854 = vperm.slane %v2852, 0
  %v2857 = vsel %vm193, %v2093, 0
  %v2860 = vsel %vm193, %v2094, 0
  %2862 = vmatpush.msra.mxu0 0.0
  %2863 = vmatpush.msra.mxu0 0.0
  %2864 = vmatpush.msra.mxu0 0.0
  %2865 = vmatpush.msra.mxu0 0.0
  %2866 = vmatpush.msra.mxu0 0.0
  %2867 = vmatpush.msra.mxu0 0.0
  %2868 = vmatpush.msra.mxu0 0.0
  %2869 = vmatpush.msra.mxu0 0.0
  %2870 = vmatpush.msra.mxu0 0.0
  %2871 = vmatpush.msra.mxu0 0.0
  %2872 = vmatpush.msra.mxu0 0.0
  %2873 = vmatpush.msra.mxu0 0.0
  %2874 = vmatpush.msra.mxu0 %v2851
  %2875 = vmatpush.msra.mxu0 %v2850
  %2876 = vmatpush.msra.mxu0 %v2849
  %2877 = vmatpush.msra.mxu0 %v2848
  %2878 = vmatmul.f32.gmra.mxu0 %v2857
  %v2879 = vpop.f32.mrf.mxu0
  %v2880 = vadd.f32 %v2854, %v2879
  %2881 = vmatmul.f32.gmra.mxu0 %v2860
  %v2882 = vpop.f32.mrf.mxu0
  %v2883 = vadd.f32 %v2854, %v2882
  %2884 = vdwg.mxu0
  %v2886 = vsel %vm226, %v2843, 0
  %v2889 = vsel %vm226, %v2880, 0
  %2891 = vmatpush.xpose.msra.mxu0 0.0
  %2892 = vmatpush.xpose.msra.mxu0 0.0
  %2893 = vmatpush.xpose.msra.mxu0 0.0
  %2894 = vmatpush.xpose.msra.mxu0 0.0
  %2895 = vmatpush.xpose.msra.mxu0 0.0
  %2896 = vmatpush.xpose.msra.mxu0 0.0
  %2897 = vmatpush.xpose.msra.mxu0 0.0
  %2898 = vmatpush.xpose.msra.mxu0 0.0
  %2899 = vmatpush.xpose.msra.mxu0 0.0
  %2900 = vmatpush.xpose.msra.mxu0 0.0
  %2901 = vmatpush.xpose.msra.mxu0 0.0
  %2902 = vmatpush.xpose.msra.mxu0 0.0
  %2903 = vmatpush.xpose.msra.mxu0 0.0
  %2904 = vmatpush.xpose.msra.mxu0 0.0
  %2905 = vmatpush.xpose.msra.mxu0 0.0
  %2906 = vmatpush.xpose.msra.mxu0 %v2889
  %2907 = vmatmul.f32.gmra.mxu0 %v2886
  %v2908 = vpop.f32.mrf.mxu0
  %v2909 = vadd.f32 0.0, %v2908
  %2910 = vdwg.mxu0
  %v2912 = vsel %vm226, %v2846, 0
  %v2915 = vsel %vm226, %v2883, 0
  %2917 = vmatpush.xpose.msra.mxu0 0.0
  %2918 = vmatpush.xpose.msra.mxu0 0.0
  %2919 = vmatpush.xpose.msra.mxu0 0.0
  %2920 = vmatpush.xpose.msra.mxu0 0.0
  %2921 = vmatpush.xpose.msra.mxu0 0.0
  %2922 = vmatpush.xpose.msra.mxu0 0.0
  %2923 = vmatpush.xpose.msra.mxu0 0.0
  %2924 = vmatpush.xpose.msra.mxu0 0.0
  %2925 = vmatpush.xpose.msra.mxu0 0.0
  %2926 = vmatpush.xpose.msra.mxu0 0.0
  %2927 = vmatpush.xpose.msra.mxu0 0.0
  %2928 = vmatpush.xpose.msra.mxu0 0.0
  %2929 = vmatpush.xpose.msra.mxu0 0.0
  %2930 = vmatpush.xpose.msra.mxu0 0.0
  %2931 = vmatpush.xpose.msra.mxu0 0.0
  %2932 = vmatpush.xpose.msra.mxu0 %v2915
  %2933 = vmatmul.f32.gmra.mxu0 %v2912
  %v2934 = vpop.f32.mrf.mxu0
  %v2935 = vadd.f32 0.0, %v2934
  %2936 = vdwg.mxu0
  %v2937 = vmul.f32 %v2909, 0.35355338
  %v2938 = vmul.f32 %v2935, 0.35355338
  %v2941 = vperm.slane %v2113, 0
  %v2942 = vperm.slane %v2114, 0
  %v2945 = vadd.f32 %v2937, %v2941
  %v2946 = vadd.f32 %v2938, %v2942
  %v2947 = vsel %vm226, %v2945, -inf
  %2948 = vmax.xlane.f32.xlu0 %v2947
  %v2949 = vpop.xlane.xlu0 %2948
  %v2950 = vsel %vm226, %v2946, -inf
  %2951 = vmax.xlane.f32.xlu0 %v2950
  %v2952 = vpop.xlane.xlu0 %2951
  %v2953 = vsub.f32 %v2945, %v2949
  %v2954 = vsub.f32 %v2946, %v2952
  %v2955 = vmul.f32 %v2953, 1.442695
  %v2956 = vpow.pop %v2955
  %v2957 = vmul.f32 %v2954, 1.442695
  %v2958 = vpow.pop %v2957
  %v2959 = vsel %vm226, %v2956, 0.0
  %2960 = vadd.xlane.f32.xlu0 %v2959
  %v2961 = vpop.xlane.xlu0 %2960
  %v2962 = vsel %vm226, %v2958, 0.0
  %2963 = vadd.xlane.f32.xlu0 %v2962
  %v2964 = vpop.xlane.xlu0 %2963
  %v2965 = vrcp.pop %v2961
  %v2966 = vrcp.pop %v2964
  %v2967 = vmul.f32 %v2956, %v2965
  %v2968 = vmul.f32 %v2958, %v2966
  %2969 = vrot.lane.b32.xlu0 %v2880, 96
  %v2970 = vpop.permute.xlu0 %2969
  %v2973 = vsel %vm226, %v2967, 0
  %2975 = vmatpush.msra.mxu0 0.0
  %2976 = vmatpush.msra.mxu0 0.0
  %2977 = vmatpush.msra.mxu0 0.0
  %2978 = vmatpush.msra.mxu0 0.0
  %2979 = vmatpush.msra.mxu0 0.0
  %2980 = vmatpush.msra.mxu0 0.0
  %2981 = vmatpush.msra.mxu0 0.0
  %2982 = vmatpush.msra.mxu0 0.0
  %2983 = vmatpush.msra.mxu0 0.0
  %2984 = vmatpush.msra.mxu0 0.0
  %2985 = vmatpush.msra.mxu0 0.0
  %2986 = vmatpush.msra.mxu0 0.0
  %2987 = vmatpush.msra.mxu0 0.0
  %2988 = vmatpush.msra.mxu0 0.0
  %2989 = vmatpush.msra.mxu0 0.0
  %2990 = vmatpush.msra.mxu0 %v2970
  %2991 = vmatmul.f32.gmra.mxu0 %v2973
  %v2992 = vpop.f32.mrf.mxu0
  %v2993 = vadd.f32 0.0, %v2992
  %2994 = vdwg.mxu0
  %2995 = vrot.lane.b32.xlu0 %v2883, 96
  %v2996 = vpop.permute.xlu0 %2995
  %v2999 = vsel %vm226, %v2968, 0
  %3001 = vmatpush.msra.mxu0 0.0
  %3002 = vmatpush.msra.mxu0 0.0
  %3003 = vmatpush.msra.mxu0 0.0
  %3004 = vmatpush.msra.mxu0 0.0
  %3005 = vmatpush.msra.mxu0 0.0
  %3006 = vmatpush.msra.mxu0 0.0
  %3007 = vmatpush.msra.mxu0 0.0
  %3008 = vmatpush.msra.mxu0 0.0
  %3009 = vmatpush.msra.mxu0 0.0
  %3010 = vmatpush.msra.mxu0 0.0
  %3011 = vmatpush.msra.mxu0 0.0
  %3012 = vmatpush.msra.mxu0 0.0
  %3013 = vmatpush.msra.mxu0 0.0
  %3014 = vmatpush.msra.mxu0 0.0
  %3015 = vmatpush.msra.mxu0 0.0
  %3016 = vmatpush.msra.mxu0 %v2996
  %3017 = vmatmul.f32.gmra.mxu0 %v2999
  %v3018 = vpop.f32.mrf.mxu0
  %v3019 = vadd.f32 0.0, %v3018
  %3020 = vdwg.mxu0
  %3021 = vrot.lane.b32.xlu0 %v2843, 120
  %v3022 = vpop.permute.xlu0 %3021
  %3023 = vrot.lane.b32.xlu0 %v2880, 120
  %v3024 = vpop.permute.xlu0 %3023
  %v3025 = vsel %vm226, %v3022, 0
  %v3027 = vsel %vm226, %v3024, 0
  %3029 = vmatpush.xpose.msra.mxu0 0.0
  %3030 = vmatpush.xpose.msra.mxu0 0.0
  %3031 = vmatpush.xpose.msra.mxu0 0.0
  %3032 = vmatpush.xpose.msra.mxu0 0.0
  %3033 = vmatpush.xpose.msra.mxu0 0.0
  %3034 = vmatpush.xpose.msra.mxu0 0.0
  %3035 = vmatpush.xpose.msra.mxu0 0.0
  %3036 = vmatpush.xpose.msra.mxu0 0.0
  %3037 = vmatpush.xpose.msra.mxu0 0.0
  %3038 = vmatpush.xpose.msra.mxu0 0.0
  %3039 = vmatpush.xpose.msra.mxu0 0.0
  %3040 = vmatpush.xpose.msra.mxu0 0.0
  %3041 = vmatpush.xpose.msra.mxu0 0.0
  %3042 = vmatpush.xpose.msra.mxu0 0.0
  %3043 = vmatpush.xpose.msra.mxu0 0.0
  %3044 = vmatpush.xpose.msra.mxu0 %v3027
  %3045 = vmatmul.f32.gmra.mxu0 %v3025
  %v3046 = vpop.f32.mrf.mxu0
  %v3047 = vadd.f32 0.0, %v3046
  %3048 = vdwg.mxu0
  %3049 = vrot.lane.b32.xlu0 %v2846, 120
  %v3050 = vpop.permute.xlu0 %3049
  %3051 = vrot.lane.b32.xlu0 %v2883, 120
  %v3052 = vpop.permute.xlu0 %3051
  %v3053 = vsel %vm226, %v3050, 0
  %v3055 = vsel %vm226, %v3052, 0
  %3057 = vmatpush.xpose.msra.mxu0 0.0
  %3058 = vmatpush.xpose.msra.mxu0 0.0
  %3059 = vmatpush.xpose.msra.mxu0 0.0
  %3060 = vmatpush.xpose.msra.mxu0 0.0
  %3061 = vmatpush.xpose.msra.mxu0 0.0
  %3062 = vmatpush.xpose.msra.mxu0 0.0
  %3063 = vmatpush.xpose.msra.mxu0 0.0
  %3064 = vmatpush.xpose.msra.mxu0 0.0
  %3065 = vmatpush.xpose.msra.mxu0 0.0
  %3066 = vmatpush.xpose.msra.mxu0 0.0
  %3067 = vmatpush.xpose.msra.mxu0 0.0
  %3068 = vmatpush.xpose.msra.mxu0 0.0
  %3069 = vmatpush.xpose.msra.mxu0 0.0
  %3070 = vmatpush.xpose.msra.mxu0 0.0
  %3071 = vmatpush.xpose.msra.mxu0 0.0
  %3072 = vmatpush.xpose.msra.mxu0 %v3055
  %3073 = vmatmul.f32.gmra.mxu0 %v3053
  %v3074 = vpop.f32.mrf.mxu0
  %v3075 = vadd.f32 0.0, %v3074
  %3076 = vdwg.mxu0
  %v3077 = vmul.f32 %v3047, 0.35355338
  %v3078 = vmul.f32 %v3075, 0.35355338
  %v3079 = vadd.f32 %v3077, %v2941
  %v3080 = vadd.f32 %v3078, %v2942
  %v3081 = vsel %vm226, %v3079, -inf
  %3082 = vmax.xlane.f32.xlu0 %v3081
  %v3083 = vpop.xlane.xlu0 %3082
  %v3084 = vsel %vm226, %v3080, -inf
  %3085 = vmax.xlane.f32.xlu0 %v3084
  %v3086 = vpop.xlane.xlu0 %3085
  %v3087 = vsub.f32 %v3079, %v3083
  %v3088 = vsub.f32 %v3080, %v3086
  %v3089 = vmul.f32 %v3087, 1.442695
  %v3090 = vpow.pop %v3089
  %v3091 = vmul.f32 %v3088, 1.442695
  %v3092 = vpow.pop %v3091
  %v3093 = vsel %vm226, %v3090, 0.0
  %3094 = vadd.xlane.f32.xlu0 %v3093
  %v3095 = vpop.xlane.xlu0 %3094
  %v3096 = vsel %vm226, %v3092, 0.0
  %3097 = vadd.xlane.f32.xlu0 %v3096
  %v3098 = vpop.xlane.xlu0 %3097
  %v3099 = vrcp.pop %v3095
  %v3100 = vrcp.pop %v3098
  %v3101 = vmul.f32 %v3090, %v3099
  %v3102 = vmul.f32 %v3092, %v3100
  %3103 = vrot.lane.b32.xlu0 %v2880, 88
  %v3104 = vpop.permute.xlu0 %3103
  %v3107 = vsel %vm226, %v3101, 0
  %3109 = vmatpush.msra.mxu0 0.0
  %3110 = vmatpush.msra.mxu0 0.0
  %3111 = vmatpush.msra.mxu0 0.0
  %3112 = vmatpush.msra.mxu0 0.0
  %3113 = vmatpush.msra.mxu0 0.0
  %3114 = vmatpush.msra.mxu0 0.0
  %3115 = vmatpush.msra.mxu0 0.0
  %3116 = vmatpush.msra.mxu0 0.0
  %3117 = vmatpush.msra.mxu0 0.0
  %3118 = vmatpush.msra.mxu0 0.0
  %3119 = vmatpush.msra.mxu0 0.0
  %3120 = vmatpush.msra.mxu0 0.0
  %3121 = vmatpush.msra.mxu0 0.0
  %3122 = vmatpush.msra.mxu0 0.0
  %3123 = vmatpush.msra.mxu0 0.0
  %3124 = vmatpush.msra.mxu0 %v3104
  %3125 = vmatmul.f32.gmra.mxu0 %v3107
  %v3126 = vpop.f32.mrf.mxu0
  %v3127 = vadd.f32 0.0, %v3126
  %3128 = vdwg.mxu0
  %3129 = vrot.lane.b32.xlu0 %v2883, 88
  %v3130 = vpop.permute.xlu0 %3129
  %v3133 = vsel %vm226, %v3102, 0
  %3135 = vmatpush.msra.mxu0 0.0
  %3136 = vmatpush.msra.mxu0 0.0
  %3137 = vmatpush.msra.mxu0 0.0
  %3138 = vmatpush.msra.mxu0 0.0
  %3139 = vmatpush.msra.mxu0 0.0
  %3140 = vmatpush.msra.mxu0 0.0
  %3141 = vmatpush.msra.mxu0 0.0
  %3142 = vmatpush.msra.mxu0 0.0
  %3143 = vmatpush.msra.mxu0 0.0
  %3144 = vmatpush.msra.mxu0 0.0
  %3145 = vmatpush.msra.mxu0 0.0
  %3146 = vmatpush.msra.mxu0 0.0
  %3147 = vmatpush.msra.mxu0 0.0
  %3148 = vmatpush.msra.mxu0 0.0
  %3149 = vmatpush.msra.mxu0 0.0
  %3150 = vmatpush.msra.mxu0 %v3130
  %3151 = vmatmul.f32.gmra.mxu0 %v3133
  %v3152 = vpop.f32.mrf.mxu0
  %v3153 = vadd.f32 0.0, %v3152
  %3154 = vdwg.mxu0
  %3155 = vrot.lane.b32.xlu0 %v2843, 112
  %v3156 = vpop.permute.xlu0 %3155
  %3157 = vrot.lane.b32.xlu0 %v2880, 112
  %v3158 = vpop.permute.xlu0 %3157
  %v3159 = vsel %vm226, %v3156, 0
  %v3161 = vsel %vm226, %v3158, 0
  %3163 = vmatpush.xpose.msra.mxu0 0.0
  %3164 = vmatpush.xpose.msra.mxu0 0.0
  %3165 = vmatpush.xpose.msra.mxu0 0.0
  %3166 = vmatpush.xpose.msra.mxu0 0.0
  %3167 = vmatpush.xpose.msra.mxu0 0.0
  %3168 = vmatpush.xpose.msra.mxu0 0.0
  %3169 = vmatpush.xpose.msra.mxu0 0.0
  %3170 = vmatpush.xpose.msra.mxu0 0.0
  %3171 = vmatpush.xpose.msra.mxu0 0.0
  %3172 = vmatpush.xpose.msra.mxu0 0.0
  %3173 = vmatpush.xpose.msra.mxu0 0.0
  %3174 = vmatpush.xpose.msra.mxu0 0.0
  %3175 = vmatpush.xpose.msra.mxu0 0.0
  %3176 = vmatpush.xpose.msra.mxu0 0.0
  %3177 = vmatpush.xpose.msra.mxu0 0.0
  %3178 = vmatpush.xpose.msra.mxu0 %v3161
  %3179 = vmatmul.f32.gmra.mxu0 %v3159
  %v3180 = vpop.f32.mrf.mxu0
  %v3181 = vadd.f32 0.0, %v3180
  %3182 = vdwg.mxu0
  %3183 = vrot.lane.b32.xlu0 %v2846, 112
  %v3184 = vpop.permute.xlu0 %3183
  %3185 = vrot.lane.b32.xlu0 %v2883, 112
  %v3186 = vpop.permute.xlu0 %3185
  %v3187 = vsel %vm226, %v3184, 0
  %v3189 = vsel %vm226, %v3186, 0
  %3191 = vmatpush.xpose.msra.mxu0 0.0
  %3192 = vmatpush.xpose.msra.mxu0 0.0
  %3193 = vmatpush.xpose.msra.mxu0 0.0
  %3194 = vmatpush.xpose.msra.mxu0 0.0
  %3195 = vmatpush.xpose.msra.mxu0 0.0
  %3196 = vmatpush.xpose.msra.mxu0 0.0
  %3197 = vmatpush.xpose.msra.mxu0 0.0
  %3198 = vmatpush.xpose.msra.mxu0 0.0
  %3199 = vmatpush.xpose.msra.mxu0 0.0
  %3200 = vmatpush.xpose.msra.mxu0 0.0
  %3201 = vmatpush.xpose.msra.mxu0 0.0
  %3202 = vmatpush.xpose.msra.mxu0 0.0
  %3203 = vmatpush.xpose.msra.mxu0 0.0
  %3204 = vmatpush.xpose.msra.mxu0 0.0
  %3205 = vmatpush.xpose.msra.mxu0 0.0
  %3206 = vmatpush.xpose.msra.mxu0 %v3189
  %3207 = vmatmul.f32.gmra.mxu0 %v3187
  %v3208 = vpop.f32.mrf.mxu0
  %v3209 = vadd.f32 0.0, %v3208
  %3210 = vdwg.mxu0
  %v3211 = vmul.f32 %v3181, 0.35355338
  %v3212 = vmul.f32 %v3209, 0.35355338
  %v3213 = vadd.f32 %v3211, %v2941
  %v3214 = vadd.f32 %v3212, %v2942
  %v3215 = vsel %vm226, %v3213, -inf
  %3216 = vmax.xlane.f32.xlu0 %v3215
  %v3217 = vpop.xlane.xlu0 %3216
  %v3218 = vsel %vm226, %v3214, -inf
  %3219 = vmax.xlane.f32.xlu0 %v3218
  %v3220 = vpop.xlane.xlu0 %3219
  %v3221 = vsub.f32 %v3213, %v3217
  %v3222 = vsub.f32 %v3214, %v3220
  %v3223 = vmul.f32 %v3221, 1.442695
  %v3224 = vpow.pop %v3223
  %v3225 = vmul.f32 %v3222, 1.442695
  %v3226 = vpow.pop %v3225
  %v3227 = vsel %vm226, %v3224, 0.0
  %3228 = vadd.xlane.f32.xlu0 %v3227
  %v3229 = vpop.xlane.xlu0 %3228
  %v3230 = vsel %vm226, %v3226, 0.0
  %3231 = vadd.xlane.f32.xlu0 %v3230
  %v3232 = vpop.xlane.xlu0 %3231
  %v3233 = vrcp.pop %v3229
  %v3234 = vrcp.pop %v3232
  %v3235 = vmul.f32 %v3224, %v3233
  %v3236 = vmul.f32 %v3226, %v3234
  %3237 = vrot.lane.b32.xlu0 %v2880, 80
  %v3238 = vpop.permute.xlu0 %3237
  %v3241 = vsel %vm226, %v3235, 0
  %3243 = vmatpush.msra.mxu0 0.0
  %3244 = vmatpush.msra.mxu0 0.0
  %3245 = vmatpush.msra.mxu0 0.0
  %3246 = vmatpush.msra.mxu0 0.0
  %3247 = vmatpush.msra.mxu0 0.0
  %3248 = vmatpush.msra.mxu0 0.0
  %3249 = vmatpush.msra.mxu0 0.0
  %3250 = vmatpush.msra.mxu0 0.0
  %3251 = vmatpush.msra.mxu0 0.0
  %3252 = vmatpush.msra.mxu0 0.0
  %3253 = vmatpush.msra.mxu0 0.0
  %3254 = vmatpush.msra.mxu0 0.0
  %3255 = vmatpush.msra.mxu0 0.0
  %3256 = vmatpush.msra.mxu0 0.0
  %3257 = vmatpush.msra.mxu0 0.0
  %3258 = vmatpush.msra.mxu0 %v3238
  %3259 = vmatmul.f32.gmra.mxu0 %v3241
  %v3260 = vpop.f32.mrf.mxu0
  %v3261 = vadd.f32 0.0, %v3260
  %3262 = vdwg.mxu0
  %3263 = vrot.lane.b32.xlu0 %v2883, 80
  %v3264 = vpop.permute.xlu0 %3263
  %v3267 = vsel %vm226, %v3236, 0
  %3269 = vmatpush.msra.mxu0 0.0
  %3270 = vmatpush.msra.mxu0 0.0
  %3271 = vmatpush.msra.mxu0 0.0
  %3272 = vmatpush.msra.mxu0 0.0
  %3273 = vmatpush.msra.mxu0 0.0
  %3274 = vmatpush.msra.mxu0 0.0
  %3275 = vmatpush.msra.mxu0 0.0
  %3276 = vmatpush.msra.mxu0 0.0
  %3277 = vmatpush.msra.mxu0 0.0
  %3278 = vmatpush.msra.mxu0 0.0
  %3279 = vmatpush.msra.mxu0 0.0
  %3280 = vmatpush.msra.mxu0 0.0
  %3281 = vmatpush.msra.mxu0 0.0
  %3282 = vmatpush.msra.mxu0 0.0
  %3283 = vmatpush.msra.mxu0 0.0
  %3284 = vmatpush.msra.mxu0 %v3264
  %3285 = vmatmul.f32.gmra.mxu0 %v3267
  %v3286 = vpop.f32.mrf.mxu0
  %v3287 = vadd.f32 0.0, %v3286
  %3288 = vdwg.mxu0
  %3289 = vrot.lane.b32.xlu0 %v2843, 104
  %v3290 = vpop.permute.xlu0 %3289
  %3291 = vrot.lane.b32.xlu0 %v2880, 104
  %v3292 = vpop.permute.xlu0 %3291
  %v3293 = vsel %vm226, %v3290, 0
  %v3295 = vsel %vm226, %v3292, 0
  %3297 = vmatpush.xpose.msra.mxu0 0.0
  %3298 = vmatpush.xpose.msra.mxu0 0.0
  %3299 = vmatpush.xpose.msra.mxu0 0.0
  %3300 = vmatpush.xpose.msra.mxu0 0.0
  %3301 = vmatpush.xpose.msra.mxu0 0.0
  %3302 = vmatpush.xpose.msra.mxu0 0.0
  %3303 = vmatpush.xpose.msra.mxu0 0.0
  %3304 = vmatpush.xpose.msra.mxu0 0.0
  %3305 = vmatpush.xpose.msra.mxu0 0.0
  %3306 = vmatpush.xpose.msra.mxu0 0.0
  %3307 = vmatpush.xpose.msra.mxu0 0.0
  %3308 = vmatpush.xpose.msra.mxu0 0.0
  %3309 = vmatpush.xpose.msra.mxu0 0.0
  %3310 = vmatpush.xpose.msra.mxu0 0.0
  %3311 = vmatpush.xpose.msra.mxu0 0.0
  %3312 = vmatpush.xpose.msra.mxu0 %v3295
  %3313 = vmatmul.f32.gmra.mxu0 %v3293
  %v3314 = vpop.f32.mrf.mxu0
  %v3315 = vadd.f32 0.0, %v3314
  %3316 = vdwg.mxu0
  %3317 = vrot.lane.b32.xlu0 %v2846, 104
  %v3318 = vpop.permute.xlu0 %3317
  %3319 = vrot.lane.b32.xlu0 %v2883, 104
  %v3320 = vpop.permute.xlu0 %3319
  %v3321 = vsel %vm226, %v3318, 0
  %v3323 = vsel %vm226, %v3320, 0
  %3325 = vmatpush.xpose.msra.mxu0 0.0
  %3326 = vmatpush.xpose.msra.mxu0 0.0
  %3327 = vmatpush.xpose.msra.mxu0 0.0
  %3328 = vmatpush.xpose.msra.mxu0 0.0
  %3329 = vmatpush.xpose.msra.mxu0 0.0
  %3330 = vmatpush.xpose.msra.mxu0 0.0
  %3331 = vmatpush.xpose.msra.mxu0 0.0
  %3332 = vmatpush.xpose.msra.mxu0 0.0
  %3333 = vmatpush.xpose.msra.mxu0 0.0
  %3334 = vmatpush.xpose.msra.mxu0 0.0
  %3335 = vmatpush.xpose.msra.mxu0 0.0
  %3336 = vmatpush.xpose.msra.mxu0 0.0
  %3337 = vmatpush.xpose.msra.mxu0 0.0
  %3338 = vmatpush.xpose.msra.mxu0 0.0
  %3339 = vmatpush.xpose.msra.mxu0 0.0
  %3340 = vmatpush.xpose.msra.mxu0 %v3323
  %3341 = vmatmul.f32.gmra.mxu0 %v3321
  %v3342 = vpop.f32.mrf.mxu0
  %v3343 = vadd.f32 0.0, %v3342
  %3344 = vdwg.mxu0
  %v3345 = vmul.f32 %v3315, 0.35355338
  %v3346 = vmul.f32 %v3343, 0.35355338
  %v3347 = vadd.f32 %v3345, %v2941
  %v3348 = vadd.f32 %v3346, %v2942
  %v3349 = vsel %vm226, %v3347, -inf
  %3350 = vmax.xlane.f32.xlu0 %v3349
  %v3351 = vpop.xlane.xlu0 %3350
  %v3352 = vsel %vm226, %v3348, -inf
  %3353 = vmax.xlane.f32.xlu0 %v3352
  %v3354 = vpop.xlane.xlu0 %3353
  %v3355 = vsub.f32 %v3347, %v3351
  %v3356 = vsub.f32 %v3348, %v3354
  %v3357 = vmul.f32 %v3355, 1.442695
  %v3358 = vpow.pop %v3357
  %v3359 = vmul.f32 %v3356, 1.442695
  %v3360 = vpow.pop %v3359
  %v3361 = vsel %vm226, %v3358, 0.0
  %3362 = vadd.xlane.f32.xlu0 %v3361
  %v3363 = vpop.xlane.xlu0 %3362
  %v3364 = vsel %vm226, %v3360, 0.0
  %3365 = vadd.xlane.f32.xlu0 %v3364
  %v3366 = vpop.xlane.xlu0 %3365
  %v3367 = vrcp.pop %v3363
  %v3368 = vrcp.pop %v3366
  %v3369 = vmul.f32 %v3358, %v3367
  %v3370 = vmul.f32 %v3360, %v3368
  %3371 = vrot.lane.b32.xlu0 %v2880, 72
  %v3372 = vpop.permute.xlu0 %3371
  %v3375 = vsel %vm226, %v3369, 0
  %3377 = vmatpush.msra.mxu0 0.0
  %3378 = vmatpush.msra.mxu0 0.0
  %3379 = vmatpush.msra.mxu0 0.0
  %3380 = vmatpush.msra.mxu0 0.0
  %3381 = vmatpush.msra.mxu0 0.0
  %3382 = vmatpush.msra.mxu0 0.0
  %3383 = vmatpush.msra.mxu0 0.0
  %3384 = vmatpush.msra.mxu0 0.0
  %3385 = vmatpush.msra.mxu0 0.0
  %3386 = vmatpush.msra.mxu0 0.0
  %3387 = vmatpush.msra.mxu0 0.0
  %3388 = vmatpush.msra.mxu0 0.0
  %3389 = vmatpush.msra.mxu0 0.0
  %3390 = vmatpush.msra.mxu0 0.0
  %3391 = vmatpush.msra.mxu0 0.0
  %3392 = vmatpush.msra.mxu0 %v3372
  %3393 = vmatmul.f32.gmra.mxu0 %v3375
  %v3394 = vpop.f32.mrf.mxu0
  %v3395 = vadd.f32 0.0, %v3394
  %3396 = vdwg.mxu0
  %3397 = vrot.lane.b32.xlu0 %v2883, 72
  %v3398 = vpop.permute.xlu0 %3397
  %v3401 = vsel %vm226, %v3370, 0
  %3403 = vmatpush.msra.mxu0 0.0
  %3404 = vmatpush.msra.mxu0 0.0
  %3405 = vmatpush.msra.mxu0 0.0
  %3406 = vmatpush.msra.mxu0 0.0
  %3407 = vmatpush.msra.mxu0 0.0
  %3408 = vmatpush.msra.mxu0 0.0
  %3409 = vmatpush.msra.mxu0 0.0
  %3410 = vmatpush.msra.mxu0 0.0
  %3411 = vmatpush.msra.mxu0 0.0
  %3412 = vmatpush.msra.mxu0 0.0
  %3413 = vmatpush.msra.mxu0 0.0
  %3414 = vmatpush.msra.mxu0 0.0
  %3415 = vmatpush.msra.mxu0 0.0
  %3416 = vmatpush.msra.mxu0 0.0
  %3417 = vmatpush.msra.mxu0 0.0
  %3418 = vmatpush.msra.mxu0 %v3398
  %3419 = vmatmul.f32.gmra.mxu0 %v3401
  %v3420 = vpop.f32.mrf.mxu0
  %v3421 = vadd.f32 0.0, %v3420
  %3422 = vdwg.mxu0
  %3425 = vrot.lane.b32.xlu0 %v3127, 8
  %v3426 = vpop.permute.xlu0 %3425
  %3427 = vrot.lane.b32.xlu0 %v3153, 8
  %v3428 = vpop.permute.xlu0 %3427
  %3433 = vrot.lane.b32.xlu0 %v3261, 16
  %v3434 = vpop.permute.xlu0 %3433
  %3435 = vrot.lane.b32.xlu0 %v3287, 16
  %v3436 = vpop.permute.xlu0 %3435
  %3441 = vrot.lane.b32.xlu0 %v3395, 24
  %v3442 = vpop.permute.xlu0 %3441
  %3443 = vrot.lane.b32.xlu0 %v3421, 24
  %v3444 = vpop.permute.xlu0 %3443
  %v3447 = vsel %vm226, %v2993, %v3426
  %v3448 = vsel %vm226, %v3019, %v3428
  %v3449 = vsel %vm790, %v3447, %v3434
  %v3450 = vsel %vm790, %v3448, %v3436
  %v3451 = vsel %vm793, %v3449, %v3442
  %v3452 = vsel %vm793, %v3450, %v3444
  %v3453 = vld [vmem:[%s55] sm:$0xff]
  %v3454 = vld [vmem:[%s55 + $0x8] sm:$0xff]
  %v3455 = vld [vmem:[%s55 + $0x10] sm:$0xff]
  %v3456 = vld [vmem:[%s55 + $0x18] sm:$0xff]
  %v3457 = vld [vmem:[%s57] sm:$0x1]
  %v3459 = vperm.slane %v3457, 0
  %v3462 = vsel %vm193, %v3451, 0
  %v3465 = vsel %vm193, %v3452, 0
  %3467 = vmatpush.msra.mxu0 0.0
  %3468 = vmatpush.msra.mxu0 0.0
  %3469 = vmatpush.msra.mxu0 0.0
  %3470 = vmatpush.msra.mxu0 0.0
  %3471 = vmatpush.msra.mxu0 0.0
  %3472 = vmatpush.msra.mxu0 0.0
  %3473 = vmatpush.msra.mxu0 0.0
  %3474 = vmatpush.msra.mxu0 0.0
  %3475 = vmatpush.msra.mxu0 0.0
  %3476 = vmatpush.msra.mxu0 0.0
  %3477 = vmatpush.msra.mxu0 0.0
  %3478 = vmatpush.msra.mxu0 0.0
  %3479 = vmatpush.msra.mxu0 %v3456
  %3480 = vmatpush.msra.mxu0 %v3455
  %3481 = vmatpush.msra.mxu0 %v3454
  %3482 = vmatpush.msra.mxu0 %v3453
  %3483 = vmatmul.f32.gmra.mxu0 %v3462
  %v3484 = vpop.f32.mrf.mxu0
  %v3485 = vadd.f32 %v3459, %v3484
  %3486 = vmatmul.f32.gmra.mxu0 %v3465
  %v3487 = vpop.f32.mrf.mxu0
  %v3488 = vadd.f32 %v3459, %v3487
  %3489 = vdwg.mxu0
  %v3490 = vadd.f32 %v2809, %v3485
  %v3491 = vadd.f32 %v2810, %v3488
  %v3492 = vld [vmem:[%s63] sm:$0x1]
  %v3493 = vld [vmem:[%s65] sm:$0x1]
  %v3494 = vsel %vm193, %v3490, 0.0
  %3495 = vadd.xlane.f32.xlu0 %v3494
  %v3496 = vpop.xlane.xlu0 %3495
  %v3497 = vsel %vm193, %v3491, 0.0
  %3498 = vadd.xlane.f32.xlu0 %v3497
  %v3499 = vpop.xlane.xlu0 %3498
  %v3500 = vmul.f32 %v3496, %v849
  %v3501 = vmul.f32 %v3499, %v849
  %v3502 = vsub.f32 %v3490, %v3500
  %v3503 = vsub.f32 %v3491, %v3501
  %v3504 = vmul.f32 %v3502, %v3502
  %v3505 = vmul.f32 %v3503, %v3503
  %v3506 = vsel %vm193, %v3504, 0.0
  %3507 = vadd.xlane.f32.xlu0 %v3506
  %v3508 = vpop.xlane.xlu0 %3507
  %v3509 = vsel %vm193, %v3505, 0.0
  %3510 = vadd.xlane.f32.xlu0 %v3509
  %v3511 = vpop.xlane.xlu0 %3510
  %v3512 = vmul.f32 %v3508, %v849
  %v3513 = vmul.f32 %v3511, %v849
  %v3514 = vadd.f32 %v3512, 1e-05
  %v3515 = vadd.f32 %v3513, 1e-05
  %v3516 = vrsqrt.pop %v3514
  %v3517 = vmul.f32 %v3516, %v3514
  %v3518 = vmul.f32 %v3517, %v3516
  %v3519 = vmul.f32 0.5, %v3518
  %v3520 = vsub.f32 1.5, %v3519
  %v3521 = vmul.f32 %v3516, %v3520
  %vm3522 = vweird.f32 %v3514
  %vm3523 = vweird.f32 %v3516
  %vm3524 = vmor %vm3522, %vm3523
  %v3525 = vsel %vm3524, %v3516, %v3521
  %v3526 = vrsqrt.pop %v3515
  %v3527 = vmul.f32 %v3526, %v3515
  %v3528 = vmul.f32 %v3527, %v3526
  %v3529 = vmul.f32 0.5, %v3528
  %v3530 = vsub.f32 1.5, %v3529
  %v3531 = vmul.f32 %v3526, %v3530
  %vm3532 = vweird.f32 %v3515
  %vm3533 = vweird.f32 %v3526
  %vm3534 = vmor %vm3532, %vm3533
  %v3535 = vsel %vm3534, %v3526, %v3531
  %v3536 = vmul.f32 %v3502, %v3525
  %v3537 = vmul.f32 %v3503, %v3535
  %v3539 = vperm.slane %v3492, 0
  %v3541 = vmul.f32 %v3536, %v3539
  %v3542 = vmul.f32 %v3537, %v3539
  %v3544 = vperm.slane %v3493, 0
  %v3546 = vadd.f32 %v3541, %v3544
  %v3547 = vadd.f32 %v3542, %v3544
  %v3548 = vld [vmem:[%s71] sm:$0xff]
  %v3549 = vld [vmem:[%s71 + $0x8] sm:$0xff]
  %v3550 = vld [vmem:[%s71 + $0x10] sm:$0xff]
  %v3551 = vld [vmem:[%s71 + $0x18] sm:$0xff]
  %v3552 = vld [vmem:[%s73] sm:$0x1]
  %v3554 = vperm.slane %v3552, 0
  %v3557 = vsel %vm193, %v3546, 0
  %v3560 = vsel %vm193, %v3547, 0
  %3562 = vmatpush.msra.mxu0 0.0
  %3563 = vmatpush.msra.mxu0 0.0
  %3564 = vmatpush.msra.mxu0 0.0
  %3565 = vmatpush.msra.mxu0 0.0
  %3566 = vmatpush.msra.mxu0 0.0
  %3567 = vmatpush.msra.mxu0 0.0
  %3568 = vmatpush.msra.mxu0 0.0
  %3569 = vmatpush.msra.mxu0 0.0
  %3570 = vmatpush.msra.mxu0 0.0
  %3571 = vmatpush.msra.mxu0 0.0
  %3572 = vmatpush.msra.mxu0 0.0
  %3573 = vmatpush.msra.mxu0 0.0
  %3574 = vmatpush.msra.mxu0 %v3551
  %3575 = vmatpush.msra.mxu0 %v3550
  %3576 = vmatpush.msra.mxu0 %v3549
  %3577 = vmatpush.msra.mxu0 %v3548
  %3578 = vmatmul.f32.gmra.mxu0 %v3557
  %v3579 = vpop.f32.mrf.mxu0
  %v3580 = vadd.f32 %v3554, %v3579
  %3581 = vmatmul.f32.gmra.mxu0 %v3560
  %v3582 = vpop.f32.mrf.mxu0
  %v3583 = vadd.f32 %v3554, %v3582
  %3584 = vdwg.mxu0
  %v3585 = vmul.f32 %v3580, 0.5
  %v3586 = vmul.f32 %v3583, 0.5
  %v3587 = vmul.f32 %v3580, 0.70710677
  %v3588 = vmul.f32 %v3583, 0.70710677
  %vm3589 = vcmp.lt.f32.partialorder %v3587, 0.0
  %vm3590 = vcmp.lt.f32.partialorder %v3588, 0.0
  %v3591 = vsel %vm3589, -1.0, 1.0
  %v3592 = vsel %vm3590, -1.0, 1.0
  %v3593 = vand.u32 2147483647, %v3587
  %v3594 = vand.u32 2147483647, %v3588
  %v3595 = vmul.f32 %v3593, 0.3275911
  %v3596 = vmul.f32 %v3594, 0.3275911
  %v3597 = vadd.f32 %v3595, 1.0
  %v3598 = vadd.f32 %v3596, 1.0
  %v3599 = vrcp.pop %v3597
  %v3600 = vmul.f32 %v3597, %v3599
  %v3601 = vsub.f32 1.0, %v3600
  %v3602 = vmul.f32 %v3599, %v3601
  %v3603 = vadd.f32 %v3599, %v3602
  %vm3604 = vweird.f32 %v3597
  %vm3605 = vweird.f32 %v3599
  %vm3606 = vmor %vm3604, %vm3605
  %v3607 = vsel %vm3606, %v3599, %v3603
  %v3608 = vand.u32 2147483647, %v3597
  %vm3609 = vcmp.eq.f32.partialorder %v3608, 8.507059e+37
  %v3610 = vand.u32 %v3597, 2147483648
  %v3611 = vor.u32 1.1754944e-38, %v3610
  %v3612 = vsel %vm3609, %v3611, %v3607
  %v3613 = vmul.f32 1.0, %v3612
  %v3614 = vrcp.pop %v3598
  %v3615 = vmul.f32 %v3598, %v3614
  %v3616 = vsub.f32 1.0, %v3615
  %v3617 = vmul.f32 %v3614, %v3616
  %v3618 = vadd.f32 %v3614, %v3617
  %vm3619 = vweird.f32 %v3598
  %vm3620 = vweird.f32 %v3614
  %vm3621 = vmor %vm3619, %vm3620
  %v3622 = vsel %vm3621, %v3614, %v3618
  %v3623 = vand.u32 2147483647, %v3598
  %vm3624 = vcmp.eq.f32.partialorder %v3623, 8.507059e+37
  %v3625 = vand.u32 %v3598, 2147483648
  %v3626 = vor.u32 1.1754944e-38, %v3625
  %v3627 = vsel %vm3624, %v3626, %v3622
  %v3628 = vmul.f32 1.0, %v3627
  %v3629 = vmul.f32 %v3613, 1.0614054
  %v3630 = vmul.f32 %v3628, 1.0614054
  %v3631 = vadd.f32 %v3629, -1.4531521
  %v3632 = vadd.f32 %v3630, -1.4531521
  %v3633 = vmul.f32 %v3631, %v3613
  %v3634 = vmul.f32 %v3632, %v3628
  %v3635 = vadd.f32 %v3633, 1.4214138
  %v3636 = vadd.f32 %v3634, 1.4214138
  %v3637 = vmul.f32 %v3635, %v3613
  %v3638 = vmul.f32 %v3636, %v3628
  %v3639 = vadd.f32 %v3637, -0.28449672
  %v3640 = vadd.f32 %v3638, -0.28449672
  %v3641 = vmul.f32 %v3639, %v3613
  %v3642 = vmul.f32 %v3640, %v3628
  %v3643 = vadd.f32 %v3641, 0.2548296
  %v3644 = vadd.f32 %v3642, 0.2548296
  %v3645 = vmul.f32 %v3643, %v3613
  %v3646 = vmul.f32 %v3644, %v3628
  %v3647 = vsub.f32 0.0, %v3593
  %v3648 = vsub.f32 0.0, %v3594
  %v3649 = vmul.f32 %v3647, %v3593
  %v3650 = vmul.f32 %v3648, %v3594
  %v3651 = vmul.f32 %v3649, 1.442695
  %v3652 = vpow.pop %v3651
  %v3653 = vmul.f32 %v3650, 1.442695
  %v3654 = vpow.pop %v3653
  %v3655 = vmul.f32 %v3645, %v3652
  %v3656 = vmul.f32 %v3646, %v3654
  %v3657 = vsub.f32 1.0, %v3655
  %v3658 = vsub.f32 1.0, %v3656
  %v3659 = vmul.f32 %v3591, %v3657
  %v3660 = vmul.f32 %v3592, %v3658
  %v3661 = vadd.f32 %v3659, 1.0
  %v3662 = vadd.f32 %v3660, 1.0
  %v3663 = vmul.f32 %v3585, %v3661
  %v3664 = vmul.f32 %v3586, %v3662
  %v3665 = vld [vmem:[%s75] sm:$0xff]
  %v3666 = vld [vmem:[%s75 + $0x8] sm:$0xff]
  %v3667 = vld [vmem:[%s75 + $0x10] sm:$0xff]
  %v3668 = vld [vmem:[%s75 + $0x18] sm:$0xff]
  %v3669 = vld [vmem:[%s75 + $0x20] sm:$0xff]
  %v3670 = vld [vmem:[%s75 + $0x28] sm:$0xff]
  %v3671 = vld [vmem:[%s75 + $0x30] sm:$0xff]
  %v3672 = vld [vmem:[%s75 + $0x38] sm:$0xff]
  %v3673 = vld [vmem:[%s77] sm:$0x1]
  %v3675 = vperm.slane %v3673, 0
  %v3678 = vsel %vm1027, %v3663, 0
  %v3681 = vsel %vm1027, %v3664, 0
  %3683 = vmatpush.msra.mxu0 0.0
  %3684 = vmatpush.msra.mxu0 0.0
  %3685 = vmatpush.msra.mxu0 0.0
  %3686 = vmatpush.msra.mxu0 0.0
  %3687 = vmatpush.msra.mxu0 0.0
  %3688 = vmatpush.msra.mxu0 0.0
  %3689 = vmatpush.msra.mxu0 0.0
  %3690 = vmatpush.msra.mxu0 0.0
  %3691 = vmatpush.msra.mxu0 %v3672
  %3692 = vmatpush.msra.mxu0 %v3671
  %3693 = vmatpush.msra.mxu0 %v3670
  %3694 = vmatpush.msra.mxu0 %v3669
  %3695 = vmatpush.msra.mxu0 %v3668
  %3696 = vmatpush.msra.mxu0 %v3667
  %3697 = vmatpush.msra.mxu0 %v3666
  %3698 = vmatpush.msra.mxu0 %v3665
  %3699 = vmatmul.f32.gmra.mxu0 %v3678
  %v3700 = vpop.f32.mrf.mxu0
  %v3701 = vadd.f32 %v3675, %v3700
  %3702 = vmatmul.f32.gmra.mxu0 %v3681
  %v3703 = vpop.f32.mrf.mxu0
  %v3704 = vadd.f32 %v3675, %v3703
  %3705 = vdwg.mxu0
  %v3706 = vadd.f32 %v3546, %v3701
  %v3707 = vadd.f32 %v3547, %v3704
  %v3708 = vld [vmem:[%s67] sm:$0x1]
  %v3709 = vld [vmem:[%s69] sm:$0x1]
  %v3710 = vsel %vm193, %v3706, 0.0
  %3711 = vadd.xlane.f32.xlu0 %v3710
  %v3712 = vpop.xlane.xlu0 %3711
  %v3713 = vsel %vm193, %v3707, 0.0
  %3714 = vadd.xlane.f32.xlu0 %v3713
  %v3715 = vpop.xlane.xlu0 %3714
  %v3716 = vmul.f32 %v3712, %v849
  %v3717 = vmul.f32 %v3715, %v849
  %v3718 = vsub.f32 %v3706, %v3716
  %v3719 = vsub.f32 %v3707, %v3717
  %v3720 = vmul.f32 %v3718, %v3718
  %v3721 = vmul.f32 %v3719, %v3719
  %v3722 = vsel %vm193, %v3720, 0.0
  %3723 = vadd.xlane.f32.xlu0 %v3722
  %v3724 = vpop.xlane.xlu0 %3723
  %v3725 = vsel %vm193, %v3721, 0.0
  %3726 = vadd.xlane.f32.xlu0 %v3725
  %v3727 = vpop.xlane.xlu0 %3726
  %v3728 = vmul.f32 %v3724, %v849
  %v3729 = vmul.f32 %v3727, %v849
  %v3730 = vadd.f32 %v3728, 1e-05
  %v3731 = vadd.f32 %v3729, 1e-05
  %v3732 = vrsqrt.pop %v3730
  %v3733 = vmul.f32 %v3732, %v3730
  %v3734 = vmul.f32 %v3733, %v3732
  %v3735 = vmul.f32 0.5, %v3734
  %v3736 = vsub.f32 1.5, %v3735
  %v3737 = vmul.f32 %v3732, %v3736
  %vm3738 = vweird.f32 %v3730
  %vm3739 = vweird.f32 %v3732
  %vm3740 = vmor %vm3738, %vm3739
  %v3741 = vsel %vm3740, %v3732, %v3737
  %v3742 = vrsqrt.pop %v3731
  %v3743 = vmul.f32 %v3742, %v3731
  %v3744 = vmul.f32 %v3743, %v3742
  %v3745 = vmul.f32 0.5, %v3744
  %v3746 = vsub.f32 1.5, %v3745
  %v3747 = vmul.f32 %v3742, %v3746
  %vm3748 = vweird.f32 %v3731
  %vm3749 = vweird.f32 %v3742
  %vm3750 = vmor %vm3748, %vm3749
  %v3751 = vsel %vm3750, %v3742, %v3747
  %v3752 = vmul.f32 %v3718, %v3741
  %v3753 = vmul.f32 %v3719, %v3751
  %v3755 = vperm.slane %v3708, 0
  %v3757 = vmul.f32 %v3752, %v3755
  %v3758 = vmul.f32 %v3753, %v3755
  %v3760 = vperm.slane %v3709, 0
  %v3762 = vadd.f32 %v3757, %v3760
  %v3763 = vadd.f32 %v3758, %v3760
  %s3764 = scalar_lea.vmem %s39, 32
  %v3765 = vld [vmem:[%s3764] sm:$0xff]
  %v3766 = vld [vmem:[%s3764 + $0x8] sm:$0xff]
  %v3767 = vld [vmem:[%s3764 + $0x10] sm:$0xff]
  %v3768 = vld [vmem:[%s3764 + $0x18] sm:$0xff]
  %s3769 = scalar_lea.vmem %s41, 1
  %v3770 = vld [vmem:[%s3769] sm:$0x1]
  %v3772 = vperm.slane %v3770, 0
  %v3775 = vsel %vm193, %v3762, 0
  %v3778 = vsel %vm193, %v3763, 0
  %3780 = vmatpush.msra.mxu0 0.0
  %3781 = vmatpush.msra.mxu0 0.0
  %3782 = vmatpush.msra.mxu0 0.0
  %3783 = vmatpush.msra.mxu0 0.0
  %3784 = vmatpush.msra.mxu0 0.0
  %3785 = vmatpush.msra.mxu0 0.0
  %3786 = vmatpush.msra.mxu0 0.0
  %3787 = vmatpush.msra.mxu0 0.0
  %3788 = vmatpush.msra.mxu0 0.0
  %3789 = vmatpush.msra.mxu0 0.0
  %3790 = vmatpush.msra.mxu0 0.0
  %3791 = vmatpush.msra.mxu0 0.0
  %3792 = vmatpush.msra.mxu0 %v3768
  %3793 = vmatpush.msra.mxu0 %v3767
  %3794 = vmatpush.msra.mxu0 %v3766
  %3795 = vmatpush.msra.mxu0 %v3765
  %3796 = vmatmul.f32.gmra.mxu0 %v3775
  %v3797 = vpop.f32.mrf.mxu0
  %v3798 = vadd.f32 %v3772, %v3797
  %3799 = vmatmul.f32.gmra.mxu0 %v3778
  %v3800 = vpop.f32.mrf.mxu0
  %v3801 = vadd.f32 %v3772, %v3800
  %3802 = vdwg.mxu0
  %3804 = vrot.lane.b32.xlu0 %v3798, 96
  %v3805 = vpop.permute.xlu0 %3804
  %v3806 = vsel %vm226, %v3798, 0
  %v3808 = vsel %vm226, %v3805, 0
  %3810 = vmatpush.xpose.msra.mxu0 0.0
  %3811 = vmatpush.xpose.msra.mxu0 0.0
  %3812 = vmatpush.xpose.msra.mxu0 0.0
  %3813 = vmatpush.xpose.msra.mxu0 0.0
  %3814 = vmatpush.xpose.msra.mxu0 0.0
  %3815 = vmatpush.xpose.msra.mxu0 0.0
  %3816 = vmatpush.xpose.msra.mxu0 0.0
  %3817 = vmatpush.xpose.msra.mxu0 0.0
  %3818 = vmatpush.xpose.msra.mxu0 0.0
  %3819 = vmatpush.xpose.msra.mxu0 0.0
  %3820 = vmatpush.xpose.msra.mxu0 0.0
  %3821 = vmatpush.xpose.msra.mxu0 0.0
  %3822 = vmatpush.xpose.msra.mxu0 0.0
  %3823 = vmatpush.xpose.msra.mxu0 0.0
  %3824 = vmatpush.xpose.msra.mxu0 0.0
  %3825 = vmatpush.xpose.msra.mxu0 %v3808
  %3826 = vmatmul.f32.gmra.mxu0 %v3806
  %v3827 = vpop.f32.mrf.mxu0
  %v3828 = vadd.f32 0.0, %v3827
  %3829 = vdwg.mxu0
  %3831 = vrot.lane.b32.xlu0 %v3801, 96
  %v3832 = vpop.permute.xlu0 %3831
  %v3833 = vsel %vm226, %v3801, 0
  %v3835 = vsel %vm226, %v3832, 0
  %3837 = vmatpush.xpose.msra.mxu0 0.0
  %3838 = vmatpush.xpose.msra.mxu0 0.0
  %3839 = vmatpush.xpose.msra.mxu0 0.0
  %3840 = vmatpush.xpose.msra.mxu0 0.0
  %3841 = vmatpush.xpose.msra.mxu0 0.0
  %3842 = vmatpush.xpose.msra.mxu0 0.0
  %3843 = vmatpush.xpose.msra.mxu0 0.0
  %3844 = vmatpush.xpose.msra.mxu0 0.0
  %3845 = vmatpush.xpose.msra.mxu0 0.0
  %3846 = vmatpush.xpose.msra.mxu0 0.0
  %3847 = vmatpush.xpose.msra.mxu0 0.0
  %3848 = vmatpush.xpose.msra.mxu0 0.0
  %3849 = vmatpush.xpose.msra.mxu0 0.0
  %3850 = vmatpush.xpose.msra.mxu0 0.0
  %3851 = vmatpush.xpose.msra.mxu0 0.0
  %3852 = vmatpush.xpose.msra.mxu0 %v3835
  %3853 = vmatmul.f32.gmra.mxu0 %v3833
  %v3854 = vpop.f32.mrf.mxu0
  %v3855 = vadd.f32 0.0, %v3854
  %3856 = vdwg.mxu0
  %v3857 = vmul.f32 %v3828, 0.35355338
  %v3858 = vmul.f32 %v3855, 0.35355338
  %v3859 = vadd.f32 %v3857, %v2111
  %v3860 = vadd.f32 %v3858, %v2112
  %v3861 = vsel %vm226, %v3859, -inf
  %3862 = vmax.xlane.f32.xlu0 %v3861
  %v3863 = vpop.xlane.xlu0 %3862
  %v3864 = vsel %vm226, %v3860, -inf
  %3865 = vmax.xlane.f32.xlu0 %v3864
  %v3866 = vpop.xlane.xlu0 %3865
  %v3867 = vsub.f32 %v3859, %v3863
  %v3868 = vsub.f32 %v3860, %v3866
  %v3869 = vmul.f32 %v3867, 1.442695
  %v3870 = vpow.pop %v3869
  %v3871 = vmul.f32 %v3868, 1.442695
  %v3872 = vpow.pop %v3871
  %v3873 = vsel %vm226, %v3870, 0.0
  %3874 = vadd.xlane.f32.xlu0 %v3873
  %v3875 = vpop.xlane.xlu0 %3874
  %v3876 = vsel %vm226, %v3872, 0.0
  %3877 = vadd.xlane.f32.xlu0 %v3876
  %v3878 = vpop.xlane.xlu0 %3877
  %v3879 = vrcp.pop %v3875
  %v3880 = vrcp.pop %v3878
  %v3881 = vmul.f32 %v3870, %v3879
  %v3882 = vmul.f32 %v3872, %v3880
  %3883 = vrot.lane.b32.xlu0 %v3798, 64
  %v3884 = vpop.permute.xlu0 %3883
  %v3887 = vsel %vm226, %v3881, 0
  %3889 = vmatpush.msra.mxu0 0.0
  %3890 = vmatpush.msra.mxu0 0.0
  %3891 = vmatpush.msra.mxu0 0.0
  %3892 = vmatpush.msra.mxu0 0.0
  %3893 = vmatpush.msra.mxu0 0.0
  %3894 = vmatpush.msra.mxu0 0.0
  %3895 = vmatpush.msra.mxu0 0.0
  %3896 = vmatpush.msra.mxu0 0.0
  %3897 = vmatpush.msra.mxu0 0.0
  %3898 = vmatpush.msra.mxu0 0.0
  %3899 = vmatpush.msra.mxu0 0.0
  %3900 = vmatpush.msra.mxu0 0.0
  %3901 = vmatpush.msra.mxu0 0.0
  %3902 = vmatpush.msra.mxu0 0.0
  %3903 = vmatpush.msra.mxu0 0.0
  %3904 = vmatpush.msra.mxu0 %v3884
  %3905 = vmatmul.f32.gmra.mxu0 %v3887
  %v3906 = vpop.f32.mrf.mxu0
  %v3907 = vadd.f32 0.0, %v3906
  %3908 = vdwg.mxu0
  %3909 = vrot.lane.b32.xlu0 %v3801, 64
  %v3910 = vpop.permute.xlu0 %3909
  %v3913 = vsel %vm226, %v3882, 0
  %3915 = vmatpush.msra.mxu0 0.0
  %3916 = vmatpush.msra.mxu0 0.0
  %3917 = vmatpush.msra.mxu0 0.0
  %3918 = vmatpush.msra.mxu0 0.0
  %3919 = vmatpush.msra.mxu0 0.0
  %3920 = vmatpush.msra.mxu0 0.0
  %3921 = vmatpush.msra.mxu0 0.0
  %3922 = vmatpush.msra.mxu0 0.0
  %3923 = vmatpush.msra.mxu0 0.0
  %3924 = vmatpush.msra.mxu0 0.0
  %3925 = vmatpush.msra.mxu0 0.0
  %3926 = vmatpush.msra.mxu0 0.0
  %3927 = vmatpush.msra.mxu0 0.0
  %3928 = vmatpush.msra.mxu0 0.0
  %3929 = vmatpush.msra.mxu0 0.0
  %3930 = vmatpush.msra.mxu0 %v3910
  %3931 = vmatmul.f32.gmra.mxu0 %v3913
  %v3932 = vpop.f32.mrf.mxu0
  %v3933 = vadd.f32 0.0, %v3932
  %3934 = vdwg.mxu0
  %3935 = vrot.lane.b32.xlu0 %v3798, 120
  %v3936 = vpop.permute.xlu0 %3935
  %3937 = vrot.lane.b32.xlu0 %v3798, 88
  %v3938 = vpop.permute.xlu0 %3937
  %v3939 = vsel %vm226, %v3936, 0
  %v3941 = vsel %vm226, %v3938, 0
  %3943 = vmatpush.xpose.msra.mxu0 0.0
  %3944 = vmatpush.xpose.msra.mxu0 0.0
  %3945 = vmatpush.xpose.msra.mxu0 0.0
  %3946 = vmatpush.xpose.msra.mxu0 0.0
  %3947 = vmatpush.xpose.msra.mxu0 0.0
  %3948 = vmatpush.xpose.msra.mxu0 0.0
  %3949 = vmatpush.xpose.msra.mxu0 0.0
  %3950 = vmatpush.xpose.msra.mxu0 0.0
  %3951 = vmatpush.xpose.msra.mxu0 0.0
  %3952 = vmatpush.xpose.msra.mxu0 0.0
  %3953 = vmatpush.xpose.msra.mxu0 0.0
  %3954 = vmatpush.xpose.msra.mxu0 0.0
  %3955 = vmatpush.xpose.msra.mxu0 0.0
  %3956 = vmatpush.xpose.msra.mxu0 0.0
  %3957 = vmatpush.xpose.msra.mxu0 0.0
  %3958 = vmatpush.xpose.msra.mxu0 %v3941
  %3959 = vmatmul.f32.gmra.mxu0 %v3939
  %v3960 = vpop.f32.mrf.mxu0
  %v3961 = vadd.f32 0.0, %v3960
  %3962 = vdwg.mxu0
  %3963 = vrot.lane.b32.xlu0 %v3801, 120
  %v3964 = vpop.permute.xlu0 %3963
  %3965 = vrot.lane.b32.xlu0 %v3801, 88
  %v3966 = vpop.permute.xlu0 %3965
  %v3967 = vsel %vm226, %v3964, 0
  %v3969 = vsel %vm226, %v3966, 0
  %3971 = vmatpush.xpose.msra.mxu0 0.0
  %3972 = vmatpush.xpose.msra.mxu0 0.0
  %3973 = vmatpush.xpose.msra.mxu0 0.0
  %3974 = vmatpush.xpose.msra.mxu0 0.0
  %3975 = vmatpush.xpose.msra.mxu0 0.0
  %3976 = vmatpush.xpose.msra.mxu0 0.0
  %3977 = vmatpush.xpose.msra.mxu0 0.0
  %3978 = vmatpush.xpose.msra.mxu0 0.0
  %3979 = vmatpush.xpose.msra.mxu0 0.0
  %3980 = vmatpush.xpose.msra.mxu0 0.0
  %3981 = vmatpush.xpose.msra.mxu0 0.0
  %3982 = vmatpush.xpose.msra.mxu0 0.0
  %3983 = vmatpush.xpose.msra.mxu0 0.0
  %3984 = vmatpush.xpose.msra.mxu0 0.0
  %3985 = vmatpush.xpose.msra.mxu0 0.0
  %3986 = vmatpush.xpose.msra.mxu0 %v3969
  %3987 = vmatmul.f32.gmra.mxu0 %v3967
  %v3988 = vpop.f32.mrf.mxu0
  %v3989 = vadd.f32 0.0, %v3988
  %3990 = vdwg.mxu0
  %v3991 = vmul.f32 %v3961, 0.35355338
  %v3992 = vmul.f32 %v3989, 0.35355338
  %v3993 = vadd.f32 %v3991, %v2111
  %v3994 = vadd.f32 %v3992, %v2112
  %v3995 = vsel %vm226, %v3993, -inf
  %3996 = vmax.xlane.f32.xlu0 %v3995
  %v3997 = vpop.xlane.xlu0 %3996
  %v3998 = vsel %vm226, %v3994, -inf
  %3999 = vmax.xlane.f32.xlu0 %v3998
  %v4000 = vpop.xlane.xlu0 %3999
  %v4001 = vsub.f32 %v3993, %v3997
  %v4002 = vsub.f32 %v3994, %v4000
  %v4003 = vmul.f32 %v4001, 1.442695
  %v4004 = vpow.pop %v4003
  %v4005 = vmul.f32 %v4002, 1.442695
  %v4006 = vpow.pop %v4005
  %v4007 = vsel %vm226, %v4004, 0.0
  %4008 = vadd.xlane.f32.xlu0 %v4007
  %v4009 = vpop.xlane.xlu0 %4008
  %v4010 = vsel %vm226, %v4006, 0.0
  %4011 = vadd.xlane.f32.xlu0 %v4010
  %v4012 = vpop.xlane.xlu0 %4011
  %v4013 = vrcp.pop %v4009
  %v4014 = vrcp.pop %v4012
  %v4015 = vmul.f32 %v4004, %v4013
  %v4016 = vmul.f32 %v4006, %v4014
  %4017 = vrot.lane.b32.xlu0 %v3798, 56
  %v4018 = vpop.permute.xlu0 %4017
  %v4021 = vsel %vm226, %v4015, 0
  %4023 = vmatpush.msra.mxu0 0.0
  %4024 = vmatpush.msra.mxu0 0.0
  %4025 = vmatpush.msra.mxu0 0.0
  %4026 = vmatpush.msra.mxu0 0.0
  %4027 = vmatpush.msra.mxu0 0.0
  %4028 = vmatpush.msra.mxu0 0.0
  %4029 = vmatpush.msra.mxu0 0.0
  %4030 = vmatpush.msra.mxu0 0.0
  %4031 = vmatpush.msra.mxu0 0.0
  %4032 = vmatpush.msra.mxu0 0.0
  %4033 = vmatpush.msra.mxu0 0.0
  %4034 = vmatpush.msra.mxu0 0.0
  %4035 = vmatpush.msra.mxu0 0.0
  %4036 = vmatpush.msra.mxu0 0.0
  %4037 = vmatpush.msra.mxu0 0.0
  %4038 = vmatpush.msra.mxu0 %v4018
  %4039 = vmatmul.f32.gmra.mxu0 %v4021
  %v4040 = vpop.f32.mrf.mxu0
  %v4041 = vadd.f32 0.0, %v4040
  %4042 = vdwg.mxu0
  %4043 = vrot.lane.b32.xlu0 %v3801, 56
  %v4044 = vpop.permute.xlu0 %4043
  %v4047 = vsel %vm226, %v4016, 0
  %4049 = vmatpush.msra.mxu0 0.0
  %4050 = vmatpush.msra.mxu0 0.0
  %4051 = vmatpush.msra.mxu0 0.0
  %4052 = vmatpush.msra.mxu0 0.0
  %4053 = vmatpush.msra.mxu0 0.0
  %4054 = vmatpush.msra.mxu0 0.0
  %4055 = vmatpush.msra.mxu0 0.0
  %4056 = vmatpush.msra.mxu0 0.0
  %4057 = vmatpush.msra.mxu0 0.0
  %4058 = vmatpush.msra.mxu0 0.0
  %4059 = vmatpush.msra.mxu0 0.0
  %4060 = vmatpush.msra.mxu0 0.0
  %4061 = vmatpush.msra.mxu0 0.0
  %4062 = vmatpush.msra.mxu0 0.0
  %4063 = vmatpush.msra.mxu0 0.0
  %4064 = vmatpush.msra.mxu0 %v4044
  %4065 = vmatmul.f32.gmra.mxu0 %v4047
  %v4066 = vpop.f32.mrf.mxu0
  %v4067 = vadd.f32 0.0, %v4066
  %4068 = vdwg.mxu0
  %4069 = vrot.lane.b32.xlu0 %v3798, 112
  %v4070 = vpop.permute.xlu0 %4069
  %4071 = vrot.lane.b32.xlu0 %v3798, 80
  %v4072 = vpop.permute.xlu0 %4071
  %v4073 = vsel %vm226, %v4070, 0
  %v4075 = vsel %vm226, %v4072, 0
  %4077 = vmatpush.xpose.msra.mxu0 0.0
  %4078 = vmatpush.xpose.msra.mxu0 0.0
  %4079 = vmatpush.xpose.msra.mxu0 0.0
  %4080 = vmatpush.xpose.msra.mxu0 0.0
  %4081 = vmatpush.xpose.msra.mxu0 0.0
  %4082 = vmatpush.xpose.msra.mxu0 0.0
  %4083 = vmatpush.xpose.msra.mxu0 0.0
  %4084 = vmatpush.xpose.msra.mxu0 0.0
  %4085 = vmatpush.xpose.msra.mxu0 0.0
  %4086 = vmatpush.xpose.msra.mxu0 0.0
  %4087 = vmatpush.xpose.msra.mxu0 0.0
  %4088 = vmatpush.xpose.msra.mxu0 0.0
  %4089 = vmatpush.xpose.msra.mxu0 0.0
  %4090 = vmatpush.xpose.msra.mxu0 0.0
  %4091 = vmatpush.xpose.msra.mxu0 0.0
  %4092 = vmatpush.xpose.msra.mxu0 %v4075
  %4093 = vmatmul.f32.gmra.mxu0 %v4073
  %v4094 = vpop.f32.mrf.mxu0
  %v4095 = vadd.f32 0.0, %v4094
  %4096 = vdwg.mxu0
  %4097 = vrot.lane.b32.xlu0 %v3801, 112
  %v4098 = vpop.permute.xlu0 %4097
  %4099 = vrot.lane.b32.xlu0 %v3801, 80
  %v4100 = vpop.permute.xlu0 %4099
  %v4101 = vsel %vm226, %v4098, 0
  %v4103 = vsel %vm226, %v4100, 0
  %4105 = vmatpush.xpose.msra.mxu0 0.0
  %4106 = vmatpush.xpose.msra.mxu0 0.0
  %4107 = vmatpush.xpose.msra.mxu0 0.0
  %4108 = vmatpush.xpose.msra.mxu0 0.0
  %4109 = vmatpush.xpose.msra.mxu0 0.0
  %4110 = vmatpush.xpose.msra.mxu0 0.0
  %4111 = vmatpush.xpose.msra.mxu0 0.0
  %4112 = vmatpush.xpose.msra.mxu0 0.0
  %4113 = vmatpush.xpose.msra.mxu0 0.0
  %4114 = vmatpush.xpose.msra.mxu0 0.0
  %4115 = vmatpush.xpose.msra.mxu0 0.0
  %4116 = vmatpush.xpose.msra.mxu0 0.0
  %4117 = vmatpush.xpose.msra.mxu0 0.0
  %4118 = vmatpush.xpose.msra.mxu0 0.0
  %4119 = vmatpush.xpose.msra.mxu0 0.0
  %4120 = vmatpush.xpose.msra.mxu0 %v4103
  %4121 = vmatmul.f32.gmra.mxu0 %v4101
  %v4122 = vpop.f32.mrf.mxu0
  %v4123 = vadd.f32 0.0, %v4122
  %4124 = vdwg.mxu0
  %v4125 = vmul.f32 %v4095, 0.35355338
  %v4126 = vmul.f32 %v4123, 0.35355338
  %v4127 = vadd.f32 %v4125, %v2111
  %v4128 = vadd.f32 %v4126, %v2112
  %v4129 = vsel %vm226, %v4127, -inf
  %4130 = vmax.xlane.f32.xlu0 %v4129
  %v4131 = vpop.xlane.xlu0 %4130
  %v4132 = vsel %vm226, %v4128, -inf
  %4133 = vmax.xlane.f32.xlu0 %v4132
  %v4134 = vpop.xlane.xlu0 %4133
  %v4135 = vsub.f32 %v4127, %v4131
  %v4136 = vsub.f32 %v4128, %v4134
  %v4137 = vmul.f32 %v4135, 1.442695
  %v4138 = vpow.pop %v4137
  %v4139 = vmul.f32 %v4136, 1.442695
  %v4140 = vpow.pop %v4139
  %v4141 = vsel %vm226, %v4138, 0.0
  %4142 = vadd.xlane.f32.xlu0 %v4141
  %v4143 = vpop.xlane.xlu0 %4142
  %v4144 = vsel %vm226, %v4140, 0.0
  %4145 = vadd.xlane.f32.xlu0 %v4144
  %v4146 = vpop.xlane.xlu0 %4145
  %v4147 = vrcp.pop %v4143
  %v4148 = vrcp.pop %v4146
  %v4149 = vmul.f32 %v4138, %v4147
  %v4150 = vmul.f32 %v4140, %v4148
  %4151 = vrot.lane.b32.xlu0 %v3798, 48
  %v4152 = vpop.permute.xlu0 %4151
  %v4155 = vsel %vm226, %v4149, 0
  %4157 = vmatpush.msra.mxu0 0.0
  %4158 = vmatpush.msra.mxu0 0.0
  %4159 = vmatpush.msra.mxu0 0.0
  %4160 = vmatpush.msra.mxu0 0.0
  %4161 = vmatpush.msra.mxu0 0.0
  %4162 = vmatpush.msra.mxu0 0.0
  %4163 = vmatpush.msra.mxu0 0.0
  %4164 = vmatpush.msra.mxu0 0.0
  %4165 = vmatpush.msra.mxu0 0.0
  %4166 = vmatpush.msra.mxu0 0.0
  %4167 = vmatpush.msra.mxu0 0.0
  %4168 = vmatpush.msra.mxu0 0.0
  %4169 = vmatpush.msra.mxu0 0.0
  %4170 = vmatpush.msra.mxu0 0.0
  %4171 = vmatpush.msra.mxu0 0.0
  %4172 = vmatpush.msra.mxu0 %v4152
  %4173 = vmatmul.f32.gmra.mxu0 %v4155
  %v4174 = vpop.f32.mrf.mxu0
  %v4175 = vadd.f32 0.0, %v4174
  %4176 = vdwg.mxu0
  %4177 = vrot.lane.b32.xlu0 %v3801, 48
  %v4178 = vpop.permute.xlu0 %4177
  %v4181 = vsel %vm226, %v4150, 0
  %4183 = vmatpush.msra.mxu0 0.0
  %4184 = vmatpush.msra.mxu0 0.0
  %4185 = vmatpush.msra.mxu0 0.0
  %4186 = vmatpush.msra.mxu0 0.0
  %4187 = vmatpush.msra.mxu0 0.0
  %4188 = vmatpush.msra.mxu0 0.0
  %4189 = vmatpush.msra.mxu0 0.0
  %4190 = vmatpush.msra.mxu0 0.0
  %4191 = vmatpush.msra.mxu0 0.0
  %4192 = vmatpush.msra.mxu0 0.0
  %4193 = vmatpush.msra.mxu0 0.0
  %4194 = vmatpush.msra.mxu0 0.0
  %4195 = vmatpush.msra.mxu0 0.0
  %4196 = vmatpush.msra.mxu0 0.0
  %4197 = vmatpush.msra.mxu0 0.0
  %4198 = vmatpush.msra.mxu0 %v4178
  %4199 = vmatmul.f32.gmra.mxu0 %v4181
  %v4200 = vpop.f32.mrf.mxu0
  %v4201 = vadd.f32 0.0, %v4200
  %4202 = vdwg.mxu0
  %4203 = vrot.lane.b32.xlu0 %v3798, 104
  %v4204 = vpop.permute.xlu0 %4203
  %4205 = vrot.lane.b32.xlu0 %v3798, 72
  %v4206 = vpop.permute.xlu0 %4205
  %v4207 = vsel %vm226, %v4204, 0
  %v4209 = vsel %vm226, %v4206, 0
  %4211 = vmatpush.xpose.msra.mxu0 0.0
  %4212 = vmatpush.xpose.msra.mxu0 0.0
  %4213 = vmatpush.xpose.msra.mxu0 0.0
  %4214 = vmatpush.xpose.msra.mxu0 0.0
  %4215 = vmatpush.xpose.msra.mxu0 0.0
  %4216 = vmatpush.xpose.msra.mxu0 0.0
  %4217 = vmatpush.xpose.msra.mxu0 0.0
  %4218 = vmatpush.xpose.msra.mxu0 0.0
  %4219 = vmatpush.xpose.msra.mxu0 0.0
  %4220 = vmatpush.xpose.msra.mxu0 0.0
  %4221 = vmatpush.xpose.msra.mxu0 0.0
  %4222 = vmatpush.xpose.msra.mxu0 0.0
  %4223 = vmatpush.xpose.msra.mxu0 0.0
  %4224 = vmatpush.xpose.msra.mxu0 0.0
  %4225 = vmatpush.xpose.msra.mxu0 0.0
  %4226 = vmatpush.xpose.msra.mxu0 %v4209
  %4227 = vmatmul.f32.gmra.mxu0 %v4207
  %v4228 = vpop.f32.mrf.mxu0
  %v4229 = vadd.f32 0.0, %v4228
  %4230 = vdwg.mxu0
  %4231 = vrot.lane.b32.xlu0 %v3801, 104
  %v4232 = vpop.permute.xlu0 %4231
  %4233 = vrot.lane.b32.xlu0 %v3801, 72
  %v4234 = vpop.permute.xlu0 %4233
  %v4235 = vsel %vm226, %v4232, 0
  %v4237 = vsel %vm226, %v4234, 0
  %4239 = vmatpush.xpose.msra.mxu0 0.0
  %4240 = vmatpush.xpose.msra.mxu0 0.0
  %4241 = vmatpush.xpose.msra.mxu0 0.0
  %4242 = vmatpush.xpose.msra.mxu0 0.0
  %4243 = vmatpush.xpose.msra.mxu0 0.0
  %4244 = vmatpush.xpose.msra.mxu0 0.0
  %4245 = vmatpush.xpose.msra.mxu0 0.0
  %4246 = vmatpush.xpose.msra.mxu0 0.0
  %4247 = vmatpush.xpose.msra.mxu0 0.0
  %4248 = vmatpush.xpose.msra.mxu0 0.0
  %4249 = vmatpush.xpose.msra.mxu0 0.0
  %4250 = vmatpush.xpose.msra.mxu0 0.0
  %4251 = vmatpush.xpose.msra.mxu0 0.0
  %4252 = vmatpush.xpose.msra.mxu0 0.0
  %4253 = vmatpush.xpose.msra.mxu0 0.0
  %4254 = vmatpush.xpose.msra.mxu0 %v4237
  %4255 = vmatmul.f32.gmra.mxu0 %v4235
  %v4256 = vpop.f32.mrf.mxu0
  %v4257 = vadd.f32 0.0, %v4256
  %4258 = vdwg.mxu0
  %v4259 = vmul.f32 %v4229, 0.35355338
  %v4260 = vmul.f32 %v4257, 0.35355338
  %v4261 = vadd.f32 %v4259, %v2111
  %v4262 = vadd.f32 %v4260, %v2112
  %v4263 = vsel %vm226, %v4261, -inf
  %4264 = vmax.xlane.f32.xlu0 %v4263
  %v4265 = vpop.xlane.xlu0 %4264
  %v4266 = vsel %vm226, %v4262, -inf
  %4267 = vmax.xlane.f32.xlu0 %v4266
  %v4268 = vpop.xlane.xlu0 %4267
  %v4269 = vsub.f32 %v4261, %v4265
  %v4270 = vsub.f32 %v4262, %v4268
  %v4271 = vmul.f32 %v4269, 1.442695
  %v4272 = vpow.pop %v4271
  %v4273 = vmul.f32 %v4270, 1.442695
  %v4274 = vpow.pop %v4273
  %v4275 = vsel %vm226, %v4272, 0.0
  %4276 = vadd.xlane.f32.xlu0 %v4275
  %v4277 = vpop.xlane.xlu0 %4276
  %v4278 = vsel %vm226, %v4274, 0.0
  %4279 = vadd.xlane.f32.xlu0 %v4278
  %v4280 = vpop.xlane.xlu0 %4279
  %v4281 = vrcp.pop %v4277
  %v4282 = vrcp.pop %v4280
  %v4283 = vmul.f32 %v4272, %v4281
  %v4284 = vmul.f32 %v4274, %v4282
  %4285 = vrot.lane.b32.xlu0 %v3798, 40
  %v4286 = vpop.permute.xlu0 %4285
  %v4289 = vsel %vm226, %v4283, 0
  %4291 = vmatpush.msra.mxu0 0.0
  %4292 = vmatpush.msra.mxu0 0.0
  %4293 = vmatpush.msra.mxu0 0.0
  %4294 = vmatpush.msra.mxu0 0.0
  %4295 = vmatpush.msra.mxu0 0.0
  %4296 = vmatpush.msra.mxu0 0.0
  %4297 = vmatpush.msra.mxu0 0.0
  %4298 = vmatpush.msra.mxu0 0.0
  %4299 = vmatpush.msra.mxu0 0.0
  %4300 = vmatpush.msra.mxu0 0.0
  %4301 = vmatpush.msra.mxu0 0.0
  %4302 = vmatpush.msra.mxu0 0.0
  %4303 = vmatpush.msra.mxu0 0.0
  %4304 = vmatpush.msra.mxu0 0.0
  %4305 = vmatpush.msra.mxu0 0.0
  %4306 = vmatpush.msra.mxu0 %v4286
  %4307 = vmatmul.f32.gmra.mxu0 %v4289
  %v4308 = vpop.f32.mrf.mxu0
  %v4309 = vadd.f32 0.0, %v4308
  %4310 = vdwg.mxu0
  %4311 = vrot.lane.b32.xlu0 %v3801, 40
  %v4312 = vpop.permute.xlu0 %4311
  %v4315 = vsel %vm226, %v4284, 0
  %4317 = vmatpush.msra.mxu0 0.0
  %4318 = vmatpush.msra.mxu0 0.0
  %4319 = vmatpush.msra.mxu0 0.0
  %4320 = vmatpush.msra.mxu0 0.0
  %4321 = vmatpush.msra.mxu0 0.0
  %4322 = vmatpush.msra.mxu0 0.0
  %4323 = vmatpush.msra.mxu0 0.0
  %4324 = vmatpush.msra.mxu0 0.0
  %4325 = vmatpush.msra.mxu0 0.0
  %4326 = vmatpush.msra.mxu0 0.0
  %4327 = vmatpush.msra.mxu0 0.0
  %4328 = vmatpush.msra.mxu0 0.0
  %4329 = vmatpush.msra.mxu0 0.0
  %4330 = vmatpush.msra.mxu0 0.0
  %4331 = vmatpush.msra.mxu0 0.0
  %4332 = vmatpush.msra.mxu0 %v4312
  %4333 = vmatmul.f32.gmra.mxu0 %v4315
  %v4334 = vpop.f32.mrf.mxu0
  %v4335 = vadd.f32 0.0, %v4334
  %4336 = vdwg.mxu0
  %4339 = vrot.lane.b32.xlu0 %v4041, 8
  %v4340 = vpop.permute.xlu0 %4339
  %4341 = vrot.lane.b32.xlu0 %v4067, 8
  %v4342 = vpop.permute.xlu0 %4341
  %4347 = vrot.lane.b32.xlu0 %v4175, 16
  %v4348 = vpop.permute.xlu0 %4347
  %4349 = vrot.lane.b32.xlu0 %v4201, 16
  %v4350 = vpop.permute.xlu0 %4349
  %4355 = vrot.lane.b32.xlu0 %v4309, 24
  %v4356 = vpop.permute.xlu0 %4355
  %4357 = vrot.lane.b32.xlu0 %v4335, 24
  %v4358 = vpop.permute.xlu0 %4357
  %v4361 = vsel %vm226, %v3907, %v4340
  %v4362 = vsel %vm226, %v3933, %v4342
  %v4363 = vsel %vm790, %v4361, %v4348
  %v4364 = vsel %vm790, %v4362, %v4350
  %v4365 = vsel %vm793, %v4363, %v4356
  %v4366 = vsel %vm793, %v4364, %v4358
  %s4367 = scalar_lea.vmem %s43, 32
  %v4368 = vld [vmem:[%s4367] sm:$0xff]
  %v4369 = vld [vmem:[%s4367 + $0x8] sm:$0xff]
  %v4370 = vld [vmem:[%s4367 + $0x10] sm:$0xff]
  %v4371 = vld [vmem:[%s4367 + $0x18] sm:$0xff]
  %s4372 = scalar_lea.vmem %s45, 1
  %v4373 = vld [vmem:[%s4372] sm:$0x1]
  %v4375 = vperm.slane %v4373, 0
  %v4378 = vsel %vm193, %v4365, 0
  %v4381 = vsel %vm193, %v4366, 0
  %4383 = vmatpush.msra.mxu0 0.0
  %4384 = vmatpush.msra.mxu0 0.0
  %4385 = vmatpush.msra.mxu0 0.0
  %4386 = vmatpush.msra.mxu0 0.0
  %4387 = vmatpush.msra.mxu0 0.0
  %4388 = vmatpush.msra.mxu0 0.0
  %4389 = vmatpush.msra.mxu0 0.0
  %4390 = vmatpush.msra.mxu0 0.0
  %4391 = vmatpush.msra.mxu0 0.0
  %4392 = vmatpush.msra.mxu0 0.0
  %4393 = vmatpush.msra.mxu0 0.0
  %4394 = vmatpush.msra.mxu0 0.0
  %4395 = vmatpush.msra.mxu0 %v4371
  %4396 = vmatpush.msra.mxu0 %v4370
  %4397 = vmatpush.msra.mxu0 %v4369
  %4398 = vmatpush.msra.mxu0 %v4368
  %4399 = vmatmul.f32.gmra.mxu0 %v4378
  %v4400 = vpop.f32.mrf.mxu0
  %v4401 = vadd.f32 %v4375, %v4400
  %4402 = vmatmul.f32.gmra.mxu0 %v4381
  %v4403 = vpop.f32.mrf.mxu0
  %v4404 = vadd.f32 %v4375, %v4403
  %4405 = vdwg.mxu0
  %v4406 = vadd.f32 %v3762, %v4401
  %v4407 = vadd.f32 %v3763, %v4404
  %s4408 = scalar_lea.vmem %s59, 1
  %v4409 = vld [vmem:[%s4408] sm:$0x1]
  %s4410 = scalar_lea.vmem %s61, 1
  %v4411 = vld [vmem:[%s4410] sm:$0x1]
  %v4412 = vsel %vm193, %v4406, 0.0
  %4413 = vadd.xlane.f32.xlu0 %v4412
  %v4414 = vpop.xlane.xlu0 %4413
  %v4415 = vsel %vm193, %v4407, 0.0
  %4416 = vadd.xlane.f32.xlu0 %v4415
  %v4417 = vpop.xlane.xlu0 %4416
  %v4418 = vmul.f32 %v4414, %v849
  %v4419 = vmul.f32 %v4417, %v849
  %v4420 = vsub.f32 %v4406, %v4418
  %v4421 = vsub.f32 %v4407, %v4419
  %v4422 = vmul.f32 %v4420, %v4420
  %v4423 = vmul.f32 %v4421, %v4421
  %v4424 = vsel %vm193, %v4422, 0.0
  %4425 = vadd.xlane.f32.xlu0 %v4424
  %v4426 = vpop.xlane.xlu0 %4425
  %v4427 = vsel %vm193, %v4423, 0.0
  %4428 = vadd.xlane.f32.xlu0 %v4427
  %v4429 = vpop.xlane.xlu0 %4428
  %v4430 = vmul.f32 %v4426, %v849
  %v4431 = vmul.f32 %v4429, %v849
  %v4432 = vadd.f32 %v4430, 1e-05
  %v4433 = vadd.f32 %v4431, 1e-05
  %v4434 = vrsqrt.pop %v4432
  %v4435 = vmul.f32 %v4434, %v4432
  %v4436 = vmul.f32 %v4435, %v4434
  %v4437 = vmul.f32 0.5, %v4436
  %v4438 = vsub.f32 1.5, %v4437
  %v4439 = vmul.f32 %v4434, %v4438
  %vm4440 = vweird.f32 %v4432
  %vm4441 = vweird.f32 %v4434
  %vm4442 = vmor %vm4440, %vm4441
  %v4443 = vsel %vm4442, %v4434, %v4439
  %v4444 = vrsqrt.pop %v4433
  %v4445 = vmul.f32 %v4444, %v4433
  %v4446 = vmul.f32 %v4445, %v4444
  %v4447 = vmul.f32 0.5, %v4446
  %v4448 = vsub.f32 1.5, %v4447
  %v4449 = vmul.f32 %v4444, %v4448
  %vm4450 = vweird.f32 %v4433
  %vm4451 = vweird.f32 %v4444
  %vm4452 = vmor %vm4450, %vm4451
  %v4453 = vsel %vm4452, %v4444, %v4449
  %v4454 = vmul.f32 %v4420, %v4443
  %v4455 = vmul.f32 %v4421, %v4453
  %v4457 = vperm.slane %v4409, 0
  %v4459 = vmul.f32 %v4454, %v4457
  %v4460 = vmul.f32 %v4455, %v4457
  %v4462 = vperm.slane %v4411, 0
  %v4464 = vadd.f32 %v4459, %v4462
  %v4465 = vadd.f32 %v4460, %v4462
  %s4466 = scalar_lea.vmem %s47, 32
  %v4467 = vld [vmem:[%s4466] sm:$0xff]
  %v4468 = vld [vmem:[%s4466 + $0x8] sm:$0xff]
  %v4469 = vld [vmem:[%s4466 + $0x10] sm:$0xff]
  %v4470 = vld [vmem:[%s4466 + $0x18] sm:$0xff]
  %s4471 = scalar_lea.vmem %s49, 1
  %v4472 = vld [vmem:[%s4471] sm:$0x1]
  %v4474 = vperm.slane %v4472, 0
  %v4477 = vsel %vm193, %v4464, 0
  %v4480 = vsel %vm193, %v4465, 0
  %4482 = vmatpush.msra.mxu0 0.0
  %4483 = vmatpush.msra.mxu0 0.0
  %4484 = vmatpush.msra.mxu0 0.0
  %4485 = vmatpush.msra.mxu0 0.0
  %4486 = vmatpush.msra.mxu0 0.0
  %4487 = vmatpush.msra.mxu0 0.0
  %4488 = vmatpush.msra.mxu0 0.0
  %4489 = vmatpush.msra.mxu0 0.0
  %4490 = vmatpush.msra.mxu0 0.0
  %4491 = vmatpush.msra.mxu0 0.0
  %4492 = vmatpush.msra.mxu0 0.0
  %4493 = vmatpush.msra.mxu0 0.0
  %4494 = vmatpush.msra.mxu0 %v4470
  %4495 = vmatpush.msra.mxu0 %v4469
  %4496 = vmatpush.msra.mxu0 %v4468
  %4497 = vmatpush.msra.mxu0 %v4467
  %4498 = vmatmul.f32.gmra.mxu0 %v4477
  %v4499 = vpop.f32.mrf.mxu0
  %v4500 = vadd.f32 %v4474, %v4499
  %4501 = vmatmul.f32.gmra.mxu0 %v4480
  %v4502 = vpop.f32.mrf.mxu0
  %v4503 = vadd.f32 %v4474, %v4502
  %4504 = vdwg.mxu0
  %s4505 = scalar_lea.vmem %s51, 32
  %v4506 = vld [vmem:[%s4505] sm:$0xff]
  %v4507 = vld [vmem:[%s4505 + $0x8] sm:$0xff]
  %v4508 = vld [vmem:[%s4505 + $0x10] sm:$0xff]
  %v4509 = vld [vmem:[%s4505 + $0x18] sm:$0xff]
  %s4510 = scalar_lea.vmem %s53, 1
  %v4511 = vld [vmem:[%s4510] sm:$0x1]
  %v4513 = vperm.slane %v4511, 0
  %4515 = vmatpush.msra.mxu0 0.0
  %4516 = vmatpush.msra.mxu0 0.0
  %4517 = vmatpush.msra.mxu0 0.0
  %4518 = vmatpush.msra.mxu0 0.0
  %4519 = vmatpush.msra.mxu0 0.0
  %4520 = vmatpush.msra.mxu0 0.0
  %4521 = vmatpush.msra.mxu0 0.0
  %4522 = vmatpush.msra.mxu0 0.0
  %4523 = vmatpush.msra.mxu0 0.0
  %4524 = vmatpush.msra.mxu0 0.0
  %4525 = vmatpush.msra.mxu0 0.0
  %4526 = vmatpush.msra.mxu0 0.0
  %4527 = vmatpush.msra.mxu0 %v4509
  %4528 = vmatpush.msra.mxu0 %v4508
  %4529 = vmatpush.msra.mxu0 %v4507
  %4530 = vmatpush.msra.mxu0 %v4506
  %4531 = vmatmul.f32.gmra.mxu0 %v2857
  %v4532 = vpop.f32.mrf.mxu0
  %v4533 = vadd.f32 %v4513, %v4532
  %4534 = vmatmul.f32.gmra.mxu0 %v2860
  %v4535 = vpop.f32.mrf.mxu0
  %v4536 = vadd.f32 %v4513, %v4535
  %4537 = vdwg.mxu0
  %v4539 = vsel %vm226, %v4500, 0
  %v4542 = vsel %vm226, %v4533, 0
  %4544 = vmatpush.xpose.msra.mxu0 0.0
  %4545 = vmatpush.xpose.msra.mxu0 0.0
  %4546 = vmatpush.xpose.msra.mxu0 0.0
  %4547 = vmatpush.xpose.msra.mxu0 0.0
  %4548 = vmatpush.xpose.msra.mxu0 0.0
  %4549 = vmatpush.xpose.msra.mxu0 0.0
  %4550 = vmatpush.xpose.msra.mxu0 0.0
  %4551 = vmatpush.xpose.msra.mxu0 0.0
  %4552 = vmatpush.xpose.msra.mxu0 0.0
  %4553 = vmatpush.xpose.msra.mxu0 0.0
  %4554 = vmatpush.xpose.msra.mxu0 0.0
  %4555 = vmatpush.xpose.msra.mxu0 0.0
  %4556 = vmatpush.xpose.msra.mxu0 0.0
  %4557 = vmatpush.xpose.msra.mxu0 0.0
  %4558 = vmatpush.xpose.msra.mxu0 0.0
  %4559 = vmatpush.xpose.msra.mxu0 %v4542
  %4560 = vmatmul.f32.gmra.mxu0 %v4539
  %v4561 = vpop.f32.mrf.mxu0
  %v4562 = vadd.f32 0.0, %v4561
  %4563 = vdwg.mxu0
  %v4565 = vsel %vm226, %v4503, 0
  %v4568 = vsel %vm226, %v4536, 0
  %4570 = vmatpush.xpose.msra.mxu0 0.0
  %4571 = vmatpush.xpose.msra.mxu0 0.0
  %4572 = vmatpush.xpose.msra.mxu0 0.0
  %4573 = vmatpush.xpose.msra.mxu0 0.0
  %4574 = vmatpush.xpose.msra.mxu0 0.0
  %4575 = vmatpush.xpose.msra.mxu0 0.0
  %4576 = vmatpush.xpose.msra.mxu0 0.0
  %4577 = vmatpush.xpose.msra.mxu0 0.0
  %4578 = vmatpush.xpose.msra.mxu0 0.0
  %4579 = vmatpush.xpose.msra.mxu0 0.0
  %4580 = vmatpush.xpose.msra.mxu0 0.0
  %4581 = vmatpush.xpose.msra.mxu0 0.0
  %4582 = vmatpush.xpose.msra.mxu0 0.0
  %4583 = vmatpush.xpose.msra.mxu0 0.0
  %4584 = vmatpush.xpose.msra.mxu0 0.0
  %4585 = vmatpush.xpose.msra.mxu0 %v4568
  %4586 = vmatmul.f32.gmra.mxu0 %v4565
  %v4587 = vpop.f32.mrf.mxu0
  %v4588 = vadd.f32 0.0, %v4587
  %4589 = vdwg.mxu0
  %v4590 = vmul.f32 %v4562, 0.35355338
  %v4591 = vmul.f32 %v4588, 0.35355338
  %v4592 = vadd.f32 %v4590, %v2941
  %v4593 = vadd.f32 %v4591, %v2942
  %v4594 = vsel %vm226, %v4592, -inf
  %4595 = vmax.xlane.f32.xlu0 %v4594
  %v4596 = vpop.xlane.xlu0 %4595
  %v4597 = vsel %vm226, %v4593, -inf
  %4598 = vmax.xlane.f32.xlu0 %v4597
  %v4599 = vpop.xlane.xlu0 %4598
  %v4600 = vsub.f32 %v4592, %v4596
  %v4601 = vsub.f32 %v4593, %v4599
  %v4602 = vmul.f32 %v4600, 1.442695
  %v4603 = vpow.pop %v4602
  %v4604 = vmul.f32 %v4601, 1.442695
  %v4605 = vpow.pop %v4604
  %v4606 = vsel %vm226, %v4603, 0.0
  %4607 = vadd.xlane.f32.xlu0 %v4606
  %v4608 = vpop.xlane.xlu0 %4607
  %v4609 = vsel %vm226, %v4605, 0.0
  %4610 = vadd.xlane.f32.xlu0 %v4609
  %v4611 = vpop.xlane.xlu0 %4610
  %v4612 = vrcp.pop %v4608
  %v4613 = vrcp.pop %v4611
  %v4614 = vmul.f32 %v4603, %v4612
  %v4615 = vmul.f32 %v4605, %v4613
  %4616 = vrot.lane.b32.xlu0 %v4533, 96
  %v4617 = vpop.permute.xlu0 %4616
  %v4620 = vsel %vm226, %v4614, 0
  %4622 = vmatpush.msra.mxu0 0.0
  %4623 = vmatpush.msra.mxu0 0.0
  %4624 = vmatpush.msra.mxu0 0.0
  %4625 = vmatpush.msra.mxu0 0.0
  %4626 = vmatpush.msra.mxu0 0.0
  %4627 = vmatpush.msra.mxu0 0.0
  %4628 = vmatpush.msra.mxu0 0.0
  %4629 = vmatpush.msra.mxu0 0.0
  %4630 = vmatpush.msra.mxu0 0.0
  %4631 = vmatpush.msra.mxu0 0.0
  %4632 = vmatpush.msra.mxu0 0.0
  %4633 = vmatpush.msra.mxu0 0.0
  %4634 = vmatpush.msra.mxu0 0.0
  %4635 = vmatpush.msra.mxu0 0.0
  %4636 = vmatpush.msra.mxu0 0.0
  %4637 = vmatpush.msra.mxu0 %v4617
  %4638 = vmatmul.f32.gmra.mxu0 %v4620
  %v4639 = vpop.f32.mrf.mxu0
  %v4640 = vadd.f32 0.0, %v4639
  %4641 = vdwg.mxu0
  %4642 = vrot.lane.b32.xlu0 %v4536, 96
  %v4643 = vpop.permute.xlu0 %4642
  %v4646 = vsel %vm226, %v4615, 0
  %4648 = vmatpush.msra.mxu0 0.0
  %4649 = vmatpush.msra.mxu0 0.0
  %4650 = vmatpush.msra.mxu0 0.0
  %4651 = vmatpush.msra.mxu0 0.0
  %4652 = vmatpush.msra.mxu0 0.0
  %4653 = vmatpush.msra.mxu0 0.0
  %4654 = vmatpush.msra.mxu0 0.0
  %4655 = vmatpush.msra.mxu0 0.0
  %4656 = vmatpush.msra.mxu0 0.0
  %4657 = vmatpush.msra.mxu0 0.0
  %4658 = vmatpush.msra.mxu0 0.0
  %4659 = vmatpush.msra.mxu0 0.0
  %4660 = vmatpush.msra.mxu0 0.0
  %4661 = vmatpush.msra.mxu0 0.0
  %4662 = vmatpush.msra.mxu0 0.0
  %4663 = vmatpush.msra.mxu0 %v4643
  %4664 = vmatmul.f32.gmra.mxu0 %v4646
  %v4665 = vpop.f32.mrf.mxu0
  %v4666 = vadd.f32 0.0, %v4665
  %4667 = vdwg.mxu0
  %4668 = vrot.lane.b32.xlu0 %v4500, 120
  %v4669 = vpop.permute.xlu0 %4668
  %4670 = vrot.lane.b32.xlu0 %v4533, 120
  %v4671 = vpop.permute.xlu0 %4670
  %v4672 = vsel %vm226, %v4669, 0
  %v4674 = vsel %vm226, %v4671, 0
  %4676 = vmatpush.xpose.msra.mxu0 0.0
  %4677 = vmatpush.xpose.msra.mxu0 0.0
  %4678 = vmatpush.xpose.msra.mxu0 0.0
  %4679 = vmatpush.xpose.msra.mxu0 0.0
  %4680 = vmatpush.xpose.msra.mxu0 0.0
  %4681 = vmatpush.xpose.msra.mxu0 0.0
  %4682 = vmatpush.xpose.msra.mxu0 0.0
  %4683 = vmatpush.xpose.msra.mxu0 0.0
  %4684 = vmatpush.xpose.msra.mxu0 0.0
  %4685 = vmatpush.xpose.msra.mxu0 0.0
  %4686 = vmatpush.xpose.msra.mxu0 0.0
  %4687 = vmatpush.xpose.msra.mxu0 0.0
  %4688 = vmatpush.xpose.msra.mxu0 0.0
  %4689 = vmatpush.xpose.msra.mxu0 0.0
  %4690 = vmatpush.xpose.msra.mxu0 0.0
  %4691 = vmatpush.xpose.msra.mxu0 %v4674
  %4692 = vmatmul.f32.gmra.mxu0 %v4672
  %v4693 = vpop.f32.mrf.mxu0
  %v4694 = vadd.f32 0.0, %v4693
  %4695 = vdwg.mxu0
  %4696 = vrot.lane.b32.xlu0 %v4503, 120
  %v4697 = vpop.permute.xlu0 %4696
  %4698 = vrot.lane.b32.xlu0 %v4536, 120
  %v4699 = vpop.permute.xlu0 %4698
  %v4700 = vsel %vm226, %v4697, 0
  %v4702 = vsel %vm226, %v4699, 0
  %4704 = vmatpush.xpose.msra.mxu0 0.0
  %4705 = vmatpush.xpose.msra.mxu0 0.0
  %4706 = vmatpush.xpose.msra.mxu0 0.0
  %4707 = vmatpush.xpose.msra.mxu0 0.0
  %4708 = vmatpush.xpose.msra.mxu0 0.0
  %4709 = vmatpush.xpose.msra.mxu0 0.0
  %4710 = vmatpush.xpose.msra.mxu0 0.0
  %4711 = vmatpush.xpose.msra.mxu0 0.0
  %4712 = vmatpush.xpose.msra.mxu0 0.0
  %4713 = vmatpush.xpose.msra.mxu0 0.0
  %4714 = vmatpush.xpose.msra.mxu0 0.0
  %4715 = vmatpush.xpose.msra.mxu0 0.0
  %4716 = vmatpush.xpose.msra.mxu0 0.0
  %4717 = vmatpush.xpose.msra.mxu0 0.0
  %4718 = vmatpush.xpose.msra.mxu0 0.0
  %4719 = vmatpush.xpose.msra.mxu0 %v4702
  %4720 = vmatmul.f32.gmra.mxu0 %v4700
  %v4721 = vpop.f32.mrf.mxu0
  %v4722 = vadd.f32 0.0, %v4721
  %4723 = vdwg.mxu0
  %v4724 = vmul.f32 %v4694, 0.35355338
  %v4725 = vmul.f32 %v4722, 0.35355338
  %v4726 = vadd.f32 %v4724, %v2941
  %v4727 = vadd.f32 %v4725, %v2942
  %v4728 = vsel %vm226, %v4726, -inf
  %4729 = vmax.xlane.f32.xlu0 %v4728
  %v4730 = vpop.xlane.xlu0 %4729
  %v4731 = vsel %vm226, %v4727, -inf
  %4732 = vmax.xlane.f32.xlu0 %v4731
  %v4733 = vpop.xlane.xlu0 %4732
  %v4734 = vsub.f32 %v4726, %v4730
  %v4735 = vsub.f32 %v4727, %v4733
  %v4736 = vmul.f32 %v4734, 1.442695
  %v4737 = vpow.pop %v4736
  %v4738 = vmul.f32 %v4735, 1.442695
  %v4739 = vpow.pop %v4738
  %v4740 = vsel %vm226, %v4737, 0.0
  %4741 = vadd.xlane.f32.xlu0 %v4740
  %v4742 = vpop.xlane.xlu0 %4741
  %v4743 = vsel %vm226, %v4739, 0.0
  %4744 = vadd.xlane.f32.xlu0 %v4743
  %v4745 = vpop.xlane.xlu0 %4744
  %v4746 = vrcp.pop %v4742
  %v4747 = vrcp.pop %v4745
  %v4748 = vmul.f32 %v4737, %v4746
  %v4749 = vmul.f32 %v4739, %v4747
  %4750 = vrot.lane.b32.xlu0 %v4533, 88
  %v4751 = vpop.permute.xlu0 %4750
  %v4754 = vsel %vm226, %v4748, 0
  %4756 = vmatpush.msra.mxu0 0.0
  %4757 = vmatpush.msra.mxu0 0.0
  %4758 = vmatpush.msra.mxu0 0.0
  %4759 = vmatpush.msra.mxu0 0.0
  %4760 = vmatpush.msra.mxu0 0.0
  %4761 = vmatpush.msra.mxu0 0.0
  %4762 = vmatpush.msra.mxu0 0.0
  %4763 = vmatpush.msra.mxu0 0.0
  %4764 = vmatpush.msra.mxu0 0.0
  %4765 = vmatpush.msra.mxu0 0.0
  %4766 = vmatpush.msra.mxu0 0.0
  %4767 = vmatpush.msra.mxu0 0.0
  %4768 = vmatpush.msra.mxu0 0.0
  %4769 = vmatpush.msra.mxu0 0.0
  %4770 = vmatpush.msra.mxu0 0.0
  %4771 = vmatpush.msra.mxu0 %v4751
  %4772 = vmatmul.f32.gmra.mxu0 %v4754
  %v4773 = vpop.f32.mrf.mxu0
  %v4774 = vadd.f32 0.0, %v4773
  %4775 = vdwg.mxu0
  %4776 = vrot.lane.b32.xlu0 %v4536, 88
  %v4777 = vpop.permute.xlu0 %4776
  %v4780 = vsel %vm226, %v4749, 0
  %4782 = vmatpush.msra.mxu0 0.0
  %4783 = vmatpush.msra.mxu0 0.0
  %4784 = vmatpush.msra.mxu0 0.0
  %4785 = vmatpush.msra.mxu0 0.0
  %4786 = vmatpush.msra.mxu0 0.0
  %4787 = vmatpush.msra.mxu0 0.0
  %4788 = vmatpush.msra.mxu0 0.0
  %4789 = vmatpush.msra.mxu0 0.0
  %4790 = vmatpush.msra.mxu0 0.0
  %4791 = vmatpush.msra.mxu0 0.0
  %4792 = vmatpush.msra.mxu0 0.0
  %4793 = vmatpush.msra.mxu0 0.0
  %4794 = vmatpush.msra.mxu0 0.0
  %4795 = vmatpush.msra.mxu0 0.0
  %4796 = vmatpush.msra.mxu0 0.0
  %4797 = vmatpush.msra.mxu0 %v4777
  %4798 = vmatmul.f32.gmra.mxu0 %v4780
  %v4799 = vpop.f32.mrf.mxu0
  %v4800 = vadd.f32 0.0, %v4799
  %4801 = vdwg.mxu0
  %4802 = vrot.lane.b32.xlu0 %v4500, 112
  %v4803 = vpop.permute.xlu0 %4802
  %4804 = vrot.lane.b32.xlu0 %v4533, 112
  %v4805 = vpop.permute.xlu0 %4804
  %v4806 = vsel %vm226, %v4803, 0
  %v4808 = vsel %vm226, %v4805, 0
  %4810 = vmatpush.xpose.msra.mxu0 0.0
  %4811 = vmatpush.xpose.msra.mxu0 0.0
  %4812 = vmatpush.xpose.msra.mxu0 0.0
  %4813 = vmatpush.xpose.msra.mxu0 0.0
  %4814 = vmatpush.xpose.msra.mxu0 0.0
  %4815 = vmatpush.xpose.msra.mxu0 0.0
  %4816 = vmatpush.xpose.msra.mxu0 0.0
  %4817 = vmatpush.xpose.msra.mxu0 0.0
  %4818 = vmatpush.xpose.msra.mxu0 0.0
  %4819 = vmatpush.xpose.msra.mxu0 0.0
  %4820 = vmatpush.xpose.msra.mxu0 0.0
  %4821 = vmatpush.xpose.msra.mxu0 0.0
  %4822 = vmatpush.xpose.msra.mxu0 0.0
  %4823 = vmatpush.xpose.msra.mxu0 0.0
  %4824 = vmatpush.xpose.msra.mxu0 0.0
  %4825 = vmatpush.xpose.msra.mxu0 %v4808
  %4826 = vmatmul.f32.gmra.mxu0 %v4806
  %v4827 = vpop.f32.mrf.mxu0
  %v4828 = vadd.f32 0.0, %v4827
  %4829 = vdwg.mxu0
  %4830 = vrot.lane.b32.xlu0 %v4503, 112
  %v4831 = vpop.permute.xlu0 %4830
  %4832 = vrot.lane.b32.xlu0 %v4536, 112
  %v4833 = vpop.permute.xlu0 %4832
  %v4834 = vsel %vm226, %v4831, 0
  %v4836 = vsel %vm226, %v4833, 0
  %4838 = vmatpush.xpose.msra.mxu0 0.0
  %4839 = vmatpush.xpose.msra.mxu0 0.0
  %4840 = vmatpush.xpose.msra.mxu0 0.0
  %4841 = vmatpush.xpose.msra.mxu0 0.0
  %4842 = vmatpush.xpose.msra.mxu0 0.0
  %4843 = vmatpush.xpose.msra.mxu0 0.0
  %4844 = vmatpush.xpose.msra.mxu0 0.0
  %4845 = vmatpush.xpose.msra.mxu0 0.0
  %4846 = vmatpush.xpose.msra.mxu0 0.0
  %4847 = vmatpush.xpose.msra.mxu0 0.0
  %4848 = vmatpush.xpose.msra.mxu0 0.0
  %4849 = vmatpush.xpose.msra.mxu0 0.0
  %4850 = vmatpush.xpose.msra.mxu0 0.0
  %4851 = vmatpush.xpose.msra.mxu0 0.0
  %4852 = vmatpush.xpose.msra.mxu0 0.0
  %4853 = vmatpush.xpose.msra.mxu0 %v4836
  %4854 = vmatmul.f32.gmra.mxu0 %v4834
  %v4855 = vpop.f32.mrf.mxu0
  %v4856 = vadd.f32 0.0, %v4855
  %4857 = vdwg.mxu0
  %v4858 = vmul.f32 %v4828, 0.35355338
  %v4859 = vmul.f32 %v4856, 0.35355338
  %v4860 = vadd.f32 %v4858, %v2941
  %v4861 = vadd.f32 %v4859, %v2942
  %v4862 = vsel %vm226, %v4860, -inf
  %4863 = vmax.xlane.f32.xlu0 %v4862
  %v4864 = vpop.xlane.xlu0 %4863
  %v4865 = vsel %vm226, %v4861, -inf
  %4866 = vmax.xlane.f32.xlu0 %v4865
  %v4867 = vpop.xlane.xlu0 %4866
  %v4868 = vsub.f32 %v4860, %v4864
  %v4869 = vsub.f32 %v4861, %v4867
  %v4870 = vmul.f32 %v4868, 1.442695
  %v4871 = vpow.pop %v4870
  %v4872 = vmul.f32 %v4869, 1.442695
  %v4873 = vpow.pop %v4872
  %v4874 = vsel %vm226, %v4871, 0.0
  %4875 = vadd.xlane.f32.xlu0 %v4874
  %v4876 = vpop.xlane.xlu0 %4875
  %v4877 = vsel %vm226, %v4873, 0.0
  %4878 = vadd.xlane.f32.xlu0 %v4877
  %v4879 = vpop.xlane.xlu0 %4878
  %v4880 = vrcp.pop %v4876
  %v4881 = vrcp.pop %v4879
  %v4882 = vmul.f32 %v4871, %v4880
  %v4883 = vmul.f32 %v4873, %v4881
  %4884 = vrot.lane.b32.xlu0 %v4533, 80
  %v4885 = vpop.permute.xlu0 %4884
  %v4888 = vsel %vm226, %v4882, 0
  %4890 = vmatpush.msra.mxu0 0.0
  %4891 = vmatpush.msra.mxu0 0.0
  %4892 = vmatpush.msra.mxu0 0.0
  %4893 = vmatpush.msra.mxu0 0.0
  %4894 = vmatpush.msra.mxu0 0.0
  %4895 = vmatpush.msra.mxu0 0.0
  %4896 = vmatpush.msra.mxu0 0.0
  %4897 = vmatpush.msra.mxu0 0.0
  %4898 = vmatpush.msra.mxu0 0.0
  %4899 = vmatpush.msra.mxu0 0.0
  %4900 = vmatpush.msra.mxu0 0.0
  %4901 = vmatpush.msra.mxu0 0.0
  %4902 = vmatpush.msra.mxu0 0.0
  %4903 = vmatpush.msra.mxu0 0.0
  %4904 = vmatpush.msra.mxu0 0.0
  %4905 = vmatpush.msra.mxu0 %v4885
  %4906 = vmatmul.f32.gmra.mxu0 %v4888
  %v4907 = vpop.f32.mrf.mxu0
  %v4908 = vadd.f32 0.0, %v4907
  %4909 = vdwg.mxu0
  %4910 = vrot.lane.b32.xlu0 %v4536, 80
  %v4911 = vpop.permute.xlu0 %4910
  %v4914 = vsel %vm226, %v4883, 0
  %4916 = vmatpush.msra.mxu0 0.0
  %4917 = vmatpush.msra.mxu0 0.0
  %4918 = vmatpush.msra.mxu0 0.0
  %4919 = vmatpush.msra.mxu0 0.0
  %4920 = vmatpush.msra.mxu0 0.0
  %4921 = vmatpush.msra.mxu0 0.0
  %4922 = vmatpush.msra.mxu0 0.0
  %4923 = vmatpush.msra.mxu0 0.0
  %4924 = vmatpush.msra.mxu0 0.0
  %4925 = vmatpush.msra.mxu0 0.0
  %4926 = vmatpush.msra.mxu0 0.0
  %4927 = vmatpush.msra.mxu0 0.0
  %4928 = vmatpush.msra.mxu0 0.0
  %4929 = vmatpush.msra.mxu0 0.0
  %4930 = vmatpush.msra.mxu0 0.0
  %4931 = vmatpush.msra.mxu0 %v4911
  %4932 = vmatmul.f32.gmra.mxu0 %v4914
  %v4933 = vpop.f32.mrf.mxu0
  %v4934 = vadd.f32 0.0, %v4933
  %4935 = vdwg.mxu0
  %4936 = vrot.lane.b32.xlu0 %v4500, 104
  %v4937 = vpop.permute.xlu0 %4936
  %4938 = vrot.lane.b32.xlu0 %v4533, 104
  %v4939 = vpop.permute.xlu0 %4938
  %v4940 = vsel %vm226, %v4937, 0
  %v4942 = vsel %vm226, %v4939, 0
  %4944 = vmatpush.xpose.msra.mxu0 0.0
  %4945 = vmatpush.xpose.msra.mxu0 0.0
  %4946 = vmatpush.xpose.msra.mxu0 0.0
  %4947 = vmatpush.xpose.msra.mxu0 0.0
  %4948 = vmatpush.xpose.msra.mxu0 0.0
  %4949 = vmatpush.xpose.msra.mxu0 0.0
  %4950 = vmatpush.xpose.msra.mxu0 0.0
  %4951 = vmatpush.xpose.msra.mxu0 0.0
  %4952 = vmatpush.xpose.msra.mxu0 0.0
  %4953 = vmatpush.xpose.msra.mxu0 0.0
  %4954 = vmatpush.xpose.msra.mxu0 0.0
  %4955 = vmatpush.xpose.msra.mxu0 0.0
  %4956 = vmatpush.xpose.msra.mxu0 0.0
  %4957 = vmatpush.xpose.msra.mxu0 0.0
  %4958 = vmatpush.xpose.msra.mxu0 0.0
  %4959 = vmatpush.xpose.msra.mxu0 %v4942
  %4960 = vmatmul.f32.gmra.mxu0 %v4940
  %v4961 = vpop.f32.mrf.mxu0
  %v4962 = vadd.f32 0.0, %v4961
  %4963 = vdwg.mxu0
  %4964 = vrot.lane.b32.xlu0 %v4503, 104
  %v4965 = vpop.permute.xlu0 %4964
  %4966 = vrot.lane.b32.xlu0 %v4536, 104
  %v4967 = vpop.permute.xlu0 %4966
  %v4968 = vsel %vm226, %v4965, 0
  %v4970 = vsel %vm226, %v4967, 0
  %4972 = vmatpush.xpose.msra.mxu0 0.0
  %4973 = vmatpush.xpose.msra.mxu0 0.0
  %4974 = vmatpush.xpose.msra.mxu0 0.0
  %4975 = vmatpush.xpose.msra.mxu0 0.0
  %4976 = vmatpush.xpose.msra.mxu0 0.0
  %4977 = vmatpush.xpose.msra.mxu0 0.0
  %4978 = vmatpush.xpose.msra.mxu0 0.0
  %4979 = vmatpush.xpose.msra.mxu0 0.0
  %4980 = vmatpush.xpose.msra.mxu0 0.0
  %4981 = vmatpush.xpose.msra.mxu0 0.0
  %4982 = vmatpush.xpose.msra.mxu0 0.0
  %4983 = vmatpush.xpose.msra.mxu0 0.0
  %4984 = vmatpush.xpose.msra.mxu0 0.0
  %4985 = vmatpush.xpose.msra.mxu0 0.0
  %4986 = vmatpush.xpose.msra.mxu0 0.0
  %4987 = vmatpush.xpose.msra.mxu0 %v4970
  %4988 = vmatmul.f32.gmra.mxu0 %v4968
  %v4989 = vpop.f32.mrf.mxu0
  %v4990 = vadd.f32 0.0, %v4989
  %4991 = vdwg.mxu0
  %v4992 = vmul.f32 %v4962, 0.35355338
  %v4993 = vmul.f32 %v4990, 0.35355338
  %v4994 = vadd.f32 %v4992, %v2941
  %v4995 = vadd.f32 %v4993, %v2942
  %v4996 = vsel %vm226, %v4994, -inf
  %4997 = vmax.xlane.f32.xlu0 %v4996
  %v4998 = vpop.xlane.xlu0 %4997
  %v4999 = vsel %vm226, %v4995, -inf
  %5000 = vmax.xlane.f32.xlu0 %v4999
  %v5001 = vpop.xlane.xlu0 %5000
  %v5002 = vsub.f32 %v4994, %v4998
  %v5003 = vsub.f32 %v4995, %v5001
  %v5004 = vmul.f32 %v5002, 1.442695
  %v5005 = vpow.pop %v5004
  %v5006 = vmul.f32 %v5003, 1.442695
  %v5007 = vpow.pop %v5006
  %v5008 = vsel %vm226, %v5005, 0.0
  %5009 = vadd.xlane.f32.xlu0 %v5008
  %v5010 = vpop.xlane.xlu0 %5009
  %v5011 = vsel %vm226, %v5007, 0.0
  %5012 = vadd.xlane.f32.xlu0 %v5011
  %v5013 = vpop.xlane.xlu0 %5012
  %v5014 = vrcp.pop %v5010
  %v5015 = vrcp.pop %v5013
  %v5016 = vmul.f32 %v5005, %v5014
  %v5017 = vmul.f32 %v5007, %v5015
  %5018 = vrot.lane.b32.xlu0 %v4533, 72
  %v5019 = vpop.permute.xlu0 %5018
  %v5022 = vsel %vm226, %v5016, 0
  %5024 = vmatpush.msra.mxu0 0.0
  %5025 = vmatpush.msra.mxu0 0.0
  %5026 = vmatpush.msra.mxu0 0.0
  %5027 = vmatpush.msra.mxu0 0.0
  %5028 = vmatpush.msra.mxu0 0.0
  %5029 = vmatpush.msra.mxu0 0.0
  %5030 = vmatpush.msra.mxu0 0.0
  %5031 = vmatpush.msra.mxu0 0.0
  %5032 = vmatpush.msra.mxu0 0.0
  %5033 = vmatpush.msra.mxu0 0.0
  %5034 = vmatpush.msra.mxu0 0.0
  %5035 = vmatpush.msra.mxu0 0.0
  %5036 = vmatpush.msra.mxu0 0.0
  %5037 = vmatpush.msra.mxu0 0.0
  %5038 = vmatpush.msra.mxu0 0.0
  %5039 = vmatpush.msra.mxu0 %v5019
  %5040 = vmatmul.f32.gmra.mxu0 %v5022
  %v5041 = vpop.f32.mrf.mxu0
  %v5042 = vadd.f32 0.0, %v5041
  %5043 = vdwg.mxu0
  %5044 = vrot.lane.b32.xlu0 %v4536, 72
  %v5045 = vpop.permute.xlu0 %5044
  %v5048 = vsel %vm226, %v5017, 0
  %5050 = vmatpush.msra.mxu0 0.0
  %5051 = vmatpush.msra.mxu0 0.0
  %5052 = vmatpush.msra.mxu0 0.0
  %5053 = vmatpush.msra.mxu0 0.0
  %5054 = vmatpush.msra.mxu0 0.0
  %5055 = vmatpush.msra.mxu0 0.0
  %5056 = vmatpush.msra.mxu0 0.0
  %5057 = vmatpush.msra.mxu0 0.0
  %5058 = vmatpush.msra.mxu0 0.0
  %5059 = vmatpush.msra.mxu0 0.0
  %5060 = vmatpush.msra.mxu0 0.0
  %5061 = vmatpush.msra.mxu0 0.0
  %5062 = vmatpush.msra.mxu0 0.0
  %5063 = vmatpush.msra.mxu0 0.0
  %5064 = vmatpush.msra.mxu0 0.0
  %5065 = vmatpush.msra.mxu0 %v5045
  %5066 = vmatmul.f32.gmra.mxu0 %v5048
  %v5067 = vpop.f32.mrf.mxu0
  %v5068 = vadd.f32 0.0, %v5067
  %5069 = vdwg.mxu0
  %5072 = vrot.lane.b32.xlu0 %v4774, 8
  %v5073 = vpop.permute.xlu0 %5072
  %5074 = vrot.lane.b32.xlu0 %v4800, 8
  %v5075 = vpop.permute.xlu0 %5074
  %5080 = vrot.lane.b32.xlu0 %v4908, 16
  %v5081 = vpop.permute.xlu0 %5080
  %5082 = vrot.lane.b32.xlu0 %v4934, 16
  %v5083 = vpop.permute.xlu0 %5082
  %5088 = vrot.lane.b32.xlu0 %v5042, 24
  %v5089 = vpop.permute.xlu0 %5088
  %5090 = vrot.lane.b32.xlu0 %v5068, 24
  %v5091 = vpop.permute.xlu0 %5090
  %v5094 = vsel %vm226, %v4640, %v5073
  %v5095 = vsel %vm226, %v4666, %v5075
  %v5096 = vsel %vm790, %v5094, %v5081
  %v5097 = vsel %vm790, %v5095, %v5083
  %v5098 = vsel %vm793, %v5096, %v5089
  %v5099 = vsel %vm793, %v5097, %v5091
  %s5100 = scalar_lea.vmem %s55, 32
  %v5101 = vld [vmem:[%s5100] sm:$0xff]
  %v5102 = vld [vmem:[%s5100 + $0x8] sm:$0xff]
  %v5103 = vld [vmem:[%s5100 + $0x10] sm:$0xff]
  %v5104 = vld [vmem:[%s5100 + $0x18] sm:$0xff]
  %s5105 = scalar_lea.vmem %s57, 1
  %v5106 = vld [vmem:[%s5105] sm:$0x1]
  %v5108 = vperm.slane %v5106, 0
  %v5111 = vsel %vm193, %v5098, 0
  %v5114 = vsel %vm193, %v5099, 0
  %5116 = vmatpush.msra.mxu0 0.0
  %5117 = vmatpush.msra.mxu0 0.0
  %5118 = vmatpush.msra.mxu0 0.0
  %5119 = vmatpush.msra.mxu0 0.0
  %5120 = vmatpush.msra.mxu0 0.0
  %5121 = vmatpush.msra.mxu0 0.0
  %5122 = vmatpush.msra.mxu0 0.0
  %5123 = vmatpush.msra.mxu0 0.0
  %5124 = vmatpush.msra.mxu0 0.0
  %5125 = vmatpush.msra.mxu0 0.0
  %5126 = vmatpush.msra.mxu0 0.0
  %5127 = vmatpush.msra.mxu0 0.0
  %5128 = vmatpush.msra.mxu0 %v5104
  %5129 = vmatpush.msra.mxu0 %v5103
  %5130 = vmatpush.msra.mxu0 %v5102
  %5131 = vmatpush.msra.mxu0 %v5101
  %5132 = vmatmul.f32.gmra.mxu0 %v5111
  %v5133 = vpop.f32.mrf.mxu0
  %v5134 = vadd.f32 %v5108, %v5133
  %5135 = vmatmul.f32.gmra.mxu0 %v5114
  %v5136 = vpop.f32.mrf.mxu0
  %v5137 = vadd.f32 %v5108, %v5136
  %5138 = vdwg.mxu0
  %v5139 = vadd.f32 %v4464, %v5134
  %v5140 = vadd.f32 %v4465, %v5137
  %s5141 = scalar_lea.vmem %s63, 1
  %v5142 = vld [vmem:[%s5141] sm:$0x1]
  %s5143 = scalar_lea.vmem %s65, 1
  %v5144 = vld [vmem:[%s5143] sm:$0x1]
  %v5145 = vsel %vm193, %v5139, 0.0
  %5146 = vadd.xlane.f32.xlu0 %v5145
  %v5147 = vpop.xlane.xlu0 %5146
  %v5148 = vsel %vm193, %v5140, 0.0
  %5149 = vadd.xlane.f32.xlu0 %v5148
  %v5150 = vpop.xlane.xlu0 %5149
  %v5151 = vmul.f32 %v5147, %v849
  %v5152 = vmul.f32 %v5150, %v849
  %v5153 = vsub.f32 %v5139, %v5151
  %v5154 = vsub.f32 %v5140, %v5152
  %v5155 = vmul.f32 %v5153, %v5153
  %v5156 = vmul.f32 %v5154, %v5154
  %v5157 = vsel %vm193, %v5155, 0.0
  %5158 = vadd.xlane.f32.xlu0 %v5157
  %v5159 = vpop.xlane.xlu0 %5158
  %v5160 = vsel %vm193, %v5156, 0.0
  %5161 = vadd.xlane.f32.xlu0 %v5160
  %v5162 = vpop.xlane.xlu0 %5161
  %v5163 = vmul.f32 %v5159, %v849
  %v5164 = vmul.f32 %v5162, %v849
  %v5165 = vadd.f32 %v5163, 1e-05
  %v5166 = vadd.f32 %v5164, 1e-05
  %v5167 = vrsqrt.pop %v5165
  %v5168 = vmul.f32 %v5167, %v5165
  %v5169 = vmul.f32 %v5168, %v5167
  %v5170 = vmul.f32 0.5, %v5169
  %v5171 = vsub.f32 1.5, %v5170
  %v5172 = vmul.f32 %v5167, %v5171
  %vm5173 = vweird.f32 %v5165
  %vm5174 = vweird.f32 %v5167
  %vm5175 = vmor %vm5173, %vm5174
  %v5176 = vsel %vm5175, %v5167, %v5172
  %v5177 = vrsqrt.pop %v5166
  %v5178 = vmul.f32 %v5177, %v5166
  %v5179 = vmul.f32 %v5178, %v5177
  %v5180 = vmul.f32 0.5, %v5179
  %v5181 = vsub.f32 1.5, %v5180
  %v5182 = vmul.f32 %v5177, %v5181
  %vm5183 = vweird.f32 %v5166
  %vm5184 = vweird.f32 %v5177
  %vm5185 = vmor %vm5183, %vm5184
  %v5186 = vsel %vm5185, %v5177, %v5182
  %v5187 = vmul.f32 %v5153, %v5176
  %v5188 = vmul.f32 %v5154, %v5186
  %v5190 = vperm.slane %v5142, 0
  %v5192 = vmul.f32 %v5187, %v5190
  %v5193 = vmul.f32 %v5188, %v5190
  %v5195 = vperm.slane %v5144, 0
  %v5197 = vadd.f32 %v5192, %v5195
  %v5198 = vadd.f32 %v5193, %v5195
  %s5199 = scalar_lea.vmem %s71, 32
  %v5200 = vld [vmem:[%s5199] sm:$0xff]
  %v5201 = vld [vmem:[%s5199 + $0x8] sm:$0xff]
  %v5202 = vld [vmem:[%s5199 + $0x10] sm:$0xff]
  %v5203 = vld [vmem:[%s5199 + $0x18] sm:$0xff]
  %s5204 = scalar_lea.vmem %s73, 1
  %v5205 = vld [vmem:[%s5204] sm:$0x1]
  %v5207 = vperm.slane %v5205, 0
  %v5210 = vsel %vm193, %v5197, 0
  %v5213 = vsel %vm193, %v5198, 0
  %5215 = vmatpush.msra.mxu0 0.0
  %5216 = vmatpush.msra.mxu0 0.0
  %5217 = vmatpush.msra.mxu0 0.0
  %5218 = vmatpush.msra.mxu0 0.0
  %5219 = vmatpush.msra.mxu0 0.0
  %5220 = vmatpush.msra.mxu0 0.0
  %5221 = vmatpush.msra.mxu0 0.0
  %5222 = vmatpush.msra.mxu0 0.0
  %5223 = vmatpush.msra.mxu0 0.0
  %5224 = vmatpush.msra.mxu0 0.0
  %5225 = vmatpush.msra.mxu0 0.0
  %5226 = vmatpush.msra.mxu0 0.0
  %5227 = vmatpush.msra.mxu0 %v5203
  %5228 = vmatpush.msra.mxu0 %v5202
  %5229 = vmatpush.msra.mxu0 %v5201
  %5230 = vmatpush.msra.mxu0 %v5200
  %5231 = vmatmul.f32.gmra.mxu0 %v5210
  %v5232 = vpop.f32.mrf.mxu0
  %v5233 = vadd.f32 %v5207, %v5232
  %5234 = vmatmul.f32.gmra.mxu0 %v5213
  %v5235 = vpop.f32.mrf.mxu0
  %v5236 = vadd.f32 %v5207, %v5235
  %5237 = vdwg.mxu0
  %v5238 = vmul.f32 %v5233, 0.5
  %v5239 = vmul.f32 %v5236, 0.5
  %v5240 = vmul.f32 %v5233, 0.70710677
  %v5241 = vmul.f32 %v5236, 0.70710677
  %vm5242 = vcmp.lt.f32.partialorder %v5240, 0.0
  %vm5243 = vcmp.lt.f32.partialorder %v5241, 0.0
  %v5244 = vsel %vm5242, -1.0, 1.0
  %v5245 = vsel %vm5243, -1.0, 1.0
  %v5246 = vand.u32 2147483647, %v5240
  %v5247 = vand.u32 2147483647, %v5241
  %v5248 = vmul.f32 %v5246, 0.3275911
  %v5249 = vmul.f32 %v5247, 0.3275911
  %v5250 = vadd.f32 %v5248, 1.0
  %v5251 = vadd.f32 %v5249, 1.0
  %v5252 = vrcp.pop %v5250
  %v5253 = vmul.f32 %v5250, %v5252
  %v5254 = vsub.f32 1.0, %v5253
  %v5255 = vmul.f32 %v5252, %v5254
  %v5256 = vadd.f32 %v5252, %v5255
  %vm5257 = vweird.f32 %v5250
  %vm5258 = vweird.f32 %v5252
  %vm5259 = vmor %vm5257, %vm5258
  %v5260 = vsel %vm5259, %v5252, %v5256
  %v5261 = vand.u32 2147483647, %v5250
  %vm5262 = vcmp.eq.f32.partialorder %v5261, 8.507059e+37
  %v5263 = vand.u32 %v5250, 2147483648
  %v5264 = vor.u32 1.1754944e-38, %v5263
  %v5265 = vsel %vm5262, %v5264, %v5260
  %v5266 = vmul.f32 1.0, %v5265
  %v5267 = vrcp.pop %v5251
  %v5268 = vmul.f32 %v5251, %v5267
  %v5269 = vsub.f32 1.0, %v5268
  %v5270 = vmul.f32 %v5267, %v5269
  %v5271 = vadd.f32 %v5267, %v5270
  %vm5272 = vweird.f32 %v5251
  %vm5273 = vweird.f32 %v5267
  %vm5274 = vmor %vm5272, %vm5273
  %v5275 = vsel %vm5274, %v5267, %v5271
  %v5276 = vand.u32 2147483647, %v5251
  %vm5277 = vcmp.eq.f32.partialorder %v5276, 8.507059e+37
  %v5278 = vand.u32 %v5251, 2147483648
  %v5279 = vor.u32 1.1754944e-38, %v5278
  %v5280 = vsel %vm5277, %v5279, %v5275
  %v5281 = vmul.f32 1.0, %v5280
  %v5282 = vmul.f32 %v5266, 1.0614054
  %v5283 = vmul.f32 %v5281, 1.0614054
  %v5284 = vadd.f32 %v5282, -1.4531521
  %v5285 = vadd.f32 %v5283, -1.4531521
  %v5286 = vmul.f32 %v5284, %v5266
  %v5287 = vmul.f32 %v5285, %v5281
  %v5288 = vadd.f32 %v5286, 1.4214138
  %v5289 = vadd.f32 %v5287, 1.4214138
  %v5290 = vmul.f32 %v5288, %v5266
  %v5291 = vmul.f32 %v5289, %v5281
  %v5292 = vadd.f32 %v5290, -0.28449672
  %v5293 = vadd.f32 %v5291, -0.28449672
  %v5294 = vmul.f32 %v5292, %v5266
  %v5295 = vmul.f32 %v5293, %v5281
  %v5296 = vadd.f32 %v5294, 0.2548296
  %v5297 = vadd.f32 %v5295, 0.2548296
  %v5298 = vmul.f32 %v5296, %v5266
  %v5299 = vmul.f32 %v5297, %v5281
  %v5300 = vsub.f32 0.0, %v5246
  %v5301 = vsub.f32 0.0, %v5247
  %v5302 = vmul.f32 %v5300, %v5246
  %v5303 = vmul.f32 %v5301, %v5247
  %v5304 = vmul.f32 %v5302, 1.442695
  %v5305 = vpow.pop %v5304
  %v5306 = vmul.f32 %v5303, 1.442695
  %v5307 = vpow.pop %v5306
  %v5308 = vmul.f32 %v5298, %v5305
  %v5309 = vmul.f32 %v5299, %v5307
  %v5310 = vsub.f32 1.0, %v5308
  %v5311 = vsub.f32 1.0, %v5309
  %v5312 = vmul.f32 %v5244, %v5310
  %v5313 = vmul.f32 %v5245, %v5311
  %v5314 = vadd.f32 %v5312, 1.0
  %v5315 = vadd.f32 %v5313, 1.0
  %v5316 = vmul.f32 %v5238, %v5314
  %v5317 = vmul.f32 %v5239, %v5315
  %s5318 = scalar_lea.vmem %s75, 64
  %v5319 = vld [vmem:[%s5318] sm:$0xff]
  %v5320 = vld [vmem:[%s5318 + $0x8] sm:$0xff]
  %v5321 = vld [vmem:[%s5318 + $0x10] sm:$0xff]
  %v5322 = vld [vmem:[%s5318 + $0x18] sm:$0xff]
  %v5323 = vld [vmem:[%s5318 + $0x20] sm:$0xff]
  %v5324 = vld [vmem:[%s5318 + $0x28] sm:$0xff]
  %v5325 = vld [vmem:[%s5318 + $0x30] sm:$0xff]
  %v5326 = vld [vmem:[%s5318 + $0x38] sm:$0xff]
  %s5327 = scalar_lea.vmem %s77, 1
  %v5328 = vld [vmem:[%s5327] sm:$0x1]
  %v5330 = vperm.slane %v5328, 0
  %v5333 = vsel %vm1027, %v5316, 0
  %v5336 = vsel %vm1027, %v5317, 0
  %5338 = vmatpush.msra.mxu0 0.0
  %5339 = vmatpush.msra.mxu0 0.0
  %5340 = vmatpush.msra.mxu0 0.0
  %5341 = vmatpush.msra.mxu0 0.0
  %5342 = vmatpush.msra.mxu0 0.0
  %5343 = vmatpush.msra.mxu0 0.0
  %5344 = vmatpush.msra.mxu0 0.0
  %5345 = vmatpush.msra.mxu0 0.0
  %5346 = vmatpush.msra.mxu0 %v5326
  %5347 = vmatpush.msra.mxu0 %v5325
  %5348 = vmatpush.msra.mxu0 %v5324
  %5349 = vmatpush.msra.mxu0 %v5323
  %5350 = vmatpush.msra.mxu0 %v5322
  %5351 = vmatpush.msra.mxu0 %v5321
  %5352 = vmatpush.msra.mxu0 %v5320
  %5353 = vmatpush.msra.mxu0 %v5319
  %5354 = vmatmul.f32.gmra.mxu0 %v5333
  %v5355 = vpop.f32.mrf.mxu0
  %v5356 = vadd.f32 %v5330, %v5355
  %5357 = vmatmul.f32.gmra.mxu0 %v5336
  %v5358 = vpop.f32.mrf.mxu0
  %v5359 = vadd.f32 %v5330, %v5358
  %5360 = vdwg.mxu0
  %v5361 = vadd.f32 %v5197, %v5356
  %v5362 = vadd.f32 %v5198, %v5359
  %s5363 = scalar_lea.vmem %s67, 1
  %v5364 = vld [vmem:[%s5363] sm:$0x1]
  %s5365 = scalar_lea.vmem %s69, 1
  %v5366 = vld [vmem:[%s5365] sm:$0x1]
  %v5367 = vsel %vm193, %v5361, 0.0
  %5368 = vadd.xlane.f32.xlu0 %v5367
  %v5369 = vpop.xlane.xlu0 %5368
  %v5370 = vsel %vm193, %v5362, 0.0
  %5371 = vadd.xlane.f32.xlu0 %v5370
  %v5372 = vpop.xlane.xlu0 %5371
  %v5373 = vmul.f32 %v5369, %v849
  %v5374 = vmul.f32 %v5372, %v849
  %v5375 = vsub.f32 %v5361, %v5373
  %v5376 = vsub.f32 %v5362, %v5374
  %v5377 = vmul.f32 %v5375, %v5375
  %v5378 = vmul.f32 %v5376, %v5376
  %v5379 = vsel %vm193, %v5377, 0.0
  %5380 = vadd.xlane.f32.xlu0 %v5379
  %v5381 = vpop.xlane.xlu0 %5380
  %v5382 = vsel %vm193, %v5378, 0.0
  %5383 = vadd.xlane.f32.xlu0 %v5382
  %v5384 = vpop.xlane.xlu0 %5383
  %v5385 = vmul.f32 %v5381, %v849
  %v5386 = vmul.f32 %v5384, %v849
  %v5387 = vadd.f32 %v5385, 1e-05
  %v5388 = vadd.f32 %v5386, 1e-05
  %v5389 = vrsqrt.pop %v5387
  %v5390 = vmul.f32 %v5389, %v5387
  %v5391 = vmul.f32 %v5390, %v5389
  %v5392 = vmul.f32 0.5, %v5391
  %v5393 = vsub.f32 1.5, %v5392
  %v5394 = vmul.f32 %v5389, %v5393
  %vm5395 = vweird.f32 %v5387
  %vm5396 = vweird.f32 %v5389
  %vm5397 = vmor %vm5395, %vm5396
  %v5398 = vsel %vm5397, %v5389, %v5394
  %v5399 = vrsqrt.pop %v5388
  %v5400 = vmul.f32 %v5399, %v5388
  %v5401 = vmul.f32 %v5400, %v5399
  %v5402 = vmul.f32 0.5, %v5401
  %v5403 = vsub.f32 1.5, %v5402
  %v5404 = vmul.f32 %v5399, %v5403
  %vm5405 = vweird.f32 %v5388
  %vm5406 = vweird.f32 %v5399
  %vm5407 = vmor %vm5405, %vm5406
  %v5408 = vsel %vm5407, %v5399, %v5404
  %v5409 = vmul.f32 %v5375, %v5398
  %v5410 = vmul.f32 %v5376, %v5408
  %v5412 = vperm.slane %v5364, 0
  %v5414 = vmul.f32 %v5409, %v5412
  %v5415 = vmul.f32 %v5410, %v5412
  %v5417 = vperm.slane %v5366, 0
  %v5419 = vadd.f32 %v5414, %v5417
  %v5420 = vadd.f32 %v5415, %v5417
  %v5421 = vld [vmem:[%s79] sm:$0x1]
  %v5422 = vld [vmem:[%s81] sm:$0x1]
  %v5423 = vsel %vm193, %v5419, 0.0
  %5424 = vadd.xlane.f32.xlu0 %v5423
  %v5425 = vpop.xlane.xlu0 %5424
  %v5426 = vsel %vm193, %v5420, 0.0
  %5427 = vadd.xlane.f32.xlu0 %v5426
  %v5428 = vpop.xlane.xlu0 %5427
  %v5429 = vmul.f32 %v5425, %v849
  %v5430 = vmul.f32 %v5428, %v849
  %v5431 = vsub.f32 %v5419, %v5429
  %v5432 = vsub.f32 %v5420, %v5430
  %v5433 = vmul.f32 %v5431, %v5431
  %v5434 = vmul.f32 %v5432, %v5432
  %v5435 = vsel %vm193, %v5433, 0.0
  %5436 = vadd.xlane.f32.xlu0 %v5435
  %v5437 = vpop.xlane.xlu0 %5436
  %v5438 = vsel %vm193, %v5434, 0.0
  %5439 = vadd.xlane.f32.xlu0 %v5438
  %v5440 = vpop.xlane.xlu0 %5439
  %v5441 = vmul.f32 %v5437, %v849
  %v5442 = vmul.f32 %v5440, %v849
  %v5443 = vadd.f32 %v5441, 1e-05
  %v5444 = vadd.f32 %v5442, 1e-05
  %v5445 = vrsqrt.pop %v5443
  %v5446 = vmul.f32 %v5445, %v5443
  %v5447 = vmul.f32 %v5446, %v5445
  %v5448 = vmul.f32 0.5, %v5447
  %v5449 = vsub.f32 1.5, %v5448
  %v5450 = vmul.f32 %v5445, %v5449
  %vm5451 = vweird.f32 %v5443
  %vm5452 = vweird.f32 %v5445
  %vm5453 = vmor %vm5451, %vm5452
  %v5454 = vsel %vm5453, %v5445, %v5450
  %v5455 = vrsqrt.pop %v5444
  %v5456 = vmul.f32 %v5455, %v5444
  %v5457 = vmul.f32 %v5456, %v5455
  %v5458 = vmul.f32 0.5, %v5457
  %v5459 = vsub.f32 1.5, %v5458
  %v5460 = vmul.f32 %v5455, %v5459
  %vm5461 = vweird.f32 %v5444
  %vm5462 = vweird.f32 %v5455
  %vm5463 = vmor %vm5461, %vm5462
  %v5464 = vsel %vm5463, %v5455, %v5460
  %v5465 = vmul.f32 %v5431, %v5454
  %v5466 = vmul.f32 %v5432, %v5464
  %v5468 = vperm.slane %v5421, 0
  %v5470 = vmul.f32 %v5465, %v5468
  %v5471 = vmul.f32 %v5466, %v5468
  %v5473 = vperm.slane %v5422, 0
  %v5475 = vadd.f32 %v5470, %v5473
  %v5476 = vadd.f32 %v5471, %v5473
  %v5477 = vld [vmem:[%s83] sm:$0xff]
  %v5478 = vld [vmem:[%s83 + $0x8] sm:$0xff]
  %v5479 = vld [vmem:[%s83 + $0x10] sm:$0xff]
  %v5480 = vld [vmem:[%s83 + $0x18] sm:$0xff]
  %v5481 = vld [vmem:[%s85] sm:$0x1]
  %v5483 = vperm.slane %v5481, 0
  %v5486 = vsel %vm193, %v5475, 0
  %v5489 = vsel %vm193, %v5476, 0
  %5491 = vmatpush.msra.mxu0 0.0
  %5492 = vmatpush.msra.mxu0 0.0
  %5493 = vmatpush.msra.mxu0 0.0
  %5494 = vmatpush.msra.mxu0 0.0
  %5495 = vmatpush.msra.mxu0 0.0
  %5496 = vmatpush.msra.mxu0 0.0
  %5497 = vmatpush.msra.mxu0 0.0
  %5498 = vmatpush.msra.mxu0 0.0
  %5499 = vmatpush.msra.mxu0 0.0
  %5500 = vmatpush.msra.mxu0 0.0
  %5501 = vmatpush.msra.mxu0 0.0
  %5502 = vmatpush.msra.mxu0 0.0
  %5503 = vmatpush.msra.mxu0 %v5480
  %5504 = vmatpush.msra.mxu0 %v5479
  %5505 = vmatpush.msra.mxu0 %v5478
  %5506 = vmatpush.msra.mxu0 %v5477
  %5507 = vmatmul.f32.gmra.mxu0 %v5486
  %v5508 = vpop.f32.mrf.mxu0
  %v5509 = vadd.f32 %v5483, %v5508
  %5510 = vmatmul.f32.gmra.mxu0 %v5489
  %v5511 = vpop.f32.mrf.mxu0
  %v5512 = vadd.f32 %v5483, %v5511
  %5513 = vdwg.mxu0
  %v5514 = vsel %vm790, %v5509, -inf
  %5515 = vmax.xlane.f32.xlu0 %v5514
  %v5516 = vpop.xlane.xlu0 %5515
  %v5517 = vsel %vm790, %v5512, -inf
  %5518 = vmax.xlane.f32.xlu0 %v5517
  %v5519 = vpop.xlane.xlu0 %5518
  %v5520 = vsub.f32 %v5509, %v5516
  %v5521 = vsub.f32 %v5512, %v5519
  %v5522 = vmul.f32 %v5520, 1.442695
  %v5523 = vpow.pop %v5522
  %v5524 = vmul.f32 %v5521, 1.442695
  %v5525 = vpow.pop %v5524
  %v5526 = vsel %vm790, %v5523, 0.0
  %5527 = vadd.xlane.f32.xlu0 %v5526
  %v5528 = vpop.xlane.xlu0 %5527
  %v5529 = vsel %vm790, %v5525, 0.0
  %5530 = vadd.xlane.f32.xlu0 %v5529
  %v5531 = vpop.xlane.xlu0 %5530
  %v5532 = vlog2.pop %v5528
  %v5533 = vmul.f32 %v5532, 0.6931472
  %v5534 = vlog2.pop %v5531
  %v5535 = vmul.f32 %v5534, 0.6931472
  %v5536 = vsub.f32 %v5520, %v5533
  %v5537 = vsub.f32 %v5521, %v5535
  %v5538 = vcvt.s32.f32 %v2100
  %v5539 = vsel %vm790, %v5536, -inf
  %5540 = vmax.xlane.f32.xlu0 %v5539
  %v5541 = vpop.xlane.xlu0 %5540
  %v5542 = vsel %vm790, %v5537, -inf
  %5543 = vmax.xlane.f32.xlu0 %v5542
  %v5544 = vpop.xlane.xlu0 %5543
  %vm5545 = vcmp.ge.f32.partialorder %v5536, %v5541
  %vm5546 = vcmp.ge.f32.partialorder %v5537, %v5544
  %v5547 = vsel %vm5545, %v5538, 16.0
  %v5548 = vsel %vm5546, %v5538, 16.0
  %v5549 = vsel %vm790, %v5547, inf
  %5550 = vmin.xlane.f32.xlu0 %v5549
  %v5551 = vpop.xlane.xlu0 %5550
  %v5552 = vsel %vm790, %v5548, inf
  %5553 = vmin.xlane.f32.xlu0 %v5552
  %v5554 = vpop.xlane.xlu0 %5553
  %v5555 = vcvt.f32.s32.to.zero.pseudo %v5551
  %v5556 = vcvt.f32.s32.to.zero.pseudo %v5554
  %vm5557 = vcmask 7168
  %5558 = vst.msk [vmem:[%s87] sm:$0xff] %vm5557, %v5555
  %5559 = vst.msk [vmem:[%s87 + $0x8] sm:$0xff] %vm5557, %v5556
  %v5560 = vld [vmem:[%s9] sm:$0xff]
  %v5561 = vld [vmem:[%s9 + $0x8] sm:$0xff]
  %5562 = vset.pattern.permute.xlu0 0
  %5563 = vperm.xlu0 %5562, %v5560
  %v5564 = vpop.permute.xlu0 %5563
  %5565 = vset.pattern.permute.xlu0 0
  %5566 = vperm.xlu0 %5565, %v5561
  %v5567 = vpop.permute.xlu0 %5566
  %vm5568 = vcmp.eq.s32.totalorder %v2100, %v5564
  %vm5569 = vcmp.eq.s32.totalorder %v2100, %v5567
  %v5570 = vsel %vm5568, 0.9, 0.007142857
  %v5571 = vsel %vm5569, 0.9, 0.007142857
  %vm5572 = vcmp.eq.s32.totalorder %v2100, 1
  %v5573 = vsel %vm5572, 0.0, %v5570
  %v5574 = vsel %vm5572, 0.0, %v5571
  %vm5575 = vcmp.eq.s32.totalorder %v5560, 1
  %vm5576 = vcmp.eq.s32.totalorder %v5561, 1
  %v5577 = vsel %vm5575, 1, 0
  %v5578 = vsel %vm5576, 1, 0
  %5579 = vset.pattern.permute.xlu0 0
  %5580 = vperm.xlu0 %5579, %v5577
  %v5581 = vpop.permute.xlu0 %5580
  %5582 = vset.pattern.permute.xlu0 0
  %5583 = vperm.xlu0 %5582, %v5578
  %v5584 = vpop.permute.xlu0 %5583
  %vm5585 = vcmp.eq.s32.totalorder %v5581, 1
  %vm5586 = vcmp.eq.s32.totalorder %v5584, 1
  %v5587 = vsel %vm5585, 0.0, %v5573
  %v5588 = vsel %vm5586, 0.0, %v5574
  %vm5589 = vcmp.gt.f32.partialorder %v5587, 0.0
  %vm5590 = vcmp.gt.f32.partialorder %v5588, 0.0
  %v5591 = vmax.f32 %v5587, 1e-38
  %v5592 = vmax.f32 %v5588, 1e-38
  %v5593 = vlog2.pop %v5591
  %v5594 = vmul.f32 %v5593, 0.6931472
  %v5595 = vlog2.pop %v5592
  %v5596 = vmul.f32 %v5595, 0.6931472
  %v5597 = vsub.f32 %v5594, %v5536
  %v5598 = vsub.f32 %v5596, %v5537
  %v5599 = vmul.f32 %v5587, %v5597
  %v5600 = vmul.f32 %v5588, %v5598
  %v5601 = vsel %vm5589, %v5599, 0.0
  %v5602 = vsel %vm5590, %v5600, 0.0
  %v5603 = vsel %vm790, %v5601, 0.0
  %5604 = vadd.xlane.f32.xlu0 %v5603
  %v5605 = vpop.xlane.xlu0 %5604
  %v5606 = vsel %vm790, %v5602, 0.0
  %5607 = vadd.xlane.f32.xlu0 %v5606
  %v5608 = vpop.xlane.xlu0 %5607
  %5609 = vst.msk [vmem:[%s89] sm:$0xff] %vm5557, %v5605
  %5610 = vst.msk [vmem:[%s89 + $0x8] sm:$0xff] %vm5557, %v5608
  // Predicated region
  $region174: #{_decode_core.1} parent=0 // pred_check
    _
  $region175: #{_decode_core.1} parent=0 // pred_check_branch
    %5612 = sbr.rel (0) target = $region177
  $region176: #{_decode_core.1} parent=0 // pred_region
    _
  $region177: #{_decode_core.1} parent=0 // pred_fallthru
    _
  // Predicated region
  $region178: #{_decode_core.1} parent=0 // pred_check
    _
  $region179: #{_decode_core.1} parent=0 // pred_check_branch
    %5614 = sbr.rel (0) target = $region181
  $region180: #{_decode_core.1} parent=0 // pred_region
    _
  $region181: #{_decode_core.1} parent=0 // pred_fallthru
    _
  // Predicated region
  $region182: #{_decode_core.1} parent=0 // pred_check
    _
  $region183: #{_decode_core.1} parent=0 // pred_check_branch
    %5616 = sbr.rel (0) target = $region185
  $region184: #{_decode_core.1} parent=0 // pred_region
    _
  $region185: #{_decode_core.1} parent=0 // pred_fallthru
    _
  // Predicated region
  $region186: #{_decode_core.1} parent=0 // pred_check
    _
  $region187: #{_decode_core.1} parent=0 // pred_check_branch
    %5618 = sbr.rel (0) target = $region189
  $region188: #{_decode_core.1} parent=0 // pred_region
    _
  $region189: #{_decode_core.1} parent=0 // pred_fallthru
    _

</llo_original>
